<compile_context>
chip_gen: v7x
topology: tpu7x:2x2x1
jax: 0.10.0
libtpu: 0.0.40
codegen_flags: <defaults>
</compile_context>

<pallas_src>
import functools
import math

import jax
import jax.numpy as jnp
from jax import lax
from jax.experimental import pallas as pl
from jax.experimental.pallas import tpu as pltpu


_ROW_CAP = 1024   # max matmul rows (incl. junk column) per M-tile


# ----------------------------------------------------------------------------
# XLA-side space-to-depth (one pad + transpose copy per layer).
#   z[n, a*Wa + b, (rp, cp, ci)] = xpad[n, 2a+rp, 2b+cp, ci],  xpad = pad(x, 1)
# Two extra all-zero image rows are appended at the bottom so the in-kernel
# phase windows (which run one row past the last valid output row) never read
# out of bounds.
# ----------------------------------------------------------------------------
def _space_to_depth(x_nhwc):
    N, H, W, C = x_nhwc.shape
    Ho, Wo = H // 2, W // 2
    Wa = Wo + 1
    xp = jnp.pad(x_nhwc, ((0, 0), (1, 3), (1, 1), (0, 0)))   # (N, 2*(Ho+2), 2*Wa, C)
    z = xp.reshape(N, Ho + 2, 2, Wa, 2, C).transpose(0, 1, 3, 2, 4, 5)
    return z.reshape(N, (Ho + 2) * Wa, 4 * C), Ho, Wo, Wa


def _pick_row_tile(Ho, Wa):
    """Conv-output rows (th) per M-tile; th*Wa is the matmul M dimension."""
    if Ho * Wa <= _ROW_CAP:
        return Ho
    best = None
    th = 8
    while th <= Ho:
        if Ho % th == 0 and th * Wa <= _ROW_CAP:
            best = th            # keep the largest multiple-of-8 divisor
        th += 8
    if best is None:
        best = 8 if Ho % 8 == 0 else Ho
    return best


def _phase_dot(z_ref, w_ref, s, tmw, Wa):
    """sum_p  z[s + off_p : s + off_p + tmw, :] @ w[p],  off = (0, 1, Wa, Wa+1).

    Row r = lh*Wa + wo of the result is output pixel (base+lh, wo); rows with
    wo == Wa-1 are junk (right-pad phantom column) and are handled by the
    caller.  All four slices are unit-stride windows of the VMEM z slab — no
    gather, no scratch copies; phase accumulation is 3 f32 VALU adds.
    """
    acc = jnp.dot(z_ref[0, pl.ds(s, tmw), :], w_ref[0],
                  preferred_element_type=jnp.float32)
    acc = acc + jnp.dot(z_ref[0, pl.ds(s + 1, tmw), :], w_ref[1],
                        preferred_element_type=jnp.float32)
    acc = acc + jnp.dot(z_ref[0, pl.ds(s + Wa, tmw), :], w_ref[2],
                        preferred_element_type=jnp.float32)
    acc = acc + jnp.dot(z_ref[0, pl.ds(s + Wa + 1, tmw), :], w_ref[3],
                        preferred_element_type=jnp.float32)
    return acc


# ----------------------------------------------------------------------------
# Kernel 1: fused Conv2d(k=4, s=2, p=1) + bias + Tanh
# ----------------------------------------------------------------------------
def _conv_tanh_kernel(z_ref, w_ref, b_ref, o_ref, *, Wa, th, n_m):
    mi = pl.program_id(1)
    base = 0 if n_m == 1 else mi * th
    tmw = th * Wa
    acc = _phase_dot(z_ref, w_ref, base * Wa, tmw, Wa)
    o_ref[0] = jnp.tanh(acc + b_ref[...]).astype(o_ref.dtype)   # VPU add + EUP tanh


# ----------------------------------------------------------------------------
# Kernel 2: last conv layer fused with Flatten + Linear(conv_out -> 1) + ReLU
# ----------------------------------------------------------------------------
def _conv_tanh_fc_relu_kernel(z_ref, w_ref, b_ref, fcw_ref, fcb_ref, o_ref,
                              fc_acc, *, Wa, th, n_m):
    mi = pl.program_id(1)
    base = 0 if n_m == 1 else mi * th
    tmw = th * Wa
    acc = _phase_dot(z_ref, w_ref, base * Wa, tmw, Wa)
    y = jnp.tanh(acc + b_ref[...])                     # (tmw, Cout) f32

    @pl.when(mi == 0)
    def _():
        fc_acc[...] = jnp.zeros_like(fc_acc)

    # Lane-resident partial: sublane reduce only.  Junk rows carry zero fc
    # weight, so they drop out here.  (The M axis is "arbitrary" => sequential
    # per core, which the accumulator relies on.)
    fc_acc[...] += jnp.sum(y * fcw_ref[...], axis=0, keepdims=True)

    @pl.when(mi == n_m - 1)
    def _():
        total = jnp.sum(fc_acc[...])                   # single cross-lane reduce
        o_ref[0] = jnp.maximum(total + fcb_ref[...], 0.0)


# ----------------------------------------------------------------------------
# Wrappers
# ----------------------------------------------------------------------------
def conv4x4_s2_tanh(x_nhwc, w4, b):
    """Fused Conv2d(k=4, s=2, p=1) + bias + Tanh.

    w4: (4, 4*Cin, Cout) bf16 (space-to-depth weight layout), b: (1, Cout) f32.
    Returns (N, Ho, Wa, Cout) bf16 where column Wa-1 is junk (caller drops it).
    """
    z, Ho, Wo, Wa = _space_to_depth(x_nhwc)
    N, HWp, Ck = z.shape
    Cout = w4.shape[-1]
    th = _pick_row_tile(Ho, Wa)
    assert Ho % th == 0
    n_m = Ho // th
    tmw = th * Wa

    out = pl.pallas_call(
        functools.partial(_conv_tanh_kernel, Wa=Wa, th=th, n_m=n_m),
        out_shape=jax.ShapeDtypeStruct((N, Ho * Wa, Cout), jnp.bfloat16),
        grid=(N, n_m),
        in_specs=[
            pl.BlockSpec((1, HWp, Ck), lambda n, mi: (n, 0, 0)),    # z slab / batch
            pl.BlockSpec((4, Ck, Cout), lambda n, mi: (0, 0, 0)),   # resident weights
            pl.BlockSpec((1, Cout), lambda n, mi: (0, 0)),          # resident bias
        ],
        out_specs=pl.BlockSpec((1, tmw, Cout), lambda n, mi: (n, mi, 0)),
        compiler_params=pltpu.CompilerParams(
            dimension_semantics=("parallel", "parallel")),
    )(z, w4, b)
    return out.reshape(N, Ho, Wa, Cout)


def conv4x4_s2_tanh_fc_relu(x_nhwc, w4, b, fc_w, fc_b):
    """Last conv layer fused with Flatten + Linear(conv_out->1) + ReLU.

    fc_w: (Ho*Wa, Cout) f32 in NHWC-flat order with zeros at the junk column;
    fc_b: (1, 128) f32 (scalar bias replicated across lanes).  Returns (N, 1).
    """
    z, Ho, Wo, Wa = _space_to_depth(x_nhwc)
    N, HWp, Ck = z.shape
    Cout = w4.shape[-1]
    th = _pick_row_tile(Ho, Wa)
    assert Ho % th == 0
    n_m = Ho // th
    tmw = th * Wa

    out = pl.pallas_call(
        functools.partial(_conv_tanh_fc_relu_kernel, Wa=Wa, th=th, n_m=n_m),
        out_shape=jax.ShapeDtypeStruct((N, 1, 128), jnp.float32),
        grid=(N, n_m),
        in_specs=[
            pl.BlockSpec((1, HWp, Ck), lambda n, mi: (n, 0, 0)),
            pl.BlockSpec((4, Ck, Cout), lambda n, mi: (0, 0, 0)),
            pl.BlockSpec((1, Cout), lambda n, mi: (0, 0)),
            pl.BlockSpec((tmw, Cout), lambda n, mi: (mi, 0)),       # fc weight tile
            pl.BlockSpec((1, 128), lambda n, mi: (0, 0)),           # fc bias
        ],
        out_specs=pl.BlockSpec((1, 1, 128), lambda n, mi: (n, 0, 0)),
        scratch_shapes=[pltpu.VMEM((1, Cout), jnp.float32)],        # lane-resident fc acc
        compiler_params=pltpu.CompilerParams(
            dimension_semantics=("parallel", "arbitrary")),         # mi carries fc_acc
    )(z, w4, b, fc_w, fc_b)
    return out[:, 0, :1]


# ----------------------------------------------------------------------------
# Parameters (synthetic, deterministic)
# ----------------------------------------------------------------------------
def init_params(input_shape, key):
    """input_shape = (Cin, H, W) (PyTorch convention).

    Conv weights are generated directly in the space-to-depth layout
    (4, 4*Cin, Cout) -- a fixed permutation of the standard (Cout, Cin, 4, 4)
    Conv2d weight (see _effective_conv_weight) -- so the module is exactly a
    Conv2d(k=4, s=2, p=1) stack with uniform init.  The fc weight is stored in
    NHWC-flat (spatial, channel) order (a row permutation of PyTorch's
    NCHW-flat Linear layout) and padded with a zero junk column.
    """
    cin, H, W = input_shape
    assert H % 16 == 0 and W % 16 == 0, "spatial dims must be divisible by 16"
    chans = [cin, 64, 128, 256, 512]
    conv_w, conv_b = [], []
    h, w = H, W
    for li in range(4):
        key, kw_, kb_ = jax.random.split(key, 3)
        c_in, c_out = chans[li], chans[li + 1]
        scale = 1.0 / math.sqrt(c_in * 16.0)
        w4 = jax.random.uniform(kw_, (4, 4 * c_in, c_out), jnp.float32,
                                minval=-scale, maxval=scale)
        b4 = jax.random.uniform(kb_, (1, c_out), jnp.float32,
                                minval=-scale, maxval=scale)
        conv_w.append(w4.astype(jnp.bfloat16))
        conv_b.append(b4)
        h, w = h // 2, w // 2
    conv_out = 512 * h * w
    key, kw_, kb_ = jax.random.split(key, 3)
    scale = 1.0 / math.sqrt(float(conv_out))
    fc_core = jax.random.uniform(kw_, (h, w, 512), jnp.float32,
                                 minval=-scale, maxval=scale)
    fc_w = jnp.pad(fc_core, ((0, 0), (0, 1), (0, 0))).reshape(h * (w + 1), 512)
    fc_b0 = jax.random.uniform(kb_, (), jnp.float32, minval=-scale, maxval=scale)
    fc_b = jnp.full((1, 128), fc_b0, jnp.float32)
    return {"conv_w": conv_w, "conv_b": conv_b,
            "fc_w": fc_w, "fc_w_core": fc_core, "fc_b": fc_b}


# ----------------------------------------------------------------------------
# Forward pass (Pallas) and pure-JAX reference
# ----------------------------------------------------------------------------
@jax.jit
def disc_forward(x_nchw, params):
    x = jnp.transpose(x_nchw, (0, 2, 3, 1)).astype(jnp.bfloat16)   # NCHW -> NHWC
    for li in range(3):
        y = conv4x4_s2_tanh(x, params["conv_w"][li], params["conv_b"][li])
        x = y[:, :, :-1, :]            # drop the junk (phantom right-pad) column
    return conv4x4_s2_tanh_fc_relu(x, params["conv_w"][3], params["conv_b"][3],
                                   params["fc_w"], params["fc_b"])


def _effective_conv_weight(w4):
    """(4, 4*Cin, Cout) space-to-depth weight -> HWIO (4, 4, Cin, Cout)."""
    _, ck, cout = w4.shape
    cin = ck // 4
    w = w4.astype(jnp.float32).reshape(2, 2, 2, 2, cin, cout)  # (da,db,rp,cp,ci,co)
    return w.transpose(0, 2, 1, 3, 4, 5).reshape(4, 4, cin, cout)


def disc_forward_reference(x_nchw, params):
    """Pure-JAX f32 reference (lax.conv_general_dilated) for validation."""
    x = jnp.transpose(x_nchw, (0, 2, 3, 1)).astype(jnp.bfloat16).astype(jnp.float32)
    for li in range(4):
        w = _effective_conv_weight(params["conv_w"][li])
        y = lax.conv_general_dilated(
            x, w, window_strides=(2, 2), padding=((1, 1), (1, 1)),
            dimension_numbers=("NHWC", "HWIO", "NHWC"))
        x = jnp.tanh(y + params["conv_b"][li].reshape(1, 1, 1, -1))
    out = jnp.einsum("nhwc,hwc->n", x, params["fc_w_core"]) + params["fc_b"][0, 0]
    return jnp.maximum(out, 0.0)[:, None]


# ----------------------------------------------------------------------------
if __name__ == "__main__":
    key = jax.random.PRNGKey(0)
    key, kx, kp = jax.random.split(key, 3)

    input_shape = (4, 16, 16)                 # (Cin, H, W) -> conv_out = 512*1*1
    batch = 2
    x = jax.random.normal(kx, (batch,) + input_shape, dtype=jnp.float32)
    params = init_params(input_shape, kp)

    out = jax.block_until_ready(disc_forward(x, params))
    assert out.shape == (batch, 1), out.shape
    assert bool(jnp.all(out >= 0.0))          # ReLU output is non-negative

    ref = jax.block_until_ready(disc_forward_reference(x, params))
    assert bool(jnp.allclose(out, ref, atol=7.5e-2, rtol=7.5e-2)), (out, ref)

    print("KERNEL_OK")
</pallas_src>

<mosaic_0001>
module attributes {stable_mosaic.version = 11 : i64} {
  func.func @_conv_tanh_kernel(%arg0: i32, %arg1: i32, %arg2: memref<1x90x16xbf16, #tpu.memory_space<vmem>>, %arg3: memref<4x16x64xbf16, #tpu.memory_space<vmem>>, %arg4: memref<1x64xf32, #tpu.memory_space<vmem>>, %arg5: memref<1x72x64xbf16, #tpu.memory_space<vmem>>) attributes {dimension_semantics = [#tpu.dimension_semantics<parallel>, #tpu.dimension_semantics<parallel>], iteration_bounds = array<i64: 2, 1>, scalar_prefetch = 0 : i64, scratch_operands = 0 : i64, tpu.core_type = #tpu.core_type<tc>, window_params = [{transform_indices = @transform_0, window_bounds = array<i64: 1, 90, 16>}, {pipeline_mode = #tpu.pipeline_mode<synchronous>, transform_indices = @transform_1, window_bounds = array<i64: 4, 16, 64>}, {pipeline_mode = #tpu.pipeline_mode<synchronous>, transform_indices = @transform_2, window_bounds = array<i64: 1, 64>}, {transform_indices = @transform_3, window_bounds = array<i64: 1, 72, 64>}]} {
    %c0 = arith.constant 0 : index
    %c0_0 = arith.constant 0 : index
    %c0_1 = arith.constant 0 : index
    %0 = vector.load %arg2[%c0, %c0_0, %c0_1] : memref<1x90x16xbf16, #tpu.memory_space<vmem>>, vector<1x72x16xbf16>
    %1 = vector.shape_cast %0 : vector<1x72x16xbf16> to vector<72x16xbf16>
    %c0_2 = arith.constant 0 : index
    %c0_3 = arith.constant 0 : index
    %c0_4 = arith.constant 0 : index
    %2 = vector.load %arg3[%c0_2, %c0_3, %c0_4] : memref<4x16x64xbf16, #tpu.memory_space<vmem>>, vector<1x16x64xbf16>
    %3 = vector.shape_cast %2 : vector<1x16x64xbf16> to vector<16x64xbf16>
    %cst = arith.constant dense<0.000000e+00> : vector<72x64xf32>
    %4 = tpu.matmul %1, %3, %cst {dimension_numbers = #tpu.dot_dimension_numbers<[1], [0], [0], [1], [0, 0, 1, 1], [], []>} : vector<72x16xbf16>, vector<16x64xbf16>, vector<72x64xf32> -> vector<72x64xf32>
    %c0_5 = arith.constant 0 : index
    %c1 = arith.constant 1 : index
    %c0_6 = arith.constant 0 : index
    %5 = vector.load %arg2[%c0_5, %c1, %c0_6] : memref<1x90x16xbf16, #tpu.memory_space<vmem>>, vector<1x72x16xbf16>
    %6 = vector.shape_cast %5 : vector<1x72x16xbf16> to vector<72x16xbf16>
    %c1_7 = arith.constant 1 : index
    %c0_8 = arith.constant 0 : index
    %c0_9 = arith.constant 0 : index
    %7 = vector.load %arg3[%c1_7, %c0_8, %c0_9] : memref<4x16x64xbf16, #tpu.memory_space<vmem>>, vector<1x16x64xbf16>
    %8 = vector.shape_cast %7 : vector<1x16x64xbf16> to vector<16x64xbf16>
    %cst_10 = arith.constant dense<0.000000e+00> : vector<72x64xf32>
    %9 = tpu.matmul %6, %8, %cst_10 {dimension_numbers = #tpu.dot_dimension_numbers<[1], [0], [0], [1], [0, 0, 1, 1], [], []>} : vector<72x16xbf16>, vector<16x64xbf16>, vector<72x64xf32> -> vector<72x64xf32>
    %10 = arith.addf %4, %9 : vector<72x64xf32>
    %c0_11 = arith.constant 0 : index
    %c9 = arith.constant 9 : index
    %c0_12 = arith.constant 0 : index
    %11 = vector.load %arg2[%c0_11, %c9, %c0_12] : memref<1x90x16xbf16, #tpu.memory_space<vmem>>, vector<1x72x16xbf16>
    %12 = vector.shape_cast %11 : vector<1x72x16xbf16> to vector<72x16xbf16>
    %c2 = arith.constant 2 : index
    %c0_13 = arith.constant 0 : index
    %c0_14 = arith.constant 0 : index
    %13 = vector.load %arg3[%c2, %c0_13, %c0_14] : memref<4x16x64xbf16, #tpu.memory_space<vmem>>, vector<1x16x64xbf16>
    %14 = vector.shape_cast %13 : vector<1x16x64xbf16> to vector<16x64xbf16>
    %cst_15 = arith.constant dense<0.000000e+00> : vector<72x64xf32>
    %15 = tpu.matmul %12, %14, %cst_15 {dimension_numbers = #tpu.dot_dimension_numbers<[1], [0], [0], [1], [0, 0, 1, 1], [], []>} : vector<72x16xbf16>, vector<16x64xbf16>, vector<72x64xf32> -> vector<72x64xf32>
    %16 = arith.addf %10, %15 : vector<72x64xf32>
    %c0_16 = arith.constant 0 : index
    %c10 = arith.constant 10 : index
    %c0_17 = arith.constant 0 : index
    %17 = vector.load %arg2[%c0_16, %c10, %c0_17] : memref<1x90x16xbf16, #tpu.memory_space<vmem>>, vector<1x72x16xbf16>
    %18 = vector.shape_cast %17 : vector<1x72x16xbf16> to vector<72x16xbf16>
    %c3 = arith.constant 3 : index
    %c0_18 = arith.constant 0 : index
    %c0_19 = arith.constant 0 : index
    %19 = vector.load %arg3[%c3, %c0_18, %c0_19] : memref<4x16x64xbf16, #tpu.memory_space<vmem>>, vector<1x16x64xbf16>
    %20 = vector.shape_cast %19 : vector<1x16x64xbf16> to vector<16x64xbf16>
    %cst_20 = arith.constant dense<0.000000e+00> : vector<72x64xf32>
    %21 = tpu.matmul %18, %20, %cst_20 {dimension_numbers = #tpu.dot_dimension_numbers<[1], [0], [0], [1], [0, 0, 1, 1], [], []>} : vector<72x16xbf16>, vector<16x64xbf16>, vector<72x64xf32> -> vector<72x64xf32>
    %22 = arith.addf %16, %21 : vector<72x64xf32>
    %c0_21 = arith.constant 0 : index
    %c0_22 = arith.constant 0 : index
    %23 = vector.load %arg4[%c0_21, %c0_22] : memref<1x64xf32, #tpu.memory_space<vmem>>, vector<1x64xf32>
    %24 = vector.broadcast %23 : vector<1x64xf32> to vector<72x64xf32>
    %25 = arith.addf %22, %24 : vector<72x64xf32>
    %26 = math.tanh %25 : vector<72x64xf32>
    %27 = arith.truncf %26 : vector<72x64xf32> to vector<72x64xbf16>
    %c0_23 = arith.constant 0 : index
    %c0_24 = arith.constant 0 : index
    %c0_25 = arith.constant 0 : index
    %28 = vector.load %arg5[%c0_23, %c0_24, %c0_25] : memref<1x72x64xbf16, #tpu.memory_space<vmem>>, vector<1x72x64xbf16>
    %29 = vector.shape_cast %28 : vector<1x72x64xbf16> to vector<72x64xbf16>
    %30 = vector.shape_cast %27 : vector<72x64xbf16> to vector<1x72x64xbf16>
    tpu.vector_store %arg5[%c0_23, %c0_24, %c0_25], %30 {strides = array<i32>} : memref<1x72x64xbf16, #tpu.memory_space<vmem>>, vector<1x72x64xbf16>,
    return
  }
  func.func @transform_0(%arg0: i32, %arg1: i32) -> (i32, i32, i32) {
    %c0_i32 = arith.constant 0 : i32
    %c0_i32_0 = arith.constant 0 : i32
    %c0_i32_1 = arith.constant 0 : i32
    return %arg0, %c0_i32, %c0_i32_0 : i32, i32, i32
  }
  func.func @transform_1(%arg0: i32, %arg1: i32) -> (i32, i32, i32) {
    %c0_i32 = arith.constant 0 : i32
    %c0_i32_0 = arith.constant 0 : i32
    %c0_i32_1 = arith.constant 0 : i32
    %c0_i32_2 = arith.constant 0 : i32
    return %c0_i32, %c0_i32_0, %c0_i32_1 : i32, i32, i32
  }
  func.func @transform_2(%arg0: i32, %arg1: i32) -> (i32, i32) {
    %c0_i32 = arith.constant 0 : i32
    %c0_i32_0 = arith.constant 0 : i32
    %c0_i32_1 = arith.constant 0 : i32
    return %c0_i32, %c0_i32_0 : i32, i32
  }
  func.func @transform_3(%arg0: i32, %arg1: i32) -> (i32, i32, i32) {
    %c0_i32 = arith.constant 0 : i32
    %c0_i32_0 = arith.constant 0 : i32
    return %arg0, %arg1, %c0_i32 : i32, i32, i32
  }
}

module attributes {stable_mosaic.version = 11 : i64} {
  func.func @_conv_tanh_kernel(%arg0: i32, %arg1: i32, %arg2: memref<1x30x256xbf16, #tpu.memory_space<vmem>>, %arg3: memref<4x256x128xbf16, #tpu.memory_space<vmem>>, %arg4: memref<1x128xf32, #tpu.memory_space<vmem>>, %arg5: memref<1x20x128xbf16, #tpu.memory_space<vmem>>) attributes {dimension_semantics = [#tpu.dimension_semantics<parallel>, #tpu.dimension_semantics<parallel>], iteration_bounds = array<i64: 2, 1>, scalar_prefetch = 0 : i64, scratch_operands = 0 : i64, tpu.core_type = #tpu.core_type<tc>, window_params = [{transform_indices = @transform_0, window_bounds = array<i64: 1, 30, 256>}, {pipeline_mode = #tpu.pipeline_mode<synchronous>, transform_indices = @transform_1, window_bounds = array<i64: 4, 256, 128>}, {pipeline_mode = #tpu.pipeline_mode<synchronous>, transform_indices = @transform_2, window_bounds = array<i64: 1, 128>}, {transform_indices = @transform_3, window_bounds = array<i64: 1, 20, 128>}]} {
    %c0 = arith.constant 0 : index
    %c0_0 = arith.constant 0 : index
    %c0_1 = arith.constant 0 : index
    %0 = vector.load %arg2[%c0, %c0_0, %c0_1] : memref<1x30x256xbf16, #tpu.memory_space<vmem>>, vector<1x20x256xbf16>
    %1 = vector.shape_cast %0 : vector<1x20x256xbf16> to vector<20x256xbf16>
    %c0_2 = arith.constant 0 : index
    %c0_3 = arith.constant 0 : index
    %c0_4 = arith.constant 0 : index
    %2 = vector.load %arg3[%c0_2, %c0_3, %c0_4] : memref<4x256x128xbf16, #tpu.memory_space<vmem>>, vector<1x256x128xbf16>
    %3 = vector.shape_cast %2 : vector<1x256x128xbf16> to vector<256x128xbf16>
    %cst = arith.constant dense<0.000000e+00> : vector<20x128xf32>
    %4 = tpu.matmul %1, %3, %cst {dimension_numbers = #tpu.dot_dimension_numbers<[1], [0], [0], [1], [0, 0, 1, 1], [], []>} : vector<20x256xbf16>, vector<256x128xbf16>, vector<20x128xf32> -> vector<20x128xf32>
    %c0_5 = arith.constant 0 : index
    %c1 = arith.constant 1 : index
    %c0_6 = arith.constant 0 : index
    %5 = vector.load %arg2[%c0_5, %c1, %c0_6] : memref<1x30x256xbf16, #tpu.memory_space<vmem>>, vector<1x20x256xbf16>
    %6 = vector.shape_cast %5 : vector<1x20x256xbf16> to vector<20x256xbf16>
    %c1_7 = arith.constant 1 : index
    %c0_8 = arith.constant 0 : index
    %c0_9 = arith.constant 0 : index
    %7 = vector.load %arg3[%c1_7, %c0_8, %c0_9] : memref<4x256x128xbf16, #tpu.memory_space<vmem>>, vector<1x256x128xbf16>
    %8 = vector.shape_cast %7 : vector<1x256x128xbf16> to vector<256x128xbf16>
    %cst_10 = arith.constant dense<0.000000e+00> : vector<20x128xf32>
    %9 = tpu.matmul %6, %8, %cst_10 {dimension_numbers = #tpu.dot_dimension_numbers<[1], [0], [0], [1], [0, 0, 1, 1], [], []>} : vector<20x256xbf16>, vector<256x128xbf16>, vector<20x128xf32> -> vector<20x128xf32>
    %10 = arith.addf %4, %9 : vector<20x128xf32>
    %c0_11 = arith.constant 0 : index
    %c5 = arith.constant 5 : index
    %c0_12 = arith.constant 0 : index
    %11 = vector.load %arg2[%c0_11, %c5, %c0_12] : memref<1x30x256xbf16, #tpu.memory_space<vmem>>, vector<1x20x256xbf16>
    %12 = vector.shape_cast %11 : vector<1x20x256xbf16> to vector<20x256xbf16>
    %c2 = arith.constant 2 : index
    %c0_13 = arith.constant 0 : index
    %c0_14 = arith.constant 0 : index
    %13 = vector.load %arg3[%c2, %c0_13, %c0_14] : memref<4x256x128xbf16, #tpu.memory_space<vmem>>, vector<1x256x128xbf16>
    %14 = vector.shape_cast %13 : vector<1x256x128xbf16> to vector<256x128xbf16>
    %cst_15 = arith.constant dense<0.000000e+00> : vector<20x128xf32>
    %15 = tpu.matmul %12, %14, %cst_15 {dimension_numbers = #tpu.dot_dimension_numbers<[1], [0], [0], [1], [0, 0, 1, 1], [], []>} : vector<20x256xbf16>, vector<256x128xbf16>, vector<20x128xf32> -> vector<20x128xf32>
    %16 = arith.addf %10, %15 : vector<20x128xf32>
    %c0_16 = arith.constant 0 : index
    %c6 = arith.constant 6 : index
    %c0_17 = arith.constant 0 : index
    %17 = vector.load %arg2[%c0_16, %c6, %c0_17] : memref<1x30x256xbf16, #tpu.memory_space<vmem>>, vector<1x20x256xbf16>
    %18 = vector.shape_cast %17 : vector<1x20x256xbf16> to vector<20x256xbf16>
    %c3 = arith.constant 3 : index
    %c0_18 = arith.constant 0 : index
    %c0_19 = arith.constant 0 : index
    %19 = vector.load %arg3[%c3, %c0_18, %c0_19] : memref<4x256x128xbf16, #tpu.memory_space<vmem>>, vector<1x256x128xbf16>
    %20 = vector.shape_cast %19 : vector<1x256x128xbf16> to vector<256x128xbf16>
    %cst_20 = arith.constant dense<0.000000e+00> : vector<20x128xf32>
    %21 = tpu.matmul %18, %20, %cst_20 {dimension_numbers = #tpu.dot_dimension_numbers<[1], [0], [0], [1], [0, 0, 1, 1], [], []>} : vector<20x256xbf16>, vector<256x128xbf16>, vector<20x128xf32> -> vector<20x128xf32>
    %22 = arith.addf %16, %21 : vector<20x128xf32>
    %c0_21 = arith.constant 0 : index
    %c0_22 = arith.constant 0 : index
    %23 = vector.load %arg4[%c0_21, %c0_22] : memref<1x128xf32, #tpu.memory_space<vmem>>, vector<1x128xf32>
    %24 = vector.broadcast %23 : vector<1x128xf32> to vector<20x128xf32>
    %25 = arith.addf %22, %24 : vector<20x128xf32>
    %26 = math.tanh %25 : vector<20x128xf32>
    %27 = arith.truncf %26 : vector<20x128xf32> to vector<20x128xbf16>
    %c0_23 = arith.constant 0 : index
    %c0_24 = arith.constant 0 : index
    %c0_25 = arith.constant 0 : index
    %28 = vector.load %arg5[%c0_23, %c0_24, %c0_25] : memref<1x20x128xbf16, #tpu.memory_space<vmem>>, vector<1x20x128xbf16>
    %29 = vector.shape_cast %28 : vector<1x20x128xbf16> to vector<20x128xbf16>
    %30 = vector.shape_cast %27 : vector<20x128xbf16> to vector<1x20x128xbf16>
    tpu.vector_store %arg5[%c0_23, %c0_24, %c0_25], %30 {strides = array<i32>} : memref<1x20x128xbf16, #tpu.memory_space<vmem>>, vector<1x20x128xbf16>,
    return
  }
  func.func @transform_0(%arg0: i32, %arg1: i32) -> (i32, i32, i32) {
    %c0_i32 = arith.constant 0 : i32
    %c0_i32_0 = arith.constant 0 : i32
    %c0_i32_1 = arith.constant 0 : i32
    return %arg0, %c0_i32, %c0_i32_0 : i32, i32, i32
  }
  func.func @transform_1(%arg0: i32, %arg1: i32) -> (i32, i32, i32) {
    %c0_i32 = arith.constant 0 : i32
    %c0_i32_0 = arith.constant 0 : i32
    %c0_i32_1 = arith.constant 0 : i32
    %c0_i32_2 = arith.constant 0 : i32
    return %c0_i32, %c0_i32_0, %c0_i32_1 : i32, i32, i32
  }
  func.func @transform_2(%arg0: i32, %arg1: i32) -> (i32, i32) {
    %c0_i32 = arith.constant 0 : i32
    %c0_i32_0 = arith.constant 0 : i32
    %c0_i32_1 = arith.constant 0 : i32
    return %c0_i32, %c0_i32_0 : i32, i32
  }
  func.func @transform_3(%arg0: i32, %arg1: i32) -> (i32, i32, i32) {
    %c0_i32 = arith.constant 0 : i32
    %c0_i32_0 = arith.constant 0 : i32
    return %arg0, %arg1, %c0_i32 : i32, i32, i32
  }
}

module attributes {stable_mosaic.version = 11 : i64} {
  func.func @_conv_tanh_kernel(%arg0: i32, %arg1: i32, %arg2: memref<1x12x512xbf16, #tpu.memory_space<vmem>>, %arg3: memref<4x512x256xbf16, #tpu.memory_space<vmem>>, %arg4: memref<1x256xf32, #tpu.memory_space<vmem>>, %arg5: memref<1x6x256xbf16, #tpu.memory_space<vmem>>) attributes {dimension_semantics = [#tpu.dimension_semantics<parallel>, #tpu.dimension_semantics<parallel>], iteration_bounds = array<i64: 2, 1>, scalar_prefetch = 0 : i64, scratch_operands = 0 : i64, tpu.core_type = #tpu.core_type<tc>, window_params = [{transform_indices = @transform_0, window_bounds = array<i64: 1, 12, 512>}, {pipeline_mode = #tpu.pipeline_mode<synchronous>, transform_indices = @transform_1, window_bounds = array<i64: 4, 512, 256>}, {pipeline_mode = #tpu.pipeline_mode<synchronous>, transform_indices = @transform_2, window_bounds = array<i64: 1, 256>}, {transform_indices = @transform_3, window_bounds = array<i64: 1, 6, 256>}]} {
    %c0 = arith.constant 0 : index
    %c0_0 = arith.constant 0 : index
    %c0_1 = arith.constant 0 : index
    %0 = vector.load %arg2[%c0, %c0_0, %c0_1] : memref<1x12x512xbf16, #tpu.memory_space<vmem>>, vector<1x6x512xbf16>
    %1 = vector.shape_cast %0 : vector<1x6x512xbf16> to vector<6x512xbf16>
    %c0_2 = arith.constant 0 : index
    %c0_3 = arith.constant 0 : index
    %c0_4 = arith.constant 0 : index
    %2 = vector.load %arg3[%c0_2, %c0_3, %c0_4] : memref<4x512x256xbf16, #tpu.memory_space<vmem>>, vector<1x512x256xbf16>
    %3 = vector.shape_cast %2 : vector<1x512x256xbf16> to vector<512x256xbf16>
    %cst = arith.constant dense<0.000000e+00> : vector<6x256xf32>
    %4 = tpu.matmul %1, %3, %cst {dimension_numbers = #tpu.dot_dimension_numbers<[1], [0], [0], [1], [0, 0, 1, 1], [], []>} : vector<6x512xbf16>, vector<512x256xbf16>, vector<6x256xf32> -> vector<6x256xf32>
    %c0_5 = arith.constant 0 : index
    %c1 = arith.constant 1 : index
    %c0_6 = arith.constant 0 : index
    %5 = vector.load %arg2[%c0_5, %c1, %c0_6] : memref<1x12x512xbf16, #tpu.memory_space<vmem>>, vector<1x6x512xbf16>
    %6 = vector.shape_cast %5 : vector<1x6x512xbf16> to vector<6x512xbf16>
    %c1_7 = arith.constant 1 : index
    %c0_8 = arith.constant 0 : index
    %c0_9 = arith.constant 0 : index
    %7 = vector.load %arg3[%c1_7, %c0_8, %c0_9] : memref<4x512x256xbf16, #tpu.memory_space<vmem>>, vector<1x512x256xbf16>
    %8 = vector.shape_cast %7 : vector<1x512x256xbf16> to vector<512x256xbf16>
    %cst_10 = arith.constant dense<0.000000e+00> : vector<6x256xf32>
    %9 = tpu.matmul %6, %8, %cst_10 {dimension_numbers = #tpu.dot_dimension_numbers<[1], [0], [0], [1], [0, 0, 1, 1], [], []>} : vector<6x512xbf16>, vector<512x256xbf16>, vector<6x256xf32> -> vector<6x256xf32>
    %10 = arith.addf %4, %9 : vector<6x256xf32>
    %c0_11 = arith.constant 0 : index
    %c3 = arith.constant 3 : index
    %c0_12 = arith.constant 0 : index
    %11 = vector.load %arg2[%c0_11, %c3, %c0_12] : memref<1x12x512xbf16, #tpu.memory_space<vmem>>, vector<1x6x512xbf16>
    %12 = vector.shape_cast %11 : vector<1x6x512xbf16> to vector<6x512xbf16>
    %c2 = arith.constant 2 : index
    %c0_13 = arith.constant 0 : index
    %c0_14 = arith.constant 0 : index
    %13 = vector.load %arg3[%c2, %c0_13, %c0_14] : memref<4x512x256xbf16, #tpu.memory_space<vmem>>, vector<1x512x256xbf16>
    %14 = vector.shape_cast %13 : vector<1x512x256xbf16> to vector<512x256xbf16>
    %cst_15 = arith.constant dense<0.000000e+00> : vector<6x256xf32>
    %15 = tpu.matmul %12, %14, %cst_15 {dimension_numbers = #tpu.dot_dimension_numbers<[1], [0], [0], [1], [0, 0, 1, 1], [], []>} : vector<6x512xbf16>, vector<512x256xbf16>, vector<6x256xf32> -> vector<6x256xf32>
    %16 = arith.addf %10, %15 : vector<6x256xf32>
    %c0_16 = arith.constant 0 : index
    %c4 = arith.constant 4 : index
    %c0_17 = arith.constant 0 : index
    %17 = vector.load %arg2[%c0_16, %c4, %c0_17] : memref<1x12x512xbf16, #tpu.memory_space<vmem>>, vector<1x6x512xbf16>
    %18 = vector.shape_cast %17 : vector<1x6x512xbf16> to vector<6x512xbf16>
    %c3_18 = arith.constant 3 : index
    %c0_19 = arith.constant 0 : index
    %c0_20 = arith.constant 0 : index
    %19 = vector.load %arg3[%c3_18, %c0_19, %c0_20] : memref<4x512x256xbf16, #tpu.memory_space<vmem>>, vector<1x512x256xbf16>
    %20 = vector.shape_cast %19 : vector<1x512x256xbf16> to vector<512x256xbf16>
    %cst_21 = arith.constant dense<0.000000e+00> : vector<6x256xf32>
    %21 = tpu.matmul %18, %20, %cst_21 {dimension_numbers = #tpu.dot_dimension_numbers<[1], [0], [0], [1], [0, 0, 1, 1], [], []>} : vector<6x512xbf16>, vector<512x256xbf16>, vector<6x256xf32> -> vector<6x256xf32>
    %22 = arith.addf %16, %21 : vector<6x256xf32>
    %c0_22 = arith.constant 0 : index
    %c0_23 = arith.constant 0 : index
    %23 = vector.load %arg4[%c0_22, %c0_23] : memref<1x256xf32, #tpu.memory_space<vmem>>, vector<1x256xf32>
    %24 = vector.broadcast %23 : vector<1x256xf32> to vector<6x256xf32>
    %25 = arith.addf %22, %24 : vector<6x256xf32>
    %26 = math.tanh %25 : vector<6x256xf32>
    %27 = arith.truncf %26 : vector<6x256xf32> to vector<6x256xbf16>
    %c0_24 = arith.constant 0 : index
    %c0_25 = arith.constant 0 : index
    %c0_26 = arith.constant 0 : index
    %28 = vector.load %arg5[%c0_24, %c0_25, %c0_26] : memref<1x6x256xbf16, #tpu.memory_space<vmem>>, vector<1x6x256xbf16>
    %29 = vector.shape_cast %28 : vector<1x6x256xbf16> to vector<6x256xbf16>
    %30 = vector.shape_cast %27 : vector<6x256xbf16> to vector<1x6x256xbf16>
    tpu.vector_store %arg5[%c0_24, %c0_25, %c0_26], %30 {strides = array<i32>} : memref<1x6x256xbf16, #tpu.memory_space<vmem>>, vector<1x6x256xbf16>,
    return
  }
  func.func @transform_0(%arg0: i32, %arg1: i32) -> (i32, i32, i32) {
    %c0_i32 = arith.constant 0 : i32
    %c0_i32_0 = arith.constant 0 : i32
    %c0_i32_1 = arith.constant 0 : i32
    return %arg0, %c0_i32, %c0_i32_0 : i32, i32, i32
  }
  func.func @transform_1(%arg0: i32, %arg1: i32) -> (i32, i32, i32) {
    %c0_i32 = arith.constant 0 : i32
    %c0_i32_0 = arith.constant 0 : i32
    %c0_i32_1 = arith.constant 0 : i32
    %c0_i32_2 = arith.constant 0 : i32
    return %c0_i32, %c0_i32_0, %c0_i32_1 : i32, i32, i32
  }
  func.func @transform_2(%arg0: i32, %arg1: i32) -> (i32, i32) {
    %c0_i32 = arith.constant 0 : i32
    %c0_i32_0 = arith.constant 0 : i32
    %c0_i32_1 = arith.constant 0 : i32
    return %c0_i32, %c0_i32_0 : i32, i32
  }
  func.func @transform_3(%arg0: i32, %arg1: i32) -> (i32, i32, i32) {
    %c0_i32 = arith.constant 0 : i32
    %c0_i32_0 = arith.constant 0 : i32
    return %arg0, %arg1, %c0_i32 : i32, i32, i32
  }
}

module attributes {stable_mosaic.version = 11 : i64} {
  func.func @_conv_tanh_fc_relu_kernel(%arg0: i32, %arg1: i32, %arg2: memref<1x6x1024xbf16, #tpu.memory_space<vmem>>, %arg3: memref<4x1024x512xbf16, #tpu.memory_space<vmem>>, %arg4: memref<1x512xf32, #tpu.memory_space<vmem>>, %arg5: memref<2x512xf32, #tpu.memory_space<vmem>>, %arg6: memref<1x128xf32, #tpu.memory_space<vmem>>, %arg7: memref<1x1x128xf32, #tpu.memory_space<vmem>>, %arg8: memref<1x512xf32, #tpu.memory_space<vmem>>) attributes {dimension_semantics = [#tpu.dimension_semantics<parallel>, #tpu.dimension_semantics<arbitrary>], iteration_bounds = array<i64: 2, 1>, scalar_prefetch = 0 : i64, scratch_operands = 1 : i64, tpu.core_type = #tpu.core_type<tc>, window_params = [{transform_indices = @transform_0, window_bounds = array<i64: 1, 6, 1024>}, {pipeline_mode = #tpu.pipeline_mode<synchronous>, transform_indices = @transform_1, window_bounds = array<i64: 4, 1024, 512>}, {pipeline_mode = #tpu.pipeline_mode<synchronous>, transform_indices = @transform_2, window_bounds = array<i64: 1, 512>}, {transform_indices = @transform_3, window_bounds = array<i64: 2, 512>}, {pipeline_mode = #tpu.pipeline_mode<synchronous>, transform_indices = @transform_4, window_bounds = array<i64: 1, 128>}, {transform_indices = @transform_5, window_bounds = array<i64: 1, 1, 128>}]} {
    %c0 = arith.constant 0 : index
    %c0_0 = arith.constant 0 : index
    %c0_1 = arith.constant 0 : index
    %0 = vector.load %arg2[%c0, %c0_0, %c0_1] : memref<1x6x1024xbf16, #tpu.memory_space<vmem>>, vector<1x2x1024xbf16>
    %1 = vector.shape_cast %0 : vector<1x2x1024xbf16> to vector<2x1024xbf16>
    %c0_2 = arith.constant 0 : index
    %c0_3 = arith.constant 0 : index
    %c0_4 = arith.constant 0 : index
    %2 = vector.load %arg3[%c0_2, %c0_3, %c0_4] : memref<4x1024x512xbf16, #tpu.memory_space<vmem>>, vector<1x1024x512xbf16>
    %3 = vector.shape_cast %2 : vector<1x1024x512xbf16> to vector<1024x512xbf16>
    %cst = arith.constant dense<0.000000e+00> : vector<2x512xf32>
    %4 = tpu.matmul %1, %3, %cst {dimension_numbers = #tpu.dot_dimension_numbers<[1], [0], [0], [1], [0, 0, 1, 1], [], []>} : vector<2x1024xbf16>, vector<1024x512xbf16>, vector<2x512xf32> -> vector<2x512xf32>
    %c0_5 = arith.constant 0 : index
    %c1 = arith.constant 1 : index
    %c0_6 = arith.constant 0 : index
    %5 = vector.load %arg2[%c0_5, %c1, %c0_6] : memref<1x6x1024xbf16, #tpu.memory_space<vmem>>, vector<1x2x1024xbf16>
    %6 = vector.shape_cast %5 : vector<1x2x1024xbf16> to vector<2x1024xbf16>
    %c1_7 = arith.constant 1 : index
    %c0_8 = arith.constant 0 : index
    %c0_9 = arith.constant 0 : index
    %7 = vector.load %arg3[%c1_7, %c0_8, %c0_9] : memref<4x1024x512xbf16, #tpu.memory_space<vmem>>, vector<1x1024x512xbf16>
    %8 = vector.shape_cast %7 : vector<1x1024x512xbf16> to vector<1024x512xbf16>
    %cst_10 = arith.constant dense<0.000000e+00> : vector<2x512xf32>
    %9 = tpu.matmul %6, %8, %cst_10 {dimension_numbers = #tpu.dot_dimension_numbers<[1], [0], [0], [1], [0, 0, 1, 1], [], []>} : vector<2x1024xbf16>, vector<1024x512xbf16>, vector<2x512xf32> -> vector<2x512xf32>
    %10 = arith.addf %4, %9 : vector<2x512xf32>
    %c0_11 = arith.constant 0 : index
    %c2 = arith.constant 2 : index
    %c0_12 = arith.constant 0 : index
    %11 = vector.load %arg2[%c0_11, %c2, %c0_12] : memref<1x6x1024xbf16, #tpu.memory_space<vmem>>, vector<1x2x1024xbf16>
    %12 = vector.shape_cast %11 : vector<1x2x1024xbf16> to vector<2x1024xbf16>
    %c2_13 = arith.constant 2 : index
    %c0_14 = arith.constant 0 : index
    %c0_15 = arith.constant 0 : index
    %13 = vector.load %arg3[%c2_13, %c0_14, %c0_15] : memref<4x1024x512xbf16, #tpu.memory_space<vmem>>, vector<1x1024x512xbf16>
    %14 = vector.shape_cast %13 : vector<1x1024x512xbf16> to vector<1024x512xbf16>
    %cst_16 = arith.constant dense<0.000000e+00> : vector<2x512xf32>
    %15 = tpu.matmul %12, %14, %cst_16 {dimension_numbers = #tpu.dot_dimension_numbers<[1], [0], [0], [1], [0, 0, 1, 1], [], []>} : vector<2x1024xbf16>, vector<1024x512xbf16>, vector<2x512xf32> -> vector<2x512xf32>
    %16 = arith.addf %10, %15 : vector<2x512xf32>
    %c0_17 = arith.constant 0 : index
    %c3 = arith.constant 3 : index
    %c0_18 = arith.constant 0 : index
    %17 = vector.load %arg2[%c0_17, %c3, %c0_18] : memref<1x6x1024xbf16, #tpu.memory_space<vmem>>, vector<1x2x1024xbf16>
    %18 = vector.shape_cast %17 : vector<1x2x1024xbf16> to vector<2x1024xbf16>
    %c3_19 = arith.constant 3 : index
    %c0_20 = arith.constant 0 : index
    %c0_21 = arith.constant 0 : index
    %19 = vector.load %arg3[%c3_19, %c0_20, %c0_21] : memref<4x1024x512xbf16, #tpu.memory_space<vmem>>, vector<1x1024x512xbf16>
    %20 = vector.shape_cast %19 : vector<1x1024x512xbf16> to vector<1024x512xbf16>
    %cst_22 = arith.constant dense<0.000000e+00> : vector<2x512xf32>
    %21 = tpu.matmul %18, %20, %cst_22 {dimension_numbers = #tpu.dot_dimension_numbers<[1], [0], [0], [1], [0, 0, 1, 1], [], []>} : vector<2x1024xbf16>, vector<1024x512xbf16>, vector<2x512xf32> -> vector<2x512xf32>
    %22 = arith.addf %16, %21 : vector<2x512xf32>
    %c0_23 = arith.constant 0 : index
    %c0_24 = arith.constant 0 : index
    %23 = vector.load %arg4[%c0_23, %c0_24] : memref<1x512xf32, #tpu.memory_space<vmem>>, vector<1x512xf32>
    %24 = vector.broadcast %23 : vector<1x512xf32> to vector<2x512xf32>
    %25 = arith.addf %22, %24 : vector<2x512xf32>
    %26 = math.tanh %25 : vector<2x512xf32>
    %c0_i32 = arith.constant 0 : i32
    %27 = arith.cmpi eq, %arg1, %c0_i32 : i32
    %28 = arith.extui %27 : i1 to i32
    %c0_i32_25 = arith.constant 0 : i32
    %29 = arith.cmpi ne, %28, %c0_i32_25 : i32
    scf.if %29 {
      %cst_35 = arith.constant 0.000000e+00 : f32
      %40 = vector.broadcast %cst_35 : f32 to vector<1x512xf32>
      %c0_36 = arith.constant 0 : index
      %c0_37 = arith.constant 0 : index
      %41 = vector.load %arg8[%c0_36, %c0_37] : memref<1x512xf32, #tpu.memory_space<vmem>>, vector<1x512xf32>
      tpu.vector_store %arg8[%c0_36, %c0_37], %40 {strides = array<i32>} : memref<1x512xf32, #tpu.memory_space<vmem>>, vector<1x512xf32>,
    } else {
    }
    %c0_26 = arith.constant 0 : index
    %c0_27 = arith.constant 0 : index
    %30 = vector.load %arg8[%c0_26, %c0_27] : memref<1x512xf32, #tpu.memory_space<vmem>>, vector<1x512xf32>
    %c0_28 = arith.constant 0 : index
    %c0_29 = arith.constant 0 : index
    %31 = vector.load %arg5[%c0_28, %c0_29] : memref<2x512xf32, #tpu.memory_space<vmem>>, vector<2x512xf32>
    %32 = arith.mulf %26, %31 : vector<2x512xf32>
    %cst_30 = arith.constant dense<0.000000e+00> : vector<512xf32>
    %33 = vector.multi_reduction <add>, %32, %cst_30 [0] : vector<2x512xf32> to vector<512xf32>
    %34 = vector.shape_cast %33 : vector<512xf32> to vector<1x512xf32>
    %35 = arith.addf %30, %34 : vector<1x512xf32>
    %c0_31 = arith.constant 0 : index
    %c0_32 = arith.constant 0 : index
    %36 = vector.load %arg8[%c0_31, %c0_32] : memref<1x512xf32, #tpu.memory_space<vmem>>, vector<1x512xf32>
    tpu.vector_store %arg8[%c0_31, %c0_32], %35 {strides = array<i32>} : memref<1x512xf32, #tpu.memory_space<vmem>>, vector<1x512xf32>,
    %c0_i32_33 = arith.constant 0 : i32
    %37 = arith.cmpi eq, %arg1, %c0_i32_33 : i32
    %38 = arith.extui %37 : i1 to i32
    %c0_i32_34 = arith.constant 0 : i32
    %39 = arith.cmpi ne, %38, %c0_i32_34 : i32
    scf.if %39 {
      %c0_35 = arith.constant 0 : index
      %c0_36 = arith.constant 0 : index
      %40 = vector.load %arg8[%c0_35, %c0_36] : memref<1x512xf32, #tpu.memory_space<vmem>>, vector<1x512xf32>
      %41 = vector.shape_cast %40 : vector<1x512xf32> to vector<1x1x512xf32>
      %cst_37 = arith.constant dense<0.000000e+00> : vector<1xf32>
      %42 = vector.multi_reduction <add>, %41, %cst_37 [1, 2] : vector<1x1x512xf32> to vector<1xf32>
      %43 = vector.shape_cast %42 : vector<1xf32> to vector<1x1x1xf32>
      %44 = vector.extract %43[0, 0, 0] : f32 from vector<1x1x1xf32>
      %c0_38 = arith.constant 0 : index
      %c0_39 = arith.constant 0 : index
      %45 = vector.load %arg6[%c0_38, %c0_39] : memref<1x128xf32, #tpu.memory_space<vmem>>, vector<1x128xf32>
      %46 = vector.broadcast %44 : f32 to vector<1x128xf32>
      %47 = arith.addf %46, %45 : vector<1x128xf32>
      %cst_40 = arith.constant 0.000000e+00 : f32
      %48 = vector.broadcast %cst_40 : f32 to vector<1x128xf32>
      %49 = arith.maximumf %47, %48 : vector<1x128xf32>
      %c0_41 = arith.constant 0 : index
      %c0_42 = arith.constant 0 : index
      %c0_43 = arith.constant 0 : index
      %50 = vector.load %arg7[%c0_41, %c0_42, %c0_43] : memref<1x1x128xf32, #tpu.memory_space<vmem>>, vector<1x1x128xf32>
      %51 = vector.shape_cast %50 : vector<1x1x128xf32> to vector<1x128xf32>
      %52 = vector.shape_cast %49 : vector<1x128xf32> to vector<1x1x128xf32>
      tpu.vector_store %arg7[%c0_41, %c0_42, %c0_43], %52 {strides = array<i32>} : memref<1x1x128xf32, #tpu.memory_space<vmem>>, vector<1x1x128xf32>,
    } else {
    }
    return
  }
  func.func @transform_0(%arg0: i32, %arg1: i32) -> (i32, i32, i32) {
    %c0_i32 = arith.constant 0 : i32
    %c0_i32_0 = arith.constant 0 : i32
    %c0_i32_1 = arith.constant 0 : i32
    return %arg0, %c0_i32, %c0_i32_0 : i32, i32, i32
  }
  func.func @transform_1(%arg0: i32, %arg1: i32) -> (i32, i32, i32) {
    %c0_i32 = arith.constant 0 : i32
    %c0_i32_0 = arith.constant 0 : i32
    %c0_i32_1 = arith.constant 0 : i32
    %c0_i32_2 = arith.constant 0 : i32
    return %c0_i32, %c0_i32_0, %c0_i32_1 : i32, i32, i32
  }
  func.func @transform_2(%arg0: i32, %arg1: i32) -> (i32, i32) {
    %c0_i32 = arith.constant 0 : i32
    %c0_i32_0 = arith.constant 0 : i32
    %c0_i32_1 = arith.constant 0 : i32
    return %c0_i32, %c0_i32_0 : i32, i32
  }
  func.func @transform_3(%arg0: i32, %arg1: i32) -> (i32, i32) {
    %c0_i32 = arith.constant 0 : i32
    %c0_i32_0 = arith.constant 0 : i32
    return %arg1, %c0_i32 : i32, i32
  }
  func.func @transform_4(%arg0: i32, %arg1: i32) -> (i32, i32) {
    %c0_i32 = arith.constant 0 : i32
    %c0_i32_0 = arith.constant 0 : i32
    %c0_i32_1 = arith.constant 0 : i32
    return %c0_i32, %c0_i32_0 : i32, i32
  }
  func.func @transform_5(%arg0: i32, %arg1: i32) -> (i32, i32, i32) {
    %c0_i32 = arith.constant 0 : i32
    %c0_i32_0 = arith.constant 0 : i32
    %c0_i32_1 = arith.constant 0 : i32
    return %arg0, %c0_i32, %c0_i32_0 : i32, i32, i32
  }
}

</mosaic_0001>

<llo_original>
// kernel: disc_forward.4
$region0: #{disc_forward.4}
  #allocation0 [shape = 'u32[]', space=smem, size = 0x4, offset = 0x4, fixed_abs, tag = 'smem constant byte address 0x4 - core index']
  #allocation1 [shape = 'u32[144,128]{1,0:T(1,128)}', space=vmem, size = 0x12000, scoped, tag = 'internal scratch']
  %s0 = inlined_call_operand.vmem [shape: bf16[2,90,16], index: 0, kind: input, shape index: {}]
  %s1 = inlined_call_operand.hbm [shape: bf16[4,16,64], index: 1, kind: input, shape index: {}]
  %s2 = inlined_call_operand.hbm [shape: f32[1,64], index: 2, kind: input, shape index: {}]
  %s3 = inlined_call_operand.vmem [shape: bf16[2,72,64], index: 3, kind: output, shape index: {}]
  %s4 = sld [smem:[#allocation0]]
  $region53: #{disc_forward.4} parent=0
    _
  %s6 = ssub.s32 1, %s4
  %s7 = scalar_select 0, %s6, %s4
  $region1: #{disc_forward.4} parent=0
    #allocation2 [shape = 'u8[16384]{0}', space=vmem, size = 0x4000, scoped, tag = 'input window, operand 1, single buffered']
    #allocation3 [shape = 's32[2]{0}', space=sflag, size = 0x8, scoped, tag = 'scoped memory for disc_forward.4']
    #allocation4 [shape = 'u8[512]{0}', space=vmem, size = 0x400, scoped, tag = 'input window, operand 2, single buffered']
    #allocation5 [shape = 's32[1]{0}', space=sflag, size = 0x4, scoped, tag = 'scoped memory for disc_forward.4']
    %8 = vsyncpa [#allocation3], 0
    %9 = vsyncpa [#allocation5], 0
    loop: start=0, step=1, limit=4
    $region2: #{disc_forward.4} parent=1 // loop_pre_header
      _
    $region3: #{disc_forward.4} parent=1 // loop_header
      %s11 = sphi 0, %s15
      %p12 = scmp.ge.s32.totalorder %s11, 4
      %s18 = sphi 0, %s30
      %s19 = sphi 0, %s26
      %s20 = sphi 0, %s18
      %s21 = sphi 0, %s19
      %s22 = sphi 0, %s20
      %s23 = sphi 0, %s21
      %s33 = sphi 0, %s35
      %s36 = sphi 0, %s33
      %s37 = sphi 0, %s36
      %s53 = sphi 0, %s37
      %s57 = sphi 0, %s57
      %s59 = sphi 0, %s57
      %s60 = sphi 0, %s59
      %s74 = sphi 0, %s60
      %s78 = sphi 0, %s78
      %s80 = sphi 0, %s78
      %s81 = sphi 0, %s80
      %s95 = sphi 0, %s81
      %s103 = sphi 0, %s105
      %s106 = sphi 0, %s103
      %s107 = sphi 0, %s106
      %s123 = sphi 0, %s107
    $region4: #{disc_forward.4} parent=1 // loop_header_branch
      %14 = sbr.rel (%p12) target = $region8
    $region5: #{disc_forward.4} parent=1 // loop_body
      %s16 = ssub.s32 %s11, 1
      %s17 = ssub.s32 %s11, 2
      %s24 = sadd.s32 1, %s19
      %p25 = scmp.ge.s32.totalorder %s24, 1
      %s26 = scalar_select %p25, 0, %s24
      %s27 = sadd.s32 1, %s18
      %s28 = scalar_select %p25, %s27, %s18
      %p29 = scmp.ge.s32.totalorder %s28, 2
      %s30 = scalar_select %p29, 0, %s28
      %s31 = ssub.s32 %s18, %s30
      %p32 = scmp.eq.s32.totalorder %s31, 0
      %s34 = sadd.s32 %s33, 1
      %s35 = scalar_select %p32, %s33, %s34
      %p38 = pneg %p32
      %p39 = scmp.eq.s32.totalorder %s11, 1
      %p40 = por %p38, %p39
      %p41 = scmp.ne.s32.totalorder %s33, %s36
      %p42 = scmp.eq.s32.totalorder %s11, 0
      %p43 = por %p41, %p42
      %p44 = scmp.ne.s32.totalorder %s33, %s36
      %p45 = scmp.eq.s32.totalorder %s16, 1
      %p46 = por %p44, %p45
      %p47 = scmp.ne.s32.totalorder %s36, %s37
      %p48 = scmp.eq.s32.totalorder %s16, 0
      %p49 = por %p47, %p48
      %p50 = scmp.ne.s32.totalorder %s36, %s37
      %p51 = scmp.eq.s32.totalorder %s17, 1
      %p52 = por %p50, %p51
      %p54 = scmp.ne.s32.totalorder %s37, %s53
      %p55 = scmp.eq.s32.totalorder %s17, 0
      %p56 = por %p54, %p55
      %s58 = sadd.s32 %s57, 1
      %p61 = scmp.eq.s32.totalorder %s11, 1
      %p62 = scmp.ne.s32.totalorder %s57, %s59
      %p63 = scmp.eq.s32.totalorder %s11, 0
      %p64 = por %p62, %p63
      %p65 = scmp.ne.s32.totalorder %s57, %s59
      %p66 = scmp.eq.s32.totalorder %s16, 1
      %p67 = por %p65, %p66
      %p68 = scmp.ne.s32.totalorder %s59, %s60
      %p69 = scmp.eq.s32.totalorder %s16, 0
      %p70 = por %p68, %p69
      %p71 = scmp.ne.s32.totalorder %s59, %s60
      %p72 = scmp.eq.s32.totalorder %s17, 1
      %p73 = por %p71, %p72
      %p75 = scmp.ne.s32.totalorder %s60, %s74
      %p76 = scmp.eq.s32.totalorder %s17, 0
      %p77 = por %p75, %p76
      %s79 = sadd.s32 %s78, 1
      %p82 = scmp.eq.s32.totalorder %s11, 1
      %p83 = scmp.ne.s32.totalorder %s78, %s80
      %p84 = scmp.eq.s32.totalorder %s11, 0
      %p85 = por %p83, %p84
      %p86 = scmp.ne.s32.totalorder %s78, %s80
      %p87 = scmp.eq.s32.totalorder %s16, 1
      %p88 = por %p86, %p87
      %p89 = scmp.ne.s32.totalorder %s80, %s81
      %p90 = scmp.eq.s32.totalorder %s16, 0
      %p91 = por %p89, %p90
      %p92 = scmp.ne.s32.totalorder %s80, %s81
      %p93 = scmp.eq.s32.totalorder %s17, 1
      %p94 = por %p92, %p93
      %p96 = scmp.ne.s32.totalorder %s81, %s95
      %p97 = scmp.eq.s32.totalorder %s17, 0
      %p98 = por %p96, %p97
      %s99 = ssub.s32 %s18, %s30
      %s100 = ssub.s32 %s19, %s26
      %s101 = sor.u32 %s99, %s100
      %p102 = scmp.eq.s32.totalorder %s101, 0
      %s104 = sadd.s32 %s103, 1
      %s105 = scalar_select %p102, %s103, %s104
      %p108 = pneg %p102
      %p109 = scmp.eq.s32.totalorder %s11, 1
      %p110 = por %p108, %p109
      %p111 = scmp.ne.s32.totalorder %s103, %s106
      %p112 = scmp.eq.s32.totalorder %s11, 0
      %p113 = por %p111, %p112
      %p114 = scmp.ne.s32.totalorder %s103, %s106
      %p115 = scmp.eq.s32.totalorder %s16, 1
      %p116 = por %p114, %p115
      %p117 = scmp.ne.s32.totalorder %s106, %s107
      %p118 = scmp.eq.s32.totalorder %s16, 0
      %p119 = por %p117, %p118
      %p120 = scmp.ne.s32.totalorder %s106, %s107
      %p121 = scmp.eq.s32.totalorder %s17, 1
      %p122 = por %p120, %p121
      %p124 = scmp.ne.s32.totalorder %s107, %s123
      %p125 = scmp.eq.s32.totalorder %s17, 0
      %p126 = por %p124, %p125
      %p127 = scmp.le.s32.totalorder 1, %s11
      %p128 = scmp.lt.s32.totalorder %s11, 3
      %p129 = pnand %p127, %p128
      %p130 = pneg %p129
      // Predicated region
      $region9: #{disc_forward.4} parent=5 // pred_check
        _
      $region10: #{disc_forward.4} parent=5 // pred_check_branch
        %132 = sbr.rel (%p129) target = $region12
      $region11: #{disc_forward.4} parent=5 // pred_region
        %s133 = ssub.s32 %s11, 1
        // Predicated region
        $region13: #{disc_forward.4} parent=11 // pred_check
          %p134 = pneg %p70
        $region14: #{disc_forward.4} parent=11 // pred_check_branch
          %136 = sbr.rel (%p134) target = $region16
        $region15: #{disc_forward.4} parent=11 // pred_region
          %s138 = ssub.s32 512, 512
          %139 = vsyncadd [#allocation3], %s138
          %s140 = sshll.u32 [#allocation2], 4
          %s141 = int_to_ptr.vmem [resolvable:$true] %s140
          %146 = dma.hbm_to_vmem [thread:$0]  %s1, 512, %s141, [#allocation3], 64, 64, 4
        $region16: #{disc_forward.4} parent=11 // pred_fallthru
          _
        // Predicated region
        $region17: #{disc_forward.4} parent=11 // pred_check
          %p147 = pneg %p91
        $region18: #{disc_forward.4} parent=11 // pred_check_branch
          %149 = sbr.rel (%p147) target = $region20
        $region19: #{disc_forward.4} parent=11 // pred_region
          %s151 = ssub.s32 16, 16
          %152 = vsyncadd [#allocation5], %s151
          %s154 = sshll.u32 [#allocation4], 4
          %s155 = int_to_ptr.vmem [resolvable:$true] %s154
          %157 = dma.hbm_to_vmem [thread:$0]  %s2, 16, %s155, [#allocation5]
        $region20: #{disc_forward.4} parent=11 // pred_fallthru
          _
      $region12: #{disc_forward.4} parent=5 // pred_fallthru
        _
      %p158 = scmp.lt.s32.totalorder %s11, 2
      // Predicated region
      $region21: #{disc_forward.4} parent=5 // pred_check
        %p159 = pneg %p158
      $region22: #{disc_forward.4} parent=5 // pred_check_branch
        %161 = sbr.rel (%p159) target = $region24
      $region23: #{disc_forward.4} parent=5 // pred_region
        // Predicated region
        $region25: #{disc_forward.4} parent=23 // pred_check
          %p162 = pneg %p43
        $region26: #{disc_forward.4} parent=23 // pred_check_branch
          %164 = sbr.rel (%p162) target = $region28
        $region27: #{disc_forward.4} parent=23 // pred_region
          %p165 = scmp.lt.s32.totalorder %s18, 1
          %s166 = scalar_select %p165, %s18, 1
          %s167 = smul.addr %s166, 12
          %s168 = smul.addr %s167, 4
          %s169 = scalar_lea.vmem %s0, %s168
        $region28: #{disc_forward.4} parent=23 // pred_fallthru
          _
      $region24: #{disc_forward.4} parent=5 // pred_fallthru
        _
      %p170 = scmp.le.s32.totalorder 1, %s11
      %p171 = scmp.lt.s32.totalorder %s11, 3
      %p172 = pnand %p170, %p171
      %p173 = pneg %p172
      // Predicated region
      $region29: #{disc_forward.4} parent=5 // pred_check
        _
      $region30: #{disc_forward.4} parent=5 // pred_check_branch
        %175 = sbr.rel (%p172) target = $region32
      $region31: #{disc_forward.4} parent=5 // pred_region
        %s176 = ssub.s32 %s11, 1
        // Predicated region
        $region33: #{disc_forward.4} parent=31 // pred_check
          %p177 = pneg %p70
        $region34: #{disc_forward.4} parent=31 // pred_check_branch
          %179 = sbr.rel (%p177) target = $region36
        $region35: #{disc_forward.4} parent=31 // pred_region
          %180 = dma.done [#allocation3], 512
        $region36: #{disc_forward.4} parent=31 // pred_fallthru
          _
        // Predicated region
        $region37: #{disc_forward.4} parent=31 // pred_check
          %p181 = pneg %p91
        $region38: #{disc_forward.4} parent=31 // pred_check_branch
          %183 = sbr.rel (%p181) target = $region40
        $region39: #{disc_forward.4} parent=31 // pred_region
          %184 = dma.done [#allocation5], 16
        $region40: #{disc_forward.4} parent=31 // pred_fallthru
          _
        %p185 = scmp.lt.s32.totalorder %s20, 1
        %s186 = scalar_select %p185, %s20, 1
        %s187 = smul.addr %s186, 12
        %s188 = smul.addr %s187, 4
        %s189 = scalar_lea.vmem %s0, %s188
        %p190 = pneg %p49
        %p191 = pneg %p46
        %p192 = pneg %p70
        %p193 = pneg %p67
        %p194 = pneg %p91
        %p195 = pneg %p88
        %p196 = pneg %p119
        %p197 = pneg %p116
        %s198 = smul.u32 9, %s21
        %p199 = scmp.lt.s32.totalorder %s20, 1
        %s200 = scalar_select %p199, %s20, 1
        %p201 = scmp.lt.s32.totalorder %s198, 8
        %s202 = scalar_select %p201, %s198, 8
        %s203 = smul.addr %s200, 9
        %s204 = sadd.s32 %s202, %s203
        %s205 = smul.addr %s204, 4
        %s206 = scalar_lea.vmem %s3, %s205
        %p207 = scmp.lt.s32.totalorder %s20, 1
        %s208 = scalar_select %p207, %s20, 1
        %s209 = smul.addr %s208, 12
        %s210 = smul.addr %s209, 4
        %s211 = scalar_lea.vmem %s0, %s210
        %s212 = smul.u32 9, %s21
        %p213 = scmp.lt.s32.totalorder %s20, 1
        %s214 = scalar_select %p213, %s20, 1
        %p215 = scmp.lt.s32.totalorder %s212, 8
        %s216 = scalar_select %p215, %s212, 8
        %s217 = smul.addr %s214, 9
        %s218 = sadd.s32 %s216, %s217
        %s219 = smul.addr %s218, 4
        %s220 = scalar_lea.vmem %s3, %s219
        %s221 = smul.u32 9, %s21
        %v223 = vld [vmem:[%s211] sm:$0xf]
        %v224 = vld [vmem:[%s211 + $0x4] sm:$0xf]
        %v225 = vld [vmem:[%s211 + $0x8] sm:$0xf]
        %v226 = vld [vmem:[%s211 + $0xc] sm:$0xf]
        %v227 = vld [vmem:[%s211 + $0x10] sm:$0xf]
        %v228 = vld [vmem:[%s211 + $0x14] sm:$0xf]
        %v229 = vld [vmem:[%s211 + $0x18] sm:$0xf]
        %v230 = vld [vmem:[%s211 + $0x1c] sm:$0xf]
        %v231 = vld [vmem:[%s211 + $0x20] sm:$0xf]
        %v232 = vld [vmem:[#allocation2] sm:$0xf]
        %v233 = vld [vmem:[#allocation2 + $0x4] sm:$0xf]
        %v234 = vld [vmem:[%s211 + $0x24] sm:$0x1]
        %s235 = scalar_lea.vmem [#allocation2], 8
        %v236 = vld [vmem:[%s235] sm:$0xf]
        %v237 = vld [vmem:[%s235 + $0x4] sm:$0xf]
        %v248 = vunpack.c.l.b16 %v223
        %v249 = vunpack.c.l.b16 %v224
        %v250 = vunpack.c.l.b16 %v225
        %v251 = vunpack.c.l.b16 %v226
        %v252 = vunpack.c.l.b16 %v227
        %v253 = vunpack.c.l.b16 %v228
        %v254 = vunpack.c.l.b16 %v229
        %v255 = vunpack.c.l.b16 %v230
        %v256 = vunpack.c.l.b16 %v231
        %v257 = vunpack.c.l.b16 %v234
        %v258 = vpack.c.b16 %v249, %v248
        %v259 = vpack.c.b16 %v251, %v250
        %v260 = vpack.c.b16 %v253, %v252
        %v261 = vpack.c.b16 %v255, %v254
        %v262 = vpack.c.b16 %v257, %v256
        %vm263 = vsmask.f32 7424
        %v265 = vshrl.u32 %v258, 16
        %v267 = vshll.u32 %v258, 16
        %v269 = vrot.slane %v267, 1
        %v270 = vor.u32 %v265, %v269
        %v272 = vshll.u32 %v259, 16
        %v274 = vrot.slane %v272, 1
        %v275 = vsel %vm263, %v270, %v274
        %v276 = vshrl.u32 %v259, 16
        %v278 = vor.u32 %v276, %v274
        %v280 = vshll.u32 %v260, 16
        %v282 = vrot.slane %v280, 1
        %v283 = vsel %vm263, %v278, %v282
        %v284 = vshrl.u32 %v260, 16
        %v286 = vor.u32 %v284, %v282
        %v288 = vshll.u32 %v261, 16
        %v290 = vrot.slane %v288, 1
        %v291 = vsel %vm263, %v286, %v290
        %v292 = vshrl.u32 %v261, 16
        %v294 = vor.u32 %v292, %v290
        %v296 = vshll.u32 %v262, 16
        %v298 = vrot.slane %v296, 1
        %v299 = vsel %vm263, %v294, %v298
        %v300 = vshrl.u32 %v262, 16
        %v302 = vor.u32 %v300, %v298
        %v305 = vunpack.c.l.b16 %v236
        %v306 = vunpack.c.l.b16 %v237
        %v307 = vpack.c.b16 %v306, %v305
        %vm309 = vcmask 130048
        %v311 = vsel %vm309, %v275, 0
        %v314 = vsel %vm309, %v283, 0
        %v317 = vsel %vm309, %v291, 0
        %v320 = vsel %vm309, %v299, 0
        %v323 = vsel %vm309, %v302, 0
        %325 = vmatprep.subr.bf16.mxu0 0
        %326 = vmatpush1.bf16.msra.mxu0 %v307
        %327 = vmatprep.subr.bf16.mxu0 0
        %328 = vmatpush1.bf16.msra.mxu0 0
        %329 = vmatprep.subr.bf16.mxu0 0
        %330 = vmatpush1.bf16.msra.mxu0 0
        %331 = vmatprep.subr.bf16.mxu0 0
        %332 = vmatpush1.bf16.msra.mxu0 0
        %333 = vmatprep.subr.bf16.mxu0 0
        %334 = vmatpush1.bf16.msra.mxu0 0
        %335 = vmatprep.subr.bf16.mxu0 0
        %336 = vmatpush1.bf16.msra.mxu0 0
        %337 = vmatprep.subr.bf16.mxu0 0
        %338 = vmatpush1.bf16.msra.mxu0 0
        %339 = vmatprep.subr.bf16.mxu0 0
        %340 = vmatpush1.bf16.msra.mxu0 0
        %341 = vmatprep.subr.bf16.mxu0 0
        %342 = vmatpush1.bf16.msra.mxu0 0
        %343 = vmatprep.subr.bf16.mxu0 0
        %344 = vmatpush1.bf16.msra.mxu0 0
        %345 = vmatprep.subr.bf16.mxu0 0
        %346 = vmatpush1.bf16.msra.mxu0 0
        %347 = vmatprep.subr.bf16.mxu0 0
        %348 = vmatpush1.bf16.msra.mxu0 0
        %349 = vmatprep.subr.bf16.mxu0 0
        %350 = vmatpush1.bf16.msra.mxu0 0
        %351 = vmatprep.subr.bf16.mxu0 0
        %352 = vmatpush1.bf16.msra.mxu0 0
        %353 = vmatprep.subr.bf16.mxu0 0
        %354 = vmatpush1.bf16.msra.mxu0 0
        %355 = vmatprep.subr.bf16.mxu0 0
        %356 = vmatpush1.bf16.msra.mxu0 0
        %357 = vmatprep.mubr.bf16.mxu0 0
        %358 = vmatmul.mubr.bf16.gmra.mrb[0].mxu0 %v311
        %v359 = vpop.f32.mrb[0].mxu0
        %v360 = vadd.f32 0.0, %v359
        %v361 = vpop.f32.mrb[0].mxu0
        %v362 = vpop.f32.mrb[0].mxu0
        %v363 = vadd.f32 0.0, %v362
        %v364 = vpop.f32.mrb[0].mxu0
        %365 = vmatprep.mubr.bf16.mxu0 0
        %366 = vmatmul.mubr.bf16.gmra.mrb[0].mxu0 %v314
        %v367 = vpop.f32.mrb[0].mxu0
        %v368 = vadd.f32 0.0, %v367
        %v369 = vpop.f32.mrb[0].mxu0
        %v370 = vpop.f32.mrb[0].mxu0
        %v371 = vadd.f32 0.0, %v370
        %v372 = vpop.f32.mrb[0].mxu0
        %373 = vmatprep.mubr.bf16.mxu0 0
        %374 = vmatmul.mubr.bf16.gmra.mrb[0].mxu0 %v317
        %v375 = vpop.f32.mrb[0].mxu0
        %v376 = vadd.f32 0.0, %v375
        %v377 = vpop.f32.mrb[0].mxu0
        %v378 = vpop.f32.mrb[0].mxu0
        %v379 = vadd.f32 0.0, %v378
        %v380 = vpop.f32.mrb[0].mxu0
        %381 = vmatprep.mubr.bf16.mxu0 0
        %382 = vmatmul.mubr.bf16.gmra.mrb[0].mxu0 %v320
        %v383 = vpop.f32.mrb[0].mxu0
        %v384 = vadd.f32 0.0, %v383
        %v385 = vpop.f32.mrb[0].mxu0
        %v386 = vpop.f32.mrb[0].mxu0
        %v387 = vadd.f32 0.0, %v386
        %v388 = vpop.f32.mrb[0].mxu0
        %389 = vmatprep.mubr.bf16.mxu0 0
        %390 = vmatmul.mubr.bf16.gmra.mrb[0].mxu0 %v323
        %v391 = vpop.f32.mrb[0].mxu0
        %v392 = vadd.f32 0.0, %v391
        %v393 = vpop.f32.mrb[0].mxu0
        %v394 = vpop.f32.mrb[0].mxu0
        %v395 = vpop.f32.mrb[0].mxu0
        %396 = vdwg.mxu0
        %v397 = vpack.c.b16 %v256, %v256
        %v400 = vunpack.c.l.b16 %v232
        %v401 = vunpack.c.l.b16 %v233
        %v402 = vpack.c.b16 %v401, %v400
        %v404 = vsel %vm309, %v258, 0
        %v406 = vsel %vm309, %v259, 0
        %v408 = vsel %vm309, %v260, 0
        %v410 = vsel %vm309, %v261, 0
        %v413 = vsel %vm309, %v397, 0
        %415 = vmatprep.subr.bf16.mxu0 0
        %416 = vmatpush1.bf16.msra.mxu0 %v402
        %417 = vmatprep.subr.bf16.mxu0 0
        %418 = vmatpush1.bf16.msra.mxu0 0
        %419 = vmatprep.subr.bf16.mxu0 0
        %420 = vmatpush1.bf16.msra.mxu0 0
        %421 = vmatprep.subr.bf16.mxu0 0
        %422 = vmatpush1.bf16.msra.mxu0 0
        %423 = vmatprep.subr.bf16.mxu0 0
        %424 = vmatpush1.bf16.msra.mxu0 0
        %425 = vmatprep.subr.bf16.mxu0 0
        %426 = vmatpush1.bf16.msra.mxu0 0
        %427 = vmatprep.subr.bf16.mxu0 0
        %428 = vmatpush1.bf16.msra.mxu0 0
        %429 = vmatprep.subr.bf16.mxu0 0
        %430 = vmatpush1.bf16.msra.mxu0 0
        %431 = vmatprep.subr.bf16.mxu0 0
        %432 = vmatpush1.bf16.msra.mxu0 0
        %433 = vmatprep.subr.bf16.mxu0 0
        %434 = vmatpush1.bf16.msra.mxu0 0
        %435 = vmatprep.subr.bf16.mxu0 0
        %436 = vmatpush1.bf16.msra.mxu0 0
        %437 = vmatprep.subr.bf16.mxu0 0
        %438 = vmatpush1.bf16.msra.mxu0 0
        %439 = vmatprep.subr.bf16.mxu0 0
        %440 = vmatpush1.bf16.msra.mxu0 0
        %441 = vmatprep.subr.bf16.mxu0 0
        %442 = vmatpush1.bf16.msra.mxu0 0
        %443 = vmatprep.subr.bf16.mxu0 0
        %444 = vmatpush1.bf16.msra.mxu0 0
        %445 = vmatprep.subr.bf16.mxu0 0
        %446 = vmatpush1.bf16.msra.mxu0 0
        %447 = vmatprep.mubr.bf16.mxu0 0
        %448 = vmatmul.mubr.bf16.gmra.mrb[0].mxu0 %v404
        %v449 = vpop.f32.mrb[0].mxu0
        %v450 = vadd.f32 %v360, %v449
        %v451 = vpop.f32.mrb[0].mxu0
        %v452 = vpop.f32.mrb[0].mxu0
        %v453 = vadd.f32 %v363, %v452
        %v454 = vpop.f32.mrb[0].mxu0
        %455 = vmatprep.mubr.bf16.mxu0 0
        %456 = vmatmul.mubr.bf16.gmra.mrb[0].mxu0 %v406
        %v457 = vpop.f32.mrb[0].mxu0
        %v458 = vadd.f32 %v368, %v457
        %v459 = vpop.f32.mrb[0].mxu0
        %v460 = vpop.f32.mrb[0].mxu0
        %v461 = vadd.f32 %v371, %v460
        %v462 = vpop.f32.mrb[0].mxu0
        %463 = vmatprep.mubr.bf16.mxu0 0
        %464 = vmatmul.mubr.bf16.gmra.mrb[0].mxu0 %v408
        %v465 = vpop.f32.mrb[0].mxu0
        %v466 = vadd.f32 %v376, %v465
        %v467 = vpop.f32.mrb[0].mxu0
        %v468 = vpop.f32.mrb[0].mxu0
        %v469 = vadd.f32 %v379, %v468
        %v470 = vpop.f32.mrb[0].mxu0
        %471 = vmatprep.mubr.bf16.mxu0 0
        %472 = vmatmul.mubr.bf16.gmra.mrb[0].mxu0 %v410
        %v473 = vpop.f32.mrb[0].mxu0
        %v474 = vadd.f32 %v384, %v473
        %v475 = vpop.f32.mrb[0].mxu0
        %v476 = vpop.f32.mrb[0].mxu0
        %v477 = vadd.f32 %v387, %v476
        %v478 = vpop.f32.mrb[0].mxu0
        %479 = vmatprep.mubr.bf16.mxu0 0
        %480 = vmatmul.mubr.bf16.gmra.mrb[0].mxu0 %v413
        %v481 = vpop.f32.mrb[0].mxu0
        %v482 = vadd.f32 %v392, %v481
        %v483 = vpop.f32.mrb[0].mxu0
        %v484 = vpop.f32.mrb[0].mxu0
        %v485 = vpop.f32.mrb[0].mxu0
        %486 = vdwg.mxu0
        %v487 = vld [vmem:[%s211 + $0x4] sm:$0xf]
        %v488 = vld [vmem:[%s211 + $0x8] sm:$0xf]
        %v489 = vld [vmem:[%s211 + $0xc] sm:$0xf]
        %v490 = vld [vmem:[%s211 + $0x10] sm:$0xf]
        %v491 = vld [vmem:[%s211 + $0x14] sm:$0xf]
        %v492 = vld [vmem:[%s211 + $0x18] sm:$0xf]
        %v493 = vld [vmem:[%s211 + $0x1c] sm:$0xf]
        %v494 = vld [vmem:[%s211 + $0x20] sm:$0xf]
        %v495 = vld [vmem:[%s211 + $0x24] sm:$0xf]
        %v496 = vld [vmem:[%s211 + $0x28] sm:$0x1]
        %s497 = scalar_lea.vmem [#allocation2], 16
        %v498 = vld [vmem:[%s497] sm:$0xf]
        %v499 = vld [vmem:[%s497 + $0x4] sm:$0xf]
        %v510 = vunpack.c.l.b16 %v487
        %v511 = vunpack.c.l.b16 %v488
        %v512 = vunpack.c.l.b16 %v489
        %v513 = vunpack.c.l.b16 %v490
        %v514 = vunpack.c.l.b16 %v491
        %v515 = vunpack.c.l.b16 %v492
        %v516 = vunpack.c.l.b16 %v493
        %v517 = vunpack.c.l.b16 %v494
        %v518 = vunpack.c.l.b16 %v495
        %v519 = vunpack.c.l.b16 %v496
        %v520 = vpack.c.b16 %v511, %v510
        %v521 = vpack.c.b16 %v513, %v512
        %v522 = vpack.c.b16 %v515, %v514
        %v523 = vpack.c.b16 %v517, %v516
        %v524 = vpack.c.b16 %v519, %v518
        %v526 = vshrl.u32 %v520, 16
        %v528 = vshll.u32 %v520, 16
        %v530 = vrot.slane %v528, 1
        %v531 = vor.u32 %v526, %v530
        %v533 = vshll.u32 %v521, 16
        %v535 = vrot.slane %v533, 1
        %v536 = vsel %vm263, %v531, %v535
        %v537 = vshrl.u32 %v521, 16
        %v539 = vor.u32 %v537, %v535
        %v541 = vshll.u32 %v522, 16
        %v543 = vrot.slane %v541, 1
        %v544 = vsel %vm263, %v539, %v543
        %v545 = vshrl.u32 %v522, 16
        %v547 = vor.u32 %v545, %v543
        %v549 = vshll.u32 %v523, 16
        %v551 = vrot.slane %v549, 1
        %v552 = vsel %vm263, %v547, %v551
        %v553 = vshrl.u32 %v523, 16
        %v555 = vor.u32 %v553, %v551
        %v557 = vshll.u32 %v524, 16
        %v559 = vrot.slane %v557, 1
        %v560 = vsel %vm263, %v555, %v559
        %v561 = vshrl.u32 %v524, 16
        %v563 = vor.u32 %v561, %v559
        %v566 = vunpack.c.l.b16 %v498
        %v567 = vunpack.c.l.b16 %v499
        %v568 = vpack.c.b16 %v567, %v566
        %v571 = vsel %vm309, %v536, 0
        %v574 = vsel %vm309, %v544, 0
        %v577 = vsel %vm309, %v552, 0
        %v580 = vsel %vm309, %v560, 0
        %v583 = vsel %vm309, %v563, 0
        %585 = vmatprep.subr.bf16.mxu0 0
        %586 = vmatpush1.bf16.msra.mxu0 %v568
        %587 = vmatprep.subr.bf16.mxu0 0
        %588 = vmatpush1.bf16.msra.mxu0 0
        %589 = vmatprep.subr.bf16.mxu0 0
        %590 = vmatpush1.bf16.msra.mxu0 0
        %591 = vmatprep.subr.bf16.mxu0 0
        %592 = vmatpush1.bf16.msra.mxu0 0
        %593 = vmatprep.subr.bf16.mxu0 0
        %594 = vmatpush1.bf16.msra.mxu0 0
        %595 = vmatprep.subr.bf16.mxu0 0
        %596 = vmatpush1.bf16.msra.mxu0 0
        %597 = vmatprep.subr.bf16.mxu0 0
        %598 = vmatpush1.bf16.msra.mxu0 0
        %599 = vmatprep.subr.bf16.mxu0 0
        %600 = vmatpush1.bf16.msra.mxu0 0
        %601 = vmatprep.subr.bf16.mxu0 0
        %602 = vmatpush1.bf16.msra.mxu0 0
        %603 = vmatprep.subr.bf16.mxu0 0
        %604 = vmatpush1.bf16.msra.mxu0 0
        %605 = vmatprep.subr.bf16.mxu0 0
        %606 = vmatpush1.bf16.msra.mxu0 0
        %607 = vmatprep.subr.bf16.mxu0 0
        %608 = vmatpush1.bf16.msra.mxu0 0
        %609 = vmatprep.subr.bf16.mxu0 0
        %610 = vmatpush1.bf16.msra.mxu0 0
        %611 = vmatprep.subr.bf16.mxu0 0
        %612 = vmatpush1.bf16.msra.mxu0 0
        %613 = vmatprep.subr.bf16.mxu0 0
        %614 = vmatpush1.bf16.msra.mxu0 0
        %615 = vmatprep.subr.bf16.mxu0 0
        %616 = vmatpush1.bf16.msra.mxu0 0
        %617 = vmatprep.mubr.bf16.mxu0 0
        %618 = vmatmul.mubr.bf16.gmra.mrb[0].mxu0 %v571
        %v619 = vpop.f32.mrb[0].mxu0
        %v620 = vadd.f32 0.0, %v619
        %v621 = vpop.f32.mrb[0].mxu0
        %v622 = vpop.f32.mrb[0].mxu0
        %v623 = vadd.f32 0.0, %v622
        %v624 = vpop.f32.mrb[0].mxu0
        %625 = vmatprep.mubr.bf16.mxu0 0
        %626 = vmatmul.mubr.bf16.gmra.mrb[0].mxu0 %v574
        %v627 = vpop.f32.mrb[0].mxu0
        %v628 = vadd.f32 0.0, %v627
        %v629 = vpop.f32.mrb[0].mxu0
        %v630 = vpop.f32.mrb[0].mxu0
        %v631 = vadd.f32 0.0, %v630
        %v632 = vpop.f32.mrb[0].mxu0
        %633 = vmatprep.mubr.bf16.mxu0 0
        %634 = vmatmul.mubr.bf16.gmra.mrb[0].mxu0 %v577
        %v635 = vpop.f32.mrb[0].mxu0
        %v636 = vadd.f32 0.0, %v635
        %v637 = vpop.f32.mrb[0].mxu0
        %v638 = vpop.f32.mrb[0].mxu0
        %v639 = vadd.f32 0.0, %v638
        %v640 = vpop.f32.mrb[0].mxu0
        %641 = vmatprep.mubr.bf16.mxu0 0
        %642 = vmatmul.mubr.bf16.gmra.mrb[0].mxu0 %v580
        %v643 = vpop.f32.mrb[0].mxu0
        %v644 = vadd.f32 0.0, %v643
        %v645 = vpop.f32.mrb[0].mxu0
        %v646 = vpop.f32.mrb[0].mxu0
        %v647 = vadd.f32 0.0, %v646
        %v648 = vpop.f32.mrb[0].mxu0
        %649 = vmatprep.mubr.bf16.mxu0 0
        %650 = vmatmul.mubr.bf16.gmra.mrb[0].mxu0 %v583
        %v651 = vpop.f32.mrb[0].mxu0
        %v652 = vadd.f32 0.0, %v651
        %v653 = vpop.f32.mrb[0].mxu0
        %v654 = vpop.f32.mrb[0].mxu0
        %v655 = vpop.f32.mrb[0].mxu0
        %656 = vdwg.mxu0
        %v657 = vadd.f32 %v450, %v620
        %v658 = vadd.f32 %v453, %v623
        %v659 = vadd.f32 %v458, %v628
        %v660 = vadd.f32 %v461, %v631
        %v661 = vadd.f32 %v466, %v636
        %v662 = vadd.f32 %v469, %v639
        %v663 = vadd.f32 %v474, %v644
        %v664 = vadd.f32 %v477, %v647
        %v665 = vadd.f32 %v482, %v652
        %v666 = vld [vmem:[%s211 + $0x4] sm:$0xe]
        %s667 = scalar_lea.vmem [#allocation2], 24
        %v668 = vld [vmem:[%s667] sm:$0xf]
        %v669 = vld [vmem:[%s667 + $0x4] sm:$0xf]
        %v671 = vunpack.c.l.b16 %v666
        %v672 = vpack.c.b16 %v511, %v671
        %vm673 = vcmask 1046528
        %v674 = vrot.slane %v672, 1
        %v675 = vrot.slane %v521, 1
        %v676 = vsel %vm673, %v674, %v675
        %v677 = vrot.slane %v522, 1
        %v678 = vsel %vm673, %v675, %v677
        %v679 = vrot.slane %v523, 1
        %v680 = vsel %vm673, %v677, %v679
        %v681 = vrot.slane %v524, 1
        %v682 = vsel %vm673, %v679, %v681
        %v685 = vunpack.c.l.b16 %v668
        %v686 = vunpack.c.l.b16 %v669
        %v687 = vpack.c.b16 %v686, %v685
        %v690 = vsel %vm309, %v676, 0
        %v693 = vsel %vm309, %v678, 0
        %v696 = vsel %vm309, %v680, 0
        %v699 = vsel %vm309, %v682, 0
        %v702 = vsel %vm309, %v681, 0
        %704 = vmatprep.subr.bf16.mxu0 0
        %705 = vmatpush1.bf16.msra.mxu0 %v687
        %706 = vmatprep.subr.bf16.mxu0 0
        %707 = vmatpush1.bf16.msra.mxu0 0
        %708 = vmatprep.subr.bf16.mxu0 0
        %709 = vmatpush1.bf16.msra.mxu0 0
        %710 = vmatprep.subr.bf16.mxu0 0
        %711 = vmatpush1.bf16.msra.mxu0 0
        %712 = vmatprep.subr.bf16.mxu0 0
        %713 = vmatpush1.bf16.msra.mxu0 0
        %714 = vmatprep.subr.bf16.mxu0 0
        %715 = vmatpush1.bf16.msra.mxu0 0
        %716 = vmatprep.subr.bf16.mxu0 0
        %717 = vmatpush1.bf16.msra.mxu0 0
        %718 = vmatprep.subr.bf16.mxu0 0
        %719 = vmatpush1.bf16.msra.mxu0 0
        %720 = vmatprep.subr.bf16.mxu0 0
        %721 = vmatpush1.bf16.msra.mxu0 0
        %722 = vmatprep.subr.bf16.mxu0 0
        %723 = vmatpush1.bf16.msra.mxu0 0
        %724 = vmatprep.subr.bf16.mxu0 0
        %725 = vmatpush1.bf16.msra.mxu0 0
        %726 = vmatprep.subr.bf16.mxu0 0
        %727 = vmatpush1.bf16.msra.mxu0 0
        %728 = vmatprep.subr.bf16.mxu0 0
        %729 = vmatpush1.bf16.msra.mxu0 0
        %730 = vmatprep.subr.bf16.mxu0 0
        %731 = vmatpush1.bf16.msra.mxu0 0
        %732 = vmatprep.subr.bf16.mxu0 0
        %733 = vmatpush1.bf16.msra.mxu0 0
        %734 = vmatprep.subr.bf16.mxu0 0
        %735 = vmatpush1.bf16.msra.mxu0 0
        %736 = vmatprep.mubr.bf16.mxu0 0
        %737 = vmatmul.mubr.bf16.gmra.mrb[0].mxu0 %v690
        %v738 = vpop.f32.mrb[0].mxu0
        %v739 = vadd.f32 0.0, %v738
        %v740 = vpop.f32.mrb[0].mxu0
        %v741 = vpop.f32.mrb[0].mxu0
        %v742 = vadd.f32 0.0, %v741
        %v743 = vpop.f32.mrb[0].mxu0
        %744 = vmatprep.mubr.bf16.mxu0 0
        %745 = vmatmul.mubr.bf16.gmra.mrb[0].mxu0 %v693
        %v746 = vpop.f32.mrb[0].mxu0
        %v747 = vadd.f32 0.0, %v746
        %v748 = vpop.f32.mrb[0].mxu0
        %v749 = vpop.f32.mrb[0].mxu0
        %v750 = vadd.f32 0.0, %v749
        %v751 = vpop.f32.mrb[0].mxu0
        %752 = vmatprep.mubr.bf16.mxu0 0
        %753 = vmatmul.mubr.bf16.gmra.mrb[0].mxu0 %v696
        %v754 = vpop.f32.mrb[0].mxu0
        %v755 = vadd.f32 0.0, %v754
        %v756 = vpop.f32.mrb[0].mxu0
        %v757 = vpop.f32.mrb[0].mxu0
        %v758 = vadd.f32 0.0, %v757
        %v759 = vpop.f32.mrb[0].mxu0
        %760 = vmatprep.mubr.bf16.mxu0 0
        %761 = vmatmul.mubr.bf16.gmra.mrb[0].mxu0 %v699
        %v762 = vpop.f32.mrb[0].mxu0
        %v763 = vadd.f32 0.0, %v762
        %v764 = vpop.f32.mrb[0].mxu0
        %v765 = vpop.f32.mrb[0].mxu0
        %v766 = vadd.f32 0.0, %v765
        %v767 = vpop.f32.mrb[0].mxu0
        %768 = vmatprep.mubr.bf16.mxu0 0
        %769 = vmatmul.mubr.bf16.gmra.mrb[0].mxu0 %v702
        %v770 = vpop.f32.mrb[0].mxu0
        %v771 = vadd.f32 0.0, %v770
        %v772 = vpop.f32.mrb[0].mxu0
        %v773 = vpop.f32.mrb[0].mxu0
        %v774 = vpop.f32.mrb[0].mxu0
        %775 = vdwg.mxu0
        %v776 = vadd.f32 %v657, %v739
        %v777 = vadd.f32 %v658, %v742
        %v778 = vadd.f32 %v659, %v747
        %v779 = vadd.f32 %v660, %v750
        %v780 = vadd.f32 %v661, %v755
        %v781 = vadd.f32 %v662, %v758
        %v782 = vadd.f32 %v663, %v763
        %v783 = vadd.f32 %v664, %v766
        %v784 = vadd.f32 %v665, %v771
        %v785 = vld [vmem:[#allocation4] sm:$0x1]
        %v787 = vlaneseq
        %v788 = vshrl.u32 %v787, 7
        %v789 = vsub.s32 0, %v788
        %v790 = vrot.slane %v785, %v789
        %v792 = vadd.f32 %v776, %v790
        %v793 = vadd.f32 %v777, %v790
        %v794 = vadd.f32 %v778, %v790
        %v795 = vadd.f32 %v779, %v790
        %v796 = vadd.f32 %v780, %v790
        %v797 = vadd.f32 %v781, %v790
        %v798 = vadd.f32 %v782, %v790
        %v799 = vadd.f32 %v783, %v790
        %v800 = vadd.f32 %v784, %v790
        %v801 = vtanh.pop %v792
        %v802 = vtanh.pop %v793
        %v803 = vtanh.pop %v794
        %v804 = vtanh.pop %v795
        %v805 = vtanh.pop %v796
        %v806 = vtanh.pop %v797
        %v807 = vtanh.pop %v798
        %v808 = vtanh.pop %v799
        %v809 = vtanh.pop %v800
        %v810 = vpack.c.bf16 %v802, %v801
        %v811 = vpack.c.bf16 %v804, %v803
        %v812 = vpack.c.bf16 %v806, %v805
        %v813 = vpack.c.bf16 %v808, %v807
        %v814 = vpack.c.bf16 %v809, %v809
        %v820 = vunpack.c.l.b16 %v810
        %v821 = vunpack.c.h.b16 %v810
        %v822 = vunpack.c.l.b16 %v811
        %v823 = vunpack.c.h.b16 %v811
        %v824 = vunpack.c.l.b16 %v812
        %v825 = vunpack.c.h.b16 %v812
        %v826 = vunpack.c.l.b16 %v813
        %v827 = vunpack.c.h.b16 %v813
        %v828 = vunpack.c.l.b16 %v814
        %v829 = vpack.c.b16 %v820, %v820
        %v830 = vpack.c.b16 %v821, %v821
        %v831 = vpack.c.b16 %v822, %v822
        %v832 = vpack.c.b16 %v823, %v823
        %v833 = vpack.c.b16 %v824, %v824
        %v834 = vpack.c.b16 %v825, %v825
        %v835 = vpack.c.b16 %v826, %v826
        %v836 = vpack.c.b16 %v827, %v827
        %v837 = vpack.c.b16 %v828, %v828
        %vm847 = vcmask 519168
        %848 = vst.msk [vmem:[%s220] sm:$0xf] %vm847, %v829
        %849 = vst.msk [vmem:[%s220 + $0x4] sm:$0xf] %vm847, %v830
        %850 = vst.msk [vmem:[%s220 + $0x8] sm:$0xf] %vm847, %v831
        %851 = vst.msk [vmem:[%s220 + $0xc] sm:$0xf] %vm847, %v832
        %852 = vst.msk [vmem:[%s220 + $0x10] sm:$0xf] %vm847, %v833
        %853 = vst.msk [vmem:[%s220 + $0x14] sm:$0xf] %vm847, %v834
        %854 = vst.msk [vmem:[%s220 + $0x18] sm:$0xf] %vm847, %v835
        %855 = vst.msk [vmem:[%s220 + $0x1c] sm:$0xf] %vm847, %v836
        %856 = vst.msk [vmem:[%s220 + $0x20] sm:$0xf] %vm847, %v837
        %s857 = smul.u32 9, %s21
        %p858 = scmp.lt.s32.totalorder %s20, 1
        %s859 = scalar_select %p858, %s20, 1
        %p860 = scmp.lt.s32.totalorder %s857, 8
        %s861 = scalar_select %p860, %s857, 8
        %s862 = smul.addr %s859, 9
        %s863 = sadd.s32 %s861, %s862
        %s864 = smul.addr %s863, 4
        %s865 = scalar_lea.vmem %s3, %s864
        // Predicated region
        $region41: #{disc_forward.4} parent=31 // pred_check
          %p866 = pneg %p116
        $region42: #{disc_forward.4} parent=31 // pred_check_branch
          %868 = sbr.rel (%p866) target = $region44
        $region43: #{disc_forward.4} parent=31 // pred_region
          %s869 = smul.u32 9, %s21
        $region44: #{disc_forward.4} parent=31 // pred_fallthru
          _
      $region32: #{disc_forward.4} parent=5 // pred_fallthru
        _
      %p870 = scmp.le.s32.totalorder 2, %s11
      // Predicated region
      $region45: #{disc_forward.4} parent=5 // pred_check
        %p871 = pneg %p870
      $region46: #{disc_forward.4} parent=5 // pred_check_branch
        %873 = sbr.rel (%p871) target = $region48
      $region47: #{disc_forward.4} parent=5 // pred_region
        %s874 = ssub.s32 %s11, 2
        // Predicated region
        $region49: #{disc_forward.4} parent=47 // pred_check
          %p875 = pneg %p122
        $region50: #{disc_forward.4} parent=47 // pred_check_branch
          %877 = sbr.rel (%p875) target = $region52
        $region51: #{disc_forward.4} parent=47 // pred_region
          %s878 = smul.u32 9, %s23
          %p879 = scmp.lt.s32.totalorder %s22, 1
          %s880 = scalar_select %p879, %s22, 1
          %p881 = scmp.lt.s32.totalorder %s878, 8
          %s882 = scalar_select %p881, %s878, 8
          %s883 = smul.addr %s880, 9
          %s884 = sadd.s32 %s882, %s883
          %s885 = smul.addr %s884, 4
          %s886 = scalar_lea.vmem %s3, %s885
        $region52: #{disc_forward.4} parent=47 // pred_fallthru
          _
      $region48: #{disc_forward.4} parent=5 // pred_fallthru
        _
    $region6: #{disc_forward.4} parent=1 // loop_footer
      %s15 = sadd.s32 1, %s11
    $region7: #{disc_forward.4} parent=1 // loop_footer_branch
      %10 = sbr.rel target = $region3
    $region8: #{disc_forward.4} parent=1 // loop_exit
      _
    %887 = vsyncpa [#allocation3], 1
    %s888 = scalar_lea.sflag [#allocation3], 1
    %889 = vsyncpa %s888, 1
    %890 = vsyncpa [#allocation5], 1

// kernel: disc_forward.5
$region0: #{disc_forward.5}
  #allocation0 [shape = 'u32[]', space=smem, size = 0x4, offset = 0x4, fixed_abs, tag = 'smem constant byte address 0x4 - core index']
  #allocation1 [shape = 'u32[144,128]{1,0:T(1,128)}', space=vmem, size = 0x12000, scoped, tag = 'internal scratch']
  %s0 = inlined_call_operand.vmem [shape: bf16[2,30,256], index: 0, kind: input, shape index: {}]
  %s1 = inlined_call_operand.hbm [shape: bf16[4,256,128], index: 1, kind: input, shape index: {}]
  %s2 = inlined_call_operand.hbm [shape: f32[1,128], index: 2, kind: input, shape index: {}]
  %s3 = inlined_call_operand.vmem [shape: bf16[2,20,128], index: 3, kind: output, shape index: {}]
  %s4 = sld [smem:[#allocation0]]
  $region53: #{disc_forward.5} parent=0
    _
  %s6 = ssub.s32 1, %s4
  %s7 = scalar_select 0, %s6, %s4
  $region1: #{disc_forward.5} parent=0
    #allocation2 [shape = 'u8[262144]{0}', space=vmem, size = 0x40000, scoped, tag = 'input window, operand 1, single buffered']
    #allocation3 [shape = 's32[2]{0}', space=sflag, size = 0x8, scoped, tag = 'scoped memory for disc_forward.5']
    #allocation4 [shape = 'u8[512]{0}', space=vmem, size = 0x400, scoped, tag = 'input window, operand 2, single buffered']
    #allocation5 [shape = 's32[1]{0}', space=sflag, size = 0x4, scoped, tag = 'scoped memory for disc_forward.5']
    %8 = vsyncpa [#allocation3], 0
    %9 = vsyncpa [#allocation5], 0
    loop: start=0, step=1, limit=4
    $region2: #{disc_forward.5} parent=1 // loop_pre_header
      _
    $region3: #{disc_forward.5} parent=1 // loop_header
      %s11 = sphi 0, %s15
      %p12 = scmp.ge.s32.totalorder %s11, 4
      %s18 = sphi 0, %s30
      %s19 = sphi 0, %s26
      %s20 = sphi 0, %s18
      %s21 = sphi 0, %s19
      %s22 = sphi 0, %s20
      %s23 = sphi 0, %s21
      %s33 = sphi 0, %s35
      %s36 = sphi 0, %s33
      %s37 = sphi 0, %s36
      %s53 = sphi 0, %s37
      %s57 = sphi 0, %s57
      %s59 = sphi 0, %s57
      %s60 = sphi 0, %s59
      %s74 = sphi 0, %s60
      %s78 = sphi 0, %s78
      %s80 = sphi 0, %s78
      %s81 = sphi 0, %s80
      %s95 = sphi 0, %s81
      %s103 = sphi 0, %s105
      %s106 = sphi 0, %s103
      %s107 = sphi 0, %s106
      %s123 = sphi 0, %s107
    $region4: #{disc_forward.5} parent=1 // loop_header_branch
      %14 = sbr.rel (%p12) target = $region8
    $region5: #{disc_forward.5} parent=1 // loop_body
      %s16 = ssub.s32 %s11, 1
      %s17 = ssub.s32 %s11, 2
      %s24 = sadd.s32 1, %s19
      %p25 = scmp.ge.s32.totalorder %s24, 1
      %s26 = scalar_select %p25, 0, %s24
      %s27 = sadd.s32 1, %s18
      %s28 = scalar_select %p25, %s27, %s18
      %p29 = scmp.ge.s32.totalorder %s28, 2
      %s30 = scalar_select %p29, 0, %s28
      %s31 = ssub.s32 %s18, %s30
      %p32 = scmp.eq.s32.totalorder %s31, 0
      %s34 = sadd.s32 %s33, 1
      %s35 = scalar_select %p32, %s33, %s34
      %p38 = pneg %p32
      %p39 = scmp.eq.s32.totalorder %s11, 1
      %p40 = por %p38, %p39
      %p41 = scmp.ne.s32.totalorder %s33, %s36
      %p42 = scmp.eq.s32.totalorder %s11, 0
      %p43 = por %p41, %p42
      %p44 = scmp.ne.s32.totalorder %s33, %s36
      %p45 = scmp.eq.s32.totalorder %s16, 1
      %p46 = por %p44, %p45
      %p47 = scmp.ne.s32.totalorder %s36, %s37
      %p48 = scmp.eq.s32.totalorder %s16, 0
      %p49 = por %p47, %p48
      %p50 = scmp.ne.s32.totalorder %s36, %s37
      %p51 = scmp.eq.s32.totalorder %s17, 1
      %p52 = por %p50, %p51
      %p54 = scmp.ne.s32.totalorder %s37, %s53
      %p55 = scmp.eq.s32.totalorder %s17, 0
      %p56 = por %p54, %p55
      %s58 = sadd.s32 %s57, 1
      %p61 = scmp.eq.s32.totalorder %s11, 1
      %p62 = scmp.ne.s32.totalorder %s57, %s59
      %p63 = scmp.eq.s32.totalorder %s11, 0
      %p64 = por %p62, %p63
      %p65 = scmp.ne.s32.totalorder %s57, %s59
      %p66 = scmp.eq.s32.totalorder %s16, 1
      %p67 = por %p65, %p66
      %p68 = scmp.ne.s32.totalorder %s59, %s60
      %p69 = scmp.eq.s32.totalorder %s16, 0
      %p70 = por %p68, %p69
      %p71 = scmp.ne.s32.totalorder %s59, %s60
      %p72 = scmp.eq.s32.totalorder %s17, 1
      %p73 = por %p71, %p72
      %p75 = scmp.ne.s32.totalorder %s60, %s74
      %p76 = scmp.eq.s32.totalorder %s17, 0
      %p77 = por %p75, %p76
      %s79 = sadd.s32 %s78, 1
      %p82 = scmp.eq.s32.totalorder %s11, 1
      %p83 = scmp.ne.s32.totalorder %s78, %s80
      %p84 = scmp.eq.s32.totalorder %s11, 0
      %p85 = por %p83, %p84
      %p86 = scmp.ne.s32.totalorder %s78, %s80
      %p87 = scmp.eq.s32.totalorder %s16, 1
      %p88 = por %p86, %p87
      %p89 = scmp.ne.s32.totalorder %s80, %s81
      %p90 = scmp.eq.s32.totalorder %s16, 0
      %p91 = por %p89, %p90
      %p92 = scmp.ne.s32.totalorder %s80, %s81
      %p93 = scmp.eq.s32.totalorder %s17, 1
      %p94 = por %p92, %p93
      %p96 = scmp.ne.s32.totalorder %s81, %s95
      %p97 = scmp.eq.s32.totalorder %s17, 0
      %p98 = por %p96, %p97
      %s99 = ssub.s32 %s18, %s30
      %s100 = ssub.s32 %s19, %s26
      %s101 = sor.u32 %s99, %s100
      %p102 = scmp.eq.s32.totalorder %s101, 0
      %s104 = sadd.s32 %s103, 1
      %s105 = scalar_select %p102, %s103, %s104
      %p108 = pneg %p102
      %p109 = scmp.eq.s32.totalorder %s11, 1
      %p110 = por %p108, %p109
      %p111 = scmp.ne.s32.totalorder %s103, %s106
      %p112 = scmp.eq.s32.totalorder %s11, 0
      %p113 = por %p111, %p112
      %p114 = scmp.ne.s32.totalorder %s103, %s106
      %p115 = scmp.eq.s32.totalorder %s16, 1
      %p116 = por %p114, %p115
      %p117 = scmp.ne.s32.totalorder %s106, %s107
      %p118 = scmp.eq.s32.totalorder %s16, 0
      %p119 = por %p117, %p118
      %p120 = scmp.ne.s32.totalorder %s106, %s107
      %p121 = scmp.eq.s32.totalorder %s17, 1
      %p122 = por %p120, %p121
      %p124 = scmp.ne.s32.totalorder %s107, %s123
      %p125 = scmp.eq.s32.totalorder %s17, 0
      %p126 = por %p124, %p125
      %p127 = scmp.le.s32.totalorder 1, %s11
      %p128 = scmp.lt.s32.totalorder %s11, 3
      %p129 = pnand %p127, %p128
      %p130 = pneg %p129
      // Predicated region
      $region9: #{disc_forward.5} parent=5 // pred_check
        _
      $region10: #{disc_forward.5} parent=5 // pred_check_branch
        %132 = sbr.rel (%p129) target = $region12
      $region11: #{disc_forward.5} parent=5 // pred_region
        %s133 = ssub.s32 %s11, 1
        // Predicated region
        $region13: #{disc_forward.5} parent=11 // pred_check
          %p134 = pneg %p70
        $region14: #{disc_forward.5} parent=11 // pred_check_branch
          %136 = sbr.rel (%p134) target = $region16
        $region15: #{disc_forward.5} parent=11 // pred_region
          %s138 = ssub.s32 8192, 8192
          %139 = vsyncadd [#allocation3], %s138
          %s140 = sshll.u32 [#allocation2], 4
          %s141 = int_to_ptr.vmem [resolvable:$true] %s140
          %146 = dma.hbm_to_vmem [thread:$0]  %s1, 8192, %s141, [#allocation3], 64, 64, 4
        $region16: #{disc_forward.5} parent=11 // pred_fallthru
          _
        // Predicated region
        $region17: #{disc_forward.5} parent=11 // pred_check
          %p147 = pneg %p91
        $region18: #{disc_forward.5} parent=11 // pred_check_branch
          %149 = sbr.rel (%p147) target = $region20
        $region19: #{disc_forward.5} parent=11 // pred_region
          %s151 = ssub.s32 16, 16
          %152 = vsyncadd [#allocation5], %s151
          %s154 = sshll.u32 [#allocation4], 4
          %s155 = int_to_ptr.vmem [resolvable:$true] %s154
          %157 = dma.hbm_to_vmem [thread:$0]  %s2, 16, %s155, [#allocation5]
        $region20: #{disc_forward.5} parent=11 // pred_fallthru
          _
      $region12: #{disc_forward.5} parent=5 // pred_fallthru
        _
      %p158 = scmp.lt.s32.totalorder %s11, 2
      // Predicated region
      $region21: #{disc_forward.5} parent=5 // pred_check
        %p159 = pneg %p158
      $region22: #{disc_forward.5} parent=5 // pred_check_branch
        %161 = sbr.rel (%p159) target = $region24
      $region23: #{disc_forward.5} parent=5 // pred_region
        // Predicated region
        $region25: #{disc_forward.5} parent=23 // pred_check
          %p162 = pneg %p43
        $region26: #{disc_forward.5} parent=23 // pred_check_branch
          %164 = sbr.rel (%p162) target = $region28
        $region27: #{disc_forward.5} parent=23 // pred_region
          %p165 = scmp.lt.s32.totalorder %s18, 1
          %s166 = scalar_select %p165, %s18, 1
          %s167 = smul.addr %s166, 8
          %s168 = smul.addr %s167, 4
          %s169 = scalar_lea.vmem %s0, %s168
        $region28: #{disc_forward.5} parent=23 // pred_fallthru
          _
      $region24: #{disc_forward.5} parent=5 // pred_fallthru
        _
      %p170 = scmp.le.s32.totalorder 1, %s11
      %p171 = scmp.lt.s32.totalorder %s11, 3
      %p172 = pnand %p170, %p171
      %p173 = pneg %p172
      // Predicated region
      $region29: #{disc_forward.5} parent=5 // pred_check
        _
      $region30: #{disc_forward.5} parent=5 // pred_check_branch
        %175 = sbr.rel (%p172) target = $region32
      $region31: #{disc_forward.5} parent=5 // pred_region
        %s176 = ssub.s32 %s11, 1
        // Predicated region
        $region33: #{disc_forward.5} parent=31 // pred_check
          %p177 = pneg %p70
        $region34: #{disc_forward.5} parent=31 // pred_check_branch
          %179 = sbr.rel (%p177) target = $region36
        $region35: #{disc_forward.5} parent=31 // pred_region
          %180 = dma.done [#allocation3], 8192
        $region36: #{disc_forward.5} parent=31 // pred_fallthru
          _
        // Predicated region
        $region37: #{disc_forward.5} parent=31 // pred_check
          %p181 = pneg %p91
        $region38: #{disc_forward.5} parent=31 // pred_check_branch
          %183 = sbr.rel (%p181) target = $region40
        $region39: #{disc_forward.5} parent=31 // pred_region
          %184 = dma.done [#allocation5], 16
        $region40: #{disc_forward.5} parent=31 // pred_fallthru
          _
        %p185 = scmp.lt.s32.totalorder %s20, 1
        %s186 = scalar_select %p185, %s20, 1
        %s187 = smul.addr %s186, 8
        %s188 = smul.addr %s187, 4
        %s189 = scalar_lea.vmem %s0, %s188
        %p190 = pneg %p49
        %p191 = pneg %p46
        %p192 = pneg %p70
        %p193 = pneg %p67
        %p194 = pneg %p91
        %p195 = pneg %p88
        %p196 = pneg %p119
        %p197 = pneg %p116
        %s198 = smul.u32 3, %s21
        %p199 = scmp.lt.s32.totalorder %s20, 1
        %s200 = scalar_select %p199, %s20, 1
        %p201 = scmp.lt.s32.totalorder %s198, 2
        %s202 = scalar_select %p201, %s198, 2
        %s203 = smul.addr %s200, 3
        %s204 = sadd.s32 %s202, %s203
        %s205 = smul.addr %s204, 4
        %s206 = scalar_lea.vmem %s3, %s205
        %p207 = scmp.lt.s32.totalorder %s20, 1
        %s208 = scalar_select %p207, %s20, 1
        %s209 = smul.addr %s208, 8
        %s210 = smul.addr %s209, 4
        %s211 = scalar_lea.vmem %s0, %s210
        %s212 = smul.u32 3, %s21
        %p213 = scmp.lt.s32.totalorder %s20, 1
        %s214 = scalar_select %p213, %s20, 1
        %p215 = scmp.lt.s32.totalorder %s212, 2
        %s216 = scalar_select %p215, %s212, 2
        %s217 = smul.addr %s214, 3
        %s218 = sadd.s32 %s216, %s217
        %s219 = smul.addr %s218, 4
        %s220 = scalar_lea.vmem %s3, %s219
        %s221 = smul.u32 3, %s21
        %v223 = vld [vmem:[%s211] sm:$0xff]
        %v224 = vld [vmem:[%s211 + $0x8] sm:$0xff]
        %v225 = vld [vmem:[%s211 + $0x10] sm:$0x33]
        %v226 = vld [vmem:[#allocation2] sm:$0xf]
        %v227 = vld [vmem:[#allocation2 + $0x4] sm:$0xf]
        %v228 = vld [vmem:[#allocation2 + $0x8] sm:$0xf]
        %v229 = vld [vmem:[#allocation2 + $0xc] sm:$0xf]
        %v230 = vld [vmem:[#allocation2 + $0x10] sm:$0xf]
        %v231 = vld [vmem:[#allocation2 + $0x14] sm:$0xf]
        %v232 = vld [vmem:[#allocation2 + $0x18] sm:$0xf]
        %v233 = vld [vmem:[#allocation2 + $0x1c] sm:$0xf]
        %v234 = vld [vmem:[#allocation2 + $0x20] sm:$0xf]
        %v235 = vld [vmem:[#allocation2 + $0x24] sm:$0xf]
        %v236 = vld [vmem:[#allocation2 + $0x28] sm:$0xf]
        %v237 = vld [vmem:[#allocation2 + $0x2c] sm:$0xf]
        %v238 = vld [vmem:[#allocation2 + $0x30] sm:$0xf]
        %v239 = vld [vmem:[#allocation2 + $0x34] sm:$0xf]
        %v240 = vld [vmem:[#allocation2 + $0x38] sm:$0xf]
        %v241 = vld [vmem:[#allocation2 + $0x3c] sm:$0xf]
        %v242 = vld [vmem:[#allocation2 + $0x40] sm:$0xf]
        %v243 = vld [vmem:[#allocation2 + $0x44] sm:$0xf]
        %v244 = vld [vmem:[#allocation2 + $0x48] sm:$0xf]
        %v245 = vld [vmem:[#allocation2 + $0x4c] sm:$0xf]
        %v246 = vld [vmem:[#allocation2 + $0x50] sm:$0xf]
        %v247 = vld [vmem:[#allocation2 + $0x54] sm:$0xf]
        %v248 = vld [vmem:[#allocation2 + $0x58] sm:$0xf]
        %v249 = vld [vmem:[#allocation2 + $0x5c] sm:$0xf]
        %v250 = vld [vmem:[#allocation2 + $0x60] sm:$0xf]
        %v251 = vld [vmem:[#allocation2 + $0x64] sm:$0xf]
        %v252 = vld [vmem:[#allocation2 + $0x68] sm:$0xf]
        %v253 = vld [vmem:[#allocation2 + $0x6c] sm:$0xf]
        %v254 = vld [vmem:[#allocation2 + $0x70] sm:$0xf]
        %v255 = vld [vmem:[#allocation2 + $0x74] sm:$0xf]
        %v256 = vld [vmem:[#allocation2 + $0x78] sm:$0xf]
        %v257 = vld [vmem:[#allocation2 + $0x7c] sm:$0xf]
        %v258 = vld [vmem:[%s211 + $0x10] sm:$0x77]
        %s259 = scalar_lea.vmem [#allocation2], 128
        %v260 = vld [vmem:[%s259] sm:$0xf]
        %v261 = vld [vmem:[%s259 + $0x4] sm:$0xf]
        %v262 = vld [vmem:[%s259 + $0x8] sm:$0xf]
        %v263 = vld [vmem:[%s259 + $0xc] sm:$0xf]
        %v264 = vld [vmem:[%s259 + $0x10] sm:$0xf]
        %v265 = vld [vmem:[%s259 + $0x14] sm:$0xf]
        %v266 = vld [vmem:[%s259 + $0x18] sm:$0xf]
        %v267 = vld [vmem:[%s259 + $0x1c] sm:$0xf]
        %v268 = vld [vmem:[%s259 + $0x20] sm:$0xf]
        %v269 = vld [vmem:[%s259 + $0x24] sm:$0xf]
        %v270 = vld [vmem:[%s259 + $0x28] sm:$0xf]
        %v271 = vld [vmem:[%s259 + $0x2c] sm:$0xf]
        %v272 = vld [vmem:[%s259 + $0x30] sm:$0xf]
        %v273 = vld [vmem:[%s259 + $0x34] sm:$0xf]
        %v274 = vld [vmem:[%s259 + $0x38] sm:$0xf]
        %v275 = vld [vmem:[%s259 + $0x3c] sm:$0xf]
        %v276 = vld [vmem:[%s259 + $0x40] sm:$0xf]
        %v277 = vld [vmem:[%s259 + $0x44] sm:$0xf]
        %v278 = vld [vmem:[%s259 + $0x48] sm:$0xf]
        %v279 = vld [vmem:[%s259 + $0x4c] sm:$0xf]
        %v280 = vld [vmem:[%s259 + $0x50] sm:$0xf]
        %v281 = vld [vmem:[%s259 + $0x54] sm:$0xf]
        %v282 = vld [vmem:[%s259 + $0x58] sm:$0xf]
        %v283 = vld [vmem:[%s259 + $0x5c] sm:$0xf]
        %v284 = vld [vmem:[%s259 + $0x60] sm:$0xf]
        %v285 = vld [vmem:[%s259 + $0x64] sm:$0xf]
        %v286 = vld [vmem:[%s259 + $0x68] sm:$0xf]
        %v287 = vld [vmem:[%s259 + $0x6c] sm:$0xf]
        %v288 = vld [vmem:[%s259 + $0x70] sm:$0xf]
        %v289 = vld [vmem:[%s259 + $0x74] sm:$0xf]
        %v290 = vld [vmem:[%s259 + $0x78] sm:$0xf]
        %v291 = vld [vmem:[%s259 + $0x7c] sm:$0xf]
        %v295 = vunpack.c.l.b16 %v223
        %v296 = vunpack.c.h.b16 %v223
        %v297 = vunpack.c.l.b16 %v224
        %v298 = vunpack.c.h.b16 %v224
        %v299 = vunpack.c.l.b16 %v258
        %v300 = vunpack.c.h.b16 %v258
        %v301 = vpack.c.b16 %v297, %v295
        %v302 = vpack.c.b16 %v298, %v296
        %v303 = vpack.c.b16 %v299, %v299
        %v304 = vpack.c.b16 %v300, %v300
        %vm305 = vsmask.f32 7424
        %v307 = vshrl.u32 %v301, 16
        %v309 = vshll.u32 %v301, 16
        %v311 = vrot.slane %v309, 1
        %v312 = vor.u32 %v307, %v311
        %v314 = vshll.u32 %v303, 16
        %v316 = vrot.slane %v314, 1
        %v317 = vsel %vm305, %v312, %v316
        %v319 = vshrl.u32 %v302, 16
        %v321 = vshll.u32 %v302, 16
        %v323 = vrot.slane %v321, 1
        %v324 = vor.u32 %v319, %v323
        %v326 = vshll.u32 %v304, 16
        %v328 = vrot.slane %v326, 1
        %v329 = vsel %vm305, %v324, %v328
        %v330 = vshrl.u32 %v303, 16
        %v332 = vor.u32 %v330, %v316
        %v333 = vshrl.u32 %v304, 16
        %v335 = vor.u32 %v333, %v328
        %v372 = vunpack.c.l.b16 %v260
        %v373 = vunpack.c.l.b16 %v261
        %v374 = vunpack.c.l.b16 %v262
        %v375 = vunpack.c.l.b16 %v263
        %v376 = vunpack.c.l.b16 %v264
        %v377 = vunpack.c.l.b16 %v265
        %v378 = vunpack.c.l.b16 %v266
        %v379 = vunpack.c.l.b16 %v267
        %v380 = vunpack.c.l.b16 %v268
        %v381 = vunpack.c.l.b16 %v269
        %v382 = vunpack.c.l.b16 %v270
        %v383 = vunpack.c.l.b16 %v271
        %v384 = vunpack.c.l.b16 %v272
        %v385 = vunpack.c.l.b16 %v273
        %v386 = vunpack.c.l.b16 %v274
        %v387 = vunpack.c.l.b16 %v275
        %v388 = vunpack.c.l.b16 %v276
        %v389 = vunpack.c.l.b16 %v277
        %v390 = vunpack.c.l.b16 %v278
        %v391 = vunpack.c.l.b16 %v279
        %v392 = vunpack.c.l.b16 %v280
        %v393 = vunpack.c.l.b16 %v281
        %v394 = vunpack.c.l.b16 %v282
        %v395 = vunpack.c.l.b16 %v283
        %v396 = vunpack.c.l.b16 %v284
        %v397 = vunpack.c.l.b16 %v285
        %v398 = vunpack.c.l.b16 %v286
        %v399 = vunpack.c.l.b16 %v287
        %v400 = vunpack.c.l.b16 %v288
        %v401 = vunpack.c.l.b16 %v289
        %v402 = vunpack.c.l.b16 %v290
        %v403 = vunpack.c.l.b16 %v291
        %v404 = vpack.c.b16 %v373, %v372
        %v405 = vpack.c.b16 %v375, %v374
        %v406 = vpack.c.b16 %v377, %v376
        %v407 = vpack.c.b16 %v379, %v378
        %v408 = vpack.c.b16 %v381, %v380
        %v409 = vpack.c.b16 %v383, %v382
        %v410 = vpack.c.b16 %v385, %v384
        %v411 = vpack.c.b16 %v387, %v386
        %v412 = vpack.c.b16 %v389, %v388
        %v413 = vpack.c.b16 %v391, %v390
        %v414 = vpack.c.b16 %v393, %v392
        %v415 = vpack.c.b16 %v395, %v394
        %v416 = vpack.c.b16 %v397, %v396
        %v417 = vpack.c.b16 %v399, %v398
        %v418 = vpack.c.b16 %v401, %v400
        %v419 = vpack.c.b16 %v403, %v402
        %436 = vmatprep.subr.bf16.mxu0 0
        %437 = vmatpush1.bf16.msra.mxu0 %v404
        %438 = vmatprep.subr.bf16.mxu0 0
        %439 = vmatpush1.bf16.msra.mxu0 %v405
        %440 = vmatprep.subr.bf16.mxu0 0
        %441 = vmatpush1.bf16.msra.mxu0 %v406
        %442 = vmatprep.subr.bf16.mxu0 0
        %443 = vmatpush1.bf16.msra.mxu0 %v407
        %444 = vmatprep.subr.bf16.mxu0 0
        %445 = vmatpush1.bf16.msra.mxu0 %v408
        %446 = vmatprep.subr.bf16.mxu0 0
        %447 = vmatpush1.bf16.msra.mxu0 %v409
        %448 = vmatprep.subr.bf16.mxu0 0
        %449 = vmatpush1.bf16.msra.mxu0 %v410
        %450 = vmatprep.subr.bf16.mxu0 0
        %451 = vmatpush1.bf16.msra.mxu0 %v411
        %452 = vmatprep.subr.bf16.mxu0 0
        %453 = vmatpush1.bf16.msra.mxu0 %v412
        %454 = vmatprep.subr.bf16.mxu0 0
        %455 = vmatpush1.bf16.msra.mxu0 %v413
        %456 = vmatprep.subr.bf16.mxu0 0
        %457 = vmatpush1.bf16.msra.mxu0 %v414
        %458 = vmatprep.subr.bf16.mxu0 0
        %459 = vmatpush1.bf16.msra.mxu0 %v415
        %460 = vmatprep.subr.bf16.mxu0 0
        %461 = vmatpush1.bf16.msra.mxu0 %v416
        %462 = vmatprep.subr.bf16.mxu0 0
        %463 = vmatpush1.bf16.msra.mxu0 %v417
        %464 = vmatprep.subr.bf16.mxu0 0
        %465 = vmatpush1.bf16.msra.mxu0 %v418
        %466 = vmatprep.subr.bf16.mxu0 0
        %467 = vmatpush1.bf16.msra.mxu0 %v419
        %468 = vmatprep.mubr.bf16.mxu0 %v329
        %469 = vmatmul.mubr.bf16.gmra.mrb[0].mxu0 %v317
        %v470 = vpop.f32.mrb[0].mxu0
        %v471 = vadd.f32 0.0, %v470
        %v472 = vpop.f32.mrb[0].mxu0
        %v473 = vpop.f32.mrb[0].mxu0
        %v474 = vadd.f32 0.0, %v473
        %v475 = vpop.f32.mrb[0].mxu0
        %476 = vmatprep.mubr.bf16.mxu0 %v335
        %477 = vmatmul.mubr.bf16.gmra.mrb[0].mxu0 %v332
        %v478 = vpop.f32.mrb[0].mxu0
        %v479 = vadd.f32 0.0, %v478
        %v480 = vpop.f32.mrb[0].mxu0
        %v481 = vpop.f32.mrb[0].mxu0
        %v482 = vpop.f32.mrb[0].mxu0
        %483 = vdwg.mxu0
        %v485 = vunpack.c.l.b16 %v225
        %v486 = vunpack.c.h.b16 %v225
        %v487 = vpack.c.b16 %v485, %v485
        %v488 = vpack.c.b16 %v486, %v486
        %v525 = vunpack.c.l.b16 %v226
        %v526 = vunpack.c.l.b16 %v227
        %v527 = vunpack.c.l.b16 %v228
        %v528 = vunpack.c.l.b16 %v229
        %v529 = vunpack.c.l.b16 %v230
        %v530 = vunpack.c.l.b16 %v231
        %v531 = vunpack.c.l.b16 %v232
        %v532 = vunpack.c.l.b16 %v233
        %v533 = vunpack.c.l.b16 %v234
        %v534 = vunpack.c.l.b16 %v235
        %v535 = vunpack.c.l.b16 %v236
        %v536 = vunpack.c.l.b16 %v237
        %v537 = vunpack.c.l.b16 %v238
        %v538 = vunpack.c.l.b16 %v239
        %v539 = vunpack.c.l.b16 %v240
        %v540 = vunpack.c.l.b16 %v241
        %v541 = vunpack.c.l.b16 %v242
        %v542 = vunpack.c.l.b16 %v243
        %v543 = vunpack.c.l.b16 %v244
        %v544 = vunpack.c.l.b16 %v245
        %v545 = vunpack.c.l.b16 %v246
        %v546 = vunpack.c.l.b16 %v247
        %v547 = vunpack.c.l.b16 %v248
        %v548 = vunpack.c.l.b16 %v249
        %v549 = vunpack.c.l.b16 %v250
        %v550 = vunpack.c.l.b16 %v251
        %v551 = vunpack.c.l.b16 %v252
        %v552 = vunpack.c.l.b16 %v253
        %v553 = vunpack.c.l.b16 %v254
        %v554 = vunpack.c.l.b16 %v255
        %v555 = vunpack.c.l.b16 %v256
        %v556 = vunpack.c.l.b16 %v257
        %v557 = vpack.c.b16 %v526, %v525
        %v558 = vpack.c.b16 %v528, %v527
        %v559 = vpack.c.b16 %v530, %v529
        %v560 = vpack.c.b16 %v532, %v531
        %v561 = vpack.c.b16 %v534, %v533
        %v562 = vpack.c.b16 %v536, %v535
        %v563 = vpack.c.b16 %v538, %v537
        %v564 = vpack.c.b16 %v540, %v539
        %v565 = vpack.c.b16 %v542, %v541
        %v566 = vpack.c.b16 %v544, %v543
        %v567 = vpack.c.b16 %v546, %v545
        %v568 = vpack.c.b16 %v548, %v547
        %v569 = vpack.c.b16 %v550, %v549
        %v570 = vpack.c.b16 %v552, %v551
        %v571 = vpack.c.b16 %v554, %v553
        %v572 = vpack.c.b16 %v556, %v555
        %589 = vmatprep.subr.bf16.mxu0 0
        %590 = vmatpush1.bf16.msra.mxu0 %v557
        %591 = vmatprep.subr.bf16.mxu0 0
        %592 = vmatpush1.bf16.msra.mxu0 %v558
        %593 = vmatprep.subr.bf16.mxu0 0
        %594 = vmatpush1.bf16.msra.mxu0 %v559
        %595 = vmatprep.subr.bf16.mxu0 0
        %596 = vmatpush1.bf16.msra.mxu0 %v560
        %597 = vmatprep.subr.bf16.mxu0 0
        %598 = vmatpush1.bf16.msra.mxu0 %v561
        %599 = vmatprep.subr.bf16.mxu0 0
        %600 = vmatpush1.bf16.msra.mxu0 %v562
        %601 = vmatprep.subr.bf16.mxu0 0
        %602 = vmatpush1.bf16.msra.mxu0 %v563
        %603 = vmatprep.subr.bf16.mxu0 0
        %604 = vmatpush1.bf16.msra.mxu0 %v564
        %605 = vmatprep.subr.bf16.mxu0 0
        %606 = vmatpush1.bf16.msra.mxu0 %v565
        %607 = vmatprep.subr.bf16.mxu0 0
        %608 = vmatpush1.bf16.msra.mxu0 %v566
        %609 = vmatprep.subr.bf16.mxu0 0
        %610 = vmatpush1.bf16.msra.mxu0 %v567
        %611 = vmatprep.subr.bf16.mxu0 0
        %612 = vmatpush1.bf16.msra.mxu0 %v568
        %613 = vmatprep.subr.bf16.mxu0 0
        %614 = vmatpush1.bf16.msra.mxu0 %v569
        %615 = vmatprep.subr.bf16.mxu0 0
        %616 = vmatpush1.bf16.msra.mxu0 %v570
        %617 = vmatprep.subr.bf16.mxu0 0
        %618 = vmatpush1.bf16.msra.mxu0 %v571
        %619 = vmatprep.subr.bf16.mxu0 0
        %620 = vmatpush1.bf16.msra.mxu0 %v572
        %621 = vmatprep.mubr.bf16.mxu0 %v302
        %622 = vmatmul.mubr.bf16.gmra.mrb[0].mxu0 %v301
        %v623 = vpop.f32.mrb[0].mxu0
        %v624 = vadd.f32 %v471, %v623
        %v625 = vpop.f32.mrb[0].mxu0
        %v626 = vpop.f32.mrb[0].mxu0
        %v627 = vadd.f32 %v474, %v626
        %v628 = vpop.f32.mrb[0].mxu0
        %629 = vmatprep.mubr.bf16.mxu0 %v488
        %630 = vmatmul.mubr.bf16.gmra.mrb[0].mxu0 %v487
        %v631 = vpop.f32.mrb[0].mxu0
        %v632 = vadd.f32 %v479, %v631
        %v633 = vpop.f32.mrb[0].mxu0
        %v634 = vpop.f32.mrb[0].mxu0
        %v635 = vpop.f32.mrb[0].mxu0
        %636 = vdwg.mxu0
        %v637 = vld [vmem:[%s211] sm:$0xcc]
        %v638 = vld [vmem:[%s211 + $0x8] sm:$0xff]
        %v639 = vld [vmem:[%s211 + $0x10] sm:$0xff]
        %v640 = vld [vmem:[%s211 + $0x18] sm:$0x11]
        %s641 = scalar_lea.vmem [#allocation2], 256
        %v642 = vld [vmem:[%s641] sm:$0xf]
        %v643 = vld [vmem:[%s641 + $0x4] sm:$0xf]
        %v644 = vld [vmem:[%s641 + $0x8] sm:$0xf]
        %v645 = vld [vmem:[%s641 + $0xc] sm:$0xf]
        %v646 = vld [vmem:[%s641 + $0x10] sm:$0xf]
        %v647 = vld [vmem:[%s641 + $0x14] sm:$0xf]
        %v648 = vld [vmem:[%s641 + $0x18] sm:$0xf]
        %v649 = vld [vmem:[%s641 + $0x1c] sm:$0xf]
        %v650 = vld [vmem:[%s641 + $0x20] sm:$0xf]
        %v651 = vld [vmem:[%s641 + $0x24] sm:$0xf]
        %v652 = vld [vmem:[%s641 + $0x28] sm:$0xf]
        %v653 = vld [vmem:[%s641 + $0x2c] sm:$0xf]
        %v654 = vld [vmem:[%s641 + $0x30] sm:$0xf]
        %v655 = vld [vmem:[%s641 + $0x34] sm:$0xf]
        %v656 = vld [vmem:[%s641 + $0x38] sm:$0xf]
        %v657 = vld [vmem:[%s641 + $0x3c] sm:$0xf]
        %v658 = vld [vmem:[%s641 + $0x40] sm:$0xf]
        %v659 = vld [vmem:[%s641 + $0x44] sm:$0xf]
        %v660 = vld [vmem:[%s641 + $0x48] sm:$0xf]
        %v661 = vld [vmem:[%s641 + $0x4c] sm:$0xf]
        %v662 = vld [vmem:[%s641 + $0x50] sm:$0xf]
        %v663 = vld [vmem:[%s641 + $0x54] sm:$0xf]
        %v664 = vld [vmem:[%s641 + $0x58] sm:$0xf]
        %v665 = vld [vmem:[%s641 + $0x5c] sm:$0xf]
        %v666 = vld [vmem:[%s641 + $0x60] sm:$0xf]
        %v667 = vld [vmem:[%s641 + $0x64] sm:$0xf]
        %v668 = vld [vmem:[%s641 + $0x68] sm:$0xf]
        %v669 = vld [vmem:[%s641 + $0x6c] sm:$0xf]
        %v670 = vld [vmem:[%s641 + $0x70] sm:$0xf]
        %v671 = vld [vmem:[%s641 + $0x74] sm:$0xf]
        %v672 = vld [vmem:[%s641 + $0x78] sm:$0xf]
        %v673 = vld [vmem:[%s641 + $0x7c] sm:$0xf]
        %v678 = vunpack.c.l.b16 %v637
        %v679 = vunpack.c.h.b16 %v637
        %v680 = vunpack.c.l.b16 %v638
        %v681 = vunpack.c.h.b16 %v638
        %v682 = vunpack.c.l.b16 %v639
        %v683 = vunpack.c.h.b16 %v639
        %v684 = vunpack.c.l.b16 %v640
        %v685 = vunpack.c.h.b16 %v640
        %v686 = vpack.c.b16 %v680, %v678
        %v687 = vpack.c.b16 %v681, %v679
        %v688 = vpack.c.b16 %v684, %v682
        %v689 = vpack.c.b16 %v685, %v683
        %vm690 = vsmask.f32 5376
        %v692 = vshrl.u32 %v686, 16
        %v694 = vrot.slane %v692, 2
        %v695 = vshll.u32 %v686, 16
        %v697 = vrot.slane %v695, 3
        %v698 = vor.u32 %v694, %v697
        %v700 = vshrl.u32 %v688, 16
        %v702 = vrot.slane %v700, 2
        %v703 = vshll.u32 %v688, 16
        %v705 = vrot.slane %v703, 3
        %v706 = vor.u32 %v702, %v705
        %v707 = vsel %vm690, %v698, %v706
        %v709 = vshrl.u32 %v687, 16
        %v711 = vrot.slane %v709, 2
        %v712 = vshll.u32 %v687, 16
        %v714 = vrot.slane %v712, 3
        %v715 = vor.u32 %v711, %v714
        %v717 = vshrl.u32 %v689, 16
        %v719 = vrot.slane %v717, 2
        %v720 = vshll.u32 %v689, 16
        %v722 = vrot.slane %v720, 3
        %v723 = vor.u32 %v719, %v722
        %v724 = vsel %vm690, %v715, %v723
        %v761 = vunpack.c.l.b16 %v642
        %v762 = vunpack.c.l.b16 %v643
        %v763 = vunpack.c.l.b16 %v644
        %v764 = vunpack.c.l.b16 %v645
        %v765 = vunpack.c.l.b16 %v646
        %v766 = vunpack.c.l.b16 %v647
        %v767 = vunpack.c.l.b16 %v648
        %v768 = vunpack.c.l.b16 %v649
        %v769 = vunpack.c.l.b16 %v650
        %v770 = vunpack.c.l.b16 %v651
        %v771 = vunpack.c.l.b16 %v652
        %v772 = vunpack.c.l.b16 %v653
        %v773 = vunpack.c.l.b16 %v654
        %v774 = vunpack.c.l.b16 %v655
        %v775 = vunpack.c.l.b16 %v656
        %v776 = vunpack.c.l.b16 %v657
        %v777 = vunpack.c.l.b16 %v658
        %v778 = vunpack.c.l.b16 %v659
        %v779 = vunpack.c.l.b16 %v660
        %v780 = vunpack.c.l.b16 %v661
        %v781 = vunpack.c.l.b16 %v662
        %v782 = vunpack.c.l.b16 %v663
        %v783 = vunpack.c.l.b16 %v664
        %v784 = vunpack.c.l.b16 %v665
        %v785 = vunpack.c.l.b16 %v666
        %v786 = vunpack.c.l.b16 %v667
        %v787 = vunpack.c.l.b16 %v668
        %v788 = vunpack.c.l.b16 %v669
        %v789 = vunpack.c.l.b16 %v670
        %v790 = vunpack.c.l.b16 %v671
        %v791 = vunpack.c.l.b16 %v672
        %v792 = vunpack.c.l.b16 %v673
        %v793 = vpack.c.b16 %v762, %v761
        %v794 = vpack.c.b16 %v764, %v763
        %v795 = vpack.c.b16 %v766, %v765
        %v796 = vpack.c.b16 %v768, %v767
        %v797 = vpack.c.b16 %v770, %v769
        %v798 = vpack.c.b16 %v772, %v771
        %v799 = vpack.c.b16 %v774, %v773
        %v800 = vpack.c.b16 %v776, %v775
        %v801 = vpack.c.b16 %v778, %v777
        %v802 = vpack.c.b16 %v780, %v779
        %v803 = vpack.c.b16 %v782, %v781
        %v804 = vpack.c.b16 %v784, %v783
        %v805 = vpack.c.b16 %v786, %v785
        %v806 = vpack.c.b16 %v788, %v787
        %v807 = vpack.c.b16 %v790, %v789
        %v808 = vpack.c.b16 %v792, %v791
        %825 = vmatprep.subr.bf16.mxu0 0
        %826 = vmatpush1.bf16.msra.mxu0 %v793
        %827 = vmatprep.subr.bf16.mxu0 0
        %828 = vmatpush1.bf16.msra.mxu0 %v794
        %829 = vmatprep.subr.bf16.mxu0 0
        %830 = vmatpush1.bf16.msra.mxu0 %v795
        %831 = vmatprep.subr.bf16.mxu0 0
        %832 = vmatpush1.bf16.msra.mxu0 %v796
        %833 = vmatprep.subr.bf16.mxu0 0
        %834 = vmatpush1.bf16.msra.mxu0 %v797
        %835 = vmatprep.subr.bf16.mxu0 0
        %836 = vmatpush1.bf16.msra.mxu0 %v798
        %837 = vmatprep.subr.bf16.mxu0 0
        %838 = vmatpush1.bf16.msra.mxu0 %v799
        %839 = vmatprep.subr.bf16.mxu0 0
        %840 = vmatpush1.bf16.msra.mxu0 %v800
        %841 = vmatprep.subr.bf16.mxu0 0
        %842 = vmatpush1.bf16.msra.mxu0 %v801
        %843 = vmatprep.subr.bf16.mxu0 0
        %844 = vmatpush1.bf16.msra.mxu0 %v802
        %845 = vmatprep.subr.bf16.mxu0 0
        %846 = vmatpush1.bf16.msra.mxu0 %v803
        %847 = vmatprep.subr.bf16.mxu0 0
        %848 = vmatpush1.bf16.msra.mxu0 %v804
        %849 = vmatprep.subr.bf16.mxu0 0
        %850 = vmatpush1.bf16.msra.mxu0 %v805
        %851 = vmatprep.subr.bf16.mxu0 0
        %852 = vmatpush1.bf16.msra.mxu0 %v806
        %853 = vmatprep.subr.bf16.mxu0 0
        %854 = vmatpush1.bf16.msra.mxu0 %v807
        %855 = vmatprep.subr.bf16.mxu0 0
        %856 = vmatpush1.bf16.msra.mxu0 %v808
        %857 = vmatprep.mubr.bf16.mxu0 %v724
        %858 = vmatmul.mubr.bf16.gmra.mrb[0].mxu0 %v707
        %v859 = vpop.f32.mrb[0].mxu0
        %v860 = vadd.f32 0.0, %v859
        %v861 = vpop.f32.mrb[0].mxu0
        %v862 = vpop.f32.mrb[0].mxu0
        %v863 = vadd.f32 0.0, %v862
        %v864 = vpop.f32.mrb[0].mxu0
        %865 = vmatprep.mubr.bf16.mxu0 %v723
        %866 = vmatmul.mubr.bf16.gmra.mrb[0].mxu0 %v706
        %v867 = vpop.f32.mrb[0].mxu0
        %v868 = vadd.f32 0.0, %v867
        %v869 = vpop.f32.mrb[0].mxu0
        %v870 = vpop.f32.mrb[0].mxu0
        %v871 = vpop.f32.mrb[0].mxu0
        %872 = vdwg.mxu0
        %v873 = vadd.f32 %v624, %v860
        %v874 = vadd.f32 %v627, %v863
        %v875 = vadd.f32 %v632, %v868
        %v876 = vld [vmem:[%s211] sm:$0x88]
        %s877 = scalar_lea.vmem [#allocation2], 384
        %v878 = vld [vmem:[%s877] sm:$0xf]
        %v879 = vld [vmem:[%s877 + $0x4] sm:$0xf]
        %v880 = vld [vmem:[%s877 + $0x8] sm:$0xf]
        %v881 = vld [vmem:[%s877 + $0xc] sm:$0xf]
        %v882 = vld [vmem:[%s877 + $0x10] sm:$0xf]
        %v883 = vld [vmem:[%s877 + $0x14] sm:$0xf]
        %v884 = vld [vmem:[%s877 + $0x18] sm:$0xf]
        %v885 = vld [vmem:[%s877 + $0x1c] sm:$0xf]
        %v886 = vld [vmem:[%s877 + $0x20] sm:$0xf]
        %v887 = vld [vmem:[%s877 + $0x24] sm:$0xf]
        %v888 = vld [vmem:[%s877 + $0x28] sm:$0xf]
        %v889 = vld [vmem:[%s877 + $0x2c] sm:$0xf]
        %v890 = vld [vmem:[%s877 + $0x30] sm:$0xf]
        %v891 = vld [vmem:[%s877 + $0x34] sm:$0xf]
        %v892 = vld [vmem:[%s877 + $0x38] sm:$0xf]
        %v893 = vld [vmem:[%s877 + $0x3c] sm:$0xf]
        %v894 = vld [vmem:[%s877 + $0x40] sm:$0xf]
        %v895 = vld [vmem:[%s877 + $0x44] sm:$0xf]
        %v896 = vld [vmem:[%s877 + $0x48] sm:$0xf]
        %v897 = vld [vmem:[%s877 + $0x4c] sm:$0xf]
        %v898 = vld [vmem:[%s877 + $0x50] sm:$0xf]
        %v899 = vld [vmem:[%s877 + $0x54] sm:$0xf]
        %v900 = vld [vmem:[%s877 + $0x58] sm:$0xf]
        %v901 = vld [vmem:[%s877 + $0x5c] sm:$0xf]
        %v902 = vld [vmem:[%s877 + $0x60] sm:$0xf]
        %v903 = vld [vmem:[%s877 + $0x64] sm:$0xf]
        %v904 = vld [vmem:[%s877 + $0x68] sm:$0xf]
        %v905 = vld [vmem:[%s877 + $0x6c] sm:$0xf]
        %v906 = vld [vmem:[%s877 + $0x70] sm:$0xf]
        %v907 = vld [vmem:[%s877 + $0x74] sm:$0xf]
        %v908 = vld [vmem:[%s877 + $0x78] sm:$0xf]
        %v909 = vld [vmem:[%s877 + $0x7c] sm:$0xf]
        %v911 = vunpack.c.l.b16 %v876
        %v912 = vunpack.c.h.b16 %v876
        %v913 = vpack.c.b16 %v680, %v911
        %v914 = vpack.c.b16 %v681, %v912
        %vm915 = vcmask 1044480
        %v916 = vrot.slane %v913, 3
        %v917 = vrot.slane %v688, 3
        %v918 = vsel %vm915, %v916, %v917
        %v919 = vrot.slane %v914, 3
        %v920 = vrot.slane %v689, 3
        %v921 = vsel %vm915, %v919, %v920
        %v958 = vunpack.c.l.b16 %v878
        %v959 = vunpack.c.l.b16 %v879
        %v960 = vunpack.c.l.b16 %v880
        %v961 = vunpack.c.l.b16 %v881
        %v962 = vunpack.c.l.b16 %v882
        %v963 = vunpack.c.l.b16 %v883
        %v964 = vunpack.c.l.b16 %v884
        %v965 = vunpack.c.l.b16 %v885
        %v966 = vunpack.c.l.b16 %v886
        %v967 = vunpack.c.l.b16 %v887
        %v968 = vunpack.c.l.b16 %v888
        %v969 = vunpack.c.l.b16 %v889
        %v970 = vunpack.c.l.b16 %v890
        %v971 = vunpack.c.l.b16 %v891
        %v972 = vunpack.c.l.b16 %v892
        %v973 = vunpack.c.l.b16 %v893
        %v974 = vunpack.c.l.b16 %v894
        %v975 = vunpack.c.l.b16 %v895
        %v976 = vunpack.c.l.b16 %v896
        %v977 = vunpack.c.l.b16 %v897
        %v978 = vunpack.c.l.b16 %v898
        %v979 = vunpack.c.l.b16 %v899
        %v980 = vunpack.c.l.b16 %v900
        %v981 = vunpack.c.l.b16 %v901
        %v982 = vunpack.c.l.b16 %v902
        %v983 = vunpack.c.l.b16 %v903
        %v984 = vunpack.c.l.b16 %v904
        %v985 = vunpack.c.l.b16 %v905
        %v986 = vunpack.c.l.b16 %v906
        %v987 = vunpack.c.l.b16 %v907
        %v988 = vunpack.c.l.b16 %v908
        %v989 = vunpack.c.l.b16 %v909
        %v990 = vpack.c.b16 %v959, %v958
        %v991 = vpack.c.b16 %v961, %v960
        %v992 = vpack.c.b16 %v963, %v962
        %v993 = vpack.c.b16 %v965, %v964
        %v994 = vpack.c.b16 %v967, %v966
        %v995 = vpack.c.b16 %v969, %v968
        %v996 = vpack.c.b16 %v971, %v970
        %v997 = vpack.c.b16 %v973, %v972
        %v998 = vpack.c.b16 %v975, %v974
        %v999 = vpack.c.b16 %v977, %v976
        %v1000 = vpack.c.b16 %v979, %v978
        %v1001 = vpack.c.b16 %v981, %v980
        %v1002 = vpack.c.b16 %v983, %v982
        %v1003 = vpack.c.b16 %v985, %v984
        %v1004 = vpack.c.b16 %v987, %v986
        %v1005 = vpack.c.b16 %v989, %v988
        %1022 = vmatprep.subr.bf16.mxu0 0
        %1023 = vmatpush1.bf16.msra.mxu0 %v990
        %1024 = vmatprep.subr.bf16.mxu0 0
        %1025 = vmatpush1.bf16.msra.mxu0 %v991
        %1026 = vmatprep.subr.bf16.mxu0 0
        %1027 = vmatpush1.bf16.msra.mxu0 %v992
        %1028 = vmatprep.subr.bf16.mxu0 0
        %1029 = vmatpush1.bf16.msra.mxu0 %v993
        %1030 = vmatprep.subr.bf16.mxu0 0
        %1031 = vmatpush1.bf16.msra.mxu0 %v994
        %1032 = vmatprep.subr.bf16.mxu0 0
        %1033 = vmatpush1.bf16.msra.mxu0 %v995
        %1034 = vmatprep.subr.bf16.mxu0 0
        %1035 = vmatpush1.bf16.msra.mxu0 %v996
        %1036 = vmatprep.subr.bf16.mxu0 0
        %1037 = vmatpush1.bf16.msra.mxu0 %v997
        %1038 = vmatprep.subr.bf16.mxu0 0
        %1039 = vmatpush1.bf16.msra.mxu0 %v998
        %1040 = vmatprep.subr.bf16.mxu0 0
        %1041 = vmatpush1.bf16.msra.mxu0 %v999
        %1042 = vmatprep.subr.bf16.mxu0 0
        %1043 = vmatpush1.bf16.msra.mxu0 %v1000
        %1044 = vmatprep.subr.bf16.mxu0 0
        %1045 = vmatpush1.bf16.msra.mxu0 %v1001
        %1046 = vmatprep.subr.bf16.mxu0 0
        %1047 = vmatpush1.bf16.msra.mxu0 %v1002
        %1048 = vmatprep.subr.bf16.mxu0 0
        %1049 = vmatpush1.bf16.msra.mxu0 %v1003
        %1050 = vmatprep.subr.bf16.mxu0 0
        %1051 = vmatpush1.bf16.msra.mxu0 %v1004
        %1052 = vmatprep.subr.bf16.mxu0 0
        %1053 = vmatpush1.bf16.msra.mxu0 %v1005
        %1054 = vmatprep.mubr.bf16.mxu0 %v921
        %1055 = vmatmul.mubr.bf16.gmra.mrb[0].mxu0 %v918
        %v1056 = vpop.f32.mrb[0].mxu0
        %v1057 = vadd.f32 0.0, %v1056
        %v1058 = vpop.f32.mrb[0].mxu0
        %v1059 = vpop.f32.mrb[0].mxu0
        %v1060 = vadd.f32 0.0, %v1059
        %v1061 = vpop.f32.mrb[0].mxu0
        %1062 = vmatprep.mubr.bf16.mxu0 %v920
        %1063 = vmatmul.mubr.bf16.gmra.mrb[0].mxu0 %v917
        %v1064 = vpop.f32.mrb[0].mxu0
        %v1065 = vadd.f32 0.0, %v1064
        %v1066 = vpop.f32.mrb[0].mxu0
        %v1067 = vpop.f32.mrb[0].mxu0
        %v1068 = vpop.f32.mrb[0].mxu0
        %1069 = vdwg.mxu0
        %v1070 = vadd.f32 %v873, %v1057
        %v1071 = vadd.f32 %v874, %v1060
        %v1072 = vadd.f32 %v875, %v1065
        %v1073 = vld [vmem:[#allocation4] sm:$0x1]
        %v1075 = vlaneseq
        %v1076 = vshrl.u32 %v1075, 7
        %v1077 = vsub.s32 0, %v1076
        %v1078 = vrot.slane %v1073, %v1077
        %v1080 = vadd.f32 %v1070, %v1078
        %v1081 = vadd.f32 %v1071, %v1078
        %v1082 = vadd.f32 %v1072, %v1078
        %v1083 = vtanh.pop %v1080
        %v1084 = vtanh.pop %v1081
        %v1085 = vtanh.pop %v1082
        %v1086 = vpack.c.bf16 %v1084, %v1083
        %v1087 = vpack.c.bf16 %v1085, %v1085
        %v1090 = vunpack.c.l.b16 %v1086
        %v1091 = vunpack.c.h.b16 %v1086
        %v1092 = vunpack.c.l.b16 %v1087
        %v1093 = vpack.c.b16 %v1090, %v1090
        %v1094 = vpack.c.b16 %v1091, %v1091
        %v1095 = vpack.c.b16 %v1092, %v1092
        %1099 = vst [vmem:[%s220] sm:$0xf] %v1093
        %1100 = vst [vmem:[%s220 + $0x4] sm:$0xf] %v1094
        %1101 = vst [vmem:[%s220 + $0x8] sm:$0x3] %v1095
        %s1102 = smul.u32 3, %s21
        %p1103 = scmp.lt.s32.totalorder %s20, 1
        %s1104 = scalar_select %p1103, %s20, 1
        %p1105 = scmp.lt.s32.totalorder %s1102, 2
        %s1106 = scalar_select %p1105, %s1102, 2
        %s1107 = smul.addr %s1104, 3
        %s1108 = sadd.s32 %s1106, %s1107
        %s1109 = smul.addr %s1108, 4
        %s1110 = scalar_lea.vmem %s3, %s1109
        // Predicated region
        $region41: #{disc_forward.5} parent=31 // pred_check
          %p1111 = pneg %p116
        $region42: #{disc_forward.5} parent=31 // pred_check_branch
          %1113 = sbr.rel (%p1111) target = $region44
        $region43: #{disc_forward.5} parent=31 // pred_region
          %s1114 = smul.u32 3, %s21
        $region44: #{disc_forward.5} parent=31 // pred_fallthru
          _
      $region32: #{disc_forward.5} parent=5 // pred_fallthru
        _
      %p1115 = scmp.le.s32.totalorder 2, %s11
      // Predicated region
      $region45: #{disc_forward.5} parent=5 // pred_check
        %p1116 = pneg %p1115
      $region46: #{disc_forward.5} parent=5 // pred_check_branch
        %1118 = sbr.rel (%p1116) target = $region48
      $region47: #{disc_forward.5} parent=5 // pred_region
        %s1119 = ssub.s32 %s11, 2
        // Predicated region
        $region49: #{disc_forward.5} parent=47 // pred_check
          %p1120 = pneg %p122
        $region50: #{disc_forward.5} parent=47 // pred_check_branch
          %1122 = sbr.rel (%p1120) target = $region52
        $region51: #{disc_forward.5} parent=47 // pred_region
          %s1123 = smul.u32 3, %s23
          %p1124 = scmp.lt.s32.totalorder %s22, 1
          %s1125 = scalar_select %p1124, %s22, 1
          %p1126 = scmp.lt.s32.totalorder %s1123, 2
          %s1127 = scalar_select %p1126, %s1123, 2
          %s1128 = smul.addr %s1125, 3
          %s1129 = sadd.s32 %s1127, %s1128
          %s1130 = smul.addr %s1129, 4
          %s1131 = scalar_lea.vmem %s3, %s1130
        $region52: #{disc_forward.5} parent=47 // pred_fallthru
          _
      $region48: #{disc_forward.5} parent=5 // pred_fallthru
        _
    $region6: #{disc_forward.5} parent=1 // loop_footer
      %s15 = sadd.s32 1, %s11
    $region7: #{disc_forward.5} parent=1 // loop_footer_branch
      %10 = sbr.rel target = $region3
    $region8: #{disc_forward.5} parent=1 // loop_exit
      _
    %1132 = vsyncpa [#allocation3], 1
    %s1133 = scalar_lea.sflag [#allocation3], 1
    %1134 = vsyncpa %s1133, 1
    %1135 = vsyncpa [#allocation5], 1

// kernel: disc_forward.6
$region0: #{disc_forward.6}
  #allocation0 [shape = 'u32[]', space=smem, size = 0x4, offset = 0x4, fixed_abs, tag = 'smem constant byte address 0x4 - core index']
  #allocation1 [shape = 'u32[144,128]{1,0:T(1,128)}', space=vmem, size = 0x12000, scoped, tag = 'internal scratch']
  %s0 = inlined_call_operand.vmem [shape: bf16[2,12,512], index: 0, kind: input, shape index: {}]
  %s1 = inlined_call_operand.hbm [shape: bf16[4,512,256], index: 1, kind: input, shape index: {}]
  %s2 = inlined_call_operand.hbm [shape: f32[1,256], index: 2, kind: input, shape index: {}]
  %s3 = inlined_call_operand.vmem [shape: bf16[2,6,256], index: 3, kind: output, shape index: {}]
  %s4 = sld [smem:[#allocation0]]
  $region53: #{disc_forward.6} parent=0
    _
  %s6 = ssub.s32 1, %s4
  %s7 = scalar_select 0, %s6, %s4
  $region1: #{disc_forward.6} parent=0
    #allocation2 [shape = 'u8[1048576]{0}', space=vmem, size = 0x100000, scoped, tag = 'input window, operand 1, single buffered']
    #allocation3 [shape = 's32[2]{0}', space=sflag, size = 0x8, scoped, tag = 'scoped memory for disc_forward.6']
    #allocation4 [shape = 'u8[1024]{0}', space=vmem, size = 0x400, scoped, tag = 'input window, operand 2, single buffered']
    #allocation5 [shape = 's32[1]{0}', space=sflag, size = 0x4, scoped, tag = 'scoped memory for disc_forward.6']
    %8 = vsyncpa [#allocation3], 0
    %9 = vsyncpa [#allocation5], 0
    loop: start=0, step=1, limit=4
    $region2: #{disc_forward.6} parent=1 // loop_pre_header
      _
    $region3: #{disc_forward.6} parent=1 // loop_header
      %s11 = sphi 0, %s15
      %p12 = scmp.ge.s32.totalorder %s11, 4
      %s18 = sphi 0, %s30
      %s19 = sphi 0, %s26
      %s20 = sphi 0, %s18
      %s21 = sphi 0, %s19
      %s22 = sphi 0, %s20
      %s23 = sphi 0, %s21
      %s33 = sphi 0, %s35
      %s36 = sphi 0, %s33
      %s37 = sphi 0, %s36
      %s53 = sphi 0, %s37
      %s57 = sphi 0, %s57
      %s59 = sphi 0, %s57
      %s60 = sphi 0, %s59
      %s74 = sphi 0, %s60
      %s78 = sphi 0, %s78
      %s80 = sphi 0, %s78
      %s81 = sphi 0, %s80
      %s95 = sphi 0, %s81
      %s103 = sphi 0, %s105
      %s106 = sphi 0, %s103
      %s107 = sphi 0, %s106
      %s123 = sphi 0, %s107
    $region4: #{disc_forward.6} parent=1 // loop_header_branch
      %14 = sbr.rel (%p12) target = $region8
    $region5: #{disc_forward.6} parent=1 // loop_body
      %s16 = ssub.s32 %s11, 1
      %s17 = ssub.s32 %s11, 2
      %s24 = sadd.s32 1, %s19
      %p25 = scmp.ge.s32.totalorder %s24, 1
      %s26 = scalar_select %p25, 0, %s24
      %s27 = sadd.s32 1, %s18
      %s28 = scalar_select %p25, %s27, %s18
      %p29 = scmp.ge.s32.totalorder %s28, 2
      %s30 = scalar_select %p29, 0, %s28
      %s31 = ssub.s32 %s18, %s30
      %p32 = scmp.eq.s32.totalorder %s31, 0
      %s34 = sadd.s32 %s33, 1
      %s35 = scalar_select %p32, %s33, %s34
      %p38 = pneg %p32
      %p39 = scmp.eq.s32.totalorder %s11, 1
      %p40 = por %p38, %p39
      %p41 = scmp.ne.s32.totalorder %s33, %s36
      %p42 = scmp.eq.s32.totalorder %s11, 0
      %p43 = por %p41, %p42
      %p44 = scmp.ne.s32.totalorder %s33, %s36
      %p45 = scmp.eq.s32.totalorder %s16, 1
      %p46 = por %p44, %p45
      %p47 = scmp.ne.s32.totalorder %s36, %s37
      %p48 = scmp.eq.s32.totalorder %s16, 0
      %p49 = por %p47, %p48
      %p50 = scmp.ne.s32.totalorder %s36, %s37
      %p51 = scmp.eq.s32.totalorder %s17, 1
      %p52 = por %p50, %p51
      %p54 = scmp.ne.s32.totalorder %s37, %s53
      %p55 = scmp.eq.s32.totalorder %s17, 0
      %p56 = por %p54, %p55
      %s58 = sadd.s32 %s57, 1
      %p61 = scmp.eq.s32.totalorder %s11, 1
      %p62 = scmp.ne.s32.totalorder %s57, %s59
      %p63 = scmp.eq.s32.totalorder %s11, 0
      %p64 = por %p62, %p63
      %p65 = scmp.ne.s32.totalorder %s57, %s59
      %p66 = scmp.eq.s32.totalorder %s16, 1
      %p67 = por %p65, %p66
      %p68 = scmp.ne.s32.totalorder %s59, %s60
      %p69 = scmp.eq.s32.totalorder %s16, 0
      %p70 = por %p68, %p69
      %p71 = scmp.ne.s32.totalorder %s59, %s60
      %p72 = scmp.eq.s32.totalorder %s17, 1
      %p73 = por %p71, %p72
      %p75 = scmp.ne.s32.totalorder %s60, %s74
      %p76 = scmp.eq.s32.totalorder %s17, 0
      %p77 = por %p75, %p76
      %s79 = sadd.s32 %s78, 1
      %p82 = scmp.eq.s32.totalorder %s11, 1
      %p83 = scmp.ne.s32.totalorder %s78, %s80
      %p84 = scmp.eq.s32.totalorder %s11, 0
      %p85 = por %p83, %p84
      %p86 = scmp.ne.s32.totalorder %s78, %s80
      %p87 = scmp.eq.s32.totalorder %s16, 1
      %p88 = por %p86, %p87
      %p89 = scmp.ne.s32.totalorder %s80, %s81
      %p90 = scmp.eq.s32.totalorder %s16, 0
      %p91 = por %p89, %p90
      %p92 = scmp.ne.s32.totalorder %s80, %s81
      %p93 = scmp.eq.s32.totalorder %s17, 1
      %p94 = por %p92, %p93
      %p96 = scmp.ne.s32.totalorder %s81, %s95
      %p97 = scmp.eq.s32.totalorder %s17, 0
      %p98 = por %p96, %p97
      %s99 = ssub.s32 %s18, %s30
      %s100 = ssub.s32 %s19, %s26
      %s101 = sor.u32 %s99, %s100
      %p102 = scmp.eq.s32.totalorder %s101, 0
      %s104 = sadd.s32 %s103, 1
      %s105 = scalar_select %p102, %s103, %s104
      %p108 = pneg %p102
      %p109 = scmp.eq.s32.totalorder %s11, 1
      %p110 = por %p108, %p109
      %p111 = scmp.ne.s32.totalorder %s103, %s106
      %p112 = scmp.eq.s32.totalorder %s11, 0
      %p113 = por %p111, %p112
      %p114 = scmp.ne.s32.totalorder %s103, %s106
      %p115 = scmp.eq.s32.totalorder %s16, 1
      %p116 = por %p114, %p115
      %p117 = scmp.ne.s32.totalorder %s106, %s107
      %p118 = scmp.eq.s32.totalorder %s16, 0
      %p119 = por %p117, %p118
      %p120 = scmp.ne.s32.totalorder %s106, %s107
      %p121 = scmp.eq.s32.totalorder %s17, 1
      %p122 = por %p120, %p121
      %p124 = scmp.ne.s32.totalorder %s107, %s123
      %p125 = scmp.eq.s32.totalorder %s17, 0
      %p126 = por %p124, %p125
      %p127 = scmp.le.s32.totalorder 1, %s11
      %p128 = scmp.lt.s32.totalorder %s11, 3
      %p129 = pnand %p127, %p128
      %p130 = pneg %p129
      // Predicated region
      $region9: #{disc_forward.6} parent=5 // pred_check
        _
      $region10: #{disc_forward.6} parent=5 // pred_check_branch
        %132 = sbr.rel (%p129) target = $region12
      $region11: #{disc_forward.6} parent=5 // pred_region
        %s133 = ssub.s32 %s11, 1
        // Predicated region
        $region13: #{disc_forward.6} parent=11 // pred_check
          %p134 = pneg %p70
        $region14: #{disc_forward.6} parent=11 // pred_check_branch
          %136 = sbr.rel (%p134) target = $region16
        $region15: #{disc_forward.6} parent=11 // pred_region
          %s138 = ssub.s32 32768, 32768
          %139 = vsyncadd [#allocation3], %s138
          %s140 = sshll.u32 [#allocation2], 4
          %s141 = int_to_ptr.vmem [resolvable:$true] %s140
          %146 = dma.hbm_to_vmem [thread:$0]  %s1, 32768, %s141, [#allocation3], 128, 128, 8
        $region16: #{disc_forward.6} parent=11 // pred_fallthru
          _
        // Predicated region
        $region17: #{disc_forward.6} parent=11 // pred_check
          %p147 = pneg %p91
        $region18: #{disc_forward.6} parent=11 // pred_check_branch
          %149 = sbr.rel (%p147) target = $region20
        $region19: #{disc_forward.6} parent=11 // pred_region
          %s151 = ssub.s32 32, 32
          %152 = vsyncadd [#allocation5], %s151
          %s154 = sshll.u32 [#allocation4], 4
          %s155 = int_to_ptr.vmem [resolvable:$true] %s154
          %157 = dma.hbm_to_vmem [thread:$0]  %s2, 32, %s155, [#allocation5]
        $region20: #{disc_forward.6} parent=11 // pred_fallthru
          _
      $region12: #{disc_forward.6} parent=5 // pred_fallthru
        _
      %p158 = scmp.lt.s32.totalorder %s11, 2
      // Predicated region
      $region21: #{disc_forward.6} parent=5 // pred_check
        %p159 = pneg %p158
      $region22: #{disc_forward.6} parent=5 // pred_check_branch
        %161 = sbr.rel (%p159) target = $region24
      $region23: #{disc_forward.6} parent=5 // pred_region
        // Predicated region
        $region25: #{disc_forward.6} parent=23 // pred_check
          %p162 = pneg %p43
        $region26: #{disc_forward.6} parent=23 // pred_check_branch
          %164 = sbr.rel (%p162) target = $region28
        $region27: #{disc_forward.6} parent=23 // pred_region
          %p165 = scmp.lt.s32.totalorder %s18, 1
          %s166 = scalar_select %p165, %s18, 1
          %s167 = smul.addr %s166, 8
          %s168 = smul.addr %s167, 4
          %s169 = scalar_lea.vmem %s0, %s168
        $region28: #{disc_forward.6} parent=23 // pred_fallthru
          _
      $region24: #{disc_forward.6} parent=5 // pred_fallthru
        _
      %p170 = scmp.le.s32.totalorder 1, %s11
      %p171 = scmp.lt.s32.totalorder %s11, 3
      %p172 = pnand %p170, %p171
      %p173 = pneg %p172
      // Predicated region
      $region29: #{disc_forward.6} parent=5 // pred_check
        _
      $region30: #{disc_forward.6} parent=5 // pred_check_branch
        %175 = sbr.rel (%p172) target = $region32
      $region31: #{disc_forward.6} parent=5 // pred_region
        %s176 = ssub.s32 %s11, 1
        // Predicated region
        $region33: #{disc_forward.6} parent=31 // pred_check
          %p177 = pneg %p70
        $region34: #{disc_forward.6} parent=31 // pred_check_branch
          %179 = sbr.rel (%p177) target = $region36
        $region35: #{disc_forward.6} parent=31 // pred_region
          %180 = dma.done [#allocation3], 32768
        $region36: #{disc_forward.6} parent=31 // pred_fallthru
          _
        // Predicated region
        $region37: #{disc_forward.6} parent=31 // pred_check
          %p181 = pneg %p91
        $region38: #{disc_forward.6} parent=31 // pred_check_branch
          %183 = sbr.rel (%p181) target = $region40
        $region39: #{disc_forward.6} parent=31 // pred_region
          %184 = dma.done [#allocation5], 32
        $region40: #{disc_forward.6} parent=31 // pred_fallthru
          _
        %p185 = scmp.lt.s32.totalorder %s20, 1
        %s186 = scalar_select %p185, %s20, 1
        %s187 = smul.addr %s186, 8
        %s188 = smul.addr %s187, 4
        %s189 = scalar_lea.vmem %s0, %s188
        %p190 = pneg %p49
        %p191 = pneg %p46
        %p192 = pneg %p70
        %p193 = pneg %p67
        %p194 = pneg %p91
        %p195 = pneg %p88
        %p196 = pneg %p119
        %p197 = pneg %p116
        %p198 = scmp.lt.s32.totalorder %s20, 1
        %s199 = scalar_select %p198, %s20, 1
        %p200 = scmp.lt.s32.totalorder %s21, 0
        %s201 = scalar_select %p200, %s21, 0
        %s202 = smul.addr %s201, 2
        %s203 = smul.addr %s199, 2
        %s204 = sadd.s32 %s202, %s203
        %s205 = smul.addr %s204, 4
        %s206 = scalar_lea.vmem %s3, %s205
        %p207 = scmp.lt.s32.totalorder %s20, 1
        %s208 = scalar_select %p207, %s20, 1
        %s209 = smul.addr %s208, 8
        %s210 = smul.addr %s209, 4
        %s211 = scalar_lea.vmem %s0, %s210
        %p212 = scmp.lt.s32.totalorder %s20, 1
        %s213 = scalar_select %p212, %s20, 1
        %p214 = scmp.lt.s32.totalorder %s21, 0
        %s215 = scalar_select %p214, %s21, 0
        %s216 = smul.addr %s215, 2
        %s217 = smul.addr %s213, 2
        %s218 = sadd.s32 %s216, %s217
        %s219 = smul.addr %s218, 4
        %s220 = scalar_lea.vmem %s3, %s219
        %v221 = vld [vmem:[%s211] sm:$0x77]
        %v222 = vld [vmem:[%s211 + $0x8] sm:$0x77]
        %v223 = vld [vmem:[#allocation2] sm:$0xff]
        %v224 = vld [vmem:[#allocation2 + $0x8] sm:$0xff]
        %v225 = vld [vmem:[#allocation2 + $0x10] sm:$0xff]
        %v226 = vld [vmem:[#allocation2 + $0x18] sm:$0xff]
        %v227 = vld [vmem:[#allocation2 + $0x20] sm:$0xff]
        %v228 = vld [vmem:[#allocation2 + $0x28] sm:$0xff]
        %v229 = vld [vmem:[#allocation2 + $0x30] sm:$0xff]
        %v230 = vld [vmem:[#allocation2 + $0x38] sm:$0xff]
        %v231 = vld [vmem:[#allocation2 + $0x40] sm:$0xff]
        %v232 = vld [vmem:[#allocation2 + $0x48] sm:$0xff]
        %v233 = vld [vmem:[#allocation2 + $0x50] sm:$0xff]
        %v234 = vld [vmem:[#allocation2 + $0x58] sm:$0xff]
        %v235 = vld [vmem:[#allocation2 + $0x60] sm:$0xff]
        %v236 = vld [vmem:[#allocation2 + $0x68] sm:$0xff]
        %v237 = vld [vmem:[#allocation2 + $0x70] sm:$0xff]
        %v238 = vld [vmem:[#allocation2 + $0x78] sm:$0xff]
        %v239 = vld [vmem:[#allocation2 + $0x80] sm:$0xff]
        %v240 = vld [vmem:[#allocation2 + $0x88] sm:$0xff]
        %v241 = vld [vmem:[#allocation2 + $0x90] sm:$0xff]
        %v242 = vld [vmem:[#allocation2 + $0x98] sm:$0xff]
        %v243 = vld [vmem:[#allocation2 + $0xa0] sm:$0xff]
        %v244 = vld [vmem:[#allocation2 + $0xa8] sm:$0xff]
        %v245 = vld [vmem:[#allocation2 + $0xb0] sm:$0xff]
        %v246 = vld [vmem:[#allocation2 + $0xb8] sm:$0xff]
        %v247 = vld [vmem:[#allocation2 + $0xc0] sm:$0xff]
        %v248 = vld [vmem:[#allocation2 + $0xc8] sm:$0xff]
        %v249 = vld [vmem:[#allocation2 + $0xd0] sm:$0xff]
        %v250 = vld [vmem:[#allocation2 + $0xd8] sm:$0xff]
        %v251 = vld [vmem:[#allocation2 + $0xe0] sm:$0xff]
        %v252 = vld [vmem:[#allocation2 + $0xe8] sm:$0xff]
        %v253 = vld [vmem:[#allocation2 + $0xf0] sm:$0xff]
        %v254 = vld [vmem:[#allocation2 + $0xf8] sm:$0xff]
        %v255 = vld [vmem:[#allocation2 + $0x100] sm:$0xff]
        %v256 = vld [vmem:[#allocation2 + $0x108] sm:$0xff]
        %v257 = vld [vmem:[#allocation2 + $0x110] sm:$0xff]
        %v258 = vld [vmem:[#allocation2 + $0x118] sm:$0xff]
        %v259 = vld [vmem:[#allocation2 + $0x120] sm:$0xff]
        %v260 = vld [vmem:[#allocation2 + $0x128] sm:$0xff]
        %v261 = vld [vmem:[#allocation2 + $0x130] sm:$0xff]
        %v262 = vld [vmem:[#allocation2 + $0x138] sm:$0xff]
        %v263 = vld [vmem:[#allocation2 + $0x140] sm:$0xff]
        %v264 = vld [vmem:[#allocation2 + $0x148] sm:$0xff]
        %v265 = vld [vmem:[#allocation2 + $0x150] sm:$0xff]
        %v266 = vld [vmem:[#allocation2 + $0x158] sm:$0xff]
        %v267 = vld [vmem:[#allocation2 + $0x160] sm:$0xff]
        %v268 = vld [vmem:[#allocation2 + $0x168] sm:$0xff]
        %v269 = vld [vmem:[#allocation2 + $0x170] sm:$0xff]
        %v270 = vld [vmem:[#allocation2 + $0x178] sm:$0xff]
        %v271 = vld [vmem:[#allocation2 + $0x180] sm:$0xff]
        %v272 = vld [vmem:[#allocation2 + $0x188] sm:$0xff]
        %v273 = vld [vmem:[#allocation2 + $0x190] sm:$0xff]
        %v274 = vld [vmem:[#allocation2 + $0x198] sm:$0xff]
        %v275 = vld [vmem:[#allocation2 + $0x1a0] sm:$0xff]
        %v276 = vld [vmem:[#allocation2 + $0x1a8] sm:$0xff]
        %v277 = vld [vmem:[#allocation2 + $0x1b0] sm:$0xff]
        %v278 = vld [vmem:[#allocation2 + $0x1b8] sm:$0xff]
        %v279 = vld [vmem:[#allocation2 + $0x1c0] sm:$0xff]
        %v280 = vld [vmem:[#allocation2 + $0x1c8] sm:$0xff]
        %v281 = vld [vmem:[#allocation2 + $0x1d0] sm:$0xff]
        %v282 = vld [vmem:[#allocation2 + $0x1d8] sm:$0xff]
        %v283 = vld [vmem:[#allocation2 + $0x1e0] sm:$0xff]
        %v284 = vld [vmem:[#allocation2 + $0x1e8] sm:$0xff]
        %v285 = vld [vmem:[#allocation2 + $0x1f0] sm:$0xff]
        %v286 = vld [vmem:[#allocation2 + $0x1f8] sm:$0xff]
        %v287 = vld [vmem:[%s211] sm:$0xff]
        %v288 = vld [vmem:[%s211 + $0x8] sm:$0xff]
        %s289 = scalar_lea.vmem [#allocation2], 512
        %v290 = vld [vmem:[%s289] sm:$0xff]
        %v291 = vld [vmem:[%s289 + $0x8] sm:$0xff]
        %v292 = vld [vmem:[%s289 + $0x10] sm:$0xff]
        %v293 = vld [vmem:[%s289 + $0x18] sm:$0xff]
        %v294 = vld [vmem:[%s289 + $0x20] sm:$0xff]
        %v295 = vld [vmem:[%s289 + $0x28] sm:$0xff]
        %v296 = vld [vmem:[%s289 + $0x30] sm:$0xff]
        %v297 = vld [vmem:[%s289 + $0x38] sm:$0xff]
        %v298 = vld [vmem:[%s289 + $0x40] sm:$0xff]
        %v299 = vld [vmem:[%s289 + $0x48] sm:$0xff]
        %v300 = vld [vmem:[%s289 + $0x50] sm:$0xff]
        %v301 = vld [vmem:[%s289 + $0x58] sm:$0xff]
        %v302 = vld [vmem:[%s289 + $0x60] sm:$0xff]
        %v303 = vld [vmem:[%s289 + $0x68] sm:$0xff]
        %v304 = vld [vmem:[%s289 + $0x70] sm:$0xff]
        %v305 = vld [vmem:[%s289 + $0x78] sm:$0xff]
        %v306 = vld [vmem:[%s289 + $0x80] sm:$0xff]
        %v307 = vld [vmem:[%s289 + $0x88] sm:$0xff]
        %v308 = vld [vmem:[%s289 + $0x90] sm:$0xff]
        %v309 = vld [vmem:[%s289 + $0x98] sm:$0xff]
        %v310 = vld [vmem:[%s289 + $0xa0] sm:$0xff]
        %v311 = vld [vmem:[%s289 + $0xa8] sm:$0xff]
        %v312 = vld [vmem:[%s289 + $0xb0] sm:$0xff]
        %v313 = vld [vmem:[%s289 + $0xb8] sm:$0xff]
        %v314 = vld [vmem:[%s289 + $0xc0] sm:$0xff]
        %v315 = vld [vmem:[%s289 + $0xc8] sm:$0xff]
        %v316 = vld [vmem:[%s289 + $0xd0] sm:$0xff]
        %v317 = vld [vmem:[%s289 + $0xd8] sm:$0xff]
        %v318 = vld [vmem:[%s289 + $0xe0] sm:$0xff]
        %v319 = vld [vmem:[%s289 + $0xe8] sm:$0xff]
        %v320 = vld [vmem:[%s289 + $0xf0] sm:$0xff]
        %v321 = vld [vmem:[%s289 + $0xf8] sm:$0xff]
        %v322 = vld [vmem:[%s289 + $0x100] sm:$0xff]
        %v323 = vld [vmem:[%s289 + $0x108] sm:$0xff]
        %v324 = vld [vmem:[%s289 + $0x110] sm:$0xff]
        %v325 = vld [vmem:[%s289 + $0x118] sm:$0xff]
        %v326 = vld [vmem:[%s289 + $0x120] sm:$0xff]
        %v327 = vld [vmem:[%s289 + $0x128] sm:$0xff]
        %v328 = vld [vmem:[%s289 + $0x130] sm:$0xff]
        %v329 = vld [vmem:[%s289 + $0x138] sm:$0xff]
        %v330 = vld [vmem:[%s289 + $0x140] sm:$0xff]
        %v331 = vld [vmem:[%s289 + $0x148] sm:$0xff]
        %v332 = vld [vmem:[%s289 + $0x150] sm:$0xff]
        %v333 = vld [vmem:[%s289 + $0x158] sm:$0xff]
        %v334 = vld [vmem:[%s289 + $0x160] sm:$0xff]
        %v335 = vld [vmem:[%s289 + $0x168] sm:$0xff]
        %v336 = vld [vmem:[%s289 + $0x170] sm:$0xff]
        %v337 = vld [vmem:[%s289 + $0x178] sm:$0xff]
        %v338 = vld [vmem:[%s289 + $0x180] sm:$0xff]
        %v339 = vld [vmem:[%s289 + $0x188] sm:$0xff]
        %v340 = vld [vmem:[%s289 + $0x190] sm:$0xff]
        %v341 = vld [vmem:[%s289 + $0x198] sm:$0xff]
        %v342 = vld [vmem:[%s289 + $0x1a0] sm:$0xff]
        %v343 = vld [vmem:[%s289 + $0x1a8] sm:$0xff]
        %v344 = vld [vmem:[%s289 + $0x1b0] sm:$0xff]
        %v345 = vld [vmem:[%s289 + $0x1b8] sm:$0xff]
        %v346 = vld [vmem:[%s289 + $0x1c0] sm:$0xff]
        %v347 = vld [vmem:[%s289 + $0x1c8] sm:$0xff]
        %v348 = vld [vmem:[%s289 + $0x1d0] sm:$0xff]
        %v349 = vld [vmem:[%s289 + $0x1d8] sm:$0xff]
        %v350 = vld [vmem:[%s289 + $0x1e0] sm:$0xff]
        %v351 = vld [vmem:[%s289 + $0x1e8] sm:$0xff]
        %v352 = vld [vmem:[%s289 + $0x1f0] sm:$0xff]
        %v353 = vld [vmem:[%s289 + $0x1f8] sm:$0xff]
        %v356 = vunpack.c.l.b16 %v287
        %v357 = vunpack.c.h.b16 %v287
        %v358 = vunpack.c.l.b16 %v288
        %v359 = vunpack.c.h.b16 %v288
        %v360 = vpack.c.b16 %v356, %v356
        %v361 = vpack.c.b16 %v357, %v357
        %v362 = vpack.c.b16 %v358, %v358
        %v363 = vpack.c.b16 %v359, %v359
        %v365 = vshrl.u32 %v360, 16
        %v367 = vshll.u32 %v360, 16
        %v369 = vrot.slane %v367, 1
        %v370 = vor.u32 %v365, %v369
        %v372 = vshrl.u32 %v361, 16
        %v374 = vshll.u32 %v361, 16
        %v376 = vrot.slane %v374, 1
        %v377 = vor.u32 %v372, %v376
        %v379 = vshrl.u32 %v362, 16
        %v381 = vshll.u32 %v362, 16
        %v383 = vrot.slane %v381, 1
        %v384 = vor.u32 %v379, %v383
        %v386 = vshrl.u32 %v363, 16
        %v388 = vshll.u32 %v363, 16
        %v390 = vrot.slane %v388, 1
        %v391 = vor.u32 %v386, %v390
        %v460 = vunpack.c.l.b16 %v290
        %v461 = vunpack.c.h.b16 %v290
        %v462 = vunpack.c.l.b16 %v291
        %v463 = vunpack.c.h.b16 %v291
        %v464 = vunpack.c.l.b16 %v292
        %v465 = vunpack.c.h.b16 %v292
        %v466 = vunpack.c.l.b16 %v293
        %v467 = vunpack.c.h.b16 %v293
        %v468 = vunpack.c.l.b16 %v294
        %v469 = vunpack.c.h.b16 %v294
        %v470 = vunpack.c.l.b16 %v295
        %v471 = vunpack.c.h.b16 %v295
        %v472 = vunpack.c.l.b16 %v296
        %v473 = vunpack.c.h.b16 %v296
        %v474 = vunpack.c.l.b16 %v297
        %v475 = vunpack.c.h.b16 %v297
        %v476 = vunpack.c.l.b16 %v298
        %v477 = vunpack.c.h.b16 %v298
        %v478 = vunpack.c.l.b16 %v299
        %v479 = vunpack.c.h.b16 %v299
        %v480 = vunpack.c.l.b16 %v300
        %v481 = vunpack.c.h.b16 %v300
        %v482 = vunpack.c.l.b16 %v301
        %v483 = vunpack.c.h.b16 %v301
        %v484 = vunpack.c.l.b16 %v302
        %v485 = vunpack.c.h.b16 %v302
        %v486 = vunpack.c.l.b16 %v303
        %v487 = vunpack.c.h.b16 %v303
        %v488 = vunpack.c.l.b16 %v304
        %v489 = vunpack.c.h.b16 %v304
        %v490 = vunpack.c.l.b16 %v305
        %v491 = vunpack.c.h.b16 %v305
        %v492 = vunpack.c.l.b16 %v306
        %v493 = vunpack.c.h.b16 %v306
        %v494 = vunpack.c.l.b16 %v307
        %v495 = vunpack.c.h.b16 %v307
        %v496 = vunpack.c.l.b16 %v308
        %v497 = vunpack.c.h.b16 %v308
        %v498 = vunpack.c.l.b16 %v309
        %v499 = vunpack.c.h.b16 %v309
        %v500 = vunpack.c.l.b16 %v310
        %v501 = vunpack.c.h.b16 %v310
        %v502 = vunpack.c.l.b16 %v311
        %v503 = vunpack.c.h.b16 %v311
        %v504 = vunpack.c.l.b16 %v312
        %v505 = vunpack.c.h.b16 %v312
        %v506 = vunpack.c.l.b16 %v313
        %v507 = vunpack.c.h.b16 %v313
        %v508 = vunpack.c.l.b16 %v314
        %v509 = vunpack.c.h.b16 %v314
        %v510 = vunpack.c.l.b16 %v315
        %v511 = vunpack.c.h.b16 %v315
        %v512 = vunpack.c.l.b16 %v316
        %v513 = vunpack.c.h.b16 %v316
        %v514 = vunpack.c.l.b16 %v317
        %v515 = vunpack.c.h.b16 %v317
        %v516 = vunpack.c.l.b16 %v318
        %v517 = vunpack.c.h.b16 %v318
        %v518 = vunpack.c.l.b16 %v319
        %v519 = vunpack.c.h.b16 %v319
        %v520 = vunpack.c.l.b16 %v320
        %v521 = vunpack.c.h.b16 %v320
        %v522 = vunpack.c.l.b16 %v321
        %v523 = vunpack.c.h.b16 %v321
        %v524 = vunpack.c.l.b16 %v322
        %v525 = vunpack.c.h.b16 %v322
        %v526 = vunpack.c.l.b16 %v323
        %v527 = vunpack.c.h.b16 %v323
        %v528 = vunpack.c.l.b16 %v324
        %v529 = vunpack.c.h.b16 %v324
        %v530 = vunpack.c.l.b16 %v325
        %v531 = vunpack.c.h.b16 %v325
        %v532 = vunpack.c.l.b16 %v326
        %v533 = vunpack.c.h.b16 %v326
        %v534 = vunpack.c.l.b16 %v327
        %v535 = vunpack.c.h.b16 %v327
        %v536 = vunpack.c.l.b16 %v328
        %v537 = vunpack.c.h.b16 %v328
        %v538 = vunpack.c.l.b16 %v329
        %v539 = vunpack.c.h.b16 %v329
        %v540 = vunpack.c.l.b16 %v330
        %v541 = vunpack.c.h.b16 %v330
        %v542 = vunpack.c.l.b16 %v331
        %v543 = vunpack.c.h.b16 %v331
        %v544 = vunpack.c.l.b16 %v332
        %v545 = vunpack.c.h.b16 %v332
        %v546 = vunpack.c.l.b16 %v333
        %v547 = vunpack.c.h.b16 %v333
        %v548 = vunpack.c.l.b16 %v334
        %v549 = vunpack.c.h.b16 %v334
        %v550 = vunpack.c.l.b16 %v335
        %v551 = vunpack.c.h.b16 %v335
        %v552 = vunpack.c.l.b16 %v336
        %v553 = vunpack.c.h.b16 %v336
        %v554 = vunpack.c.l.b16 %v337
        %v555 = vunpack.c.h.b16 %v337
        %v556 = vunpack.c.l.b16 %v338
        %v557 = vunpack.c.h.b16 %v338
        %v558 = vunpack.c.l.b16 %v339
        %v559 = vunpack.c.h.b16 %v339
        %v560 = vunpack.c.l.b16 %v340
        %v561 = vunpack.c.h.b16 %v340
        %v562 = vunpack.c.l.b16 %v341
        %v563 = vunpack.c.h.b16 %v341
        %v564 = vunpack.c.l.b16 %v342
        %v565 = vunpack.c.h.b16 %v342
        %v566 = vunpack.c.l.b16 %v343
        %v567 = vunpack.c.h.b16 %v343
        %v568 = vunpack.c.l.b16 %v344
        %v569 = vunpack.c.h.b16 %v344
        %v570 = vunpack.c.l.b16 %v345
        %v571 = vunpack.c.h.b16 %v345
        %v572 = vunpack.c.l.b16 %v346
        %v573 = vunpack.c.h.b16 %v346
        %v574 = vunpack.c.l.b16 %v347
        %v575 = vunpack.c.h.b16 %v347
        %v576 = vunpack.c.l.b16 %v348
        %v577 = vunpack.c.h.b16 %v348
        %v578 = vunpack.c.l.b16 %v349
        %v579 = vunpack.c.h.b16 %v349
        %v580 = vunpack.c.l.b16 %v350
        %v581 = vunpack.c.h.b16 %v350
        %v582 = vunpack.c.l.b16 %v351
        %v583 = vunpack.c.h.b16 %v351
        %v584 = vunpack.c.l.b16 %v352
        %v585 = vunpack.c.h.b16 %v352
        %v586 = vunpack.c.l.b16 %v353
        %v587 = vunpack.c.h.b16 %v353
        %v588 = vpack.c.b16 %v462, %v460
        %v589 = vpack.c.b16 %v463, %v461
        %v590 = vpack.c.b16 %v466, %v464
        %v591 = vpack.c.b16 %v467, %v465
        %v592 = vpack.c.b16 %v470, %v468
        %v593 = vpack.c.b16 %v471, %v469
        %v594 = vpack.c.b16 %v474, %v472
        %v595 = vpack.c.b16 %v475, %v473
        %v596 = vpack.c.b16 %v478, %v476
        %v597 = vpack.c.b16 %v479, %v477
        %v598 = vpack.c.b16 %v482, %v480
        %v599 = vpack.c.b16 %v483, %v481
        %v600 = vpack.c.b16 %v486, %v484
        %v601 = vpack.c.b16 %v487, %v485
        %v602 = vpack.c.b16 %v490, %v488
        %v603 = vpack.c.b16 %v491, %v489
        %v604 = vpack.c.b16 %v494, %v492
        %v605 = vpack.c.b16 %v495, %v493
        %v606 = vpack.c.b16 %v498, %v496
        %v607 = vpack.c.b16 %v499, %v497
        %v608 = vpack.c.b16 %v502, %v500
        %v609 = vpack.c.b16 %v503, %v501
        %v610 = vpack.c.b16 %v506, %v504
        %v611 = vpack.c.b16 %v507, %v505
        %v612 = vpack.c.b16 %v510, %v508
        %v613 = vpack.c.b16 %v511, %v509
        %v614 = vpack.c.b16 %v514, %v512
        %v615 = vpack.c.b16 %v515, %v513
        %v616 = vpack.c.b16 %v518, %v516
        %v617 = vpack.c.b16 %v519, %v517
        %v618 = vpack.c.b16 %v522, %v520
        %v619 = vpack.c.b16 %v523, %v521
        %v620 = vpack.c.b16 %v526, %v524
        %v621 = vpack.c.b16 %v527, %v525
        %v622 = vpack.c.b16 %v530, %v528
        %v623 = vpack.c.b16 %v531, %v529
        %v624 = vpack.c.b16 %v534, %v532
        %v625 = vpack.c.b16 %v535, %v533
        %v626 = vpack.c.b16 %v538, %v536
        %v627 = vpack.c.b16 %v539, %v537
        %v628 = vpack.c.b16 %v542, %v540
        %v629 = vpack.c.b16 %v543, %v541
        %v630 = vpack.c.b16 %v546, %v544
        %v631 = vpack.c.b16 %v547, %v545
        %v632 = vpack.c.b16 %v550, %v548
        %v633 = vpack.c.b16 %v551, %v549
        %v634 = vpack.c.b16 %v554, %v552
        %v635 = vpack.c.b16 %v555, %v553
        %v636 = vpack.c.b16 %v558, %v556
        %v637 = vpack.c.b16 %v559, %v557
        %v638 = vpack.c.b16 %v562, %v560
        %v639 = vpack.c.b16 %v563, %v561
        %v640 = vpack.c.b16 %v566, %v564
        %v641 = vpack.c.b16 %v567, %v565
        %v642 = vpack.c.b16 %v570, %v568
        %v643 = vpack.c.b16 %v571, %v569
        %v644 = vpack.c.b16 %v574, %v572
        %v645 = vpack.c.b16 %v575, %v573
        %v646 = vpack.c.b16 %v578, %v576
        %v647 = vpack.c.b16 %v579, %v577
        %v648 = vpack.c.b16 %v582, %v580
        %v649 = vpack.c.b16 %v583, %v581
        %v650 = vpack.c.b16 %v586, %v584
        %v651 = vpack.c.b16 %v587, %v585
        %716 = vmatprep.subr.bf16.mxu0 %v589
        %717 = vmatpush1.bf16.msra.mxu0 %v588
        %718 = vmatprep.subr.bf16.mxu0 %v591
        %719 = vmatpush1.bf16.msra.mxu0 %v590
        %720 = vmatprep.subr.bf16.mxu0 %v593
        %721 = vmatpush1.bf16.msra.mxu0 %v592
        %722 = vmatprep.subr.bf16.mxu0 %v595
        %723 = vmatpush1.bf16.msra.mxu0 %v594
        %724 = vmatprep.subr.bf16.mxu0 %v597
        %725 = vmatpush1.bf16.msra.mxu0 %v596
        %726 = vmatprep.subr.bf16.mxu0 %v599
        %727 = vmatpush1.bf16.msra.mxu0 %v598
        %728 = vmatprep.subr.bf16.mxu0 %v601
        %729 = vmatpush1.bf16.msra.mxu0 %v600
        %730 = vmatprep.subr.bf16.mxu0 %v603
        %731 = vmatpush1.bf16.msra.mxu0 %v602
        %732 = vmatprep.subr.bf16.mxu0 %v605
        %733 = vmatpush1.bf16.msra.mxu0 %v604
        %734 = vmatprep.subr.bf16.mxu0 %v607
        %735 = vmatpush1.bf16.msra.mxu0 %v606
        %736 = vmatprep.subr.bf16.mxu0 %v609
        %737 = vmatpush1.bf16.msra.mxu0 %v608
        %738 = vmatprep.subr.bf16.mxu0 %v611
        %739 = vmatpush1.bf16.msra.mxu0 %v610
        %740 = vmatprep.subr.bf16.mxu0 %v613
        %741 = vmatpush1.bf16.msra.mxu0 %v612
        %742 = vmatprep.subr.bf16.mxu0 %v615
        %743 = vmatpush1.bf16.msra.mxu0 %v614
        %744 = vmatprep.subr.bf16.mxu0 %v617
        %745 = vmatpush1.bf16.msra.mxu0 %v616
        %746 = vmatprep.subr.bf16.mxu0 %v619
        %747 = vmatpush1.bf16.msra.mxu0 %v618
        %748 = vmatprep.mubr.bf16.mxu0 %v377
        %749 = vmatmul.mubr.bf16.gmra.mrb[0].mxu0 %v370
        %v750 = vpop.f32.mrb[0].mxu0
        %v751 = vadd.f32 0.0, %v750
        %v752 = vpop.f32.mrb[0].mxu0
        %v753 = vadd.f32 0.0, %v752
        %v754 = vpop.f32.mrb[0].mxu0
        %v755 = vpop.f32.mrb[0].mxu0
        %756 = vdwg.mxu0
        %757 = vmatprep.subr.bf16.mxu0 %v621
        %758 = vmatpush1.bf16.msra.mxu0 %v620
        %759 = vmatprep.subr.bf16.mxu0 %v623
        %760 = vmatpush1.bf16.msra.mxu0 %v622
        %761 = vmatprep.subr.bf16.mxu0 %v625
        %762 = vmatpush1.bf16.msra.mxu0 %v624
        %763 = vmatprep.subr.bf16.mxu0 %v627
        %764 = vmatpush1.bf16.msra.mxu0 %v626
        %765 = vmatprep.subr.bf16.mxu0 %v629
        %766 = vmatpush1.bf16.msra.mxu0 %v628
        %767 = vmatprep.subr.bf16.mxu0 %v631
        %768 = vmatpush1.bf16.msra.mxu0 %v630
        %769 = vmatprep.subr.bf16.mxu0 %v633
        %770 = vmatpush1.bf16.msra.mxu0 %v632
        %771 = vmatprep.subr.bf16.mxu0 %v635
        %772 = vmatpush1.bf16.msra.mxu0 %v634
        %773 = vmatprep.subr.bf16.mxu0 %v637
        %774 = vmatpush1.bf16.msra.mxu0 %v636
        %775 = vmatprep.subr.bf16.mxu0 %v639
        %776 = vmatpush1.bf16.msra.mxu0 %v638
        %777 = vmatprep.subr.bf16.mxu0 %v641
        %778 = vmatpush1.bf16.msra.mxu0 %v640
        %779 = vmatprep.subr.bf16.mxu0 %v643
        %780 = vmatpush1.bf16.msra.mxu0 %v642
        %781 = vmatprep.subr.bf16.mxu0 %v645
        %782 = vmatpush1.bf16.msra.mxu0 %v644
        %783 = vmatprep.subr.bf16.mxu0 %v647
        %784 = vmatpush1.bf16.msra.mxu0 %v646
        %785 = vmatprep.subr.bf16.mxu0 %v649
        %786 = vmatpush1.bf16.msra.mxu0 %v648
        %787 = vmatprep.subr.bf16.mxu0 %v651
        %788 = vmatpush1.bf16.msra.mxu0 %v650
        %789 = vmatprep.mubr.bf16.mxu0 %v391
        %790 = vmatmul.mubr.bf16.gmra.mrb[0].mxu0 %v384
        %v791 = vpop.f32.mrb[0].mxu0
        %v792 = vadd.f32 %v751, %v791
        %v793 = vpop.f32.mrb[0].mxu0
        %v794 = vadd.f32 %v753, %v793
        %v795 = vpop.f32.mrb[0].mxu0
        %v796 = vpop.f32.mrb[0].mxu0
        %797 = vdwg.mxu0
        %v800 = vunpack.c.l.b16 %v221
        %v801 = vunpack.c.h.b16 %v221
        %v802 = vunpack.c.l.b16 %v222
        %v803 = vunpack.c.h.b16 %v222
        %v804 = vpack.c.b16 %v800, %v800
        %v805 = vpack.c.b16 %v801, %v801
        %v806 = vpack.c.b16 %v802, %v802
        %v807 = vpack.c.b16 %v803, %v803
        %v876 = vunpack.c.l.b16 %v223
        %v877 = vunpack.c.h.b16 %v223
        %v878 = vunpack.c.l.b16 %v224
        %v879 = vunpack.c.h.b16 %v224
        %v880 = vunpack.c.l.b16 %v225
        %v881 = vunpack.c.h.b16 %v225
        %v882 = vunpack.c.l.b16 %v226
        %v883 = vunpack.c.h.b16 %v226
        %v884 = vunpack.c.l.b16 %v227
        %v885 = vunpack.c.h.b16 %v227
        %v886 = vunpack.c.l.b16 %v228
        %v887 = vunpack.c.h.b16 %v228
        %v888 = vunpack.c.l.b16 %v229
        %v889 = vunpack.c.h.b16 %v229
        %v890 = vunpack.c.l.b16 %v230
        %v891 = vunpack.c.h.b16 %v230
        %v892 = vunpack.c.l.b16 %v231
        %v893 = vunpack.c.h.b16 %v231
        %v894 = vunpack.c.l.b16 %v232
        %v895 = vunpack.c.h.b16 %v232
        %v896 = vunpack.c.l.b16 %v233
        %v897 = vunpack.c.h.b16 %v233
        %v898 = vunpack.c.l.b16 %v234
        %v899 = vunpack.c.h.b16 %v234
        %v900 = vunpack.c.l.b16 %v235
        %v901 = vunpack.c.h.b16 %v235
        %v902 = vunpack.c.l.b16 %v236
        %v903 = vunpack.c.h.b16 %v236
        %v904 = vunpack.c.l.b16 %v237
        %v905 = vunpack.c.h.b16 %v237
        %v906 = vunpack.c.l.b16 %v238
        %v907 = vunpack.c.h.b16 %v238
        %v908 = vunpack.c.l.b16 %v239
        %v909 = vunpack.c.h.b16 %v239
        %v910 = vunpack.c.l.b16 %v240
        %v911 = vunpack.c.h.b16 %v240
        %v912 = vunpack.c.l.b16 %v241
        %v913 = vunpack.c.h.b16 %v241
        %v914 = vunpack.c.l.b16 %v242
        %v915 = vunpack.c.h.b16 %v242
        %v916 = vunpack.c.l.b16 %v243
        %v917 = vunpack.c.h.b16 %v243
        %v918 = vunpack.c.l.b16 %v244
        %v919 = vunpack.c.h.b16 %v244
        %v920 = vunpack.c.l.b16 %v245
        %v921 = vunpack.c.h.b16 %v245
        %v922 = vunpack.c.l.b16 %v246
        %v923 = vunpack.c.h.b16 %v246
        %v924 = vunpack.c.l.b16 %v247
        %v925 = vunpack.c.h.b16 %v247
        %v926 = vunpack.c.l.b16 %v248
        %v927 = vunpack.c.h.b16 %v248
        %v928 = vunpack.c.l.b16 %v249
        %v929 = vunpack.c.h.b16 %v249
        %v930 = vunpack.c.l.b16 %v250
        %v931 = vunpack.c.h.b16 %v250
        %v932 = vunpack.c.l.b16 %v251
        %v933 = vunpack.c.h.b16 %v251
        %v934 = vunpack.c.l.b16 %v252
        %v935 = vunpack.c.h.b16 %v252
        %v936 = vunpack.c.l.b16 %v253
        %v937 = vunpack.c.h.b16 %v253
        %v938 = vunpack.c.l.b16 %v254
        %v939 = vunpack.c.h.b16 %v254
        %v940 = vunpack.c.l.b16 %v255
        %v941 = vunpack.c.h.b16 %v255
        %v942 = vunpack.c.l.b16 %v256
        %v943 = vunpack.c.h.b16 %v256
        %v944 = vunpack.c.l.b16 %v257
        %v945 = vunpack.c.h.b16 %v257
        %v946 = vunpack.c.l.b16 %v258
        %v947 = vunpack.c.h.b16 %v258
        %v948 = vunpack.c.l.b16 %v259
        %v949 = vunpack.c.h.b16 %v259
        %v950 = vunpack.c.l.b16 %v260
        %v951 = vunpack.c.h.b16 %v260
        %v952 = vunpack.c.l.b16 %v261
        %v953 = vunpack.c.h.b16 %v261
        %v954 = vunpack.c.l.b16 %v262
        %v955 = vunpack.c.h.b16 %v262
        %v956 = vunpack.c.l.b16 %v263
        %v957 = vunpack.c.h.b16 %v263
        %v958 = vunpack.c.l.b16 %v264
        %v959 = vunpack.c.h.b16 %v264
        %v960 = vunpack.c.l.b16 %v265
        %v961 = vunpack.c.h.b16 %v265
        %v962 = vunpack.c.l.b16 %v266
        %v963 = vunpack.c.h.b16 %v266
        %v964 = vunpack.c.l.b16 %v267
        %v965 = vunpack.c.h.b16 %v267
        %v966 = vunpack.c.l.b16 %v268
        %v967 = vunpack.c.h.b16 %v268
        %v968 = vunpack.c.l.b16 %v269
        %v969 = vunpack.c.h.b16 %v269
        %v970 = vunpack.c.l.b16 %v270
        %v971 = vunpack.c.h.b16 %v270
        %v972 = vunpack.c.l.b16 %v271
        %v973 = vunpack.c.h.b16 %v271
        %v974 = vunpack.c.l.b16 %v272
        %v975 = vunpack.c.h.b16 %v272
        %v976 = vunpack.c.l.b16 %v273
        %v977 = vunpack.c.h.b16 %v273
        %v978 = vunpack.c.l.b16 %v274
        %v979 = vunpack.c.h.b16 %v274
        %v980 = vunpack.c.l.b16 %v275
        %v981 = vunpack.c.h.b16 %v275
        %v982 = vunpack.c.l.b16 %v276
        %v983 = vunpack.c.h.b16 %v276
        %v984 = vunpack.c.l.b16 %v277
        %v985 = vunpack.c.h.b16 %v277
        %v986 = vunpack.c.l.b16 %v278
        %v987 = vunpack.c.h.b16 %v278
        %v988 = vunpack.c.l.b16 %v279
        %v989 = vunpack.c.h.b16 %v279
        %v990 = vunpack.c.l.b16 %v280
        %v991 = vunpack.c.h.b16 %v280
        %v992 = vunpack.c.l.b16 %v281
        %v993 = vunpack.c.h.b16 %v281
        %v994 = vunpack.c.l.b16 %v282
        %v995 = vunpack.c.h.b16 %v282
        %v996 = vunpack.c.l.b16 %v283
        %v997 = vunpack.c.h.b16 %v283
        %v998 = vunpack.c.l.b16 %v284
        %v999 = vunpack.c.h.b16 %v284
        %v1000 = vunpack.c.l.b16 %v285
        %v1001 = vunpack.c.h.b16 %v285
        %v1002 = vunpack.c.l.b16 %v286
        %v1003 = vunpack.c.h.b16 %v286
        %v1004 = vpack.c.b16 %v878, %v876
        %v1005 = vpack.c.b16 %v879, %v877
        %v1006 = vpack.c.b16 %v882, %v880
        %v1007 = vpack.c.b16 %v883, %v881
        %v1008 = vpack.c.b16 %v886, %v884
        %v1009 = vpack.c.b16 %v887, %v885
        %v1010 = vpack.c.b16 %v890, %v888
        %v1011 = vpack.c.b16 %v891, %v889
        %v1012 = vpack.c.b16 %v894, %v892
        %v1013 = vpack.c.b16 %v895, %v893
        %v1014 = vpack.c.b16 %v898, %v896
        %v1015 = vpack.c.b16 %v899, %v897
        %v1016 = vpack.c.b16 %v902, %v900
        %v1017 = vpack.c.b16 %v903, %v901
        %v1018 = vpack.c.b16 %v906, %v904
        %v1019 = vpack.c.b16 %v907, %v905
        %v1020 = vpack.c.b16 %v910, %v908
        %v1021 = vpack.c.b16 %v911, %v909
        %v1022 = vpack.c.b16 %v914, %v912
        %v1023 = vpack.c.b16 %v915, %v913
        %v1024 = vpack.c.b16 %v918, %v916
        %v1025 = vpack.c.b16 %v919, %v917
        %v1026 = vpack.c.b16 %v922, %v920
        %v1027 = vpack.c.b16 %v923, %v921
        %v1028 = vpack.c.b16 %v926, %v924
        %v1029 = vpack.c.b16 %v927, %v925
        %v1030 = vpack.c.b16 %v930, %v928
        %v1031 = vpack.c.b16 %v931, %v929
        %v1032 = vpack.c.b16 %v934, %v932
        %v1033 = vpack.c.b16 %v935, %v933
        %v1034 = vpack.c.b16 %v938, %v936
        %v1035 = vpack.c.b16 %v939, %v937
        %v1036 = vpack.c.b16 %v942, %v940
        %v1037 = vpack.c.b16 %v943, %v941
        %v1038 = vpack.c.b16 %v946, %v944
        %v1039 = vpack.c.b16 %v947, %v945
        %v1040 = vpack.c.b16 %v950, %v948
        %v1041 = vpack.c.b16 %v951, %v949
        %v1042 = vpack.c.b16 %v954, %v952
        %v1043 = vpack.c.b16 %v955, %v953
        %v1044 = vpack.c.b16 %v958, %v956
        %v1045 = vpack.c.b16 %v959, %v957
        %v1046 = vpack.c.b16 %v962, %v960
        %v1047 = vpack.c.b16 %v963, %v961
        %v1048 = vpack.c.b16 %v966, %v964
        %v1049 = vpack.c.b16 %v967, %v965
        %v1050 = vpack.c.b16 %v970, %v968
        %v1051 = vpack.c.b16 %v971, %v969
        %v1052 = vpack.c.b16 %v974, %v972
        %v1053 = vpack.c.b16 %v975, %v973
        %v1054 = vpack.c.b16 %v978, %v976
        %v1055 = vpack.c.b16 %v979, %v977
        %v1056 = vpack.c.b16 %v982, %v980
        %v1057 = vpack.c.b16 %v983, %v981
        %v1058 = vpack.c.b16 %v986, %v984
        %v1059 = vpack.c.b16 %v987, %v985
        %v1060 = vpack.c.b16 %v990, %v988
        %v1061 = vpack.c.b16 %v991, %v989
        %v1062 = vpack.c.b16 %v994, %v992
        %v1063 = vpack.c.b16 %v995, %v993
        %v1064 = vpack.c.b16 %v998, %v996
        %v1065 = vpack.c.b16 %v999, %v997
        %v1066 = vpack.c.b16 %v1002, %v1000
        %v1067 = vpack.c.b16 %v1003, %v1001
        %1132 = vmatprep.subr.bf16.mxu0 %v1005
        %1133 = vmatpush1.bf16.msra.mxu0 %v1004
        %1134 = vmatprep.subr.bf16.mxu0 %v1007
        %1135 = vmatpush1.bf16.msra.mxu0 %v1006
        %1136 = vmatprep.subr.bf16.mxu0 %v1009
        %1137 = vmatpush1.bf16.msra.mxu0 %v1008
        %1138 = vmatprep.subr.bf16.mxu0 %v1011
        %1139 = vmatpush1.bf16.msra.mxu0 %v1010
        %1140 = vmatprep.subr.bf16.mxu0 %v1013
        %1141 = vmatpush1.bf16.msra.mxu0 %v1012
        %1142 = vmatprep.subr.bf16.mxu0 %v1015
        %1143 = vmatpush1.bf16.msra.mxu0 %v1014
        %1144 = vmatprep.subr.bf16.mxu0 %v1017
        %1145 = vmatpush1.bf16.msra.mxu0 %v1016
        %1146 = vmatprep.subr.bf16.mxu0 %v1019
        %1147 = vmatpush1.bf16.msra.mxu0 %v1018
        %1148 = vmatprep.subr.bf16.mxu0 %v1021
        %1149 = vmatpush1.bf16.msra.mxu0 %v1020
        %1150 = vmatprep.subr.bf16.mxu0 %v1023
        %1151 = vmatpush1.bf16.msra.mxu0 %v1022
        %1152 = vmatprep.subr.bf16.mxu0 %v1025
        %1153 = vmatpush1.bf16.msra.mxu0 %v1024
        %1154 = vmatprep.subr.bf16.mxu0 %v1027
        %1155 = vmatpush1.bf16.msra.mxu0 %v1026
        %1156 = vmatprep.subr.bf16.mxu0 %v1029
        %1157 = vmatpush1.bf16.msra.mxu0 %v1028
        %1158 = vmatprep.subr.bf16.mxu0 %v1031
        %1159 = vmatpush1.bf16.msra.mxu0 %v1030
        %1160 = vmatprep.subr.bf16.mxu0 %v1033
        %1161 = vmatpush1.bf16.msra.mxu0 %v1032
        %1162 = vmatprep.subr.bf16.mxu0 %v1035
        %1163 = vmatpush1.bf16.msra.mxu0 %v1034
        %1164 = vmatprep.mubr.bf16.mxu0 %v805
        %1165 = vmatmul.mubr.bf16.gmra.mrb[0].mxu0 %v804
        %v1166 = vpop.f32.mrb[0].mxu0
        %v1167 = vadd.f32 %v792, %v1166
        %v1168 = vpop.f32.mrb[0].mxu0
        %v1169 = vadd.f32 %v794, %v1168
        %v1170 = vpop.f32.mrb[0].mxu0
        %v1171 = vpop.f32.mrb[0].mxu0
        %1172 = vdwg.mxu0
        %1173 = vmatprep.subr.bf16.mxu0 %v1037
        %1174 = vmatpush1.bf16.msra.mxu0 %v1036
        %1175 = vmatprep.subr.bf16.mxu0 %v1039
        %1176 = vmatpush1.bf16.msra.mxu0 %v1038
        %1177 = vmatprep.subr.bf16.mxu0 %v1041
        %1178 = vmatpush1.bf16.msra.mxu0 %v1040
        %1179 = vmatprep.subr.bf16.mxu0 %v1043
        %1180 = vmatpush1.bf16.msra.mxu0 %v1042
        %1181 = vmatprep.subr.bf16.mxu0 %v1045
        %1182 = vmatpush1.bf16.msra.mxu0 %v1044
        %1183 = vmatprep.subr.bf16.mxu0 %v1047
        %1184 = vmatpush1.bf16.msra.mxu0 %v1046
        %1185 = vmatprep.subr.bf16.mxu0 %v1049
        %1186 = vmatpush1.bf16.msra.mxu0 %v1048
        %1187 = vmatprep.subr.bf16.mxu0 %v1051
        %1188 = vmatpush1.bf16.msra.mxu0 %v1050
        %1189 = vmatprep.subr.bf16.mxu0 %v1053
        %1190 = vmatpush1.bf16.msra.mxu0 %v1052
        %1191 = vmatprep.subr.bf16.mxu0 %v1055
        %1192 = vmatpush1.bf16.msra.mxu0 %v1054
        %1193 = vmatprep.subr.bf16.mxu0 %v1057
        %1194 = vmatpush1.bf16.msra.mxu0 %v1056
        %1195 = vmatprep.subr.bf16.mxu0 %v1059
        %1196 = vmatpush1.bf16.msra.mxu0 %v1058
        %1197 = vmatprep.subr.bf16.mxu0 %v1061
        %1198 = vmatpush1.bf16.msra.mxu0 %v1060
        %1199 = vmatprep.subr.bf16.mxu0 %v1063
        %1200 = vmatpush1.bf16.msra.mxu0 %v1062
        %1201 = vmatprep.subr.bf16.mxu0 %v1065
        %1202 = vmatpush1.bf16.msra.mxu0 %v1064
        %1203 = vmatprep.subr.bf16.mxu0 %v1067
        %1204 = vmatpush1.bf16.msra.mxu0 %v1066
        %1205 = vmatprep.mubr.bf16.mxu0 %v807
        %1206 = vmatmul.mubr.bf16.gmra.mrb[0].mxu0 %v806
        %v1207 = vpop.f32.mrb[0].mxu0
        %v1208 = vadd.f32 %v1167, %v1207
        %v1209 = vpop.f32.mrb[0].mxu0
        %v1210 = vadd.f32 %v1169, %v1209
        %v1211 = vpop.f32.mrb[0].mxu0
        %v1212 = vpop.f32.mrb[0].mxu0
        %1213 = vdwg.mxu0
        %v1214 = vld [vmem:[%s211] sm:$0xee]
        %v1215 = vld [vmem:[%s211 + $0x8] sm:$0xee]
        %v1216 = vld [vmem:[%s211 + $0x10] sm:$0x11]
        %v1217 = vld [vmem:[%s211 + $0x18] sm:$0x11]
        %s1218 = scalar_lea.vmem [#allocation2], 1024
        %v1219 = vld [vmem:[%s1218] sm:$0xff]
        %v1220 = vld [vmem:[%s1218 + $0x8] sm:$0xff]
        %v1221 = vld [vmem:[%s1218 + $0x10] sm:$0xff]
        %v1222 = vld [vmem:[%s1218 + $0x18] sm:$0xff]
        %v1223 = vld [vmem:[%s1218 + $0x20] sm:$0xff]
        %v1224 = vld [vmem:[%s1218 + $0x28] sm:$0xff]
        %v1225 = vld [vmem:[%s1218 + $0x30] sm:$0xff]
        %v1226 = vld [vmem:[%s1218 + $0x38] sm:$0xff]
        %v1227 = vld [vmem:[%s1218 + $0x40] sm:$0xff]
        %v1228 = vld [vmem:[%s1218 + $0x48] sm:$0xff]
        %v1229 = vld [vmem:[%s1218 + $0x50] sm:$0xff]
        %v1230 = vld [vmem:[%s1218 + $0x58] sm:$0xff]
        %v1231 = vld [vmem:[%s1218 + $0x60] sm:$0xff]
        %v1232 = vld [vmem:[%s1218 + $0x68] sm:$0xff]
        %v1233 = vld [vmem:[%s1218 + $0x70] sm:$0xff]
        %v1234 = vld [vmem:[%s1218 + $0x78] sm:$0xff]
        %v1235 = vld [vmem:[%s1218 + $0x80] sm:$0xff]
        %v1236 = vld [vmem:[%s1218 + $0x88] sm:$0xff]
        %v1237 = vld [vmem:[%s1218 + $0x90] sm:$0xff]
        %v1238 = vld [vmem:[%s1218 + $0x98] sm:$0xff]
        %v1239 = vld [vmem:[%s1218 + $0xa0] sm:$0xff]
        %v1240 = vld [vmem:[%s1218 + $0xa8] sm:$0xff]
        %v1241 = vld [vmem:[%s1218 + $0xb0] sm:$0xff]
        %v1242 = vld [vmem:[%s1218 + $0xb8] sm:$0xff]
        %v1243 = vld [vmem:[%s1218 + $0xc0] sm:$0xff]
        %v1244 = vld [vmem:[%s1218 + $0xc8] sm:$0xff]
        %v1245 = vld [vmem:[%s1218 + $0xd0] sm:$0xff]
        %v1246 = vld [vmem:[%s1218 + $0xd8] sm:$0xff]
        %v1247 = vld [vmem:[%s1218 + $0xe0] sm:$0xff]
        %v1248 = vld [vmem:[%s1218 + $0xe8] sm:$0xff]
        %v1249 = vld [vmem:[%s1218 + $0xf0] sm:$0xff]
        %v1250 = vld [vmem:[%s1218 + $0xf8] sm:$0xff]
        %v1251 = vld [vmem:[%s1218 + $0x100] sm:$0xff]
        %v1252 = vld [vmem:[%s1218 + $0x108] sm:$0xff]
        %v1253 = vld [vmem:[%s1218 + $0x110] sm:$0xff]
        %v1254 = vld [vmem:[%s1218 + $0x118] sm:$0xff]
        %v1255 = vld [vmem:[%s1218 + $0x120] sm:$0xff]
        %v1256 = vld [vmem:[%s1218 + $0x128] sm:$0xff]
        %v1257 = vld [vmem:[%s1218 + $0x130] sm:$0xff]
        %v1258 = vld [vmem:[%s1218 + $0x138] sm:$0xff]
        %v1259 = vld [vmem:[%s1218 + $0x140] sm:$0xff]
        %v1260 = vld [vmem:[%s1218 + $0x148] sm:$0xff]
        %v1261 = vld [vmem:[%s1218 + $0x150] sm:$0xff]
        %v1262 = vld [vmem:[%s1218 + $0x158] sm:$0xff]
        %v1263 = vld [vmem:[%s1218 + $0x160] sm:$0xff]
        %v1264 = vld [vmem:[%s1218 + $0x168] sm:$0xff]
        %v1265 = vld [vmem:[%s1218 + $0x170] sm:$0xff]
        %v1266 = vld [vmem:[%s1218 + $0x178] sm:$0xff]
        %v1267 = vld [vmem:[%s1218 + $0x180] sm:$0xff]
        %v1268 = vld [vmem:[%s1218 + $0x188] sm:$0xff]
        %v1269 = vld [vmem:[%s1218 + $0x190] sm:$0xff]
        %v1270 = vld [vmem:[%s1218 + $0x198] sm:$0xff]
        %v1271 = vld [vmem:[%s1218 + $0x1a0] sm:$0xff]
        %v1272 = vld [vmem:[%s1218 + $0x1a8] sm:$0xff]
        %v1273 = vld [vmem:[%s1218 + $0x1b0] sm:$0xff]
        %v1274 = vld [vmem:[%s1218 + $0x1b8] sm:$0xff]
        %v1275 = vld [vmem:[%s1218 + $0x1c0] sm:$0xff]
        %v1276 = vld [vmem:[%s1218 + $0x1c8] sm:$0xff]
        %v1277 = vld [vmem:[%s1218 + $0x1d0] sm:$0xff]
        %v1278 = vld [vmem:[%s1218 + $0x1d8] sm:$0xff]
        %v1279 = vld [vmem:[%s1218 + $0x1e0] sm:$0xff]
        %v1280 = vld [vmem:[%s1218 + $0x1e8] sm:$0xff]
        %v1281 = vld [vmem:[%s1218 + $0x1f0] sm:$0xff]
        %v1282 = vld [vmem:[%s1218 + $0x1f8] sm:$0xff]
        %v1287 = vunpack.c.l.b16 %v1214
        %v1288 = vunpack.c.h.b16 %v1214
        %v1289 = vunpack.c.l.b16 %v1215
        %v1290 = vunpack.c.h.b16 %v1215
        %v1291 = vunpack.c.l.b16 %v1216
        %v1292 = vunpack.c.h.b16 %v1216
        %v1293 = vunpack.c.l.b16 %v1217
        %v1294 = vunpack.c.h.b16 %v1217
        %v1295 = vpack.c.b16 %v1291, %v1287
        %v1296 = vpack.c.b16 %v1292, %v1288
        %v1297 = vpack.c.b16 %v1293, %v1289
        %v1298 = vpack.c.b16 %v1294, %v1290
        %v1300 = vshrl.u32 %v1295, 16
        %v1302 = vrot.slane %v1300, 1
        %v1303 = vshll.u32 %v1295, 16
        %v1305 = vrot.slane %v1303, 2
        %v1306 = vor.u32 %v1302, %v1305
        %v1308 = vshrl.u32 %v1296, 16
        %v1310 = vrot.slane %v1308, 1
        %v1311 = vshll.u32 %v1296, 16
        %v1313 = vrot.slane %v1311, 2
        %v1314 = vor.u32 %v1310, %v1313
        %v1316 = vshrl.u32 %v1297, 16
        %v1318 = vrot.slane %v1316, 1
        %v1319 = vshll.u32 %v1297, 16
        %v1321 = vrot.slane %v1319, 2
        %v1322 = vor.u32 %v1318, %v1321
        %v1324 = vshrl.u32 %v1298, 16
        %v1326 = vrot.slane %v1324, 1
        %v1327 = vshll.u32 %v1298, 16
        %v1329 = vrot.slane %v1327, 2
        %v1330 = vor.u32 %v1326, %v1329
        %v1399 = vunpack.c.l.b16 %v1219
        %v1400 = vunpack.c.h.b16 %v1219
        %v1401 = vunpack.c.l.b16 %v1220
        %v1402 = vunpack.c.h.b16 %v1220
        %v1403 = vunpack.c.l.b16 %v1221
        %v1404 = vunpack.c.h.b16 %v1221
        %v1405 = vunpack.c.l.b16 %v1222
        %v1406 = vunpack.c.h.b16 %v1222
        %v1407 = vunpack.c.l.b16 %v1223
        %v1408 = vunpack.c.h.b16 %v1223
        %v1409 = vunpack.c.l.b16 %v1224
        %v1410 = vunpack.c.h.b16 %v1224
        %v1411 = vunpack.c.l.b16 %v1225
        %v1412 = vunpack.c.h.b16 %v1225
        %v1413 = vunpack.c.l.b16 %v1226
        %v1414 = vunpack.c.h.b16 %v1226
        %v1415 = vunpack.c.l.b16 %v1227
        %v1416 = vunpack.c.h.b16 %v1227
        %v1417 = vunpack.c.l.b16 %v1228
        %v1418 = vunpack.c.h.b16 %v1228
        %v1419 = vunpack.c.l.b16 %v1229
        %v1420 = vunpack.c.h.b16 %v1229
        %v1421 = vunpack.c.l.b16 %v1230
        %v1422 = vunpack.c.h.b16 %v1230
        %v1423 = vunpack.c.l.b16 %v1231
        %v1424 = vunpack.c.h.b16 %v1231
        %v1425 = vunpack.c.l.b16 %v1232
        %v1426 = vunpack.c.h.b16 %v1232
        %v1427 = vunpack.c.l.b16 %v1233
        %v1428 = vunpack.c.h.b16 %v1233
        %v1429 = vunpack.c.l.b16 %v1234
        %v1430 = vunpack.c.h.b16 %v1234
        %v1431 = vunpack.c.l.b16 %v1235
        %v1432 = vunpack.c.h.b16 %v1235
        %v1433 = vunpack.c.l.b16 %v1236
        %v1434 = vunpack.c.h.b16 %v1236
        %v1435 = vunpack.c.l.b16 %v1237
        %v1436 = vunpack.c.h.b16 %v1237
        %v1437 = vunpack.c.l.b16 %v1238
        %v1438 = vunpack.c.h.b16 %v1238
        %v1439 = vunpack.c.l.b16 %v1239
        %v1440 = vunpack.c.h.b16 %v1239
        %v1441 = vunpack.c.l.b16 %v1240
        %v1442 = vunpack.c.h.b16 %v1240
        %v1443 = vunpack.c.l.b16 %v1241
        %v1444 = vunpack.c.h.b16 %v1241
        %v1445 = vunpack.c.l.b16 %v1242
        %v1446 = vunpack.c.h.b16 %v1242
        %v1447 = vunpack.c.l.b16 %v1243
        %v1448 = vunpack.c.h.b16 %v1243
        %v1449 = vunpack.c.l.b16 %v1244
        %v1450 = vunpack.c.h.b16 %v1244
        %v1451 = vunpack.c.l.b16 %v1245
        %v1452 = vunpack.c.h.b16 %v1245
        %v1453 = vunpack.c.l.b16 %v1246
        %v1454 = vunpack.c.h.b16 %v1246
        %v1455 = vunpack.c.l.b16 %v1247
        %v1456 = vunpack.c.h.b16 %v1247
        %v1457 = vunpack.c.l.b16 %v1248
        %v1458 = vunpack.c.h.b16 %v1248
        %v1459 = vunpack.c.l.b16 %v1249
        %v1460 = vunpack.c.h.b16 %v1249
        %v1461 = vunpack.c.l.b16 %v1250
        %v1462 = vunpack.c.h.b16 %v1250
        %v1463 = vunpack.c.l.b16 %v1251
        %v1464 = vunpack.c.h.b16 %v1251
        %v1465 = vunpack.c.l.b16 %v1252
        %v1466 = vunpack.c.h.b16 %v1252
        %v1467 = vunpack.c.l.b16 %v1253
        %v1468 = vunpack.c.h.b16 %v1253
        %v1469 = vunpack.c.l.b16 %v1254
        %v1470 = vunpack.c.h.b16 %v1254
        %v1471 = vunpack.c.l.b16 %v1255
        %v1472 = vunpack.c.h.b16 %v1255
        %v1473 = vunpack.c.l.b16 %v1256
        %v1474 = vunpack.c.h.b16 %v1256
        %v1475 = vunpack.c.l.b16 %v1257
        %v1476 = vunpack.c.h.b16 %v1257
        %v1477 = vunpack.c.l.b16 %v1258
        %v1478 = vunpack.c.h.b16 %v1258
        %v1479 = vunpack.c.l.b16 %v1259
        %v1480 = vunpack.c.h.b16 %v1259
        %v1481 = vunpack.c.l.b16 %v1260
        %v1482 = vunpack.c.h.b16 %v1260
        %v1483 = vunpack.c.l.b16 %v1261
        %v1484 = vunpack.c.h.b16 %v1261
        %v1485 = vunpack.c.l.b16 %v1262
        %v1486 = vunpack.c.h.b16 %v1262
        %v1487 = vunpack.c.l.b16 %v1263
        %v1488 = vunpack.c.h.b16 %v1263
        %v1489 = vunpack.c.l.b16 %v1264
        %v1490 = vunpack.c.h.b16 %v1264
        %v1491 = vunpack.c.l.b16 %v1265
        %v1492 = vunpack.c.h.b16 %v1265
        %v1493 = vunpack.c.l.b16 %v1266
        %v1494 = vunpack.c.h.b16 %v1266
        %v1495 = vunpack.c.l.b16 %v1267
        %v1496 = vunpack.c.h.b16 %v1267
        %v1497 = vunpack.c.l.b16 %v1268
        %v1498 = vunpack.c.h.b16 %v1268
        %v1499 = vunpack.c.l.b16 %v1269
        %v1500 = vunpack.c.h.b16 %v1269
        %v1501 = vunpack.c.l.b16 %v1270
        %v1502 = vunpack.c.h.b16 %v1270
        %v1503 = vunpack.c.l.b16 %v1271
        %v1504 = vunpack.c.h.b16 %v1271
        %v1505 = vunpack.c.l.b16 %v1272
        %v1506 = vunpack.c.h.b16 %v1272
        %v1507 = vunpack.c.l.b16 %v1273
        %v1508 = vunpack.c.h.b16 %v1273
        %v1509 = vunpack.c.l.b16 %v1274
        %v1510 = vunpack.c.h.b16 %v1274
        %v1511 = vunpack.c.l.b16 %v1275
        %v1512 = vunpack.c.h.b16 %v1275
        %v1513 = vunpack.c.l.b16 %v1276
        %v1514 = vunpack.c.h.b16 %v1276
        %v1515 = vunpack.c.l.b16 %v1277
        %v1516 = vunpack.c.h.b16 %v1277
        %v1517 = vunpack.c.l.b16 %v1278
        %v1518 = vunpack.c.h.b16 %v1278
        %v1519 = vunpack.c.l.b16 %v1279
        %v1520 = vunpack.c.h.b16 %v1279
        %v1521 = vunpack.c.l.b16 %v1280
        %v1522 = vunpack.c.h.b16 %v1280
        %v1523 = vunpack.c.l.b16 %v1281
        %v1524 = vunpack.c.h.b16 %v1281
        %v1525 = vunpack.c.l.b16 %v1282
        %v1526 = vunpack.c.h.b16 %v1282
        %v1527 = vpack.c.b16 %v1401, %v1399
        %v1528 = vpack.c.b16 %v1402, %v1400
        %v1529 = vpack.c.b16 %v1405, %v1403
        %v1530 = vpack.c.b16 %v1406, %v1404
        %v1531 = vpack.c.b16 %v1409, %v1407
        %v1532 = vpack.c.b16 %v1410, %v1408
        %v1533 = vpack.c.b16 %v1413, %v1411
        %v1534 = vpack.c.b16 %v1414, %v1412
        %v1535 = vpack.c.b16 %v1417, %v1415
        %v1536 = vpack.c.b16 %v1418, %v1416
        %v1537 = vpack.c.b16 %v1421, %v1419
        %v1538 = vpack.c.b16 %v1422, %v1420
        %v1539 = vpack.c.b16 %v1425, %v1423
        %v1540 = vpack.c.b16 %v1426, %v1424
        %v1541 = vpack.c.b16 %v1429, %v1427
        %v1542 = vpack.c.b16 %v1430, %v1428
        %v1543 = vpack.c.b16 %v1433, %v1431
        %v1544 = vpack.c.b16 %v1434, %v1432
        %v1545 = vpack.c.b16 %v1437, %v1435
        %v1546 = vpack.c.b16 %v1438, %v1436
        %v1547 = vpack.c.b16 %v1441, %v1439
        %v1548 = vpack.c.b16 %v1442, %v1440
        %v1549 = vpack.c.b16 %v1445, %v1443
        %v1550 = vpack.c.b16 %v1446, %v1444
        %v1551 = vpack.c.b16 %v1449, %v1447
        %v1552 = vpack.c.b16 %v1450, %v1448
        %v1553 = vpack.c.b16 %v1453, %v1451
        %v1554 = vpack.c.b16 %v1454, %v1452
        %v1555 = vpack.c.b16 %v1457, %v1455
        %v1556 = vpack.c.b16 %v1458, %v1456
        %v1557 = vpack.c.b16 %v1461, %v1459
        %v1558 = vpack.c.b16 %v1462, %v1460
        %v1559 = vpack.c.b16 %v1465, %v1463
        %v1560 = vpack.c.b16 %v1466, %v1464
        %v1561 = vpack.c.b16 %v1469, %v1467
        %v1562 = vpack.c.b16 %v1470, %v1468
        %v1563 = vpack.c.b16 %v1473, %v1471
        %v1564 = vpack.c.b16 %v1474, %v1472
        %v1565 = vpack.c.b16 %v1477, %v1475
        %v1566 = vpack.c.b16 %v1478, %v1476
        %v1567 = vpack.c.b16 %v1481, %v1479
        %v1568 = vpack.c.b16 %v1482, %v1480
        %v1569 = vpack.c.b16 %v1485, %v1483
        %v1570 = vpack.c.b16 %v1486, %v1484
        %v1571 = vpack.c.b16 %v1489, %v1487
        %v1572 = vpack.c.b16 %v1490, %v1488
        %v1573 = vpack.c.b16 %v1493, %v1491
        %v1574 = vpack.c.b16 %v1494, %v1492
        %v1575 = vpack.c.b16 %v1497, %v1495
        %v1576 = vpack.c.b16 %v1498, %v1496
        %v1577 = vpack.c.b16 %v1501, %v1499
        %v1578 = vpack.c.b16 %v1502, %v1500
        %v1579 = vpack.c.b16 %v1505, %v1503
        %v1580 = vpack.c.b16 %v1506, %v1504
        %v1581 = vpack.c.b16 %v1509, %v1507
        %v1582 = vpack.c.b16 %v1510, %v1508
        %v1583 = vpack.c.b16 %v1513, %v1511
        %v1584 = vpack.c.b16 %v1514, %v1512
        %v1585 = vpack.c.b16 %v1517, %v1515
        %v1586 = vpack.c.b16 %v1518, %v1516
        %v1587 = vpack.c.b16 %v1521, %v1519
        %v1588 = vpack.c.b16 %v1522, %v1520
        %v1589 = vpack.c.b16 %v1525, %v1523
        %v1590 = vpack.c.b16 %v1526, %v1524
        %1655 = vmatprep.subr.bf16.mxu0 %v1528
        %1656 = vmatpush1.bf16.msra.mxu0 %v1527
        %1657 = vmatprep.subr.bf16.mxu0 %v1530
        %1658 = vmatpush1.bf16.msra.mxu0 %v1529
        %1659 = vmatprep.subr.bf16.mxu0 %v1532
        %1660 = vmatpush1.bf16.msra.mxu0 %v1531
        %1661 = vmatprep.subr.bf16.mxu0 %v1534
        %1662 = vmatpush1.bf16.msra.mxu0 %v1533
        %1663 = vmatprep.subr.bf16.mxu0 %v1536
        %1664 = vmatpush1.bf16.msra.mxu0 %v1535
        %1665 = vmatprep.subr.bf16.mxu0 %v1538
        %1666 = vmatpush1.bf16.msra.mxu0 %v1537
        %1667 = vmatprep.subr.bf16.mxu0 %v1540
        %1668 = vmatpush1.bf16.msra.mxu0 %v1539
        %1669 = vmatprep.subr.bf16.mxu0 %v1542
        %1670 = vmatpush1.bf16.msra.mxu0 %v1541
        %1671 = vmatprep.subr.bf16.mxu0 %v1544
        %1672 = vmatpush1.bf16.msra.mxu0 %v1543
        %1673 = vmatprep.subr.bf16.mxu0 %v1546
        %1674 = vmatpush1.bf16.msra.mxu0 %v1545
        %1675 = vmatprep.subr.bf16.mxu0 %v1548
        %1676 = vmatpush1.bf16.msra.mxu0 %v1547
        %1677 = vmatprep.subr.bf16.mxu0 %v1550
        %1678 = vmatpush1.bf16.msra.mxu0 %v1549
        %1679 = vmatprep.subr.bf16.mxu0 %v1552
        %1680 = vmatpush1.bf16.msra.mxu0 %v1551
        %1681 = vmatprep.subr.bf16.mxu0 %v1554
        %1682 = vmatpush1.bf16.msra.mxu0 %v1553
        %1683 = vmatprep.subr.bf16.mxu0 %v1556
        %1684 = vmatpush1.bf16.msra.mxu0 %v1555
        %1685 = vmatprep.subr.bf16.mxu0 %v1558
        %1686 = vmatpush1.bf16.msra.mxu0 %v1557
        %1687 = vmatprep.mubr.bf16.mxu0 %v1314
        %1688 = vmatmul.mubr.bf16.gmra.mrb[0].mxu0 %v1306
        %v1689 = vpop.f32.mrb[0].mxu0
        %v1690 = vadd.f32 0.0, %v1689
        %v1691 = vpop.f32.mrb[0].mxu0
        %v1692 = vadd.f32 0.0, %v1691
        %v1693 = vpop.f32.mrb[0].mxu0
        %v1694 = vpop.f32.mrb[0].mxu0
        %1695 = vdwg.mxu0
        %1696 = vmatprep.subr.bf16.mxu0 %v1560
        %1697 = vmatpush1.bf16.msra.mxu0 %v1559
        %1698 = vmatprep.subr.bf16.mxu0 %v1562
        %1699 = vmatpush1.bf16.msra.mxu0 %v1561
        %1700 = vmatprep.subr.bf16.mxu0 %v1564
        %1701 = vmatpush1.bf16.msra.mxu0 %v1563
        %1702 = vmatprep.subr.bf16.mxu0 %v1566
        %1703 = vmatpush1.bf16.msra.mxu0 %v1565
        %1704 = vmatprep.subr.bf16.mxu0 %v1568
        %1705 = vmatpush1.bf16.msra.mxu0 %v1567
        %1706 = vmatprep.subr.bf16.mxu0 %v1570
        %1707 = vmatpush1.bf16.msra.mxu0 %v1569
        %1708 = vmatprep.subr.bf16.mxu0 %v1572
        %1709 = vmatpush1.bf16.msra.mxu0 %v1571
        %1710 = vmatprep.subr.bf16.mxu0 %v1574
        %1711 = vmatpush1.bf16.msra.mxu0 %v1573
        %1712 = vmatprep.subr.bf16.mxu0 %v1576
        %1713 = vmatpush1.bf16.msra.mxu0 %v1575
        %1714 = vmatprep.subr.bf16.mxu0 %v1578
        %1715 = vmatpush1.bf16.msra.mxu0 %v1577
        %1716 = vmatprep.subr.bf16.mxu0 %v1580
        %1717 = vmatpush1.bf16.msra.mxu0 %v1579
        %1718 = vmatprep.subr.bf16.mxu0 %v1582
        %1719 = vmatpush1.bf16.msra.mxu0 %v1581
        %1720 = vmatprep.subr.bf16.mxu0 %v1584
        %1721 = vmatpush1.bf16.msra.mxu0 %v1583
        %1722 = vmatprep.subr.bf16.mxu0 %v1586
        %1723 = vmatpush1.bf16.msra.mxu0 %v1585
        %1724 = vmatprep.subr.bf16.mxu0 %v1588
        %1725 = vmatpush1.bf16.msra.mxu0 %v1587
        %1726 = vmatprep.subr.bf16.mxu0 %v1590
        %1727 = vmatpush1.bf16.msra.mxu0 %v1589
        %1728 = vmatprep.mubr.bf16.mxu0 %v1330
        %1729 = vmatmul.mubr.bf16.gmra.mrb[0].mxu0 %v1322
        %v1730 = vpop.f32.mrb[0].mxu0
        %v1731 = vadd.f32 %v1690, %v1730
        %v1732 = vpop.f32.mrb[0].mxu0
        %v1733 = vadd.f32 %v1692, %v1732
        %v1734 = vpop.f32.mrb[0].mxu0
        %v1735 = vpop.f32.mrb[0].mxu0
        %1736 = vdwg.mxu0
        %v1737 = vadd.f32 %v1208, %v1731
        %v1738 = vadd.f32 %v1210, %v1733
        %v1739 = vld [vmem:[%s211] sm:$0xcc]
        %v1740 = vld [vmem:[%s211 + $0x8] sm:$0xcc]
        %s1741 = scalar_lea.vmem [#allocation2], 1536
        %v1742 = vld [vmem:[%s1741] sm:$0xff]
        %v1743 = vld [vmem:[%s1741 + $0x8] sm:$0xff]
        %v1744 = vld [vmem:[%s1741 + $0x10] sm:$0xff]
        %v1745 = vld [vmem:[%s1741 + $0x18] sm:$0xff]
        %v1746 = vld [vmem:[%s1741 + $0x20] sm:$0xff]
        %v1747 = vld [vmem:[%s1741 + $0x28] sm:$0xff]
        %v1748 = vld [vmem:[%s1741 + $0x30] sm:$0xff]
        %v1749 = vld [vmem:[%s1741 + $0x38] sm:$0xff]
        %v1750 = vld [vmem:[%s1741 + $0x40] sm:$0xff]
        %v1751 = vld [vmem:[%s1741 + $0x48] sm:$0xff]
        %v1752 = vld [vmem:[%s1741 + $0x50] sm:$0xff]
        %v1753 = vld [vmem:[%s1741 + $0x58] sm:$0xff]
        %v1754 = vld [vmem:[%s1741 + $0x60] sm:$0xff]
        %v1755 = vld [vmem:[%s1741 + $0x68] sm:$0xff]
        %v1756 = vld [vmem:[%s1741 + $0x70] sm:$0xff]
        %v1757 = vld [vmem:[%s1741 + $0x78] sm:$0xff]
        %v1758 = vld [vmem:[%s1741 + $0x80] sm:$0xff]
        %v1759 = vld [vmem:[%s1741 + $0x88] sm:$0xff]
        %v1760 = vld [vmem:[%s1741 + $0x90] sm:$0xff]
        %v1761 = vld [vmem:[%s1741 + $0x98] sm:$0xff]
        %v1762 = vld [vmem:[%s1741 + $0xa0] sm:$0xff]
        %v1763 = vld [vmem:[%s1741 + $0xa8] sm:$0xff]
        %v1764 = vld [vmem:[%s1741 + $0xb0] sm:$0xff]
        %v1765 = vld [vmem:[%s1741 + $0xb8] sm:$0xff]
        %v1766 = vld [vmem:[%s1741 + $0xc0] sm:$0xff]
        %v1767 = vld [vmem:[%s1741 + $0xc8] sm:$0xff]
        %v1768 = vld [vmem:[%s1741 + $0xd0] sm:$0xff]
        %v1769 = vld [vmem:[%s1741 + $0xd8] sm:$0xff]
        %v1770 = vld [vmem:[%s1741 + $0xe0] sm:$0xff]
        %v1771 = vld [vmem:[%s1741 + $0xe8] sm:$0xff]
        %v1772 = vld [vmem:[%s1741 + $0xf0] sm:$0xff]
        %v1773 = vld [vmem:[%s1741 + $0xf8] sm:$0xff]
        %v1774 = vld [vmem:[%s1741 + $0x100] sm:$0xff]
        %v1775 = vld [vmem:[%s1741 + $0x108] sm:$0xff]
        %v1776 = vld [vmem:[%s1741 + $0x110] sm:$0xff]
        %v1777 = vld [vmem:[%s1741 + $0x118] sm:$0xff]
        %v1778 = vld [vmem:[%s1741 + $0x120] sm:$0xff]
        %v1779 = vld [vmem:[%s1741 + $0x128] sm:$0xff]
        %v1780 = vld [vmem:[%s1741 + $0x130] sm:$0xff]
        %v1781 = vld [vmem:[%s1741 + $0x138] sm:$0xff]
        %v1782 = vld [vmem:[%s1741 + $0x140] sm:$0xff]
        %v1783 = vld [vmem:[%s1741 + $0x148] sm:$0xff]
        %v1784 = vld [vmem:[%s1741 + $0x150] sm:$0xff]
        %v1785 = vld [vmem:[%s1741 + $0x158] sm:$0xff]
        %v1786 = vld [vmem:[%s1741 + $0x160] sm:$0xff]
        %v1787 = vld [vmem:[%s1741 + $0x168] sm:$0xff]
        %v1788 = vld [vmem:[%s1741 + $0x170] sm:$0xff]
        %v1789 = vld [vmem:[%s1741 + $0x178] sm:$0xff]
        %v1790 = vld [vmem:[%s1741 + $0x180] sm:$0xff]
        %v1791 = vld [vmem:[%s1741 + $0x188] sm:$0xff]
        %v1792 = vld [vmem:[%s1741 + $0x190] sm:$0xff]
        %v1793 = vld [vmem:[%s1741 + $0x198] sm:$0xff]
        %v1794 = vld [vmem:[%s1741 + $0x1a0] sm:$0xff]
        %v1795 = vld [vmem:[%s1741 + $0x1a8] sm:$0xff]
        %v1796 = vld [vmem:[%s1741 + $0x1b0] sm:$0xff]
        %v1797 = vld [vmem:[%s1741 + $0x1b8] sm:$0xff]
        %v1798 = vld [vmem:[%s1741 + $0x1c0] sm:$0xff]
        %v1799 = vld [vmem:[%s1741 + $0x1c8] sm:$0xff]
        %v1800 = vld [vmem:[%s1741 + $0x1d0] sm:$0xff]
        %v1801 = vld [vmem:[%s1741 + $0x1d8] sm:$0xff]
        %v1802 = vld [vmem:[%s1741 + $0x1e0] sm:$0xff]
        %v1803 = vld [vmem:[%s1741 + $0x1e8] sm:$0xff]
        %v1804 = vld [vmem:[%s1741 + $0x1f0] sm:$0xff]
        %v1805 = vld [vmem:[%s1741 + $0x1f8] sm:$0xff]
        %v1808 = vunpack.c.l.b16 %v1739
        %v1809 = vunpack.c.h.b16 %v1739
        %v1810 = vunpack.c.l.b16 %v1740
        %v1811 = vunpack.c.h.b16 %v1740
        %v1812 = vpack.c.b16 %v1291, %v1808
        %v1813 = vpack.c.b16 %v1292, %v1809
        %v1814 = vpack.c.b16 %v1293, %v1810
        %v1815 = vpack.c.b16 %v1294, %v1811
        %v1816 = vrot.slane %v1812, 2
        %v1817 = vrot.slane %v1813, 2
        %v1818 = vrot.slane %v1814, 2
        %v1819 = vrot.slane %v1815, 2
        %v1888 = vunpack.c.l.b16 %v1742
        %v1889 = vunpack.c.h.b16 %v1742
        %v1890 = vunpack.c.l.b16 %v1743
        %v1891 = vunpack.c.h.b16 %v1743
        %v1892 = vunpack.c.l.b16 %v1744
        %v1893 = vunpack.c.h.b16 %v1744
        %v1894 = vunpack.c.l.b16 %v1745
        %v1895 = vunpack.c.h.b16 %v1745
        %v1896 = vunpack.c.l.b16 %v1746
        %v1897 = vunpack.c.h.b16 %v1746
        %v1898 = vunpack.c.l.b16 %v1747
        %v1899 = vunpack.c.h.b16 %v1747
        %v1900 = vunpack.c.l.b16 %v1748
        %v1901 = vunpack.c.h.b16 %v1748
        %v1902 = vunpack.c.l.b16 %v1749
        %v1903 = vunpack.c.h.b16 %v1749
        %v1904 = vunpack.c.l.b16 %v1750
        %v1905 = vunpack.c.h.b16 %v1750
        %v1906 = vunpack.c.l.b16 %v1751
        %v1907 = vunpack.c.h.b16 %v1751
        %v1908 = vunpack.c.l.b16 %v1752
        %v1909 = vunpack.c.h.b16 %v1752
        %v1910 = vunpack.c.l.b16 %v1753
        %v1911 = vunpack.c.h.b16 %v1753
        %v1912 = vunpack.c.l.b16 %v1754
        %v1913 = vunpack.c.h.b16 %v1754
        %v1914 = vunpack.c.l.b16 %v1755
        %v1915 = vunpack.c.h.b16 %v1755
        %v1916 = vunpack.c.l.b16 %v1756
        %v1917 = vunpack.c.h.b16 %v1756
        %v1918 = vunpack.c.l.b16 %v1757
        %v1919 = vunpack.c.h.b16 %v1757
        %v1920 = vunpack.c.l.b16 %v1758
        %v1921 = vunpack.c.h.b16 %v1758
        %v1922 = vunpack.c.l.b16 %v1759
        %v1923 = vunpack.c.h.b16 %v1759
        %v1924 = vunpack.c.l.b16 %v1760
        %v1925 = vunpack.c.h.b16 %v1760
        %v1926 = vunpack.c.l.b16 %v1761
        %v1927 = vunpack.c.h.b16 %v1761
        %v1928 = vunpack.c.l.b16 %v1762
        %v1929 = vunpack.c.h.b16 %v1762
        %v1930 = vunpack.c.l.b16 %v1763
        %v1931 = vunpack.c.h.b16 %v1763
        %v1932 = vunpack.c.l.b16 %v1764
        %v1933 = vunpack.c.h.b16 %v1764
        %v1934 = vunpack.c.l.b16 %v1765
        %v1935 = vunpack.c.h.b16 %v1765
        %v1936 = vunpack.c.l.b16 %v1766
        %v1937 = vunpack.c.h.b16 %v1766
        %v1938 = vunpack.c.l.b16 %v1767
        %v1939 = vunpack.c.h.b16 %v1767
        %v1940 = vunpack.c.l.b16 %v1768
        %v1941 = vunpack.c.h.b16 %v1768
        %v1942 = vunpack.c.l.b16 %v1769
        %v1943 = vunpack.c.h.b16 %v1769
        %v1944 = vunpack.c.l.b16 %v1770
        %v1945 = vunpack.c.h.b16 %v1770
        %v1946 = vunpack.c.l.b16 %v1771
        %v1947 = vunpack.c.h.b16 %v1771
        %v1948 = vunpack.c.l.b16 %v1772
        %v1949 = vunpack.c.h.b16 %v1772
        %v1950 = vunpack.c.l.b16 %v1773
        %v1951 = vunpack.c.h.b16 %v1773
        %v1952 = vunpack.c.l.b16 %v1774
        %v1953 = vunpack.c.h.b16 %v1774
        %v1954 = vunpack.c.l.b16 %v1775
        %v1955 = vunpack.c.h.b16 %v1775
        %v1956 = vunpack.c.l.b16 %v1776
        %v1957 = vunpack.c.h.b16 %v1776
        %v1958 = vunpack.c.l.b16 %v1777
        %v1959 = vunpack.c.h.b16 %v1777
        %v1960 = vunpack.c.l.b16 %v1778
        %v1961 = vunpack.c.h.b16 %v1778
        %v1962 = vunpack.c.l.b16 %v1779
        %v1963 = vunpack.c.h.b16 %v1779
        %v1964 = vunpack.c.l.b16 %v1780
        %v1965 = vunpack.c.h.b16 %v1780
        %v1966 = vunpack.c.l.b16 %v1781
        %v1967 = vunpack.c.h.b16 %v1781
        %v1968 = vunpack.c.l.b16 %v1782
        %v1969 = vunpack.c.h.b16 %v1782
        %v1970 = vunpack.c.l.b16 %v1783
        %v1971 = vunpack.c.h.b16 %v1783
        %v1972 = vunpack.c.l.b16 %v1784
        %v1973 = vunpack.c.h.b16 %v1784
        %v1974 = vunpack.c.l.b16 %v1785
        %v1975 = vunpack.c.h.b16 %v1785
        %v1976 = vunpack.c.l.b16 %v1786
        %v1977 = vunpack.c.h.b16 %v1786
        %v1978 = vunpack.c.l.b16 %v1787
        %v1979 = vunpack.c.h.b16 %v1787
        %v1980 = vunpack.c.l.b16 %v1788
        %v1981 = vunpack.c.h.b16 %v1788
        %v1982 = vunpack.c.l.b16 %v1789
        %v1983 = vunpack.c.h.b16 %v1789
        %v1984 = vunpack.c.l.b16 %v1790
        %v1985 = vunpack.c.h.b16 %v1790
        %v1986 = vunpack.c.l.b16 %v1791
        %v1987 = vunpack.c.h.b16 %v1791
        %v1988 = vunpack.c.l.b16 %v1792
        %v1989 = vunpack.c.h.b16 %v1792
        %v1990 = vunpack.c.l.b16 %v1793
        %v1991 = vunpack.c.h.b16 %v1793
        %v1992 = vunpack.c.l.b16 %v1794
        %v1993 = vunpack.c.h.b16 %v1794
        %v1994 = vunpack.c.l.b16 %v1795
        %v1995 = vunpack.c.h.b16 %v1795
        %v1996 = vunpack.c.l.b16 %v1796
        %v1997 = vunpack.c.h.b16 %v1796
        %v1998 = vunpack.c.l.b16 %v1797
        %v1999 = vunpack.c.h.b16 %v1797
        %v2000 = vunpack.c.l.b16 %v1798
        %v2001 = vunpack.c.h.b16 %v1798
        %v2002 = vunpack.c.l.b16 %v1799
        %v2003 = vunpack.c.h.b16 %v1799
        %v2004 = vunpack.c.l.b16 %v1800
        %v2005 = vunpack.c.h.b16 %v1800
        %v2006 = vunpack.c.l.b16 %v1801
        %v2007 = vunpack.c.h.b16 %v1801
        %v2008 = vunpack.c.l.b16 %v1802
        %v2009 = vunpack.c.h.b16 %v1802
        %v2010 = vunpack.c.l.b16 %v1803
        %v2011 = vunpack.c.h.b16 %v1803
        %v2012 = vunpack.c.l.b16 %v1804
        %v2013 = vunpack.c.h.b16 %v1804
        %v2014 = vunpack.c.l.b16 %v1805
        %v2015 = vunpack.c.h.b16 %v1805
        %v2016 = vpack.c.b16 %v1890, %v1888
        %v2017 = vpack.c.b16 %v1891, %v1889
        %v2018 = vpack.c.b16 %v1894, %v1892
        %v2019 = vpack.c.b16 %v1895, %v1893
        %v2020 = vpack.c.b16 %v1898, %v1896
        %v2021 = vpack.c.b16 %v1899, %v1897
        %v2022 = vpack.c.b16 %v1902, %v1900
        %v2023 = vpack.c.b16 %v1903, %v1901
        %v2024 = vpack.c.b16 %v1906, %v1904
        %v2025 = vpack.c.b16 %v1907, %v1905
        %v2026 = vpack.c.b16 %v1910, %v1908
        %v2027 = vpack.c.b16 %v1911, %v1909
        %v2028 = vpack.c.b16 %v1914, %v1912
        %v2029 = vpack.c.b16 %v1915, %v1913
        %v2030 = vpack.c.b16 %v1918, %v1916
        %v2031 = vpack.c.b16 %v1919, %v1917
        %v2032 = vpack.c.b16 %v1922, %v1920
        %v2033 = vpack.c.b16 %v1923, %v1921
        %v2034 = vpack.c.b16 %v1926, %v1924
        %v2035 = vpack.c.b16 %v1927, %v1925
        %v2036 = vpack.c.b16 %v1930, %v1928
        %v2037 = vpack.c.b16 %v1931, %v1929
        %v2038 = vpack.c.b16 %v1934, %v1932
        %v2039 = vpack.c.b16 %v1935, %v1933
        %v2040 = vpack.c.b16 %v1938, %v1936
        %v2041 = vpack.c.b16 %v1939, %v1937
        %v2042 = vpack.c.b16 %v1942, %v1940
        %v2043 = vpack.c.b16 %v1943, %v1941
        %v2044 = vpack.c.b16 %v1946, %v1944
        %v2045 = vpack.c.b16 %v1947, %v1945
        %v2046 = vpack.c.b16 %v1950, %v1948
        %v2047 = vpack.c.b16 %v1951, %v1949
        %v2048 = vpack.c.b16 %v1954, %v1952
        %v2049 = vpack.c.b16 %v1955, %v1953
        %v2050 = vpack.c.b16 %v1958, %v1956
        %v2051 = vpack.c.b16 %v1959, %v1957
        %v2052 = vpack.c.b16 %v1962, %v1960
        %v2053 = vpack.c.b16 %v1963, %v1961
        %v2054 = vpack.c.b16 %v1966, %v1964
        %v2055 = vpack.c.b16 %v1967, %v1965
        %v2056 = vpack.c.b16 %v1970, %v1968
        %v2057 = vpack.c.b16 %v1971, %v1969
        %v2058 = vpack.c.b16 %v1974, %v1972
        %v2059 = vpack.c.b16 %v1975, %v1973
        %v2060 = vpack.c.b16 %v1978, %v1976
        %v2061 = vpack.c.b16 %v1979, %v1977
        %v2062 = vpack.c.b16 %v1982, %v1980
        %v2063 = vpack.c.b16 %v1983, %v1981
        %v2064 = vpack.c.b16 %v1986, %v1984
        %v2065 = vpack.c.b16 %v1987, %v1985
        %v2066 = vpack.c.b16 %v1990, %v1988
        %v2067 = vpack.c.b16 %v1991, %v1989
        %v2068 = vpack.c.b16 %v1994, %v1992
        %v2069 = vpack.c.b16 %v1995, %v1993
        %v2070 = vpack.c.b16 %v1998, %v1996
        %v2071 = vpack.c.b16 %v1999, %v1997
        %v2072 = vpack.c.b16 %v2002, %v2000
        %v2073 = vpack.c.b16 %v2003, %v2001
        %v2074 = vpack.c.b16 %v2006, %v2004
        %v2075 = vpack.c.b16 %v2007, %v2005
        %v2076 = vpack.c.b16 %v2010, %v2008
        %v2077 = vpack.c.b16 %v2011, %v2009
        %v2078 = vpack.c.b16 %v2014, %v2012
        %v2079 = vpack.c.b16 %v2015, %v2013
        %2144 = vmatprep.subr.bf16.mxu0 %v2017
        %2145 = vmatpush1.bf16.msra.mxu0 %v2016
        %2146 = vmatprep.subr.bf16.mxu0 %v2019
        %2147 = vmatpush1.bf16.msra.mxu0 %v2018
        %2148 = vmatprep.subr.bf16.mxu0 %v2021
        %2149 = vmatpush1.bf16.msra.mxu0 %v2020
        %2150 = vmatprep.subr.bf16.mxu0 %v2023
        %2151 = vmatpush1.bf16.msra.mxu0 %v2022
        %2152 = vmatprep.subr.bf16.mxu0 %v2025
        %2153 = vmatpush1.bf16.msra.mxu0 %v2024
        %2154 = vmatprep.subr.bf16.mxu0 %v2027
        %2155 = vmatpush1.bf16.msra.mxu0 %v2026
        %2156 = vmatprep.subr.bf16.mxu0 %v2029
        %2157 = vmatpush1.bf16.msra.mxu0 %v2028
        %2158 = vmatprep.subr.bf16.mxu0 %v2031
        %2159 = vmatpush1.bf16.msra.mxu0 %v2030
        %2160 = vmatprep.subr.bf16.mxu0 %v2033
        %2161 = vmatpush1.bf16.msra.mxu0 %v2032
        %2162 = vmatprep.subr.bf16.mxu0 %v2035
        %2163 = vmatpush1.bf16.msra.mxu0 %v2034
        %2164 = vmatprep.subr.bf16.mxu0 %v2037
        %2165 = vmatpush1.bf16.msra.mxu0 %v2036
        %2166 = vmatprep.subr.bf16.mxu0 %v2039
        %2167 = vmatpush1.bf16.msra.mxu0 %v2038
        %2168 = vmatprep.subr.bf16.mxu0 %v2041
        %2169 = vmatpush1.bf16.msra.mxu0 %v2040
        %2170 = vmatprep.subr.bf16.mxu0 %v2043
        %2171 = vmatpush1.bf16.msra.mxu0 %v2042
        %2172 = vmatprep.subr.bf16.mxu0 %v2045
        %2173 = vmatpush1.bf16.msra.mxu0 %v2044
        %2174 = vmatprep.subr.bf16.mxu0 %v2047
        %2175 = vmatpush1.bf16.msra.mxu0 %v2046
        %2176 = vmatprep.mubr.bf16.mxu0 %v1817
        %2177 = vmatmul.mubr.bf16.gmra.mrb[0].mxu0 %v1816
        %v2178 = vpop.f32.mrb[0].mxu0
        %v2179 = vadd.f32 0.0, %v2178
        %v2180 = vpop.f32.mrb[0].mxu0
        %v2181 = vadd.f32 0.0, %v2180
        %v2182 = vpop.f32.mrb[0].mxu0
        %v2183 = vpop.f32.mrb[0].mxu0
        %2184 = vdwg.mxu0
        %2185 = vmatprep.subr.bf16.mxu0 %v2049
        %2186 = vmatpush1.bf16.msra.mxu0 %v2048
        %2187 = vmatprep.subr.bf16.mxu0 %v2051
        %2188 = vmatpush1.bf16.msra.mxu0 %v2050
        %2189 = vmatprep.subr.bf16.mxu0 %v2053
        %2190 = vmatpush1.bf16.msra.mxu0 %v2052
        %2191 = vmatprep.subr.bf16.mxu0 %v2055
        %2192 = vmatpush1.bf16.msra.mxu0 %v2054
        %2193 = vmatprep.subr.bf16.mxu0 %v2057
        %2194 = vmatpush1.bf16.msra.mxu0 %v2056
        %2195 = vmatprep.subr.bf16.mxu0 %v2059
        %2196 = vmatpush1.bf16.msra.mxu0 %v2058
        %2197 = vmatprep.subr.bf16.mxu0 %v2061
        %2198 = vmatpush1.bf16.msra.mxu0 %v2060
        %2199 = vmatprep.subr.bf16.mxu0 %v2063
        %2200 = vmatpush1.bf16.msra.mxu0 %v2062
        %2201 = vmatprep.subr.bf16.mxu0 %v2065
        %2202 = vmatpush1.bf16.msra.mxu0 %v2064
        %2203 = vmatprep.subr.bf16.mxu0 %v2067
        %2204 = vmatpush1.bf16.msra.mxu0 %v2066
        %2205 = vmatprep.subr.bf16.mxu0 %v2069
        %2206 = vmatpush1.bf16.msra.mxu0 %v2068
        %2207 = vmatprep.subr.bf16.mxu0 %v2071
        %2208 = vmatpush1.bf16.msra.mxu0 %v2070
        %2209 = vmatprep.subr.bf16.mxu0 %v2073
        %2210 = vmatpush1.bf16.msra.mxu0 %v2072
        %2211 = vmatprep.subr.bf16.mxu0 %v2075
        %2212 = vmatpush1.bf16.msra.mxu0 %v2074
        %2213 = vmatprep.subr.bf16.mxu0 %v2077
        %2214 = vmatpush1.bf16.msra.mxu0 %v2076
        %2215 = vmatprep.subr.bf16.mxu0 %v2079
        %2216 = vmatpush1.bf16.msra.mxu0 %v2078
        %2217 = vmatprep.mubr.bf16.mxu0 %v1819
        %2218 = vmatmul.mubr.bf16.gmra.mrb[0].mxu0 %v1818
        %v2219 = vpop.f32.mrb[0].mxu0
        %v2220 = vadd.f32 %v2179, %v2219
        %v2221 = vpop.f32.mrb[0].mxu0
        %v2222 = vadd.f32 %v2181, %v2221
        %v2223 = vpop.f32.mrb[0].mxu0
        %v2224 = vpop.f32.mrb[0].mxu0
        %2225 = vdwg.mxu0
        %v2226 = vadd.f32 %v1737, %v2220
        %v2227 = vadd.f32 %v1738, %v2222
        %v2228 = vld [vmem:[#allocation4] sm:$0x3]
        %v2230 = vlaneseq
        %v2231 = vshrl.u32 %v2230, 7
        %v2232 = vsub.s32 0, %v2231
        %v2233 = vrot.slane %v2228, %v2232
        %v2234 = vlaneseq
        %v2235 = vshrl.u32 %v2234, 7
        %v2236 = vsub.s32 1, %v2235
        %v2237 = vrot.slane %v2228, %v2236
        %v2240 = vadd.f32 %v2226, %v2233
        %v2241 = vadd.f32 %v2227, %v2237
        %v2242 = vtanh.pop %v2240
        %v2243 = vtanh.pop %v2241
        %v2244 = vpack.c.bf16 %v2242, %v2242
        %v2245 = vpack.c.bf16 %v2243, %v2243
        %v2248 = vunpack.c.l.b16 %v2244
        %v2249 = vunpack.c.l.b16 %v2245
        %v2250 = vpack.c.b16 %v2249, %v2248
        %2252 = vst [vmem:[%s220] sm:$0x77] %v2250
        %p2253 = scmp.lt.s32.totalorder %s20, 1
        %s2254 = scalar_select %p2253, %s20, 1
        %p2255 = scmp.lt.s32.totalorder %s21, 0
        %s2256 = scalar_select %p2255, %s21, 0
        %s2257 = smul.addr %s2256, 2
        %s2258 = smul.addr %s2254, 2
        %s2259 = sadd.s32 %s2257, %s2258
        %s2260 = smul.addr %s2259, 4
        %s2261 = scalar_lea.vmem %s3, %s2260
        // Predicated region
        $region41: #{disc_forward.6} parent=31 // pred_check
          %p2262 = pneg %p116
        $region42: #{disc_forward.6} parent=31 // pred_check_branch
          %2264 = sbr.rel (%p2262) target = $region44
        $region43: #{disc_forward.6} parent=31 // pred_region
          _
        $region44: #{disc_forward.6} parent=31 // pred_fallthru
          _
      $region32: #{disc_forward.6} parent=5 // pred_fallthru
        _
      %p2265 = scmp.le.s32.totalorder 2, %s11
      // Predicated region
      $region45: #{disc_forward.6} parent=5 // pred_check
        %p2266 = pneg %p2265
      $region46: #{disc_forward.6} parent=5 // pred_check_branch
        %2268 = sbr.rel (%p2266) target = $region48
      $region47: #{disc_forward.6} parent=5 // pred_region
        %s2269 = ssub.s32 %s11, 2
        // Predicated region
        $region49: #{disc_forward.6} parent=47 // pred_check
          %p2270 = pneg %p122
        $region50: #{disc_forward.6} parent=47 // pred_check_branch
          %2272 = sbr.rel (%p2270) target = $region52
        $region51: #{disc_forward.6} parent=47 // pred_region
          %p2273 = scmp.lt.s32.totalorder %s22, 1
          %s2274 = scalar_select %p2273, %s22, 1
          %p2275 = scmp.lt.s32.totalorder %s23, 0
          %s2276 = scalar_select %p2275, %s23, 0
          %s2277 = smul.addr %s2276, 2
          %s2278 = smul.addr %s2274, 2
          %s2279 = sadd.s32 %s2277, %s2278
          %s2280 = smul.addr %s2279, 4
          %s2281 = scalar_lea.vmem %s3, %s2280
        $region52: #{disc_forward.6} parent=47 // pred_fallthru
          _
      $region48: #{disc_forward.6} parent=5 // pred_fallthru
        _
    $region6: #{disc_forward.6} parent=1 // loop_footer
      %s15 = sadd.s32 1, %s11
    $region7: #{disc_forward.6} parent=1 // loop_footer_branch
      %10 = sbr.rel target = $region3
    $region8: #{disc_forward.6} parent=1 // loop_exit
      _
    %2282 = vsyncpa [#allocation3], 1
    %s2283 = scalar_lea.sflag [#allocation3], 1
    %2284 = vsyncpa %s2283, 1
    %2285 = vsyncpa [#allocation5], 1

// kernel: disc_forward.7
$region0: #{disc_forward.7}
  #allocation0 [shape = 'u32[]', space=smem, size = 0x4, offset = 0x4, fixed_abs, tag = 'smem constant byte address 0x4 - core index']
  #allocation1 [shape = 'u32[144,128]{1,0:T(1,128)}', space=vmem, size = 0x12000, scoped, tag = 'internal scratch']
  #allocation2 [shape = 'f32[1,512]{1,0:T(1,128)}', space=vmem, size = 0x800, scoped, tag = 'scratch operand']
  %s0 = inlined_call_operand.vmem [shape: bf16[2,6,1024], index: 0, kind: input, shape index: {}]
  %s1 = inlined_call_operand.hbm [shape: bf16[4,1024,512], index: 1, kind: input, shape index: {}]
  %s2 = inlined_call_operand.hbm [shape: f32[1,512], index: 2, kind: input, shape index: {}]
  %s3 = inlined_call_operand.hbm [shape: f32[2,512], index: 3, kind: input, shape index: {}]
  %s4 = inlined_call_operand.hbm [shape: f32[1,128], index: 4, kind: input, shape index: {}]
  %s5 = inlined_call_operand.vmem [shape: f32[2,1,128], index: 5, kind: output, shape index: {}]
  %s6 = sld [smem:[#allocation0]]
  $region77: #{disc_forward.7} parent=0
    _
  %s8 = ssub.s32 1, %s6
  %s9 = scalar_select 0, %s8, %s6
  $region1: #{disc_forward.7} parent=0
    #allocation3 [shape = 'u8[4194304]{0}', space=vmem, size = 0x400000, scoped, tag = 'input window, operand 1, single buffered']
    #allocation4 [shape = 's32[2]{0}', space=sflag, size = 0x8, scoped, tag = 'scoped memory for disc_forward.7']
    #allocation5 [shape = 'u8[2048]{0}', space=vmem, size = 0x800, scoped, tag = 'input window, operand 2, single buffered']
    #allocation6 [shape = 's32[1]{0}', space=sflag, size = 0x4, scoped, tag = 'scoped memory for disc_forward.7']
    #allocation7 [shape = 'u8[4096]{0}', space=vmem, size = 0x1000, scoped, tag = 'input window, operand 3, single buffered']
    #allocation8 [shape = 'u8[512]{0}', space=vmem, size = 0x400, scoped, tag = 'input window, operand 4, single buffered']
    #allocation9 [shape = 's32[1]{0}', space=sflag, size = 0x4, scoped, tag = 'scoped memory for disc_forward.7']
    %10 = vsyncpa [#allocation4], 0
    %11 = vsyncpa [#allocation6], 0
    %12 = vsyncpa [#allocation9], 0
    loop: start=0, step=1, limit=4
    $region2: #{disc_forward.7} parent=1 // loop_pre_header
      _
    $region3: #{disc_forward.7} parent=1 // loop_header
      %s14 = sphi 0, %s18
      %p15 = scmp.ge.s32.totalorder %s14, 4
      %s21 = sphi 0, %s33
      %s22 = sphi 0, %s29
      %s23 = sphi 0, %s21
      %s24 = sphi 0, %s22
      %s25 = sphi 0, %s23
      %s26 = sphi 0, %s24
      %s36 = sphi 0, %s38
      %s39 = sphi 0, %s36
      %s40 = sphi 0, %s39
      %s56 = sphi 0, %s40
      %s60 = sphi 0, %s60
      %s62 = sphi 0, %s60
      %s63 = sphi 0, %s62
      %s77 = sphi 0, %s63
      %s81 = sphi 0, %s81
      %s83 = sphi 0, %s81
      %s84 = sphi 0, %s83
      %s98 = sphi 0, %s84
      %s104 = sphi 0, %s106
      %s107 = sphi 0, %s104
      %s108 = sphi 0, %s107
      %s124 = sphi 0, %s108
      %s128 = sphi 0, %s128
      %s130 = sphi 0, %s128
      %s131 = sphi 0, %s130
      %s145 = sphi 0, %s131
      %s151 = sphi 0, %s153
      %s154 = sphi 0, %s151
      %s155 = sphi 0, %s154
      %s171 = sphi 0, %s155
    $region4: #{disc_forward.7} parent=1 // loop_header_branch
      %17 = sbr.rel (%p15) target = $region8
    $region5: #{disc_forward.7} parent=1 // loop_body
      %s19 = ssub.s32 %s14, 1
      %s20 = ssub.s32 %s14, 2
      %s27 = sadd.s32 1, %s22
      %p28 = scmp.ge.s32.totalorder %s27, 1
      %s29 = scalar_select %p28, 0, %s27
      %s30 = sadd.s32 1, %s21
      %s31 = scalar_select %p28, %s30, %s21
      %p32 = scmp.ge.s32.totalorder %s31, 2
      %s33 = scalar_select %p32, 0, %s31
      %s34 = ssub.s32 %s21, %s33
      %p35 = scmp.eq.s32.totalorder %s34, 0
      %s37 = sadd.s32 %s36, 1
      %s38 = scalar_select %p35, %s36, %s37
      %p41 = pneg %p35
      %p42 = scmp.eq.s32.totalorder %s14, 1
      %p43 = por %p41, %p42
      %p44 = scmp.ne.s32.totalorder %s36, %s39
      %p45 = scmp.eq.s32.totalorder %s14, 0
      %p46 = por %p44, %p45
      %p47 = scmp.ne.s32.totalorder %s36, %s39
      %p48 = scmp.eq.s32.totalorder %s19, 1
      %p49 = por %p47, %p48
      %p50 = scmp.ne.s32.totalorder %s39, %s40
      %p51 = scmp.eq.s32.totalorder %s19, 0
      %p52 = por %p50, %p51
      %p53 = scmp.ne.s32.totalorder %s39, %s40
      %p54 = scmp.eq.s32.totalorder %s20, 1
      %p55 = por %p53, %p54
      %p57 = scmp.ne.s32.totalorder %s40, %s56
      %p58 = scmp.eq.s32.totalorder %s20, 0
      %p59 = por %p57, %p58
      %s61 = sadd.s32 %s60, 1
      %p64 = scmp.eq.s32.totalorder %s14, 1
      %p65 = scmp.ne.s32.totalorder %s60, %s62
      %p66 = scmp.eq.s32.totalorder %s14, 0
      %p67 = por %p65, %p66
      %p68 = scmp.ne.s32.totalorder %s60, %s62
      %p69 = scmp.eq.s32.totalorder %s19, 1
      %p70 = por %p68, %p69
      %p71 = scmp.ne.s32.totalorder %s62, %s63
      %p72 = scmp.eq.s32.totalorder %s19, 0
      %p73 = por %p71, %p72
      %p74 = scmp.ne.s32.totalorder %s62, %s63
      %p75 = scmp.eq.s32.totalorder %s20, 1
      %p76 = por %p74, %p75
      %p78 = scmp.ne.s32.totalorder %s63, %s77
      %p79 = scmp.eq.s32.totalorder %s20, 0
      %p80 = por %p78, %p79
      %s82 = sadd.s32 %s81, 1
      %p85 = scmp.eq.s32.totalorder %s14, 1
      %p86 = scmp.ne.s32.totalorder %s81, %s83
      %p87 = scmp.eq.s32.totalorder %s14, 0
      %p88 = por %p86, %p87
      %p89 = scmp.ne.s32.totalorder %s81, %s83
      %p90 = scmp.eq.s32.totalorder %s19, 1
      %p91 = por %p89, %p90
      %p92 = scmp.ne.s32.totalorder %s83, %s84
      %p93 = scmp.eq.s32.totalorder %s19, 0
      %p94 = por %p92, %p93
      %p95 = scmp.ne.s32.totalorder %s83, %s84
      %p96 = scmp.eq.s32.totalorder %s20, 1
      %p97 = por %p95, %p96
      %p99 = scmp.ne.s32.totalorder %s84, %s98
      %p100 = scmp.eq.s32.totalorder %s20, 0
      %p101 = por %p99, %p100
      %s102 = ssub.s32 %s22, %s29
      %p103 = scmp.eq.s32.totalorder %s102, 0
      %s105 = sadd.s32 %s104, 1
      %s106 = scalar_select %p103, %s104, %s105
      %p109 = pneg %p103
      %p110 = scmp.eq.s32.totalorder %s14, 1
      %p111 = por %p109, %p110
      %p112 = scmp.ne.s32.totalorder %s104, %s107
      %p113 = scmp.eq.s32.totalorder %s14, 0
      %p114 = por %p112, %p113
      %p115 = scmp.ne.s32.totalorder %s104, %s107
      %p116 = scmp.eq.s32.totalorder %s19, 1
      %p117 = por %p115, %p116
      %p118 = scmp.ne.s32.totalorder %s107, %s108
      %p119 = scmp.eq.s32.totalorder %s19, 0
      %p120 = por %p118, %p119
      %p121 = scmp.ne.s32.totalorder %s107, %s108
      %p122 = scmp.eq.s32.totalorder %s20, 1
      %p123 = por %p121, %p122
      %p125 = scmp.ne.s32.totalorder %s108, %s124
      %p126 = scmp.eq.s32.totalorder %s20, 0
      %p127 = por %p125, %p126
      %s129 = sadd.s32 %s128, 1
      %p132 = scmp.eq.s32.totalorder %s14, 1
      %p133 = scmp.ne.s32.totalorder %s128, %s130
      %p134 = scmp.eq.s32.totalorder %s14, 0
      %p135 = por %p133, %p134
      %p136 = scmp.ne.s32.totalorder %s128, %s130
      %p137 = scmp.eq.s32.totalorder %s19, 1
      %p138 = por %p136, %p137
      %p139 = scmp.ne.s32.totalorder %s130, %s131
      %p140 = scmp.eq.s32.totalorder %s19, 0
      %p141 = por %p139, %p140
      %p142 = scmp.ne.s32.totalorder %s130, %s131
      %p143 = scmp.eq.s32.totalorder %s20, 1
      %p144 = por %p142, %p143
      %p146 = scmp.ne.s32.totalorder %s131, %s145
      %p147 = scmp.eq.s32.totalorder %s20, 0
      %p148 = por %p146, %p147
      %s149 = ssub.s32 %s21, %s33
      %p150 = scmp.eq.s32.totalorder %s149, 0
      %s152 = sadd.s32 %s151, 1
      %s153 = scalar_select %p150, %s151, %s152
      %p156 = pneg %p150
      %p157 = scmp.eq.s32.totalorder %s14, 1
      %p158 = por %p156, %p157
      %p159 = scmp.ne.s32.totalorder %s151, %s154
      %p160 = scmp.eq.s32.totalorder %s14, 0
      %p161 = por %p159, %p160
      %p162 = scmp.ne.s32.totalorder %s151, %s154
      %p163 = scmp.eq.s32.totalorder %s19, 1
      %p164 = por %p162, %p163
      %p165 = scmp.ne.s32.totalorder %s154, %s155
      %p166 = scmp.eq.s32.totalorder %s19, 0
      %p167 = por %p165, %p166
      %p168 = scmp.ne.s32.totalorder %s154, %s155
      %p169 = scmp.eq.s32.totalorder %s20, 1
      %p170 = por %p168, %p169
      %p172 = scmp.ne.s32.totalorder %s155, %s171
      %p173 = scmp.eq.s32.totalorder %s20, 0
      %p174 = por %p172, %p173
      %p175 = scmp.le.s32.totalorder 1, %s14
      %p176 = scmp.lt.s32.totalorder %s14, 3
      %p177 = pnand %p175, %p176
      %p178 = pneg %p177
      // Predicated region
      $region9: #{disc_forward.7} parent=5 // pred_check
        _
      $region10: #{disc_forward.7} parent=5 // pred_check_branch
        %180 = sbr.rel (%p177) target = $region12
      $region11: #{disc_forward.7} parent=5 // pred_region
        %s181 = ssub.s32 %s14, 1
        // Predicated region
        $region13: #{disc_forward.7} parent=11 // pred_check
          %p182 = pneg %p73
        $region14: #{disc_forward.7} parent=11 // pred_check_branch
          %184 = sbr.rel (%p182) target = $region16
        $region15: #{disc_forward.7} parent=11 // pred_region
          %s186 = ssub.s32 131072, 131072
          %187 = vsyncadd [#allocation4], %s186
          %s188 = sshll.u32 [#allocation3], 4
          %s189 = int_to_ptr.vmem [resolvable:$true] %s188
          %194 = dma.hbm_to_vmem [thread:$0]  %s1, 131072, %s189, [#allocation4], 256, 256, 16
        $region16: #{disc_forward.7} parent=11 // pred_fallthru
          _
        // Predicated region
        $region17: #{disc_forward.7} parent=11 // pred_check
          %p195 = pneg %p94
        $region18: #{disc_forward.7} parent=11 // pred_check_branch
          %197 = sbr.rel (%p195) target = $region20
        $region19: #{disc_forward.7} parent=11 // pred_region
          %s199 = ssub.s32 64, 64
          %200 = vsyncadd [#allocation6], %s199
          %s202 = sshll.u32 [#allocation5], 4
          %s203 = int_to_ptr.vmem [resolvable:$true] %s202
          %205 = dma.hbm_to_vmem [thread:$0]  %s2, 64, %s203, [#allocation6]
        $region20: #{disc_forward.7} parent=11 // pred_fallthru
          _
        // Predicated region
        $region21: #{disc_forward.7} parent=11 // pred_check
          %p206 = pneg %p120
        $region22: #{disc_forward.7} parent=11 // pred_check_branch
          %208 = sbr.rel (%p206) target = $region24
        $region23: #{disc_forward.7} parent=11 // pred_region
          %s210 = ssub.s32 128, 128
          %211 = vsyncadd [#allocation6], %s210
          %s212 = smul.addr %s24, 4
          %s213 = smul.addr %s212, 32
          %s214 = scalar_lea.hbm %s3, %s213
          %s216 = sshll.u32 [#allocation7], 4
          %s217 = int_to_ptr.vmem [resolvable:$true] %s216
          %219 = dma.hbm_to_vmem [thread:$0]  %s214, 128, %s217, [#allocation6]
        $region24: #{disc_forward.7} parent=11 // pred_fallthru
          _
        // Predicated region
        $region25: #{disc_forward.7} parent=11 // pred_check
          %p220 = pneg %p141
        $region26: #{disc_forward.7} parent=11 // pred_check_branch
          %222 = sbr.rel (%p220) target = $region28
        $region27: #{disc_forward.7} parent=11 // pred_region
          %s224 = ssub.s32 16, 16
          %225 = vsyncadd [#allocation9], %s224
          %s227 = sshll.u32 [#allocation8], 4
          %s228 = int_to_ptr.vmem [resolvable:$true] %s227
          %230 = dma.hbm_to_vmem [thread:$0]  %s4, 16, %s228, [#allocation9]
        $region28: #{disc_forward.7} parent=11 // pred_fallthru
          _
      $region12: #{disc_forward.7} parent=5 // pred_fallthru
        _
      %p231 = scmp.lt.s32.totalorder %s14, 2
      // Predicated region
      $region29: #{disc_forward.7} parent=5 // pred_check
        %p232 = pneg %p231
      $region30: #{disc_forward.7} parent=5 // pred_check_branch
        %234 = sbr.rel (%p232) target = $region32
      $region31: #{disc_forward.7} parent=5 // pred_region
        // Predicated region
        $region33: #{disc_forward.7} parent=31 // pred_check
          %p235 = pneg %p46
        $region34: #{disc_forward.7} parent=31 // pred_check_branch
          %237 = sbr.rel (%p235) target = $region36
        $region35: #{disc_forward.7} parent=31 // pred_region
          %p238 = scmp.lt.s32.totalorder %s21, 1
          %s239 = scalar_select %p238, %s21, 1
          %s240 = smul.addr %s239, 8
          %s241 = smul.addr %s240, 4
          %s242 = scalar_lea.vmem %s0, %s241
        $region36: #{disc_forward.7} parent=31 // pred_fallthru
          _
      $region32: #{disc_forward.7} parent=5 // pred_fallthru
        _
      %p243 = scmp.le.s32.totalorder 1, %s14
      %p244 = scmp.lt.s32.totalorder %s14, 3
      %p245 = pnand %p243, %p244
      %p246 = pneg %p245
      // Predicated region
      $region37: #{disc_forward.7} parent=5 // pred_check
        _
      $region38: #{disc_forward.7} parent=5 // pred_check_branch
        %248 = sbr.rel (%p245) target = $region40
      $region39: #{disc_forward.7} parent=5 // pred_region
        %s249 = ssub.s32 %s14, 1
        // Predicated region
        $region41: #{disc_forward.7} parent=39 // pred_check
          %p250 = pneg %p73
        $region42: #{disc_forward.7} parent=39 // pred_check_branch
          %252 = sbr.rel (%p250) target = $region44
        $region43: #{disc_forward.7} parent=39 // pred_region
          %253 = dma.done [#allocation4], 131072
        $region44: #{disc_forward.7} parent=39 // pred_fallthru
          _
        // Predicated region
        $region45: #{disc_forward.7} parent=39 // pred_check
          %p254 = pneg %p94
        $region46: #{disc_forward.7} parent=39 // pred_check_branch
          %256 = sbr.rel (%p254) target = $region48
        $region47: #{disc_forward.7} parent=39 // pred_region
          %257 = dma.done [#allocation6], 64
        $region48: #{disc_forward.7} parent=39 // pred_fallthru
          _
        // Predicated region
        $region49: #{disc_forward.7} parent=39 // pred_check
          %p258 = pneg %p120
        $region50: #{disc_forward.7} parent=39 // pred_check_branch
          %260 = sbr.rel (%p258) target = $region52
        $region51: #{disc_forward.7} parent=39 // pred_region
          %261 = dma.done [#allocation6], 128
        $region52: #{disc_forward.7} parent=39 // pred_fallthru
          _
        // Predicated region
        $region53: #{disc_forward.7} parent=39 // pred_check
          %p262 = pneg %p141
        $region54: #{disc_forward.7} parent=39 // pred_check_branch
          %264 = sbr.rel (%p262) target = $region56
        $region55: #{disc_forward.7} parent=39 // pred_region
          %265 = dma.done [#allocation9], 16
        $region56: #{disc_forward.7} parent=39 // pred_fallthru
          _
        %p266 = scmp.lt.s32.totalorder %s23, 1
        %s267 = scalar_select %p266, %s23, 1
        %s268 = smul.addr %s267, 8
        %s269 = smul.addr %s268, 4
        %s270 = scalar_lea.vmem %s0, %s269
        %p271 = pneg %p52
        %p272 = pneg %p49
        %p273 = pneg %p73
        %p274 = pneg %p70
        %p275 = pneg %p94
        %p276 = pneg %p91
        %p277 = pneg %p120
        %p278 = pneg %p117
        %p279 = pneg %p141
        %p280 = pneg %p138
        %p281 = pneg %p167
        %p282 = pneg %p164
        %p283 = scmp.lt.s32.totalorder %s23, 1
        %s284 = scalar_select %p283, %s23, 1
        %s285 = scalar_lea.vmem %s5, %s284
        %p286 = scmp.lt.s32.totalorder %s23, 1
        %s287 = scalar_select %p286, %s23, 1
        %s288 = smul.addr %s287, 8
        %s289 = smul.addr %s288, 4
        %s290 = scalar_lea.vmem %s0, %s289
        %p291 = scmp.lt.s32.totalorder %s23, 1
        %s292 = scalar_select %p291, %s23, 1
        %s293 = scalar_lea.vmem %s5, %s292
        %v294 = vld [vmem:[%s290] sm:$0x11]
        %v295 = vld [vmem:[%s290 + $0x8] sm:$0x11]
        %v296 = vld [vmem:[%s290 + $0x10] sm:$0x11]
        %v297 = vld [vmem:[%s290 + $0x18] sm:$0x11]
        %v298 = vld [vmem:[#allocation3] sm:$0xff]
        %v299 = vld [vmem:[#allocation3 + $0x8] sm:$0xff]
        %v300 = vld [vmem:[#allocation3 + $0x10] sm:$0xff]
        %v301 = vld [vmem:[#allocation3 + $0x18] sm:$0xff]
        %v302 = vld [vmem:[#allocation3 + $0x20] sm:$0xff]
        %v303 = vld [vmem:[#allocation3 + $0x28] sm:$0xff]
        %v304 = vld [vmem:[#allocation3 + $0x30] sm:$0xff]
        %v305 = vld [vmem:[#allocation3 + $0x38] sm:$0xff]
        %v306 = vld [vmem:[#allocation3 + $0x40] sm:$0xff]
        %v307 = vld [vmem:[#allocation3 + $0x48] sm:$0xff]
        %v308 = vld [vmem:[#allocation3 + $0x50] sm:$0xff]
        %v309 = vld [vmem:[#allocation3 + $0x58] sm:$0xff]
        %v310 = vld [vmem:[#allocation3 + $0x60] sm:$0xff]
        %v311 = vld [vmem:[#allocation3 + $0x68] sm:$0xff]
        %v312 = vld [vmem:[#allocation3 + $0x70] sm:$0xff]
        %v313 = vld [vmem:[#allocation3 + $0x78] sm:$0xff]
        %v314 = vld [vmem:[#allocation3 + $0x80] sm:$0xff]
        %v315 = vld [vmem:[#allocation3 + $0x88] sm:$0xff]
        %v316 = vld [vmem:[#allocation3 + $0x90] sm:$0xff]
        %v317 = vld [vmem:[#allocation3 + $0x98] sm:$0xff]
        %v318 = vld [vmem:[#allocation3 + $0xa0] sm:$0xff]
        %v319 = vld [vmem:[#allocation3 + $0xa8] sm:$0xff]
        %v320 = vld [vmem:[#allocation3 + $0xb0] sm:$0xff]
        %v321 = vld [vmem:[#allocation3 + $0xb8] sm:$0xff]
        %v322 = vld [vmem:[#allocation3 + $0xc0] sm:$0xff]
        %v323 = vld [vmem:[#allocation3 + $0xc8] sm:$0xff]
        %v324 = vld [vmem:[#allocation3 + $0xd0] sm:$0xff]
        %v325 = vld [vmem:[#allocation3 + $0xd8] sm:$0xff]
        %v326 = vld [vmem:[#allocation3 + $0xe0] sm:$0xff]
        %v327 = vld [vmem:[#allocation3 + $0xe8] sm:$0xff]
        %v328 = vld [vmem:[#allocation3 + $0xf0] sm:$0xff]
        %v329 = vld [vmem:[#allocation3 + $0xf8] sm:$0xff]
        %v330 = vld [vmem:[#allocation3 + $0x100] sm:$0xff]
        %v331 = vld [vmem:[#allocation3 + $0x108] sm:$0xff]
        %v332 = vld [vmem:[#allocation3 + $0x110] sm:$0xff]
        %v333 = vld [vmem:[#allocation3 + $0x118] sm:$0xff]
        %v334 = vld [vmem:[#allocation3 + $0x120] sm:$0xff]
        %v335 = vld [vmem:[#allocation3 + $0x128] sm:$0xff]
        %v336 = vld [vmem:[#allocation3 + $0x130] sm:$0xff]
        %v337 = vld [vmem:[#allocation3 + $0x138] sm:$0xff]
        %v338 = vld [vmem:[#allocation3 + $0x140] sm:$0xff]
        %v339 = vld [vmem:[#allocation3 + $0x148] sm:$0xff]
        %v340 = vld [vmem:[#allocation3 + $0x150] sm:$0xff]
        %v341 = vld [vmem:[#allocation3 + $0x158] sm:$0xff]
        %v342 = vld [vmem:[#allocation3 + $0x160] sm:$0xff]
        %v343 = vld [vmem:[#allocation3 + $0x168] sm:$0xff]
        %v344 = vld [vmem:[#allocation3 + $0x170] sm:$0xff]
        %v345 = vld [vmem:[#allocation3 + $0x178] sm:$0xff]
        %v346 = vld [vmem:[#allocation3 + $0x180] sm:$0xff]
        %v347 = vld [vmem:[#allocation3 + $0x188] sm:$0xff]
        %v348 = vld [vmem:[#allocation3 + $0x190] sm:$0xff]
        %v349 = vld [vmem:[#allocation3 + $0x198] sm:$0xff]
        %v350 = vld [vmem:[#allocation3 + $0x1a0] sm:$0xff]
        %v351 = vld [vmem:[#allocation3 + $0x1a8] sm:$0xff]
        %v352 = vld [vmem:[#allocation3 + $0x1b0] sm:$0xff]
        %v353 = vld [vmem:[#allocation3 + $0x1b8] sm:$0xff]
        %v354 = vld [vmem:[#allocation3 + $0x1c0] sm:$0xff]
        %v355 = vld [vmem:[#allocation3 + $0x1c8] sm:$0xff]
        %v356 = vld [vmem:[#allocation3 + $0x1d0] sm:$0xff]
        %v357 = vld [vmem:[#allocation3 + $0x1d8] sm:$0xff]
        %v358 = vld [vmem:[#allocation3 + $0x1e0] sm:$0xff]
        %v359 = vld [vmem:[#allocation3 + $0x1e8] sm:$0xff]
        %v360 = vld [vmem:[#allocation3 + $0x1f0] sm:$0xff]
        %v361 = vld [vmem:[#allocation3 + $0x1f8] sm:$0xff]
        %v362 = vld [vmem:[#allocation3 + $0x200] sm:$0xff]
        %v363 = vld [vmem:[#allocation3 + $0x208] sm:$0xff]
        %v364 = vld [vmem:[#allocation3 + $0x210] sm:$0xff]
        %v365 = vld [vmem:[#allocation3 + $0x218] sm:$0xff]
        %v366 = vld [vmem:[#allocation3 + $0x220] sm:$0xff]
        %v367 = vld [vmem:[#allocation3 + $0x228] sm:$0xff]
        %v368 = vld [vmem:[#allocation3 + $0x230] sm:$0xff]
        %v369 = vld [vmem:[#allocation3 + $0x238] sm:$0xff]
        %v370 = vld [vmem:[#allocation3 + $0x240] sm:$0xff]
        %v371 = vld [vmem:[#allocation3 + $0x248] sm:$0xff]
        %v372 = vld [vmem:[#allocation3 + $0x250] sm:$0xff]
        %v373 = vld [vmem:[#allocation3 + $0x258] sm:$0xff]
        %v374 = vld [vmem:[#allocation3 + $0x260] sm:$0xff]
        %v375 = vld [vmem:[#allocation3 + $0x268] sm:$0xff]
        %v376 = vld [vmem:[#allocation3 + $0x270] sm:$0xff]
        %v377 = vld [vmem:[#allocation3 + $0x278] sm:$0xff]
        %v378 = vld [vmem:[#allocation3 + $0x280] sm:$0xff]
        %v379 = vld [vmem:[#allocation3 + $0x288] sm:$0xff]
        %v380 = vld [vmem:[#allocation3 + $0x290] sm:$0xff]
        %v381 = vld [vmem:[#allocation3 + $0x298] sm:$0xff]
        %v382 = vld [vmem:[#allocation3 + $0x2a0] sm:$0xff]
        %v383 = vld [vmem:[#allocation3 + $0x2a8] sm:$0xff]
        %v384 = vld [vmem:[#allocation3 + $0x2b0] sm:$0xff]
        %v385 = vld [vmem:[#allocation3 + $0x2b8] sm:$0xff]
        %v386 = vld [vmem:[#allocation3 + $0x2c0] sm:$0xff]
        %v387 = vld [vmem:[#allocation3 + $0x2c8] sm:$0xff]
        %v388 = vld [vmem:[#allocation3 + $0x2d0] sm:$0xff]
        %v389 = vld [vmem:[#allocation3 + $0x2d8] sm:$0xff]
        %v390 = vld [vmem:[#allocation3 + $0x2e0] sm:$0xff]
        %v391 = vld [vmem:[#allocation3 + $0x2e8] sm:$0xff]
        %v392 = vld [vmem:[#allocation3 + $0x2f0] sm:$0xff]
        %v393 = vld [vmem:[#allocation3 + $0x2f8] sm:$0xff]
        %v394 = vld [vmem:[#allocation3 + $0x300] sm:$0xff]
        %v395 = vld [vmem:[#allocation3 + $0x308] sm:$0xff]
        %v396 = vld [vmem:[#allocation3 + $0x310] sm:$0xff]
        %v397 = vld [vmem:[#allocation3 + $0x318] sm:$0xff]
        %v398 = vld [vmem:[#allocation3 + $0x320] sm:$0xff]
        %v399 = vld [vmem:[#allocation3 + $0x328] sm:$0xff]
        %v400 = vld [vmem:[#allocation3 + $0x330] sm:$0xff]
        %v401 = vld [vmem:[#allocation3 + $0x338] sm:$0xff]
        %v402 = vld [vmem:[#allocation3 + $0x340] sm:$0xff]
        %v403 = vld [vmem:[#allocation3 + $0x348] sm:$0xff]
        %v404 = vld [vmem:[#allocation3 + $0x350] sm:$0xff]
        %v405 = vld [vmem:[#allocation3 + $0x358] sm:$0xff]
        %v406 = vld [vmem:[#allocation3 + $0x360] sm:$0xff]
        %v407 = vld [vmem:[#allocation3 + $0x368] sm:$0xff]
        %v408 = vld [vmem:[#allocation3 + $0x370] sm:$0xff]
        %v409 = vld [vmem:[#allocation3 + $0x378] sm:$0xff]
        %v410 = vld [vmem:[#allocation3 + $0x380] sm:$0xff]
        %v411 = vld [vmem:[#allocation3 + $0x388] sm:$0xff]
        %v412 = vld [vmem:[#allocation3 + $0x390] sm:$0xff]
        %v413 = vld [vmem:[#allocation3 + $0x398] sm:$0xff]
        %v414 = vld [vmem:[#allocation3 + $0x3a0] sm:$0xff]
        %v415 = vld [vmem:[#allocation3 + $0x3a8] sm:$0xff]
        %v416 = vld [vmem:[#allocation3 + $0x3b0] sm:$0xff]
        %v417 = vld [vmem:[#allocation3 + $0x3b8] sm:$0xff]
        %v418 = vld [vmem:[#allocation3 + $0x3c0] sm:$0xff]
        %v419 = vld [vmem:[#allocation3 + $0x3c8] sm:$0xff]
        %v420 = vld [vmem:[#allocation3 + $0x3d0] sm:$0xff]
        %v421 = vld [vmem:[#allocation3 + $0x3d8] sm:$0xff]
        %v422 = vld [vmem:[#allocation3 + $0x3e0] sm:$0xff]
        %v423 = vld [vmem:[#allocation3 + $0x3e8] sm:$0xff]
        %v424 = vld [vmem:[#allocation3 + $0x3f0] sm:$0xff]
        %v425 = vld [vmem:[#allocation3 + $0x3f8] sm:$0xff]
        %v426 = vld [vmem:[#allocation3 + $0x400] sm:$0xff]
        %v427 = vld [vmem:[#allocation3 + $0x408] sm:$0xff]
        %v428 = vld [vmem:[#allocation3 + $0x410] sm:$0xff]
        %v429 = vld [vmem:[#allocation3 + $0x418] sm:$0xff]
        %v430 = vld [vmem:[#allocation3 + $0x420] sm:$0xff]
        %v431 = vld [vmem:[#allocation3 + $0x428] sm:$0xff]
        %v432 = vld [vmem:[#allocation3 + $0x430] sm:$0xff]
        %v433 = vld [vmem:[#allocation3 + $0x438] sm:$0xff]
        %v434 = vld [vmem:[#allocation3 + $0x440] sm:$0xff]
        %v435 = vld [vmem:[#allocation3 + $0x448] sm:$0xff]
        %v436 = vld [vmem:[#allocation3 + $0x450] sm:$0xff]
        %v437 = vld [vmem:[#allocation3 + $0x458] sm:$0xff]
        %v438 = vld [vmem:[#allocation3 + $0x460] sm:$0xff]
        %v439 = vld [vmem:[#allocation3 + $0x468] sm:$0xff]
        %v440 = vld [vmem:[#allocation3 + $0x470] sm:$0xff]
        %v441 = vld [vmem:[#allocation3 + $0x478] sm:$0xff]
        %v442 = vld [vmem:[#allocation3 + $0x480] sm:$0xff]
        %v443 = vld [vmem:[#allocation3 + $0x488] sm:$0xff]
        %v444 = vld [vmem:[#allocation3 + $0x490] sm:$0xff]
        %v445 = vld [vmem:[#allocation3 + $0x498] sm:$0xff]
        %v446 = vld [vmem:[#allocation3 + $0x4a0] sm:$0xff]
        %v447 = vld [vmem:[#allocation3 + $0x4a8] sm:$0xff]
        %v448 = vld [vmem:[#allocation3 + $0x4b0] sm:$0xff]
        %v449 = vld [vmem:[#allocation3 + $0x4b8] sm:$0xff]
        %v450 = vld [vmem:[#allocation3 + $0x4c0] sm:$0xff]
        %v451 = vld [vmem:[#allocation3 + $0x4c8] sm:$0xff]
        %v452 = vld [vmem:[#allocation3 + $0x4d0] sm:$0xff]
        %v453 = vld [vmem:[#allocation3 + $0x4d8] sm:$0xff]
        %v454 = vld [vmem:[#allocation3 + $0x4e0] sm:$0xff]
        %v455 = vld [vmem:[#allocation3 + $0x4e8] sm:$0xff]
        %v456 = vld [vmem:[#allocation3 + $0x4f0] sm:$0xff]
        %v457 = vld [vmem:[#allocation3 + $0x4f8] sm:$0xff]
        %v458 = vld [vmem:[#allocation3 + $0x500] sm:$0xff]
        %v459 = vld [vmem:[#allocation3 + $0x508] sm:$0xff]
        %v460 = vld [vmem:[#allocation3 + $0x510] sm:$0xff]
        %v461 = vld [vmem:[#allocation3 + $0x518] sm:$0xff]
        %v462 = vld [vmem:[#allocation3 + $0x520] sm:$0xff]
        %v463 = vld [vmem:[#allocation3 + $0x528] sm:$0xff]
        %v464 = vld [vmem:[#allocation3 + $0x530] sm:$0xff]
        %v465 = vld [vmem:[#allocation3 + $0x538] sm:$0xff]
        %v466 = vld [vmem:[#allocation3 + $0x540] sm:$0xff]
        %v467 = vld [vmem:[#allocation3 + $0x548] sm:$0xff]
        %v468 = vld [vmem:[#allocation3 + $0x550] sm:$0xff]
        %v469 = vld [vmem:[#allocation3 + $0x558] sm:$0xff]
        %v470 = vld [vmem:[#allocation3 + $0x560] sm:$0xff]
        %v471 = vld [vmem:[#allocation3 + $0x568] sm:$0xff]
        %v472 = vld [vmem:[#allocation3 + $0x570] sm:$0xff]
        %v473 = vld [vmem:[#allocation3 + $0x578] sm:$0xff]
        %v474 = vld [vmem:[#allocation3 + $0x580] sm:$0xff]
        %v475 = vld [vmem:[#allocation3 + $0x588] sm:$0xff]
        %v476 = vld [vmem:[#allocation3 + $0x590] sm:$0xff]
        %v477 = vld [vmem:[#allocation3 + $0x598] sm:$0xff]
        %v478 = vld [vmem:[#allocation3 + $0x5a0] sm:$0xff]
        %v479 = vld [vmem:[#allocation3 + $0x5a8] sm:$0xff]
        %v480 = vld [vmem:[#allocation3 + $0x5b0] sm:$0xff]
        %v481 = vld [vmem:[#allocation3 + $0x5b8] sm:$0xff]
        %v482 = vld [vmem:[#allocation3 + $0x5c0] sm:$0xff]
        %v483 = vld [vmem:[#allocation3 + $0x5c8] sm:$0xff]
        %v484 = vld [vmem:[#allocation3 + $0x5d0] sm:$0xff]
        %v485 = vld [vmem:[#allocation3 + $0x5d8] sm:$0xff]
        %v486 = vld [vmem:[#allocation3 + $0x5e0] sm:$0xff]
        %v487 = vld [vmem:[#allocation3 + $0x5e8] sm:$0xff]
        %v488 = vld [vmem:[#allocation3 + $0x5f0] sm:$0xff]
        %v489 = vld [vmem:[#allocation3 + $0x5f8] sm:$0xff]
        %v490 = vld [vmem:[#allocation3 + $0x600] sm:$0xff]
        %v491 = vld [vmem:[#allocation3 + $0x608] sm:$0xff]
        %v492 = vld [vmem:[#allocation3 + $0x610] sm:$0xff]
        %v493 = vld [vmem:[#allocation3 + $0x618] sm:$0xff]
        %v494 = vld [vmem:[#allocation3 + $0x620] sm:$0xff]
        %v495 = vld [vmem:[#allocation3 + $0x628] sm:$0xff]
        %v496 = vld [vmem:[#allocation3 + $0x630] sm:$0xff]
        %v497 = vld [vmem:[#allocation3 + $0x638] sm:$0xff]
        %v498 = vld [vmem:[#allocation3 + $0x640] sm:$0xff]
        %v499 = vld [vmem:[#allocation3 + $0x648] sm:$0xff]
        %v500 = vld [vmem:[#allocation3 + $0x650] sm:$0xff]
        %v501 = vld [vmem:[#allocation3 + $0x658] sm:$0xff]
        %v502 = vld [vmem:[#allocation3 + $0x660] sm:$0xff]
        %v503 = vld [vmem:[#allocation3 + $0x668] sm:$0xff]
        %v504 = vld [vmem:[#allocation3 + $0x670] sm:$0xff]
        %v505 = vld [vmem:[#allocation3 + $0x678] sm:$0xff]
        %v506 = vld [vmem:[#allocation3 + $0x680] sm:$0xff]
        %v507 = vld [vmem:[#allocation3 + $0x688] sm:$0xff]
        %v508 = vld [vmem:[#allocation3 + $0x690] sm:$0xff]
        %v509 = vld [vmem:[#allocation3 + $0x698] sm:$0xff]
        %v510 = vld [vmem:[#allocation3 + $0x6a0] sm:$0xff]
        %v511 = vld [vmem:[#allocation3 + $0x6a8] sm:$0xff]
        %v512 = vld [vmem:[#allocation3 + $0x6b0] sm:$0xff]
        %v513 = vld [vmem:[#allocation3 + $0x6b8] sm:$0xff]
        %v514 = vld [vmem:[#allocation3 + $0x6c0] sm:$0xff]
        %v515 = vld [vmem:[#allocation3 + $0x6c8] sm:$0xff]
        %v516 = vld [vmem:[#allocation3 + $0x6d0] sm:$0xff]
        %v517 = vld [vmem:[#allocation3 + $0x6d8] sm:$0xff]
        %v518 = vld [vmem:[#allocation3 + $0x6e0] sm:$0xff]
        %v519 = vld [vmem:[#allocation3 + $0x6e8] sm:$0xff]
        %v520 = vld [vmem:[#allocation3 + $0x6f0] sm:$0xff]
        %v521 = vld [vmem:[#allocation3 + $0x6f8] sm:$0xff]
        %v522 = vld [vmem:[#allocation3 + $0x700] sm:$0xff]
        %v523 = vld [vmem:[#allocation3 + $0x708] sm:$0xff]
        %v524 = vld [vmem:[#allocation3 + $0x710] sm:$0xff]
        %v525 = vld [vmem:[#allocation3 + $0x718] sm:$0xff]
        %v526 = vld [vmem:[#allocation3 + $0x720] sm:$0xff]
        %v527 = vld [vmem:[#allocation3 + $0x728] sm:$0xff]
        %v528 = vld [vmem:[#allocation3 + $0x730] sm:$0xff]
        %v529 = vld [vmem:[#allocation3 + $0x738] sm:$0xff]
        %v530 = vld [vmem:[#allocation3 + $0x740] sm:$0xff]
        %v531 = vld [vmem:[#allocation3 + $0x748] sm:$0xff]
        %v532 = vld [vmem:[#allocation3 + $0x750] sm:$0xff]
        %v533 = vld [vmem:[#allocation3 + $0x758] sm:$0xff]
        %v534 = vld [vmem:[#allocation3 + $0x760] sm:$0xff]
        %v535 = vld [vmem:[#allocation3 + $0x768] sm:$0xff]
        %v536 = vld [vmem:[#allocation3 + $0x770] sm:$0xff]
        %v537 = vld [vmem:[#allocation3 + $0x778] sm:$0xff]
        %v538 = vld [vmem:[#allocation3 + $0x780] sm:$0xff]
        %v539 = vld [vmem:[#allocation3 + $0x788] sm:$0xff]
        %v540 = vld [vmem:[#allocation3 + $0x790] sm:$0xff]
        %v541 = vld [vmem:[#allocation3 + $0x798] sm:$0xff]
        %v542 = vld [vmem:[#allocation3 + $0x7a0] sm:$0xff]
        %v543 = vld [vmem:[#allocation3 + $0x7a8] sm:$0xff]
        %v544 = vld [vmem:[#allocation3 + $0x7b0] sm:$0xff]
        %v545 = vld [vmem:[#allocation3 + $0x7b8] sm:$0xff]
        %v546 = vld [vmem:[#allocation3 + $0x7c0] sm:$0xff]
        %v547 = vld [vmem:[#allocation3 + $0x7c8] sm:$0xff]
        %v548 = vld [vmem:[#allocation3 + $0x7d0] sm:$0xff]
        %v549 = vld [vmem:[#allocation3 + $0x7d8] sm:$0xff]
        %v550 = vld [vmem:[#allocation3 + $0x7e0] sm:$0xff]
        %v551 = vld [vmem:[#allocation3 + $0x7e8] sm:$0xff]
        %v552 = vld [vmem:[#allocation3 + $0x7f0] sm:$0xff]
        %v553 = vld [vmem:[#allocation3 + $0x7f8] sm:$0xff]
        %v554 = vld [vmem:[%s290] sm:$0x33]
        %v555 = vld [vmem:[%s290 + $0x8] sm:$0x33]
        %v556 = vld [vmem:[%s290 + $0x10] sm:$0x33]
        %v557 = vld [vmem:[%s290 + $0x18] sm:$0x33]
        %s558 = scalar_lea.vmem [#allocation3], 2048
        %v559 = vld [vmem:[%s558] sm:$0xff]
        %v560 = vld [vmem:[%s558 + $0x8] sm:$0xff]
        %v561 = vld [vmem:[%s558 + $0x10] sm:$0xff]
        %v562 = vld [vmem:[%s558 + $0x18] sm:$0xff]
        %v563 = vld [vmem:[%s558 + $0x20] sm:$0xff]
        %v564 = vld [vmem:[%s558 + $0x28] sm:$0xff]
        %v565 = vld [vmem:[%s558 + $0x30] sm:$0xff]
        %v566 = vld [vmem:[%s558 + $0x38] sm:$0xff]
        %v567 = vld [vmem:[%s558 + $0x40] sm:$0xff]
        %v568 = vld [vmem:[%s558 + $0x48] sm:$0xff]
        %v569 = vld [vmem:[%s558 + $0x50] sm:$0xff]
        %v570 = vld [vmem:[%s558 + $0x58] sm:$0xff]
        %v571 = vld [vmem:[%s558 + $0x60] sm:$0xff]
        %v572 = vld [vmem:[%s558 + $0x68] sm:$0xff]
        %v573 = vld [vmem:[%s558 + $0x70] sm:$0xff]
        %v574 = vld [vmem:[%s558 + $0x78] sm:$0xff]
        %v575 = vld [vmem:[%s558 + $0x80] sm:$0xff]
        %v576 = vld [vmem:[%s558 + $0x88] sm:$0xff]
        %v577 = vld [vmem:[%s558 + $0x90] sm:$0xff]
        %v578 = vld [vmem:[%s558 + $0x98] sm:$0xff]
        %v579 = vld [vmem:[%s558 + $0xa0] sm:$0xff]
        %v580 = vld [vmem:[%s558 + $0xa8] sm:$0xff]
        %v581 = vld [vmem:[%s558 + $0xb0] sm:$0xff]
        %v582 = vld [vmem:[%s558 + $0xb8] sm:$0xff]
        %v583 = vld [vmem:[%s558 + $0xc0] sm:$0xff]
        %v584 = vld [vmem:[%s558 + $0xc8] sm:$0xff]
        %v585 = vld [vmem:[%s558 + $0xd0] sm:$0xff]
        %v586 = vld [vmem:[%s558 + $0xd8] sm:$0xff]
        %v587 = vld [vmem:[%s558 + $0xe0] sm:$0xff]
        %v588 = vld [vmem:[%s558 + $0xe8] sm:$0xff]
        %v589 = vld [vmem:[%s558 + $0xf0] sm:$0xff]
        %v590 = vld [vmem:[%s558 + $0xf8] sm:$0xff]
        %v591 = vld [vmem:[%s558 + $0x100] sm:$0xff]
        %v592 = vld [vmem:[%s558 + $0x108] sm:$0xff]
        %v593 = vld [vmem:[%s558 + $0x110] sm:$0xff]
        %v594 = vld [vmem:[%s558 + $0x118] sm:$0xff]
        %v595 = vld [vmem:[%s558 + $0x120] sm:$0xff]
        %v596 = vld [vmem:[%s558 + $0x128] sm:$0xff]
        %v597 = vld [vmem:[%s558 + $0x130] sm:$0xff]
        %v598 = vld [vmem:[%s558 + $0x138] sm:$0xff]
        %v599 = vld [vmem:[%s558 + $0x140] sm:$0xff]
        %v600 = vld [vmem:[%s558 + $0x148] sm:$0xff]
        %v601 = vld [vmem:[%s558 + $0x150] sm:$0xff]
        %v602 = vld [vmem:[%s558 + $0x158] sm:$0xff]
        %v603 = vld [vmem:[%s558 + $0x160] sm:$0xff]
        %v604 = vld [vmem:[%s558 + $0x168] sm:$0xff]
        %v605 = vld [vmem:[%s558 + $0x170] sm:$0xff]
        %v606 = vld [vmem:[%s558 + $0x178] sm:$0xff]
        %v607 = vld [vmem:[%s558 + $0x180] sm:$0xff]
        %v608 = vld [vmem:[%s558 + $0x188] sm:$0xff]
        %v609 = vld [vmem:[%s558 + $0x190] sm:$0xff]
        %v610 = vld [vmem:[%s558 + $0x198] sm:$0xff]
        %v611 = vld [vmem:[%s558 + $0x1a0] sm:$0xff]
        %v612 = vld [vmem:[%s558 + $0x1a8] sm:$0xff]
        %v613 = vld [vmem:[%s558 + $0x1b0] sm:$0xff]
        %v614 = vld [vmem:[%s558 + $0x1b8] sm:$0xff]
        %v615 = vld [vmem:[%s558 + $0x1c0] sm:$0xff]
        %v616 = vld [vmem:[%s558 + $0x1c8] sm:$0xff]
        %v617 = vld [vmem:[%s558 + $0x1d0] sm:$0xff]
        %v618 = vld [vmem:[%s558 + $0x1d8] sm:$0xff]
        %v619 = vld [vmem:[%s558 + $0x1e0] sm:$0xff]
        %v620 = vld [vmem:[%s558 + $0x1e8] sm:$0xff]
        %v621 = vld [vmem:[%s558 + $0x1f0] sm:$0xff]
        %v622 = vld [vmem:[%s558 + $0x1f8] sm:$0xff]
        %v623 = vld [vmem:[%s558 + $0x200] sm:$0xff]
        %v624 = vld [vmem:[%s558 + $0x208] sm:$0xff]
        %v625 = vld [vmem:[%s558 + $0x210] sm:$0xff]
        %v626 = vld [vmem:[%s558 + $0x218] sm:$0xff]
        %v627 = vld [vmem:[%s558 + $0x220] sm:$0xff]
        %v628 = vld [vmem:[%s558 + $0x228] sm:$0xff]
        %v629 = vld [vmem:[%s558 + $0x230] sm:$0xff]
        %v630 = vld [vmem:[%s558 + $0x238] sm:$0xff]
        %v631 = vld [vmem:[%s558 + $0x240] sm:$0xff]
        %v632 = vld [vmem:[%s558 + $0x248] sm:$0xff]
        %v633 = vld [vmem:[%s558 + $0x250] sm:$0xff]
        %v634 = vld [vmem:[%s558 + $0x258] sm:$0xff]
        %v635 = vld [vmem:[%s558 + $0x260] sm:$0xff]
        %v636 = vld [vmem:[%s558 + $0x268] sm:$0xff]
        %v637 = vld [vmem:[%s558 + $0x270] sm:$0xff]
        %v638 = vld [vmem:[%s558 + $0x278] sm:$0xff]
        %v639 = vld [vmem:[%s558 + $0x280] sm:$0xff]
        %v640 = vld [vmem:[%s558 + $0x288] sm:$0xff]
        %v641 = vld [vmem:[%s558 + $0x290] sm:$0xff]
        %v642 = vld [vmem:[%s558 + $0x298] sm:$0xff]
        %v643 = vld [vmem:[%s558 + $0x2a0] sm:$0xff]
        %v644 = vld [vmem:[%s558 + $0x2a8] sm:$0xff]
        %v645 = vld [vmem:[%s558 + $0x2b0] sm:$0xff]
        %v646 = vld [vmem:[%s558 + $0x2b8] sm:$0xff]
        %v647 = vld [vmem:[%s558 + $0x2c0] sm:$0xff]
        %v648 = vld [vmem:[%s558 + $0x2c8] sm:$0xff]
        %v649 = vld [vmem:[%s558 + $0x2d0] sm:$0xff]
        %v650 = vld [vmem:[%s558 + $0x2d8] sm:$0xff]
        %v651 = vld [vmem:[%s558 + $0x2e0] sm:$0xff]
        %v652 = vld [vmem:[%s558 + $0x2e8] sm:$0xff]
        %v653 = vld [vmem:[%s558 + $0x2f0] sm:$0xff]
        %v654 = vld [vmem:[%s558 + $0x2f8] sm:$0xff]
        %v655 = vld [vmem:[%s558 + $0x300] sm:$0xff]
        %v656 = vld [vmem:[%s558 + $0x308] sm:$0xff]
        %v657 = vld [vmem:[%s558 + $0x310] sm:$0xff]
        %v658 = vld [vmem:[%s558 + $0x318] sm:$0xff]
        %v659 = vld [vmem:[%s558 + $0x320] sm:$0xff]
        %v660 = vld [vmem:[%s558 + $0x328] sm:$0xff]
        %v661 = vld [vmem:[%s558 + $0x330] sm:$0xff]
        %v662 = vld [vmem:[%s558 + $0x338] sm:$0xff]
        %v663 = vld [vmem:[%s558 + $0x340] sm:$0xff]
        %v664 = vld [vmem:[%s558 + $0x348] sm:$0xff]
        %v665 = vld [vmem:[%s558 + $0x350] sm:$0xff]
        %v666 = vld [vmem:[%s558 + $0x358] sm:$0xff]
        %v667 = vld [vmem:[%s558 + $0x360] sm:$0xff]
        %v668 = vld [vmem:[%s558 + $0x368] sm:$0xff]
        %v669 = vld [vmem:[%s558 + $0x370] sm:$0xff]
        %v670 = vld [vmem:[%s558 + $0x378] sm:$0xff]
        %v671 = vld [vmem:[%s558 + $0x380] sm:$0xff]
        %v672 = vld [vmem:[%s558 + $0x388] sm:$0xff]
        %v673 = vld [vmem:[%s558 + $0x390] sm:$0xff]
        %v674 = vld [vmem:[%s558 + $0x398] sm:$0xff]
        %v675 = vld [vmem:[%s558 + $0x3a0] sm:$0xff]
        %v676 = vld [vmem:[%s558 + $0x3a8] sm:$0xff]
        %v677 = vld [vmem:[%s558 + $0x3b0] sm:$0xff]
        %v678 = vld [vmem:[%s558 + $0x3b8] sm:$0xff]
        %v679 = vld [vmem:[%s558 + $0x3c0] sm:$0xff]
        %v680 = vld [vmem:[%s558 + $0x3c8] sm:$0xff]
        %v681 = vld [vmem:[%s558 + $0x3d0] sm:$0xff]
        %v682 = vld [vmem:[%s558 + $0x3d8] sm:$0xff]
        %v683 = vld [vmem:[%s558 + $0x3e0] sm:$0xff]
        %v684 = vld [vmem:[%s558 + $0x3e8] sm:$0xff]
        %v685 = vld [vmem:[%s558 + $0x3f0] sm:$0xff]
        %v686 = vld [vmem:[%s558 + $0x3f8] sm:$0xff]
        %v687 = vld [vmem:[%s558 + $0x400] sm:$0xff]
        %v688 = vld [vmem:[%s558 + $0x408] sm:$0xff]
        %v689 = vld [vmem:[%s558 + $0x410] sm:$0xff]
        %v690 = vld [vmem:[%s558 + $0x418] sm:$0xff]
        %v691 = vld [vmem:[%s558 + $0x420] sm:$0xff]
        %v692 = vld [vmem:[%s558 + $0x428] sm:$0xff]
        %v693 = vld [vmem:[%s558 + $0x430] sm:$0xff]
        %v694 = vld [vmem:[%s558 + $0x438] sm:$0xff]
        %v695 = vld [vmem:[%s558 + $0x440] sm:$0xff]
        %v696 = vld [vmem:[%s558 + $0x448] sm:$0xff]
        %v697 = vld [vmem:[%s558 + $0x450] sm:$0xff]
        %v698 = vld [vmem:[%s558 + $0x458] sm:$0xff]
        %v699 = vld [vmem:[%s558 + $0x460] sm:$0xff]
        %v700 = vld [vmem:[%s558 + $0x468] sm:$0xff]
        %v701 = vld [vmem:[%s558 + $0x470] sm:$0xff]
        %v702 = vld [vmem:[%s558 + $0x478] sm:$0xff]
        %v703 = vld [vmem:[%s558 + $0x480] sm:$0xff]
        %v704 = vld [vmem:[%s558 + $0x488] sm:$0xff]
        %v705 = vld [vmem:[%s558 + $0x490] sm:$0xff]
        %v706 = vld [vmem:[%s558 + $0x498] sm:$0xff]
        %v707 = vld [vmem:[%s558 + $0x4a0] sm:$0xff]
        %v708 = vld [vmem:[%s558 + $0x4a8] sm:$0xff]
        %v709 = vld [vmem:[%s558 + $0x4b0] sm:$0xff]
        %v710 = vld [vmem:[%s558 + $0x4b8] sm:$0xff]
        %v711 = vld [vmem:[%s558 + $0x4c0] sm:$0xff]
        %v712 = vld [vmem:[%s558 + $0x4c8] sm:$0xff]
        %v713 = vld [vmem:[%s558 + $0x4d0] sm:$0xff]
        %v714 = vld [vmem:[%s558 + $0x4d8] sm:$0xff]
        %v715 = vld [vmem:[%s558 + $0x4e0] sm:$0xff]
        %v716 = vld [vmem:[%s558 + $0x4e8] sm:$0xff]
        %v717 = vld [vmem:[%s558 + $0x4f0] sm:$0xff]
        %v718 = vld [vmem:[%s558 + $0x4f8] sm:$0xff]
        %v719 = vld [vmem:[%s558 + $0x500] sm:$0xff]
        %v720 = vld [vmem:[%s558 + $0x508] sm:$0xff]
        %v721 = vld [vmem:[%s558 + $0x510] sm:$0xff]
        %v722 = vld [vmem:[%s558 + $0x518] sm:$0xff]
        %v723 = vld [vmem:[%s558 + $0x520] sm:$0xff]
        %v724 = vld [vmem:[%s558 + $0x528] sm:$0xff]
        %v725 = vld [vmem:[%s558 + $0x530] sm:$0xff]
        %v726 = vld [vmem:[%s558 + $0x538] sm:$0xff]
        %v727 = vld [vmem:[%s558 + $0x540] sm:$0xff]
        %v728 = vld [vmem:[%s558 + $0x548] sm:$0xff]
        %v729 = vld [vmem:[%s558 + $0x550] sm:$0xff]
        %v730 = vld [vmem:[%s558 + $0x558] sm:$0xff]
        %v731 = vld [vmem:[%s558 + $0x560] sm:$0xff]
        %v732 = vld [vmem:[%s558 + $0x568] sm:$0xff]
        %v733 = vld [vmem:[%s558 + $0x570] sm:$0xff]
        %v734 = vld [vmem:[%s558 + $0x578] sm:$0xff]
        %v735 = vld [vmem:[%s558 + $0x580] sm:$0xff]
        %v736 = vld [vmem:[%s558 + $0x588] sm:$0xff]
        %v737 = vld [vmem:[%s558 + $0x590] sm:$0xff]
        %v738 = vld [vmem:[%s558 + $0x598] sm:$0xff]
        %v739 = vld [vmem:[%s558 + $0x5a0] sm:$0xff]
        %v740 = vld [vmem:[%s558 + $0x5a8] sm:$0xff]
        %v741 = vld [vmem:[%s558 + $0x5b0] sm:$0xff]
        %v742 = vld [vmem:[%s558 + $0x5b8] sm:$0xff]
        %v743 = vld [vmem:[%s558 + $0x5c0] sm:$0xff]
        %v744 = vld [vmem:[%s558 + $0x5c8] sm:$0xff]
        %v745 = vld [vmem:[%s558 + $0x5d0] sm:$0xff]
        %v746 = vld [vmem:[%s558 + $0x5d8] sm:$0xff]
        %v747 = vld [vmem:[%s558 + $0x5e0] sm:$0xff]
        %v748 = vld [vmem:[%s558 + $0x5e8] sm:$0xff]
        %v749 = vld [vmem:[%s558 + $0x5f0] sm:$0xff]
        %v750 = vld [vmem:[%s558 + $0x5f8] sm:$0xff]
        %v751 = vld [vmem:[%s558 + $0x600] sm:$0xff]
        %v752 = vld [vmem:[%s558 + $0x608] sm:$0xff]
        %v753 = vld [vmem:[%s558 + $0x610] sm:$0xff]
        %v754 = vld [vmem:[%s558 + $0x618] sm:$0xff]
        %v755 = vld [vmem:[%s558 + $0x620] sm:$0xff]
        %v756 = vld [vmem:[%s558 + $0x628] sm:$0xff]
        %v757 = vld [vmem:[%s558 + $0x630] sm:$0xff]
        %v758 = vld [vmem:[%s558 + $0x638] sm:$0xff]
        %v759 = vld [vmem:[%s558 + $0x640] sm:$0xff]
        %v760 = vld [vmem:[%s558 + $0x648] sm:$0xff]
        %v761 = vld [vmem:[%s558 + $0x650] sm:$0xff]
        %v762 = vld [vmem:[%s558 + $0x658] sm:$0xff]
        %v763 = vld [vmem:[%s558 + $0x660] sm:$0xff]
        %v764 = vld [vmem:[%s558 + $0x668] sm:$0xff]
        %v765 = vld [vmem:[%s558 + $0x670] sm:$0xff]
        %v766 = vld [vmem:[%s558 + $0x678] sm:$0xff]
        %v767 = vld [vmem:[%s558 + $0x680] sm:$0xff]
        %v768 = vld [vmem:[%s558 + $0x688] sm:$0xff]
        %v769 = vld [vmem:[%s558 + $0x690] sm:$0xff]
        %v770 = vld [vmem:[%s558 + $0x698] sm:$0xff]
        %v771 = vld [vmem:[%s558 + $0x6a0] sm:$0xff]
        %v772 = vld [vmem:[%s558 + $0x6a8] sm:$0xff]
        %v773 = vld [vmem:[%s558 + $0x6b0] sm:$0xff]
        %v774 = vld [vmem:[%s558 + $0x6b8] sm:$0xff]
        %v775 = vld [vmem:[%s558 + $0x6c0] sm:$0xff]
        %v776 = vld [vmem:[%s558 + $0x6c8] sm:$0xff]
        %v777 = vld [vmem:[%s558 + $0x6d0] sm:$0xff]
        %v778 = vld [vmem:[%s558 + $0x6d8] sm:$0xff]
        %v779 = vld [vmem:[%s558 + $0x6e0] sm:$0xff]
        %v780 = vld [vmem:[%s558 + $0x6e8] sm:$0xff]
        %v781 = vld [vmem:[%s558 + $0x6f0] sm:$0xff]
        %v782 = vld [vmem:[%s558 + $0x6f8] sm:$0xff]
        %v783 = vld [vmem:[%s558 + $0x700] sm:$0xff]
        %v784 = vld [vmem:[%s558 + $0x708] sm:$0xff]
        %v785 = vld [vmem:[%s558 + $0x710] sm:$0xff]
        %v786 = vld [vmem:[%s558 + $0x718] sm:$0xff]
        %v787 = vld [vmem:[%s558 + $0x720] sm:$0xff]
        %v788 = vld [vmem:[%s558 + $0x728] sm:$0xff]
        %v789 = vld [vmem:[%s558 + $0x730] sm:$0xff]
        %v790 = vld [vmem:[%s558 + $0x738] sm:$0xff]
        %v791 = vld [vmem:[%s558 + $0x740] sm:$0xff]
        %v792 = vld [vmem:[%s558 + $0x748] sm:$0xff]
        %v793 = vld [vmem:[%s558 + $0x750] sm:$0xff]
        %v794 = vld [vmem:[%s558 + $0x758] sm:$0xff]
        %v795 = vld [vmem:[%s558 + $0x760] sm:$0xff]
        %v796 = vld [vmem:[%s558 + $0x768] sm:$0xff]
        %v797 = vld [vmem:[%s558 + $0x770] sm:$0xff]
        %v798 = vld [vmem:[%s558 + $0x778] sm:$0xff]
        %v799 = vld [vmem:[%s558 + $0x780] sm:$0xff]
        %v800 = vld [vmem:[%s558 + $0x788] sm:$0xff]
        %v801 = vld [vmem:[%s558 + $0x790] sm:$0xff]
        %v802 = vld [vmem:[%s558 + $0x798] sm:$0xff]
        %v803 = vld [vmem:[%s558 + $0x7a0] sm:$0xff]
        %v804 = vld [vmem:[%s558 + $0x7a8] sm:$0xff]
        %v805 = vld [vmem:[%s558 + $0x7b0] sm:$0xff]
        %v806 = vld [vmem:[%s558 + $0x7b8] sm:$0xff]
        %v807 = vld [vmem:[%s558 + $0x7c0] sm:$0xff]
        %v808 = vld [vmem:[%s558 + $0x7c8] sm:$0xff]
        %v809 = vld [vmem:[%s558 + $0x7d0] sm:$0xff]
        %v810 = vld [vmem:[%s558 + $0x7d8] sm:$0xff]
        %v811 = vld [vmem:[%s558 + $0x7e0] sm:$0xff]
        %v812 = vld [vmem:[%s558 + $0x7e8] sm:$0xff]
        %v813 = vld [vmem:[%s558 + $0x7f0] sm:$0xff]
        %v814 = vld [vmem:[%s558 + $0x7f8] sm:$0xff]
        %v819 = vunpack.c.l.b16 %v554
        %v820 = vunpack.c.h.b16 %v554
        %v821 = vunpack.c.l.b16 %v555
        %v822 = vunpack.c.h.b16 %v555
        %v823 = vunpack.c.l.b16 %v556
        %v824 = vunpack.c.h.b16 %v556
        %v825 = vunpack.c.l.b16 %v557
        %v826 = vunpack.c.h.b16 %v557
        %v827 = vpack.c.b16 %v819, %v819
        %v828 = vpack.c.b16 %v820, %v820
        %v829 = vpack.c.b16 %v821, %v821
        %v830 = vpack.c.b16 %v822, %v822
        %v831 = vpack.c.b16 %v823, %v823
        %v832 = vpack.c.b16 %v824, %v824
        %v833 = vpack.c.b16 %v825, %v825
        %v834 = vpack.c.b16 %v826, %v826
        %v836 = vshrl.u32 %v827, 16
        %v838 = vshll.u32 %v827, 16
        %v840 = vrot.slane %v838, 1
        %v841 = vor.u32 %v836, %v840
        %v843 = vshrl.u32 %v828, 16
        %v845 = vshll.u32 %v828, 16
        %v847 = vrot.slane %v845, 1
        %v848 = vor.u32 %v843, %v847
        %v850 = vshrl.u32 %v829, 16
        %v852 = vshll.u32 %v829, 16
        %v854 = vrot.slane %v852, 1
        %v855 = vor.u32 %v850, %v854
        %v857 = vshrl.u32 %v830, 16
        %v859 = vshll.u32 %v830, 16
        %v861 = vrot.slane %v859, 1
        %v862 = vor.u32 %v857, %v861
        %v864 = vshrl.u32 %v831, 16
        %v866 = vshll.u32 %v831, 16
        %v868 = vrot.slane %v866, 1
        %v869 = vor.u32 %v864, %v868
        %v871 = vshrl.u32 %v832, 16
        %v873 = vshll.u32 %v832, 16
        %v875 = vrot.slane %v873, 1
        %v876 = vor.u32 %v871, %v875
        %v878 = vshrl.u32 %v833, 16
        %v880 = vshll.u32 %v833, 16
        %v882 = vrot.slane %v880, 1
        %v883 = vor.u32 %v878, %v882
        %v885 = vshrl.u32 %v834, 16
        %v887 = vshll.u32 %v834, 16
        %v889 = vrot.slane %v887, 1
        %v890 = vor.u32 %v885, %v889
        %v1155 = vunpack.c.l.b16 %v559
        %v1156 = vunpack.c.h.b16 %v559
        %v1157 = vunpack.c.l.b16 %v560
        %v1158 = vunpack.c.h.b16 %v560
        %v1159 = vunpack.c.l.b16 %v561
        %v1160 = vunpack.c.h.b16 %v561
        %v1161 = vunpack.c.l.b16 %v562
        %v1162 = vunpack.c.h.b16 %v562
        %v1163 = vunpack.c.l.b16 %v563
        %v1164 = vunpack.c.h.b16 %v563
        %v1165 = vunpack.c.l.b16 %v564
        %v1166 = vunpack.c.h.b16 %v564
        %v1167 = vunpack.c.l.b16 %v565
        %v1168 = vunpack.c.h.b16 %v565
        %v1169 = vunpack.c.l.b16 %v566
        %v1170 = vunpack.c.h.b16 %v566
        %v1171 = vunpack.c.l.b16 %v567
        %v1172 = vunpack.c.h.b16 %v567
        %v1173 = vunpack.c.l.b16 %v568
        %v1174 = vunpack.c.h.b16 %v568
        %v1175 = vunpack.c.l.b16 %v569
        %v1176 = vunpack.c.h.b16 %v569
        %v1177 = vunpack.c.l.b16 %v570
        %v1178 = vunpack.c.h.b16 %v570
        %v1179 = vunpack.c.l.b16 %v571
        %v1180 = vunpack.c.h.b16 %v571
        %v1181 = vunpack.c.l.b16 %v572
        %v1182 = vunpack.c.h.b16 %v572
        %v1183 = vunpack.c.l.b16 %v573
        %v1184 = vunpack.c.h.b16 %v573
        %v1185 = vunpack.c.l.b16 %v574
        %v1186 = vunpack.c.h.b16 %v574
        %v1187 = vunpack.c.l.b16 %v575
        %v1188 = vunpack.c.h.b16 %v575
        %v1189 = vunpack.c.l.b16 %v576
        %v1190 = vunpack.c.h.b16 %v576
        %v1191 = vunpack.c.l.b16 %v577
        %v1192 = vunpack.c.h.b16 %v577
        %v1193 = vunpack.c.l.b16 %v578
        %v1194 = vunpack.c.h.b16 %v578
        %v1195 = vunpack.c.l.b16 %v579
        %v1196 = vunpack.c.h.b16 %v579
        %v1197 = vunpack.c.l.b16 %v580
        %v1198 = vunpack.c.h.b16 %v580
        %v1199 = vunpack.c.l.b16 %v581
        %v1200 = vunpack.c.h.b16 %v581
        %v1201 = vunpack.c.l.b16 %v582
        %v1202 = vunpack.c.h.b16 %v582
        %v1203 = vunpack.c.l.b16 %v583
        %v1204 = vunpack.c.h.b16 %v583
        %v1205 = vunpack.c.l.b16 %v584
        %v1206 = vunpack.c.h.b16 %v584
        %v1207 = vunpack.c.l.b16 %v585
        %v1208 = vunpack.c.h.b16 %v585
        %v1209 = vunpack.c.l.b16 %v586
        %v1210 = vunpack.c.h.b16 %v586
        %v1211 = vunpack.c.l.b16 %v587
        %v1212 = vunpack.c.h.b16 %v587
        %v1213 = vunpack.c.l.b16 %v588
        %v1214 = vunpack.c.h.b16 %v588
        %v1215 = vunpack.c.l.b16 %v589
        %v1216 = vunpack.c.h.b16 %v589
        %v1217 = vunpack.c.l.b16 %v590
        %v1218 = vunpack.c.h.b16 %v590
        %v1219 = vunpack.c.l.b16 %v591
        %v1220 = vunpack.c.h.b16 %v591
        %v1221 = vunpack.c.l.b16 %v592
        %v1222 = vunpack.c.h.b16 %v592
        %v1223 = vunpack.c.l.b16 %v593
        %v1224 = vunpack.c.h.b16 %v593
        %v1225 = vunpack.c.l.b16 %v594
        %v1226 = vunpack.c.h.b16 %v594
        %v1227 = vunpack.c.l.b16 %v595
        %v1228 = vunpack.c.h.b16 %v595
        %v1229 = vunpack.c.l.b16 %v596
        %v1230 = vunpack.c.h.b16 %v596
        %v1231 = vunpack.c.l.b16 %v597
        %v1232 = vunpack.c.h.b16 %v597
        %v1233 = vunpack.c.l.b16 %v598
        %v1234 = vunpack.c.h.b16 %v598
        %v1235 = vunpack.c.l.b16 %v599
        %v1236 = vunpack.c.h.b16 %v599
        %v1237 = vunpack.c.l.b16 %v600
        %v1238 = vunpack.c.h.b16 %v600
        %v1239 = vunpack.c.l.b16 %v601
        %v1240 = vunpack.c.h.b16 %v601
        %v1241 = vunpack.c.l.b16 %v602
        %v1242 = vunpack.c.h.b16 %v602
        %v1243 = vunpack.c.l.b16 %v603
        %v1244 = vunpack.c.h.b16 %v603
        %v1245 = vunpack.c.l.b16 %v604
        %v1246 = vunpack.c.h.b16 %v604
        %v1247 = vunpack.c.l.b16 %v605
        %v1248 = vunpack.c.h.b16 %v605
        %v1249 = vunpack.c.l.b16 %v606
        %v1250 = vunpack.c.h.b16 %v606
        %v1251 = vunpack.c.l.b16 %v607
        %v1252 = vunpack.c.h.b16 %v607
        %v1253 = vunpack.c.l.b16 %v608
        %v1254 = vunpack.c.h.b16 %v608
        %v1255 = vunpack.c.l.b16 %v609
        %v1256 = vunpack.c.h.b16 %v609
        %v1257 = vunpack.c.l.b16 %v610
        %v1258 = vunpack.c.h.b16 %v610
        %v1259 = vunpack.c.l.b16 %v611
        %v1260 = vunpack.c.h.b16 %v611
        %v1261 = vunpack.c.l.b16 %v612
        %v1262 = vunpack.c.h.b16 %v612
        %v1263 = vunpack.c.l.b16 %v613
        %v1264 = vunpack.c.h.b16 %v613
        %v1265 = vunpack.c.l.b16 %v614
        %v1266 = vunpack.c.h.b16 %v614
        %v1267 = vunpack.c.l.b16 %v615
        %v1268 = vunpack.c.h.b16 %v615
        %v1269 = vunpack.c.l.b16 %v616
        %v1270 = vunpack.c.h.b16 %v616
        %v1271 = vunpack.c.l.b16 %v617
        %v1272 = vunpack.c.h.b16 %v617
        %v1273 = vunpack.c.l.b16 %v618
        %v1274 = vunpack.c.h.b16 %v618
        %v1275 = vunpack.c.l.b16 %v619
        %v1276 = vunpack.c.h.b16 %v619
        %v1277 = vunpack.c.l.b16 %v620
        %v1278 = vunpack.c.h.b16 %v620
        %v1279 = vunpack.c.l.b16 %v621
        %v1280 = vunpack.c.h.b16 %v621
        %v1281 = vunpack.c.l.b16 %v622
        %v1282 = vunpack.c.h.b16 %v622
        %v1283 = vunpack.c.l.b16 %v623
        %v1284 = vunpack.c.h.b16 %v623
        %v1285 = vunpack.c.l.b16 %v624
        %v1286 = vunpack.c.h.b16 %v624
        %v1287 = vunpack.c.l.b16 %v625
        %v1288 = vunpack.c.h.b16 %v625
        %v1289 = vunpack.c.l.b16 %v626
        %v1290 = vunpack.c.h.b16 %v626
        %v1291 = vunpack.c.l.b16 %v627
        %v1292 = vunpack.c.h.b16 %v627
        %v1293 = vunpack.c.l.b16 %v628
        %v1294 = vunpack.c.h.b16 %v628
        %v1295 = vunpack.c.l.b16 %v629
        %v1296 = vunpack.c.h.b16 %v629
        %v1297 = vunpack.c.l.b16 %v630
        %v1298 = vunpack.c.h.b16 %v630
        %v1299 = vunpack.c.l.b16 %v631
        %v1300 = vunpack.c.h.b16 %v631
        %v1301 = vunpack.c.l.b16 %v632
        %v1302 = vunpack.c.h.b16 %v632
        %v1303 = vunpack.c.l.b16 %v633
        %v1304 = vunpack.c.h.b16 %v633
        %v1305 = vunpack.c.l.b16 %v634
        %v1306 = vunpack.c.h.b16 %v634
        %v1307 = vunpack.c.l.b16 %v635
        %v1308 = vunpack.c.h.b16 %v635
        %v1309 = vunpack.c.l.b16 %v636
        %v1310 = vunpack.c.h.b16 %v636
        %v1311 = vunpack.c.l.b16 %v637
        %v1312 = vunpack.c.h.b16 %v637
        %v1313 = vunpack.c.l.b16 %v638
        %v1314 = vunpack.c.h.b16 %v638
        %v1315 = vunpack.c.l.b16 %v639
        %v1316 = vunpack.c.h.b16 %v639
        %v1317 = vunpack.c.l.b16 %v640
        %v1318 = vunpack.c.h.b16 %v640
        %v1319 = vunpack.c.l.b16 %v641
        %v1320 = vunpack.c.h.b16 %v641
        %v1321 = vunpack.c.l.b16 %v642
        %v1322 = vunpack.c.h.b16 %v642
        %v1323 = vunpack.c.l.b16 %v643
        %v1324 = vunpack.c.h.b16 %v643
        %v1325 = vunpack.c.l.b16 %v644
        %v1326 = vunpack.c.h.b16 %v644
        %v1327 = vunpack.c.l.b16 %v645
        %v1328 = vunpack.c.h.b16 %v645
        %v1329 = vunpack.c.l.b16 %v646
        %v1330 = vunpack.c.h.b16 %v646
        %v1331 = vunpack.c.l.b16 %v647
        %v1332 = vunpack.c.h.b16 %v647
        %v1333 = vunpack.c.l.b16 %v648
        %v1334 = vunpack.c.h.b16 %v648
        %v1335 = vunpack.c.l.b16 %v649
        %v1336 = vunpack.c.h.b16 %v649
        %v1337 = vunpack.c.l.b16 %v650
        %v1338 = vunpack.c.h.b16 %v650
        %v1339 = vunpack.c.l.b16 %v651
        %v1340 = vunpack.c.h.b16 %v651
        %v1341 = vunpack.c.l.b16 %v652
        %v1342 = vunpack.c.h.b16 %v652
        %v1343 = vunpack.c.l.b16 %v653
        %v1344 = vunpack.c.h.b16 %v653
        %v1345 = vunpack.c.l.b16 %v654
        %v1346 = vunpack.c.h.b16 %v654
        %v1347 = vunpack.c.l.b16 %v655
        %v1348 = vunpack.c.h.b16 %v655
        %v1349 = vunpack.c.l.b16 %v656
        %v1350 = vunpack.c.h.b16 %v656
        %v1351 = vunpack.c.l.b16 %v657
        %v1352 = vunpack.c.h.b16 %v657
        %v1353 = vunpack.c.l.b16 %v658
        %v1354 = vunpack.c.h.b16 %v658
        %v1355 = vunpack.c.l.b16 %v659
        %v1356 = vunpack.c.h.b16 %v659
        %v1357 = vunpack.c.l.b16 %v660
        %v1358 = vunpack.c.h.b16 %v660
        %v1359 = vunpack.c.l.b16 %v661
        %v1360 = vunpack.c.h.b16 %v661
        %v1361 = vunpack.c.l.b16 %v662
        %v1362 = vunpack.c.h.b16 %v662
        %v1363 = vunpack.c.l.b16 %v663
        %v1364 = vunpack.c.h.b16 %v663
        %v1365 = vunpack.c.l.b16 %v664
        %v1366 = vunpack.c.h.b16 %v664
        %v1367 = vunpack.c.l.b16 %v665
        %v1368 = vunpack.c.h.b16 %v665
        %v1369 = vunpack.c.l.b16 %v666
        %v1370 = vunpack.c.h.b16 %v666
        %v1371 = vunpack.c.l.b16 %v667
        %v1372 = vunpack.c.h.b16 %v667
        %v1373 = vunpack.c.l.b16 %v668
        %v1374 = vunpack.c.h.b16 %v668
        %v1375 = vunpack.c.l.b16 %v669
        %v1376 = vunpack.c.h.b16 %v669
        %v1377 = vunpack.c.l.b16 %v670
        %v1378 = vunpack.c.h.b16 %v670
        %v1379 = vunpack.c.l.b16 %v671
        %v1380 = vunpack.c.h.b16 %v671
        %v1381 = vunpack.c.l.b16 %v672
        %v1382 = vunpack.c.h.b16 %v672
        %v1383 = vunpack.c.l.b16 %v673
        %v1384 = vunpack.c.h.b16 %v673
        %v1385 = vunpack.c.l.b16 %v674
        %v1386 = vunpack.c.h.b16 %v674
        %v1387 = vunpack.c.l.b16 %v675
        %v1388 = vunpack.c.h.b16 %v675
        %v1389 = vunpack.c.l.b16 %v676
        %v1390 = vunpack.c.h.b16 %v676
        %v1391 = vunpack.c.l.b16 %v677
        %v1392 = vunpack.c.h.b16 %v677
        %v1393 = vunpack.c.l.b16 %v678
        %v1394 = vunpack.c.h.b16 %v678
        %v1395 = vunpack.c.l.b16 %v679
        %v1396 = vunpack.c.h.b16 %v679
        %v1397 = vunpack.c.l.b16 %v680
        %v1398 = vunpack.c.h.b16 %v680
        %v1399 = vunpack.c.l.b16 %v681
        %v1400 = vunpack.c.h.b16 %v681
        %v1401 = vunpack.c.l.b16 %v682
        %v1402 = vunpack.c.h.b16 %v682
        %v1403 = vunpack.c.l.b16 %v683
        %v1404 = vunpack.c.h.b16 %v683
        %v1405 = vunpack.c.l.b16 %v684
        %v1406 = vunpack.c.h.b16 %v684
        %v1407 = vunpack.c.l.b16 %v685
        %v1408 = vunpack.c.h.b16 %v685
        %v1409 = vunpack.c.l.b16 %v686
        %v1410 = vunpack.c.h.b16 %v686
        %v1411 = vunpack.c.l.b16 %v687
        %v1412 = vunpack.c.h.b16 %v687
        %v1413 = vunpack.c.l.b16 %v688
        %v1414 = vunpack.c.h.b16 %v688
        %v1415 = vunpack.c.l.b16 %v689
        %v1416 = vunpack.c.h.b16 %v689
        %v1417 = vunpack.c.l.b16 %v690
        %v1418 = vunpack.c.h.b16 %v690
        %v1419 = vunpack.c.l.b16 %v691
        %v1420 = vunpack.c.h.b16 %v691
        %v1421 = vunpack.c.l.b16 %v692
        %v1422 = vunpack.c.h.b16 %v692
        %v1423 = vunpack.c.l.b16 %v693
        %v1424 = vunpack.c.h.b16 %v693
        %v1425 = vunpack.c.l.b16 %v694
        %v1426 = vunpack.c.h.b16 %v694
        %v1427 = vunpack.c.l.b16 %v695
        %v1428 = vunpack.c.h.b16 %v695
        %v1429 = vunpack.c.l.b16 %v696
        %v1430 = vunpack.c.h.b16 %v696
        %v1431 = vunpack.c.l.b16 %v697
        %v1432 = vunpack.c.h.b16 %v697
        %v1433 = vunpack.c.l.b16 %v698
        %v1434 = vunpack.c.h.b16 %v698
        %v1435 = vunpack.c.l.b16 %v699
        %v1436 = vunpack.c.h.b16 %v699
        %v1437 = vunpack.c.l.b16 %v700
        %v1438 = vunpack.c.h.b16 %v700
        %v1439 = vunpack.c.l.b16 %v701
        %v1440 = vunpack.c.h.b16 %v701
        %v1441 = vunpack.c.l.b16 %v702
        %v1442 = vunpack.c.h.b16 %v702
        %v1443 = vunpack.c.l.b16 %v703
        %v1444 = vunpack.c.h.b16 %v703
        %v1445 = vunpack.c.l.b16 %v704
        %v1446 = vunpack.c.h.b16 %v704
        %v1447 = vunpack.c.l.b16 %v705
        %v1448 = vunpack.c.h.b16 %v705
        %v1449 = vunpack.c.l.b16 %v706
        %v1450 = vunpack.c.h.b16 %v706
        %v1451 = vunpack.c.l.b16 %v707
        %v1452 = vunpack.c.h.b16 %v707
        %v1453 = vunpack.c.l.b16 %v708
        %v1454 = vunpack.c.h.b16 %v708
        %v1455 = vunpack.c.l.b16 %v709
        %v1456 = vunpack.c.h.b16 %v709
        %v1457 = vunpack.c.l.b16 %v710
        %v1458 = vunpack.c.h.b16 %v710
        %v1459 = vunpack.c.l.b16 %v711
        %v1460 = vunpack.c.h.b16 %v711
        %v1461 = vunpack.c.l.b16 %v712
        %v1462 = vunpack.c.h.b16 %v712
        %v1463 = vunpack.c.l.b16 %v713
        %v1464 = vunpack.c.h.b16 %v713
        %v1465 = vunpack.c.l.b16 %v714
        %v1466 = vunpack.c.h.b16 %v714
        %v1467 = vunpack.c.l.b16 %v715
        %v1468 = vunpack.c.h.b16 %v715
        %v1469 = vunpack.c.l.b16 %v716
        %v1470 = vunpack.c.h.b16 %v716
        %v1471 = vunpack.c.l.b16 %v717
        %v1472 = vunpack.c.h.b16 %v717
        %v1473 = vunpack.c.l.b16 %v718
        %v1474 = vunpack.c.h.b16 %v718
        %v1475 = vunpack.c.l.b16 %v719
        %v1476 = vunpack.c.h.b16 %v719
        %v1477 = vunpack.c.l.b16 %v720
        %v1478 = vunpack.c.h.b16 %v720
        %v1479 = vunpack.c.l.b16 %v721
        %v1480 = vunpack.c.h.b16 %v721
        %v1481 = vunpack.c.l.b16 %v722
        %v1482 = vunpack.c.h.b16 %v722
        %v1483 = vunpack.c.l.b16 %v723
        %v1484 = vunpack.c.h.b16 %v723
        %v1485 = vunpack.c.l.b16 %v724
        %v1486 = vunpack.c.h.b16 %v724
        %v1487 = vunpack.c.l.b16 %v725
        %v1488 = vunpack.c.h.b16 %v725
        %v1489 = vunpack.c.l.b16 %v726
        %v1490 = vunpack.c.h.b16 %v726
        %v1491 = vunpack.c.l.b16 %v727
        %v1492 = vunpack.c.h.b16 %v727
        %v1493 = vunpack.c.l.b16 %v728
        %v1494 = vunpack.c.h.b16 %v728
        %v1495 = vunpack.c.l.b16 %v729
        %v1496 = vunpack.c.h.b16 %v729
        %v1497 = vunpack.c.l.b16 %v730
        %v1498 = vunpack.c.h.b16 %v730
        %v1499 = vunpack.c.l.b16 %v731
        %v1500 = vunpack.c.h.b16 %v731
        %v1501 = vunpack.c.l.b16 %v732
        %v1502 = vunpack.c.h.b16 %v732
        %v1503 = vunpack.c.l.b16 %v733
        %v1504 = vunpack.c.h.b16 %v733
        %v1505 = vunpack.c.l.b16 %v734
        %v1506 = vunpack.c.h.b16 %v734
        %v1507 = vunpack.c.l.b16 %v735
        %v1508 = vunpack.c.h.b16 %v735
        %v1509 = vunpack.c.l.b16 %v736
        %v1510 = vunpack.c.h.b16 %v736
        %v1511 = vunpack.c.l.b16 %v737
        %v1512 = vunpack.c.h.b16 %v737
        %v1513 = vunpack.c.l.b16 %v738
        %v1514 = vunpack.c.h.b16 %v738
        %v1515 = vunpack.c.l.b16 %v739
        %v1516 = vunpack.c.h.b16 %v739
        %v1517 = vunpack.c.l.b16 %v740
        %v1518 = vunpack.c.h.b16 %v740
        %v1519 = vunpack.c.l.b16 %v741
        %v1520 = vunpack.c.h.b16 %v741
        %v1521 = vunpack.c.l.b16 %v742
        %v1522 = vunpack.c.h.b16 %v742
        %v1523 = vunpack.c.l.b16 %v743
        %v1524 = vunpack.c.h.b16 %v743
        %v1525 = vunpack.c.l.b16 %v744
        %v1526 = vunpack.c.h.b16 %v744
        %v1527 = vunpack.c.l.b16 %v745
        %v1528 = vunpack.c.h.b16 %v745
        %v1529 = vunpack.c.l.b16 %v746
        %v1530 = vunpack.c.h.b16 %v746
        %v1531 = vunpack.c.l.b16 %v747
        %v1532 = vunpack.c.h.b16 %v747
        %v1533 = vunpack.c.l.b16 %v748
        %v1534 = vunpack.c.h.b16 %v748
        %v1535 = vunpack.c.l.b16 %v749
        %v1536 = vunpack.c.h.b16 %v749
        %v1537 = vunpack.c.l.b16 %v750
        %v1538 = vunpack.c.h.b16 %v750
        %v1539 = vunpack.c.l.b16 %v751
        %v1540 = vunpack.c.h.b16 %v751
        %v1541 = vunpack.c.l.b16 %v752
        %v1542 = vunpack.c.h.b16 %v752
        %v1543 = vunpack.c.l.b16 %v753
        %v1544 = vunpack.c.h.b16 %v753
        %v1545 = vunpack.c.l.b16 %v754
        %v1546 = vunpack.c.h.b16 %v754
        %v1547 = vunpack.c.l.b16 %v755
        %v1548 = vunpack.c.h.b16 %v755
        %v1549 = vunpack.c.l.b16 %v756
        %v1550 = vunpack.c.h.b16 %v756
        %v1551 = vunpack.c.l.b16 %v757
        %v1552 = vunpack.c.h.b16 %v757
        %v1553 = vunpack.c.l.b16 %v758
        %v1554 = vunpack.c.h.b16 %v758
        %v1555 = vunpack.c.l.b16 %v759
        %v1556 = vunpack.c.h.b16 %v759
        %v1557 = vunpack.c.l.b16 %v760
        %v1558 = vunpack.c.h.b16 %v760
        %v1559 = vunpack.c.l.b16 %v761
        %v1560 = vunpack.c.h.b16 %v761
        %v1561 = vunpack.c.l.b16 %v762
        %v1562 = vunpack.c.h.b16 %v762
        %v1563 = vunpack.c.l.b16 %v763
        %v1564 = vunpack.c.h.b16 %v763
        %v1565 = vunpack.c.l.b16 %v764
        %v1566 = vunpack.c.h.b16 %v764
        %v1567 = vunpack.c.l.b16 %v765
        %v1568 = vunpack.c.h.b16 %v765
        %v1569 = vunpack.c.l.b16 %v766
        %v1570 = vunpack.c.h.b16 %v766
        %v1571 = vunpack.c.l.b16 %v767
        %v1572 = vunpack.c.h.b16 %v767
        %v1573 = vunpack.c.l.b16 %v768
        %v1574 = vunpack.c.h.b16 %v768
        %v1575 = vunpack.c.l.b16 %v769
        %v1576 = vunpack.c.h.b16 %v769
        %v1577 = vunpack.c.l.b16 %v770
        %v1578 = vunpack.c.h.b16 %v770
        %v1579 = vunpack.c.l.b16 %v771
        %v1580 = vunpack.c.h.b16 %v771
        %v1581 = vunpack.c.l.b16 %v772
        %v1582 = vunpack.c.h.b16 %v772
        %v1583 = vunpack.c.l.b16 %v773
        %v1584 = vunpack.c.h.b16 %v773
        %v1585 = vunpack.c.l.b16 %v774
        %v1586 = vunpack.c.h.b16 %v774
        %v1587 = vunpack.c.l.b16 %v775
        %v1588 = vunpack.c.h.b16 %v775
        %v1589 = vunpack.c.l.b16 %v776
        %v1590 = vunpack.c.h.b16 %v776
        %v1591 = vunpack.c.l.b16 %v777
        %v1592 = vunpack.c.h.b16 %v777
        %v1593 = vunpack.c.l.b16 %v778
        %v1594 = vunpack.c.h.b16 %v778
        %v1595 = vunpack.c.l.b16 %v779
        %v1596 = vunpack.c.h.b16 %v779
        %v1597 = vunpack.c.l.b16 %v780
        %v1598 = vunpack.c.h.b16 %v780
        %v1599 = vunpack.c.l.b16 %v781
        %v1600 = vunpack.c.h.b16 %v781
        %v1601 = vunpack.c.l.b16 %v782
        %v1602 = vunpack.c.h.b16 %v782
        %v1603 = vunpack.c.l.b16 %v783
        %v1604 = vunpack.c.h.b16 %v783
        %v1605 = vunpack.c.l.b16 %v784
        %v1606 = vunpack.c.h.b16 %v784
        %v1607 = vunpack.c.l.b16 %v785
        %v1608 = vunpack.c.h.b16 %v785
        %v1609 = vunpack.c.l.b16 %v786
        %v1610 = vunpack.c.h.b16 %v786
        %v1611 = vunpack.c.l.b16 %v787
        %v1612 = vunpack.c.h.b16 %v787
        %v1613 = vunpack.c.l.b16 %v788
        %v1614 = vunpack.c.h.b16 %v788
        %v1615 = vunpack.c.l.b16 %v789
        %v1616 = vunpack.c.h.b16 %v789
        %v1617 = vunpack.c.l.b16 %v790
        %v1618 = vunpack.c.h.b16 %v790
        %v1619 = vunpack.c.l.b16 %v791
        %v1620 = vunpack.c.h.b16 %v791
        %v1621 = vunpack.c.l.b16 %v792
        %v1622 = vunpack.c.h.b16 %v792
        %v1623 = vunpack.c.l.b16 %v793
        %v1624 = vunpack.c.h.b16 %v793
        %v1625 = vunpack.c.l.b16 %v794
        %v1626 = vunpack.c.h.b16 %v794
        %v1627 = vunpack.c.l.b16 %v795
        %v1628 = vunpack.c.h.b16 %v795
        %v1629 = vunpack.c.l.b16 %v796
        %v1630 = vunpack.c.h.b16 %v796
        %v1631 = vunpack.c.l.b16 %v797
        %v1632 = vunpack.c.h.b16 %v797
        %v1633 = vunpack.c.l.b16 %v798
        %v1634 = vunpack.c.h.b16 %v798
        %v1635 = vunpack.c.l.b16 %v799
        %v1636 = vunpack.c.h.b16 %v799
        %v1637 = vunpack.c.l.b16 %v800
        %v1638 = vunpack.c.h.b16 %v800
        %v1639 = vunpack.c.l.b16 %v801
        %v1640 = vunpack.c.h.b16 %v801
        %v1641 = vunpack.c.l.b16 %v802
        %v1642 = vunpack.c.h.b16 %v802
        %v1643 = vunpack.c.l.b16 %v803
        %v1644 = vunpack.c.h.b16 %v803
        %v1645 = vunpack.c.l.b16 %v804
        %v1646 = vunpack.c.h.b16 %v804
        %v1647 = vunpack.c.l.b16 %v805
        %v1648 = vunpack.c.h.b16 %v805
        %v1649 = vunpack.c.l.b16 %v806
        %v1650 = vunpack.c.h.b16 %v806
        %v1651 = vunpack.c.l.b16 %v807
        %v1652 = vunpack.c.h.b16 %v807
        %v1653 = vunpack.c.l.b16 %v808
        %v1654 = vunpack.c.h.b16 %v808
        %v1655 = vunpack.c.l.b16 %v809
        %v1656 = vunpack.c.h.b16 %v809
        %v1657 = vunpack.c.l.b16 %v810
        %v1658 = vunpack.c.h.b16 %v810
        %v1659 = vunpack.c.l.b16 %v811
        %v1660 = vunpack.c.h.b16 %v811
        %v1661 = vunpack.c.l.b16 %v812
        %v1662 = vunpack.c.h.b16 %v812
        %v1663 = vunpack.c.l.b16 %v813
        %v1664 = vunpack.c.h.b16 %v813
        %v1665 = vunpack.c.l.b16 %v814
        %v1666 = vunpack.c.h.b16 %v814
        %v1667 = vpack.c.b16 %v1159, %v1155
        %v1668 = vpack.c.b16 %v1160, %v1156
        %v1669 = vpack.c.b16 %v1161, %v1157
        %v1670 = vpack.c.b16 %v1162, %v1158
        %v1671 = vpack.c.b16 %v1167, %v1163
        %v1672 = vpack.c.b16 %v1168, %v1164
        %v1673 = vpack.c.b16 %v1169, %v1165
        %v1674 = vpack.c.b16 %v1170, %v1166
        %v1675 = vpack.c.b16 %v1175, %v1171
        %v1676 = vpack.c.b16 %v1176, %v1172
        %v1677 = vpack.c.b16 %v1177, %v1173
        %v1678 = vpack.c.b16 %v1178, %v1174
        %v1679 = vpack.c.b16 %v1183, %v1179
        %v1680 = vpack.c.b16 %v1184, %v1180
        %v1681 = vpack.c.b16 %v1185, %v1181
        %v1682 = vpack.c.b16 %v1186, %v1182
        %v1683 = vpack.c.b16 %v1191, %v1187
        %v1684 = vpack.c.b16 %v1192, %v1188
        %v1685 = vpack.c.b16 %v1193, %v1189
        %v1686 = vpack.c.b16 %v1194, %v1190
        %v1687 = vpack.c.b16 %v1199, %v1195
        %v1688 = vpack.c.b16 %v1200, %v1196
        %v1689 = vpack.c.b16 %v1201, %v1197
        %v1690 = vpack.c.b16 %v1202, %v1198
        %v1691 = vpack.c.b16 %v1207, %v1203
        %v1692 = vpack.c.b16 %v1208, %v1204
        %v1693 = vpack.c.b16 %v1209, %v1205
        %v1694 = vpack.c.b16 %v1210, %v1206
        %v1695 = vpack.c.b16 %v1215, %v1211
        %v1696 = vpack.c.b16 %v1216, %v1212
        %v1697 = vpack.c.b16 %v1217, %v1213
        %v1698 = vpack.c.b16 %v1218, %v1214
        %v1699 = vpack.c.b16 %v1223, %v1219
        %v1700 = vpack.c.b16 %v1224, %v1220
        %v1701 = vpack.c.b16 %v1225, %v1221
        %v1702 = vpack.c.b16 %v1226, %v1222
        %v1703 = vpack.c.b16 %v1231, %v1227
        %v1704 = vpack.c.b16 %v1232, %v1228
        %v1705 = vpack.c.b16 %v1233, %v1229
        %v1706 = vpack.c.b16 %v1234, %v1230
        %v1707 = vpack.c.b16 %v1239, %v1235
        %v1708 = vpack.c.b16 %v1240, %v1236
        %v1709 = vpack.c.b16 %v1241, %v1237
        %v1710 = vpack.c.b16 %v1242, %v1238
        %v1711 = vpack.c.b16 %v1247, %v1243
        %v1712 = vpack.c.b16 %v1248, %v1244
        %v1713 = vpack.c.b16 %v1249, %v1245
        %v1714 = vpack.c.b16 %v1250, %v1246
        %v1715 = vpack.c.b16 %v1255, %v1251
        %v1716 = vpack.c.b16 %v1256, %v1252
        %v1717 = vpack.c.b16 %v1257, %v1253
        %v1718 = vpack.c.b16 %v1258, %v1254
        %v1719 = vpack.c.b16 %v1263, %v1259
        %v1720 = vpack.c.b16 %v1264, %v1260
        %v1721 = vpack.c.b16 %v1265, %v1261
        %v1722 = vpack.c.b16 %v1266, %v1262
        %v1723 = vpack.c.b16 %v1271, %v1267
        %v1724 = vpack.c.b16 %v1272, %v1268
        %v1725 = vpack.c.b16 %v1273, %v1269
        %v1726 = vpack.c.b16 %v1274, %v1270
        %v1727 = vpack.c.b16 %v1279, %v1275
        %v1728 = vpack.c.b16 %v1280, %v1276
        %v1729 = vpack.c.b16 %v1281, %v1277
        %v1730 = vpack.c.b16 %v1282, %v1278
        %v1731 = vpack.c.b16 %v1287, %v1283
        %v1732 = vpack.c.b16 %v1288, %v1284
        %v1733 = vpack.c.b16 %v1289, %v1285
        %v1734 = vpack.c.b16 %v1290, %v1286
        %v1735 = vpack.c.b16 %v1295, %v1291
        %v1736 = vpack.c.b16 %v1296, %v1292
        %v1737 = vpack.c.b16 %v1297, %v1293
        %v1738 = vpack.c.b16 %v1298, %v1294
        %v1739 = vpack.c.b16 %v1303, %v1299
        %v1740 = vpack.c.b16 %v1304, %v1300
        %v1741 = vpack.c.b16 %v1305, %v1301
        %v1742 = vpack.c.b16 %v1306, %v1302
        %v1743 = vpack.c.b16 %v1311, %v1307
        %v1744 = vpack.c.b16 %v1312, %v1308
        %v1745 = vpack.c.b16 %v1313, %v1309
        %v1746 = vpack.c.b16 %v1314, %v1310
        %v1747 = vpack.c.b16 %v1319, %v1315
        %v1748 = vpack.c.b16 %v1320, %v1316
        %v1749 = vpack.c.b16 %v1321, %v1317
        %v1750 = vpack.c.b16 %v1322, %v1318
        %v1751 = vpack.c.b16 %v1327, %v1323
        %v1752 = vpack.c.b16 %v1328, %v1324
        %v1753 = vpack.c.b16 %v1329, %v1325
        %v1754 = vpack.c.b16 %v1330, %v1326
        %v1755 = vpack.c.b16 %v1335, %v1331
        %v1756 = vpack.c.b16 %v1336, %v1332
        %v1757 = vpack.c.b16 %v1337, %v1333
        %v1758 = vpack.c.b16 %v1338, %v1334
        %v1759 = vpack.c.b16 %v1343, %v1339
        %v1760 = vpack.c.b16 %v1344, %v1340
        %v1761 = vpack.c.b16 %v1345, %v1341
        %v1762 = vpack.c.b16 %v1346, %v1342
        %v1763 = vpack.c.b16 %v1351, %v1347
        %v1764 = vpack.c.b16 %v1352, %v1348
        %v1765 = vpack.c.b16 %v1353, %v1349
        %v1766 = vpack.c.b16 %v1354, %v1350
        %v1767 = vpack.c.b16 %v1359, %v1355
        %v1768 = vpack.c.b16 %v1360, %v1356
        %v1769 = vpack.c.b16 %v1361, %v1357
        %v1770 = vpack.c.b16 %v1362, %v1358
        %v1771 = vpack.c.b16 %v1367, %v1363
        %v1772 = vpack.c.b16 %v1368, %v1364
        %v1773 = vpack.c.b16 %v1369, %v1365
        %v1774 = vpack.c.b16 %v1370, %v1366
        %v1775 = vpack.c.b16 %v1375, %v1371
        %v1776 = vpack.c.b16 %v1376, %v1372
        %v1777 = vpack.c.b16 %v1377, %v1373
        %v1778 = vpack.c.b16 %v1378, %v1374
        %v1779 = vpack.c.b16 %v1383, %v1379
        %v1780 = vpack.c.b16 %v1384, %v1380
        %v1781 = vpack.c.b16 %v1385, %v1381
        %v1782 = vpack.c.b16 %v1386, %v1382
        %v1783 = vpack.c.b16 %v1391, %v1387
        %v1784 = vpack.c.b16 %v1392, %v1388
        %v1785 = vpack.c.b16 %v1393, %v1389
        %v1786 = vpack.c.b16 %v1394, %v1390
        %v1787 = vpack.c.b16 %v1399, %v1395
        %v1788 = vpack.c.b16 %v1400, %v1396
        %v1789 = vpack.c.b16 %v1401, %v1397
        %v1790 = vpack.c.b16 %v1402, %v1398
        %v1791 = vpack.c.b16 %v1407, %v1403
        %v1792 = vpack.c.b16 %v1408, %v1404
        %v1793 = vpack.c.b16 %v1409, %v1405
        %v1794 = vpack.c.b16 %v1410, %v1406
        %v1795 = vpack.c.b16 %v1415, %v1411
        %v1796 = vpack.c.b16 %v1416, %v1412
        %v1797 = vpack.c.b16 %v1417, %v1413
        %v1798 = vpack.c.b16 %v1418, %v1414
        %v1799 = vpack.c.b16 %v1423, %v1419
        %v1800 = vpack.c.b16 %v1424, %v1420
        %v1801 = vpack.c.b16 %v1425, %v1421
        %v1802 = vpack.c.b16 %v1426, %v1422
        %v1803 = vpack.c.b16 %v1431, %v1427
        %v1804 = vpack.c.b16 %v1432, %v1428
        %v1805 = vpack.c.b16 %v1433, %v1429
        %v1806 = vpack.c.b16 %v1434, %v1430
        %v1807 = vpack.c.b16 %v1439, %v1435
        %v1808 = vpack.c.b16 %v1440, %v1436
        %v1809 = vpack.c.b16 %v1441, %v1437
        %v1810 = vpack.c.b16 %v1442, %v1438
        %v1811 = vpack.c.b16 %v1447, %v1443
        %v1812 = vpack.c.b16 %v1448, %v1444
        %v1813 = vpack.c.b16 %v1449, %v1445
        %v1814 = vpack.c.b16 %v1450, %v1446
        %v1815 = vpack.c.b16 %v1455, %v1451
        %v1816 = vpack.c.b16 %v1456, %v1452
        %v1817 = vpack.c.b16 %v1457, %v1453
        %v1818 = vpack.c.b16 %v1458, %v1454
        %v1819 = vpack.c.b16 %v1463, %v1459
        %v1820 = vpack.c.b16 %v1464, %v1460
        %v1821 = vpack.c.b16 %v1465, %v1461
        %v1822 = vpack.c.b16 %v1466, %v1462
        %v1823 = vpack.c.b16 %v1471, %v1467
        %v1824 = vpack.c.b16 %v1472, %v1468
        %v1825 = vpack.c.b16 %v1473, %v1469
        %v1826 = vpack.c.b16 %v1474, %v1470
        %v1827 = vpack.c.b16 %v1479, %v1475
        %v1828 = vpack.c.b16 %v1480, %v1476
        %v1829 = vpack.c.b16 %v1481, %v1477
        %v1830 = vpack.c.b16 %v1482, %v1478
        %v1831 = vpack.c.b16 %v1487, %v1483
        %v1832 = vpack.c.b16 %v1488, %v1484
        %v1833 = vpack.c.b16 %v1489, %v1485
        %v1834 = vpack.c.b16 %v1490, %v1486
        %v1835 = vpack.c.b16 %v1495, %v1491
        %v1836 = vpack.c.b16 %v1496, %v1492
        %v1837 = vpack.c.b16 %v1497, %v1493
        %v1838 = vpack.c.b16 %v1498, %v1494
        %v1839 = vpack.c.b16 %v1503, %v1499
        %v1840 = vpack.c.b16 %v1504, %v1500
        %v1841 = vpack.c.b16 %v1505, %v1501
        %v1842 = vpack.c.b16 %v1506, %v1502
        %v1843 = vpack.c.b16 %v1511, %v1507
        %v1844 = vpack.c.b16 %v1512, %v1508
        %v1845 = vpack.c.b16 %v1513, %v1509
        %v1846 = vpack.c.b16 %v1514, %v1510
        %v1847 = vpack.c.b16 %v1519, %v1515
        %v1848 = vpack.c.b16 %v1520, %v1516
        %v1849 = vpack.c.b16 %v1521, %v1517
        %v1850 = vpack.c.b16 %v1522, %v1518
        %v1851 = vpack.c.b16 %v1527, %v1523
        %v1852 = vpack.c.b16 %v1528, %v1524
        %v1853 = vpack.c.b16 %v1529, %v1525
        %v1854 = vpack.c.b16 %v1530, %v1526
        %v1855 = vpack.c.b16 %v1535, %v1531
        %v1856 = vpack.c.b16 %v1536, %v1532
        %v1857 = vpack.c.b16 %v1537, %v1533
        %v1858 = vpack.c.b16 %v1538, %v1534
        %v1859 = vpack.c.b16 %v1543, %v1539
        %v1860 = vpack.c.b16 %v1544, %v1540
        %v1861 = vpack.c.b16 %v1545, %v1541
        %v1862 = vpack.c.b16 %v1546, %v1542
        %v1863 = vpack.c.b16 %v1551, %v1547
        %v1864 = vpack.c.b16 %v1552, %v1548
        %v1865 = vpack.c.b16 %v1553, %v1549
        %v1866 = vpack.c.b16 %v1554, %v1550
        %v1867 = vpack.c.b16 %v1559, %v1555
        %v1868 = vpack.c.b16 %v1560, %v1556
        %v1869 = vpack.c.b16 %v1561, %v1557
        %v1870 = vpack.c.b16 %v1562, %v1558
        %v1871 = vpack.c.b16 %v1567, %v1563
        %v1872 = vpack.c.b16 %v1568, %v1564
        %v1873 = vpack.c.b16 %v1569, %v1565
        %v1874 = vpack.c.b16 %v1570, %v1566
        %v1875 = vpack.c.b16 %v1575, %v1571
        %v1876 = vpack.c.b16 %v1576, %v1572
        %v1877 = vpack.c.b16 %v1577, %v1573
        %v1878 = vpack.c.b16 %v1578, %v1574
        %v1879 = vpack.c.b16 %v1583, %v1579
        %v1880 = vpack.c.b16 %v1584, %v1580
        %v1881 = vpack.c.b16 %v1585, %v1581
        %v1882 = vpack.c.b16 %v1586, %v1582
        %v1883 = vpack.c.b16 %v1591, %v1587
        %v1884 = vpack.c.b16 %v1592, %v1588
        %v1885 = vpack.c.b16 %v1593, %v1589
        %v1886 = vpack.c.b16 %v1594, %v1590
        %v1887 = vpack.c.b16 %v1599, %v1595
        %v1888 = vpack.c.b16 %v1600, %v1596
        %v1889 = vpack.c.b16 %v1601, %v1597
        %v1890 = vpack.c.b16 %v1602, %v1598
        %v1891 = vpack.c.b16 %v1607, %v1603
        %v1892 = vpack.c.b16 %v1608, %v1604
        %v1893 = vpack.c.b16 %v1609, %v1605
        %v1894 = vpack.c.b16 %v1610, %v1606
        %v1895 = vpack.c.b16 %v1615, %v1611
        %v1896 = vpack.c.b16 %v1616, %v1612
        %v1897 = vpack.c.b16 %v1617, %v1613
        %v1898 = vpack.c.b16 %v1618, %v1614
        %v1899 = vpack.c.b16 %v1623, %v1619
        %v1900 = vpack.c.b16 %v1624, %v1620
        %v1901 = vpack.c.b16 %v1625, %v1621
        %v1902 = vpack.c.b16 %v1626, %v1622
        %v1903 = vpack.c.b16 %v1631, %v1627
        %v1904 = vpack.c.b16 %v1632, %v1628
        %v1905 = vpack.c.b16 %v1633, %v1629
        %v1906 = vpack.c.b16 %v1634, %v1630
        %v1907 = vpack.c.b16 %v1639, %v1635
        %v1908 = vpack.c.b16 %v1640, %v1636
        %v1909 = vpack.c.b16 %v1641, %v1637
        %v1910 = vpack.c.b16 %v1642, %v1638
        %v1911 = vpack.c.b16 %v1647, %v1643
        %v1912 = vpack.c.b16 %v1648, %v1644
        %v1913 = vpack.c.b16 %v1649, %v1645
        %v1914 = vpack.c.b16 %v1650, %v1646
        %v1915 = vpack.c.b16 %v1655, %v1651
        %v1916 = vpack.c.b16 %v1656, %v1652
        %v1917 = vpack.c.b16 %v1657, %v1653
        %v1918 = vpack.c.b16 %v1658, %v1654
        %v1919 = vpack.c.b16 %v1663, %v1659
        %v1920 = vpack.c.b16 %v1664, %v1660
        %v1921 = vpack.c.b16 %v1665, %v1661
        %v1922 = vpack.c.b16 %v1666, %v1662
        %2179 = vmatprep.subr.bf16.mxu0 %v1668
        %2180 = vmatpush1.bf16.msra.mxu0 %v1667
        %2181 = vmatprep.subr.bf16.mxu0 %v1672
        %2182 = vmatpush1.bf16.msra.mxu0 %v1671
        %2183 = vmatprep.subr.bf16.mxu0 %v1676
        %2184 = vmatpush1.bf16.msra.mxu0 %v1675
        %2185 = vmatprep.subr.bf16.mxu0 %v1680
        %2186 = vmatpush1.bf16.msra.mxu0 %v1679
        %2187 = vmatprep.subr.bf16.mxu0 %v1684
        %2188 = vmatpush1.bf16.msra.mxu0 %v1683
        %2189 = vmatprep.subr.bf16.mxu0 %v1688
        %2190 = vmatpush1.bf16.msra.mxu0 %v1687
        %2191 = vmatprep.subr.bf16.mxu0 %v1692
        %2192 = vmatpush1.bf16.msra.mxu0 %v1691
        %2193 = vmatprep.subr.bf16.mxu0 %v1696
        %2194 = vmatpush1.bf16.msra.mxu0 %v1695
        %2195 = vmatprep.subr.bf16.mxu0 %v1700
        %2196 = vmatpush1.bf16.msra.mxu0 %v1699
        %2197 = vmatprep.subr.bf16.mxu0 %v1704
        %2198 = vmatpush1.bf16.msra.mxu0 %v1703
        %2199 = vmatprep.subr.bf16.mxu0 %v1708
        %2200 = vmatpush1.bf16.msra.mxu0 %v1707
        %2201 = vmatprep.subr.bf16.mxu0 %v1712
        %2202 = vmatpush1.bf16.msra.mxu0 %v1711
        %2203 = vmatprep.subr.bf16.mxu0 %v1716
        %2204 = vmatpush1.bf16.msra.mxu0 %v1715
        %2205 = vmatprep.subr.bf16.mxu0 %v1720
        %2206 = vmatpush1.bf16.msra.mxu0 %v1719
        %2207 = vmatprep.subr.bf16.mxu0 %v1724
        %2208 = vmatpush1.bf16.msra.mxu0 %v1723
        %2209 = vmatprep.subr.bf16.mxu0 %v1728
        %2210 = vmatpush1.bf16.msra.mxu0 %v1727
        %2211 = vmatprep.mubr.bf16.mxu0 %v848
        %2212 = vmatmul.mubr.bf16.gmra.mrb[0].mxu0 %v841
        %v2213 = vpop.f32.mrb[0].mxu0
        %v2214 = vadd.f32 0.0, %v2213
        %v2215 = vpop.f32.mrb[0].mxu0
        %v2216 = vadd.f32 0.0, %v2215
        %v2217 = vpop.f32.mrb[0].mxu0
        %v2218 = vpop.f32.mrb[0].mxu0
        %2219 = vdwg.mxu0
        %2220 = vmatprep.subr.bf16.mxu0 %v1732
        %2221 = vmatpush1.bf16.msra.mxu0 %v1731
        %2222 = vmatprep.subr.bf16.mxu0 %v1736
        %2223 = vmatpush1.bf16.msra.mxu0 %v1735
        %2224 = vmatprep.subr.bf16.mxu0 %v1740
        %2225 = vmatpush1.bf16.msra.mxu0 %v1739
        %2226 = vmatprep.subr.bf16.mxu0 %v1744
        %2227 = vmatpush1.bf16.msra.mxu0 %v1743
        %2228 = vmatprep.subr.bf16.mxu0 %v1748
        %2229 = vmatpush1.bf16.msra.mxu0 %v1747
        %2230 = vmatprep.subr.bf16.mxu0 %v1752
        %2231 = vmatpush1.bf16.msra.mxu0 %v1751
        %2232 = vmatprep.subr.bf16.mxu0 %v1756
        %2233 = vmatpush1.bf16.msra.mxu0 %v1755
        %2234 = vmatprep.subr.bf16.mxu0 %v1760
        %2235 = vmatpush1.bf16.msra.mxu0 %v1759
        %2236 = vmatprep.subr.bf16.mxu0 %v1764
        %2237 = vmatpush1.bf16.msra.mxu0 %v1763
        %2238 = vmatprep.subr.bf16.mxu0 %v1768
        %2239 = vmatpush1.bf16.msra.mxu0 %v1767
        %2240 = vmatprep.subr.bf16.mxu0 %v1772
        %2241 = vmatpush1.bf16.msra.mxu0 %v1771
        %2242 = vmatprep.subr.bf16.mxu0 %v1776
        %2243 = vmatpush1.bf16.msra.mxu0 %v1775
        %2244 = vmatprep.subr.bf16.mxu0 %v1780
        %2245 = vmatpush1.bf16.msra.mxu0 %v1779
        %2246 = vmatprep.subr.bf16.mxu0 %v1784
        %2247 = vmatpush1.bf16.msra.mxu0 %v1783
        %2248 = vmatprep.subr.bf16.mxu0 %v1788
        %2249 = vmatpush1.bf16.msra.mxu0 %v1787
        %2250 = vmatprep.subr.bf16.mxu0 %v1792
        %2251 = vmatpush1.bf16.msra.mxu0 %v1791
        %2252 = vmatprep.mubr.bf16.mxu0 %v862
        %2253 = vmatmul.mubr.bf16.gmra.mrb[0].mxu0 %v855
        %v2254 = vpop.f32.mrb[0].mxu0
        %v2255 = vadd.f32 %v2214, %v2254
        %v2256 = vpop.f32.mrb[0].mxu0
        %v2257 = vadd.f32 %v2216, %v2256
        %v2258 = vpop.f32.mrb[0].mxu0
        %v2259 = vpop.f32.mrb[0].mxu0
        %2260 = vdwg.mxu0
        %2261 = vmatprep.subr.bf16.mxu0 %v1796
        %2262 = vmatpush1.bf16.msra.mxu0 %v1795
        %2263 = vmatprep.subr.bf16.mxu0 %v1800
        %2264 = vmatpush1.bf16.msra.mxu0 %v1799
        %2265 = vmatprep.subr.bf16.mxu0 %v1804
        %2266 = vmatpush1.bf16.msra.mxu0 %v1803
        %2267 = vmatprep.subr.bf16.mxu0 %v1808
        %2268 = vmatpush1.bf16.msra.mxu0 %v1807
        %2269 = vmatprep.subr.bf16.mxu0 %v1812
        %2270 = vmatpush1.bf16.msra.mxu0 %v1811
        %2271 = vmatprep.subr.bf16.mxu0 %v1816
        %2272 = vmatpush1.bf16.msra.mxu0 %v1815
        %2273 = vmatprep.subr.bf16.mxu0 %v1820
        %2274 = vmatpush1.bf16.msra.mxu0 %v1819
        %2275 = vmatprep.subr.bf16.mxu0 %v1824
        %2276 = vmatpush1.bf16.msra.mxu0 %v1823
        %2277 = vmatprep.subr.bf16.mxu0 %v1828
        %2278 = vmatpush1.bf16.msra.mxu0 %v1827
        %2279 = vmatprep.subr.bf16.mxu0 %v1832
        %2280 = vmatpush1.bf16.msra.mxu0 %v1831
        %2281 = vmatprep.subr.bf16.mxu0 %v1836
        %2282 = vmatpush1.bf16.msra.mxu0 %v1835
        %2283 = vmatprep.subr.bf16.mxu0 %v1840
        %2284 = vmatpush1.bf16.msra.mxu0 %v1839
        %2285 = vmatprep.subr.bf16.mxu0 %v1844
        %2286 = vmatpush1.bf16.msra.mxu0 %v1843
        %2287 = vmatprep.subr.bf16.mxu0 %v1848
        %2288 = vmatpush1.bf16.msra.mxu0 %v1847
        %2289 = vmatprep.subr.bf16.mxu0 %v1852
        %2290 = vmatpush1.bf16.msra.mxu0 %v1851
        %2291 = vmatprep.subr.bf16.mxu0 %v1856
        %2292 = vmatpush1.bf16.msra.mxu0 %v1855
        %2293 = vmatprep.mubr.bf16.mxu0 %v876
        %2294 = vmatmul.mubr.bf16.gmra.mrb[0].mxu0 %v869
        %v2295 = vpop.f32.mrb[0].mxu0
        %v2296 = vadd.f32 %v2255, %v2295
        %v2297 = vpop.f32.mrb[0].mxu0
        %v2298 = vadd.f32 %v2257, %v2297
        %v2299 = vpop.f32.mrb[0].mxu0
        %v2300 = vpop.f32.mrb[0].mxu0
        %2301 = vdwg.mxu0
        %2302 = vmatprep.subr.bf16.mxu0 %v1860
        %2303 = vmatpush1.bf16.msra.mxu0 %v1859
        %2304 = vmatprep.subr.bf16.mxu0 %v1864
        %2305 = vmatpush1.bf16.msra.mxu0 %v1863
        %2306 = vmatprep.subr.bf16.mxu0 %v1868
        %2307 = vmatpush1.bf16.msra.mxu0 %v1867
        %2308 = vmatprep.subr.bf16.mxu0 %v1872
        %2309 = vmatpush1.bf16.msra.mxu0 %v1871
        %2310 = vmatprep.subr.bf16.mxu0 %v1876
        %2311 = vmatpush1.bf16.msra.mxu0 %v1875
        %2312 = vmatprep.subr.bf16.mxu0 %v1880
        %2313 = vmatpush1.bf16.msra.mxu0 %v1879
        %2314 = vmatprep.subr.bf16.mxu0 %v1884
        %2315 = vmatpush1.bf16.msra.mxu0 %v1883
        %2316 = vmatprep.subr.bf16.mxu0 %v1888
        %2317 = vmatpush1.bf16.msra.mxu0 %v1887
        %2318 = vmatprep.subr.bf16.mxu0 %v1892
        %2319 = vmatpush1.bf16.msra.mxu0 %v1891
        %2320 = vmatprep.subr.bf16.mxu0 %v1896
        %2321 = vmatpush1.bf16.msra.mxu0 %v1895
        %2322 = vmatprep.subr.bf16.mxu0 %v1900
        %2323 = vmatpush1.bf16.msra.mxu0 %v1899
        %2324 = vmatprep.subr.bf16.mxu0 %v1904
        %2325 = vmatpush1.bf16.msra.mxu0 %v1903
        %2326 = vmatprep.subr.bf16.mxu0 %v1908
        %2327 = vmatpush1.bf16.msra.mxu0 %v1907
        %2328 = vmatprep.subr.bf16.mxu0 %v1912
        %2329 = vmatpush1.bf16.msra.mxu0 %v1911
        %2330 = vmatprep.subr.bf16.mxu0 %v1916
        %2331 = vmatpush1.bf16.msra.mxu0 %v1915
        %2332 = vmatprep.subr.bf16.mxu0 %v1920
        %2333 = vmatpush1.bf16.msra.mxu0 %v1919
        %2334 = vmatprep.mubr.bf16.mxu0 %v890
        %2335 = vmatmul.mubr.bf16.gmra.mrb[0].mxu0 %v883
        %v2336 = vpop.f32.mrb[0].mxu0
        %v2337 = vadd.f32 %v2296, %v2336
        %v2338 = vpop.f32.mrb[0].mxu0
        %v2339 = vadd.f32 %v2298, %v2338
        %v2340 = vpop.f32.mrb[0].mxu0
        %v2341 = vpop.f32.mrb[0].mxu0
        %2342 = vdwg.mxu0
        %2343 = vmatprep.subr.bf16.mxu0 %v1670
        %2344 = vmatpush1.bf16.msra.mxu0 %v1669
        %2345 = vmatprep.subr.bf16.mxu0 %v1674
        %2346 = vmatpush1.bf16.msra.mxu0 %v1673
        %2347 = vmatprep.subr.bf16.mxu0 %v1678
        %2348 = vmatpush1.bf16.msra.mxu0 %v1677
        %2349 = vmatprep.subr.bf16.mxu0 %v1682
        %2350 = vmatpush1.bf16.msra.mxu0 %v1681
        %2351 = vmatprep.subr.bf16.mxu0 %v1686
        %2352 = vmatpush1.bf16.msra.mxu0 %v1685
        %2353 = vmatprep.subr.bf16.mxu0 %v1690
        %2354 = vmatpush1.bf16.msra.mxu0 %v1689
        %2355 = vmatprep.subr.bf16.mxu0 %v1694
        %2356 = vmatpush1.bf16.msra.mxu0 %v1693
        %2357 = vmatprep.subr.bf16.mxu0 %v1698
        %2358 = vmatpush1.bf16.msra.mxu0 %v1697
        %2359 = vmatprep.subr.bf16.mxu0 %v1702
        %2360 = vmatpush1.bf16.msra.mxu0 %v1701
        %2361 = vmatprep.subr.bf16.mxu0 %v1706
        %2362 = vmatpush1.bf16.msra.mxu0 %v1705
        %2363 = vmatprep.subr.bf16.mxu0 %v1710
        %2364 = vmatpush1.bf16.msra.mxu0 %v1709
        %2365 = vmatprep.subr.bf16.mxu0 %v1714
        %2366 = vmatpush1.bf16.msra.mxu0 %v1713
        %2367 = vmatprep.subr.bf16.mxu0 %v1718
        %2368 = vmatpush1.bf16.msra.mxu0 %v1717
        %2369 = vmatprep.subr.bf16.mxu0 %v1722
        %2370 = vmatpush1.bf16.msra.mxu0 %v1721
        %2371 = vmatprep.subr.bf16.mxu0 %v1726
        %2372 = vmatpush1.bf16.msra.mxu0 %v1725
        %2373 = vmatprep.subr.bf16.mxu0 %v1730
        %2374 = vmatpush1.bf16.msra.mxu0 %v1729
        %2375 = vmatprep.mubr.bf16.mxu0 %v848
        %2376 = vmatmul.mubr.bf16.gmra.mrb[0].mxu0 %v841
        %v2377 = vpop.f32.mrb[0].mxu0
        %v2378 = vadd.f32 0.0, %v2377
        %v2379 = vpop.f32.mrb[0].mxu0
        %v2380 = vadd.f32 0.0, %v2379
        %v2381 = vpop.f32.mrb[0].mxu0
        %v2382 = vpop.f32.mrb[0].mxu0
        %2383 = vdwg.mxu0
        %2384 = vmatprep.subr.bf16.mxu0 %v1734
        %2385 = vmatpush1.bf16.msra.mxu0 %v1733
        %2386 = vmatprep.subr.bf16.mxu0 %v1738
        %2387 = vmatpush1.bf16.msra.mxu0 %v1737
        %2388 = vmatprep.subr.bf16.mxu0 %v1742
        %2389 = vmatpush1.bf16.msra.mxu0 %v1741
        %2390 = vmatprep.subr.bf16.mxu0 %v1746
        %2391 = vmatpush1.bf16.msra.mxu0 %v1745
        %2392 = vmatprep.subr.bf16.mxu0 %v1750
        %2393 = vmatpush1.bf16.msra.mxu0 %v1749
        %2394 = vmatprep.subr.bf16.mxu0 %v1754
        %2395 = vmatpush1.bf16.msra.mxu0 %v1753
        %2396 = vmatprep.subr.bf16.mxu0 %v1758
        %2397 = vmatpush1.bf16.msra.mxu0 %v1757
        %2398 = vmatprep.subr.bf16.mxu0 %v1762
        %2399 = vmatpush1.bf16.msra.mxu0 %v1761
        %2400 = vmatprep.subr.bf16.mxu0 %v1766
        %2401 = vmatpush1.bf16.msra.mxu0 %v1765
        %2402 = vmatprep.subr.bf16.mxu0 %v1770
        %2403 = vmatpush1.bf16.msra.mxu0 %v1769
        %2404 = vmatprep.subr.bf16.mxu0 %v1774
        %2405 = vmatpush1.bf16.msra.mxu0 %v1773
        %2406 = vmatprep.subr.bf16.mxu0 %v1778
        %2407 = vmatpush1.bf16.msra.mxu0 %v1777
        %2408 = vmatprep.subr.bf16.mxu0 %v1782
        %2409 = vmatpush1.bf16.msra.mxu0 %v1781
        %2410 = vmatprep.subr.bf16.mxu0 %v1786
        %2411 = vmatpush1.bf16.msra.mxu0 %v1785
        %2412 = vmatprep.subr.bf16.mxu0 %v1790
        %2413 = vmatpush1.bf16.msra.mxu0 %v1789
        %2414 = vmatprep.subr.bf16.mxu0 %v1794
        %2415 = vmatpush1.bf16.msra.mxu0 %v1793
        %2416 = vmatprep.mubr.bf16.mxu0 %v862
        %2417 = vmatmul.mubr.bf16.gmra.mrb[0].mxu0 %v855
        %v2418 = vpop.f32.mrb[0].mxu0
        %v2419 = vadd.f32 %v2378, %v2418
        %v2420 = vpop.f32.mrb[0].mxu0
        %v2421 = vadd.f32 %v2380, %v2420
        %v2422 = vpop.f32.mrb[0].mxu0
        %v2423 = vpop.f32.mrb[0].mxu0
        %2424 = vdwg.mxu0
        %2425 = vmatprep.subr.bf16.mxu0 %v1798
        %2426 = vmatpush1.bf16.msra.mxu0 %v1797
        %2427 = vmatprep.subr.bf16.mxu0 %v1802
        %2428 = vmatpush1.bf16.msra.mxu0 %v1801
        %2429 = vmatprep.subr.bf16.mxu0 %v1806
        %2430 = vmatpush1.bf16.msra.mxu0 %v1805
        %2431 = vmatprep.subr.bf16.mxu0 %v1810
        %2432 = vmatpush1.bf16.msra.mxu0 %v1809
        %2433 = vmatprep.subr.bf16.mxu0 %v1814
        %2434 = vmatpush1.bf16.msra.mxu0 %v1813
        %2435 = vmatprep.subr.bf16.mxu0 %v1818
        %2436 = vmatpush1.bf16.msra.mxu0 %v1817
        %2437 = vmatprep.subr.bf16.mxu0 %v1822
        %2438 = vmatpush1.bf16.msra.mxu0 %v1821
        %2439 = vmatprep.subr.bf16.mxu0 %v1826
        %2440 = vmatpush1.bf16.msra.mxu0 %v1825
        %2441 = vmatprep.subr.bf16.mxu0 %v1830
        %2442 = vmatpush1.bf16.msra.mxu0 %v1829
        %2443 = vmatprep.subr.bf16.mxu0 %v1834
        %2444 = vmatpush1.bf16.msra.mxu0 %v1833
        %2445 = vmatprep.subr.bf16.mxu0 %v1838
        %2446 = vmatpush1.bf16.msra.mxu0 %v1837
        %2447 = vmatprep.subr.bf16.mxu0 %v1842
        %2448 = vmatpush1.bf16.msra.mxu0 %v1841
        %2449 = vmatprep.subr.bf16.mxu0 %v1846
        %2450 = vmatpush1.bf16.msra.mxu0 %v1845
        %2451 = vmatprep.subr.bf16.mxu0 %v1850
        %2452 = vmatpush1.bf16.msra.mxu0 %v1849
        %2453 = vmatprep.subr.bf16.mxu0 %v1854
        %2454 = vmatpush1.bf16.msra.mxu0 %v1853
        %2455 = vmatprep.subr.bf16.mxu0 %v1858
        %2456 = vmatpush1.bf16.msra.mxu0 %v1857
        %2457 = vmatprep.mubr.bf16.mxu0 %v876
        %2458 = vmatmul.mubr.bf16.gmra.mrb[0].mxu0 %v869
        %v2459 = vpop.f32.mrb[0].mxu0
        %v2460 = vadd.f32 %v2419, %v2459
        %v2461 = vpop.f32.mrb[0].mxu0
        %v2462 = vadd.f32 %v2421, %v2461
        %v2463 = vpop.f32.mrb[0].mxu0
        %v2464 = vpop.f32.mrb[0].mxu0
        %2465 = vdwg.mxu0
        %2466 = vmatprep.subr.bf16.mxu0 %v1862
        %2467 = vmatpush1.bf16.msra.mxu0 %v1861
        %2468 = vmatprep.subr.bf16.mxu0 %v1866
        %2469 = vmatpush1.bf16.msra.mxu0 %v1865
        %2470 = vmatprep.subr.bf16.mxu0 %v1870
        %2471 = vmatpush1.bf16.msra.mxu0 %v1869
        %2472 = vmatprep.subr.bf16.mxu0 %v1874
        %2473 = vmatpush1.bf16.msra.mxu0 %v1873
        %2474 = vmatprep.subr.bf16.mxu0 %v1878
        %2475 = vmatpush1.bf16.msra.mxu0 %v1877
        %2476 = vmatprep.subr.bf16.mxu0 %v1882
        %2477 = vmatpush1.bf16.msra.mxu0 %v1881
        %2478 = vmatprep.subr.bf16.mxu0 %v1886
        %2479 = vmatpush1.bf16.msra.mxu0 %v1885
        %2480 = vmatprep.subr.bf16.mxu0 %v1890
        %2481 = vmatpush1.bf16.msra.mxu0 %v1889
        %2482 = vmatprep.subr.bf16.mxu0 %v1894
        %2483 = vmatpush1.bf16.msra.mxu0 %v1893
        %2484 = vmatprep.subr.bf16.mxu0 %v1898
        %2485 = vmatpush1.bf16.msra.mxu0 %v1897
        %2486 = vmatprep.subr.bf16.mxu0 %v1902
        %2487 = vmatpush1.bf16.msra.mxu0 %v1901
        %2488 = vmatprep.subr.bf16.mxu0 %v1906
        %2489 = vmatpush1.bf16.msra.mxu0 %v1905
        %2490 = vmatprep.subr.bf16.mxu0 %v1910
        %2491 = vmatpush1.bf16.msra.mxu0 %v1909
        %2492 = vmatprep.subr.bf16.mxu0 %v1914
        %2493 = vmatpush1.bf16.msra.mxu0 %v1913
        %2494 = vmatprep.subr.bf16.mxu0 %v1918
        %2495 = vmatpush1.bf16.msra.mxu0 %v1917
        %2496 = vmatprep.subr.bf16.mxu0 %v1922
        %2497 = vmatpush1.bf16.msra.mxu0 %v1921
        %2498 = vmatprep.mubr.bf16.mxu0 %v890
        %2499 = vmatmul.mubr.bf16.gmra.mrb[0].mxu0 %v883
        %v2500 = vpop.f32.mrb[0].mxu0
        %v2501 = vadd.f32 %v2460, %v2500
        %v2502 = vpop.f32.mrb[0].mxu0
        %v2503 = vadd.f32 %v2462, %v2502
        %v2504 = vpop.f32.mrb[0].mxu0
        %v2505 = vpop.f32.mrb[0].mxu0
        %2506 = vdwg.mxu0
        %v2511 = vunpack.c.l.b16 %v294
        %v2512 = vunpack.c.h.b16 %v294
        %v2513 = vunpack.c.l.b16 %v295
        %v2514 = vunpack.c.h.b16 %v295
        %v2515 = vunpack.c.l.b16 %v296
        %v2516 = vunpack.c.h.b16 %v296
        %v2517 = vunpack.c.l.b16 %v297
        %v2518 = vunpack.c.h.b16 %v297
        %v2519 = vpack.c.b16 %v2511, %v2511
        %v2520 = vpack.c.b16 %v2512, %v2512
        %v2521 = vpack.c.b16 %v2513, %v2513
        %v2522 = vpack.c.b16 %v2514, %v2514
        %v2523 = vpack.c.b16 %v2515, %v2515
        %v2524 = vpack.c.b16 %v2516, %v2516
        %v2525 = vpack.c.b16 %v2517, %v2517
        %v2526 = vpack.c.b16 %v2518, %v2518
        %v2791 = vunpack.c.l.b16 %v298
        %v2792 = vunpack.c.h.b16 %v298
        %v2793 = vunpack.c.l.b16 %v299
        %v2794 = vunpack.c.h.b16 %v299
        %v2795 = vunpack.c.l.b16 %v300
        %v2796 = vunpack.c.h.b16 %v300
        %v2797 = vunpack.c.l.b16 %v301
        %v2798 = vunpack.c.h.b16 %v301
        %v2799 = vunpack.c.l.b16 %v302
        %v2800 = vunpack.c.h.b16 %v302
        %v2801 = vunpack.c.l.b16 %v303
        %v2802 = vunpack.c.h.b16 %v303
        %v2803 = vunpack.c.l.b16 %v304
        %v2804 = vunpack.c.h.b16 %v304
        %v2805 = vunpack.c.l.b16 %v305
        %v2806 = vunpack.c.h.b16 %v305
        %v2807 = vunpack.c.l.b16 %v306
        %v2808 = vunpack.c.h.b16 %v306
        %v2809 = vunpack.c.l.b16 %v307
        %v2810 = vunpack.c.h.b16 %v307
        %v2811 = vunpack.c.l.b16 %v308
        %v2812 = vunpack.c.h.b16 %v308
        %v2813 = vunpack.c.l.b16 %v309
        %v2814 = vunpack.c.h.b16 %v309
        %v2815 = vunpack.c.l.b16 %v310
        %v2816 = vunpack.c.h.b16 %v310
        %v2817 = vunpack.c.l.b16 %v311
        %v2818 = vunpack.c.h.b16 %v311
        %v2819 = vunpack.c.l.b16 %v312
        %v2820 = vunpack.c.h.b16 %v312
        %v2821 = vunpack.c.l.b16 %v313
        %v2822 = vunpack.c.h.b16 %v313
        %v2823 = vunpack.c.l.b16 %v314
        %v2824 = vunpack.c.h.b16 %v314
        %v2825 = vunpack.c.l.b16 %v315
        %v2826 = vunpack.c.h.b16 %v315
        %v2827 = vunpack.c.l.b16 %v316
        %v2828 = vunpack.c.h.b16 %v316
        %v2829 = vunpack.c.l.b16 %v317
        %v2830 = vunpack.c.h.b16 %v317
        %v2831 = vunpack.c.l.b16 %v318
        %v2832 = vunpack.c.h.b16 %v318
        %v2833 = vunpack.c.l.b16 %v319
        %v2834 = vunpack.c.h.b16 %v319
        %v2835 = vunpack.c.l.b16 %v320
        %v2836 = vunpack.c.h.b16 %v320
        %v2837 = vunpack.c.l.b16 %v321
        %v2838 = vunpack.c.h.b16 %v321
        %v2839 = vunpack.c.l.b16 %v322
        %v2840 = vunpack.c.h.b16 %v322
        %v2841 = vunpack.c.l.b16 %v323
        %v2842 = vunpack.c.h.b16 %v323
        %v2843 = vunpack.c.l.b16 %v324
        %v2844 = vunpack.c.h.b16 %v324
        %v2845 = vunpack.c.l.b16 %v325
        %v2846 = vunpack.c.h.b16 %v325
        %v2847 = vunpack.c.l.b16 %v326
        %v2848 = vunpack.c.h.b16 %v326
        %v2849 = vunpack.c.l.b16 %v327
        %v2850 = vunpack.c.h.b16 %v327
        %v2851 = vunpack.c.l.b16 %v328
        %v2852 = vunpack.c.h.b16 %v328
        %v2853 = vunpack.c.l.b16 %v329
        %v2854 = vunpack.c.h.b16 %v329
        %v2855 = vunpack.c.l.b16 %v330
        %v2856 = vunpack.c.h.b16 %v330
        %v2857 = vunpack.c.l.b16 %v331
        %v2858 = vunpack.c.h.b16 %v331
        %v2859 = vunpack.c.l.b16 %v332
        %v2860 = vunpack.c.h.b16 %v332
        %v2861 = vunpack.c.l.b16 %v333
        %v2862 = vunpack.c.h.b16 %v333
        %v2863 = vunpack.c.l.b16 %v334
        %v2864 = vunpack.c.h.b16 %v334
        %v2865 = vunpack.c.l.b16 %v335
        %v2866 = vunpack.c.h.b16 %v335
        %v2867 = vunpack.c.l.b16 %v336
        %v2868 = vunpack.c.h.b16 %v336
        %v2869 = vunpack.c.l.b16 %v337
        %v2870 = vunpack.c.h.b16 %v337
        %v2871 = vunpack.c.l.b16 %v338
        %v2872 = vunpack.c.h.b16 %v338
        %v2873 = vunpack.c.l.b16 %v339
        %v2874 = vunpack.c.h.b16 %v339
        %v2875 = vunpack.c.l.b16 %v340
        %v2876 = vunpack.c.h.b16 %v340
        %v2877 = vunpack.c.l.b16 %v341
        %v2878 = vunpack.c.h.b16 %v341
        %v2879 = vunpack.c.l.b16 %v342
        %v2880 = vunpack.c.h.b16 %v342
        %v2881 = vunpack.c.l.b16 %v343
        %v2882 = vunpack.c.h.b16 %v343
        %v2883 = vunpack.c.l.b16 %v344
        %v2884 = vunpack.c.h.b16 %v344
        %v2885 = vunpack.c.l.b16 %v345
        %v2886 = vunpack.c.h.b16 %v345
        %v2887 = vunpack.c.l.b16 %v346
        %v2888 = vunpack.c.h.b16 %v346
        %v2889 = vunpack.c.l.b16 %v347
        %v2890 = vunpack.c.h.b16 %v347
        %v2891 = vunpack.c.l.b16 %v348
        %v2892 = vunpack.c.h.b16 %v348
        %v2893 = vunpack.c.l.b16 %v349
        %v2894 = vunpack.c.h.b16 %v349
        %v2895 = vunpack.c.l.b16 %v350
        %v2896 = vunpack.c.h.b16 %v350
        %v2897 = vunpack.c.l.b16 %v351
        %v2898 = vunpack.c.h.b16 %v351
        %v2899 = vunpack.c.l.b16 %v352
        %v2900 = vunpack.c.h.b16 %v352
        %v2901 = vunpack.c.l.b16 %v353
        %v2902 = vunpack.c.h.b16 %v353
        %v2903 = vunpack.c.l.b16 %v354
        %v2904 = vunpack.c.h.b16 %v354
        %v2905 = vunpack.c.l.b16 %v355
        %v2906 = vunpack.c.h.b16 %v355
        %v2907 = vunpack.c.l.b16 %v356
        %v2908 = vunpack.c.h.b16 %v356
        %v2909 = vunpack.c.l.b16 %v357
        %v2910 = vunpack.c.h.b16 %v357
        %v2911 = vunpack.c.l.b16 %v358
        %v2912 = vunpack.c.h.b16 %v358
        %v2913 = vunpack.c.l.b16 %v359
        %v2914 = vunpack.c.h.b16 %v359
        %v2915 = vunpack.c.l.b16 %v360
        %v2916 = vunpack.c.h.b16 %v360
        %v2917 = vunpack.c.l.b16 %v361
        %v2918 = vunpack.c.h.b16 %v361
        %v2919 = vunpack.c.l.b16 %v362
        %v2920 = vunpack.c.h.b16 %v362
        %v2921 = vunpack.c.l.b16 %v363
        %v2922 = vunpack.c.h.b16 %v363
        %v2923 = vunpack.c.l.b16 %v364
        %v2924 = vunpack.c.h.b16 %v364
        %v2925 = vunpack.c.l.b16 %v365
        %v2926 = vunpack.c.h.b16 %v365
        %v2927 = vunpack.c.l.b16 %v366
        %v2928 = vunpack.c.h.b16 %v366
        %v2929 = vunpack.c.l.b16 %v367
        %v2930 = vunpack.c.h.b16 %v367
        %v2931 = vunpack.c.l.b16 %v368
        %v2932 = vunpack.c.h.b16 %v368
        %v2933 = vunpack.c.l.b16 %v369
        %v2934 = vunpack.c.h.b16 %v369
        %v2935 = vunpack.c.l.b16 %v370
        %v2936 = vunpack.c.h.b16 %v370
        %v2937 = vunpack.c.l.b16 %v371
        %v2938 = vunpack.c.h.b16 %v371
        %v2939 = vunpack.c.l.b16 %v372
        %v2940 = vunpack.c.h.b16 %v372
        %v2941 = vunpack.c.l.b16 %v373
        %v2942 = vunpack.c.h.b16 %v373
        %v2943 = vunpack.c.l.b16 %v374
        %v2944 = vunpack.c.h.b16 %v374
        %v2945 = vunpack.c.l.b16 %v375
        %v2946 = vunpack.c.h.b16 %v375
        %v2947 = vunpack.c.l.b16 %v376
        %v2948 = vunpack.c.h.b16 %v376
        %v2949 = vunpack.c.l.b16 %v377
        %v2950 = vunpack.c.h.b16 %v377
        %v2951 = vunpack.c.l.b16 %v378
        %v2952 = vunpack.c.h.b16 %v378
        %v2953 = vunpack.c.l.b16 %v379
        %v2954 = vunpack.c.h.b16 %v379
        %v2955 = vunpack.c.l.b16 %v380
        %v2956 = vunpack.c.h.b16 %v380
        %v2957 = vunpack.c.l.b16 %v381
        %v2958 = vunpack.c.h.b16 %v381
        %v2959 = vunpack.c.l.b16 %v382
        %v2960 = vunpack.c.h.b16 %v382
        %v2961 = vunpack.c.l.b16 %v383
        %v2962 = vunpack.c.h.b16 %v383
        %v2963 = vunpack.c.l.b16 %v384
        %v2964 = vunpack.c.h.b16 %v384
        %v2965 = vunpack.c.l.b16 %v385
        %v2966 = vunpack.c.h.b16 %v385
        %v2967 = vunpack.c.l.b16 %v386
        %v2968 = vunpack.c.h.b16 %v386
        %v2969 = vunpack.c.l.b16 %v387
        %v2970 = vunpack.c.h.b16 %v387
        %v2971 = vunpack.c.l.b16 %v388
        %v2972 = vunpack.c.h.b16 %v388
        %v2973 = vunpack.c.l.b16 %v389
        %v2974 = vunpack.c.h.b16 %v389
        %v2975 = vunpack.c.l.b16 %v390
        %v2976 = vunpack.c.h.b16 %v390
        %v2977 = vunpack.c.l.b16 %v391
        %v2978 = vunpack.c.h.b16 %v391
        %v2979 = vunpack.c.l.b16 %v392
        %v2980 = vunpack.c.h.b16 %v392
        %v2981 = vunpack.c.l.b16 %v393
        %v2982 = vunpack.c.h.b16 %v393
        %v2983 = vunpack.c.l.b16 %v394
        %v2984 = vunpack.c.h.b16 %v394
        %v2985 = vunpack.c.l.b16 %v395
        %v2986 = vunpack.c.h.b16 %v395
        %v2987 = vunpack.c.l.b16 %v396
        %v2988 = vunpack.c.h.b16 %v396
        %v2989 = vunpack.c.l.b16 %v397
        %v2990 = vunpack.c.h.b16 %v397
        %v2991 = vunpack.c.l.b16 %v398
        %v2992 = vunpack.c.h.b16 %v398
        %v2993 = vunpack.c.l.b16 %v399
        %v2994 = vunpack.c.h.b16 %v399
        %v2995 = vunpack.c.l.b16 %v400
        %v2996 = vunpack.c.h.b16 %v400
        %v2997 = vunpack.c.l.b16 %v401
        %v2998 = vunpack.c.h.b16 %v401
        %v2999 = vunpack.c.l.b16 %v402
        %v3000 = vunpack.c.h.b16 %v402
        %v3001 = vunpack.c.l.b16 %v403
        %v3002 = vunpack.c.h.b16 %v403
        %v3003 = vunpack.c.l.b16 %v404
        %v3004 = vunpack.c.h.b16 %v404
        %v3005 = vunpack.c.l.b16 %v405
        %v3006 = vunpack.c.h.b16 %v405
        %v3007 = vunpack.c.l.b16 %v406
        %v3008 = vunpack.c.h.b16 %v406
        %v3009 = vunpack.c.l.b16 %v407
        %v3010 = vunpack.c.h.b16 %v407
        %v3011 = vunpack.c.l.b16 %v408
        %v3012 = vunpack.c.h.b16 %v408
        %v3013 = vunpack.c.l.b16 %v409
        %v3014 = vunpack.c.h.b16 %v409
        %v3015 = vunpack.c.l.b16 %v410
        %v3016 = vunpack.c.h.b16 %v410
        %v3017 = vunpack.c.l.b16 %v411
        %v3018 = vunpack.c.h.b16 %v411
        %v3019 = vunpack.c.l.b16 %v412
        %v3020 = vunpack.c.h.b16 %v412
        %v3021 = vunpack.c.l.b16 %v413
        %v3022 = vunpack.c.h.b16 %v413
        %v3023 = vunpack.c.l.b16 %v414
        %v3024 = vunpack.c.h.b16 %v414
        %v3025 = vunpack.c.l.b16 %v415
        %v3026 = vunpack.c.h.b16 %v415
        %v3027 = vunpack.c.l.b16 %v416
        %v3028 = vunpack.c.h.b16 %v416
        %v3029 = vunpack.c.l.b16 %v417
        %v3030 = vunpack.c.h.b16 %v417
        %v3031 = vunpack.c.l.b16 %v418
        %v3032 = vunpack.c.h.b16 %v418
        %v3033 = vunpack.c.l.b16 %v419
        %v3034 = vunpack.c.h.b16 %v419
        %v3035 = vunpack.c.l.b16 %v420
        %v3036 = vunpack.c.h.b16 %v420
        %v3037 = vunpack.c.l.b16 %v421
        %v3038 = vunpack.c.h.b16 %v421
        %v3039 = vunpack.c.l.b16 %v422
        %v3040 = vunpack.c.h.b16 %v422
        %v3041 = vunpack.c.l.b16 %v423
        %v3042 = vunpack.c.h.b16 %v423
        %v3043 = vunpack.c.l.b16 %v424
        %v3044 = vunpack.c.h.b16 %v424
        %v3045 = vunpack.c.l.b16 %v425
        %v3046 = vunpack.c.h.b16 %v425
        %v3047 = vunpack.c.l.b16 %v426
        %v3048 = vunpack.c.h.b16 %v426
        %v3049 = vunpack.c.l.b16 %v427
        %v3050 = vunpack.c.h.b16 %v427
        %v3051 = vunpack.c.l.b16 %v428
        %v3052 = vunpack.c.h.b16 %v428
        %v3053 = vunpack.c.l.b16 %v429
        %v3054 = vunpack.c.h.b16 %v429
        %v3055 = vunpack.c.l.b16 %v430
        %v3056 = vunpack.c.h.b16 %v430
        %v3057 = vunpack.c.l.b16 %v431
        %v3058 = vunpack.c.h.b16 %v431
        %v3059 = vunpack.c.l.b16 %v432
        %v3060 = vunpack.c.h.b16 %v432
        %v3061 = vunpack.c.l.b16 %v433
        %v3062 = vunpack.c.h.b16 %v433
        %v3063 = vunpack.c.l.b16 %v434
        %v3064 = vunpack.c.h.b16 %v434
        %v3065 = vunpack.c.l.b16 %v435
        %v3066 = vunpack.c.h.b16 %v435
        %v3067 = vunpack.c.l.b16 %v436
        %v3068 = vunpack.c.h.b16 %v436
        %v3069 = vunpack.c.l.b16 %v437
        %v3070 = vunpack.c.h.b16 %v437
        %v3071 = vunpack.c.l.b16 %v438
        %v3072 = vunpack.c.h.b16 %v438
        %v3073 = vunpack.c.l.b16 %v439
        %v3074 = vunpack.c.h.b16 %v439
        %v3075 = vunpack.c.l.b16 %v440
        %v3076 = vunpack.c.h.b16 %v440
        %v3077 = vunpack.c.l.b16 %v441
        %v3078 = vunpack.c.h.b16 %v441
        %v3079 = vunpack.c.l.b16 %v442
        %v3080 = vunpack.c.h.b16 %v442
        %v3081 = vunpack.c.l.b16 %v443
        %v3082 = vunpack.c.h.b16 %v443
        %v3083 = vunpack.c.l.b16 %v444
        %v3084 = vunpack.c.h.b16 %v444
        %v3085 = vunpack.c.l.b16 %v445
        %v3086 = vunpack.c.h.b16 %v445
        %v3087 = vunpack.c.l.b16 %v446
        %v3088 = vunpack.c.h.b16 %v446
        %v3089 = vunpack.c.l.b16 %v447
        %v3090 = vunpack.c.h.b16 %v447
        %v3091 = vunpack.c.l.b16 %v448
        %v3092 = vunpack.c.h.b16 %v448
        %v3093 = vunpack.c.l.b16 %v449
        %v3094 = vunpack.c.h.b16 %v449
        %v3095 = vunpack.c.l.b16 %v450
        %v3096 = vunpack.c.h.b16 %v450
        %v3097 = vunpack.c.l.b16 %v451
        %v3098 = vunpack.c.h.b16 %v451
        %v3099 = vunpack.c.l.b16 %v452
        %v3100 = vunpack.c.h.b16 %v452
        %v3101 = vunpack.c.l.b16 %v453
        %v3102 = vunpack.c.h.b16 %v453
        %v3103 = vunpack.c.l.b16 %v454
        %v3104 = vunpack.c.h.b16 %v454
        %v3105 = vunpack.c.l.b16 %v455
        %v3106 = vunpack.c.h.b16 %v455
        %v3107 = vunpack.c.l.b16 %v456
        %v3108 = vunpack.c.h.b16 %v456
        %v3109 = vunpack.c.l.b16 %v457
        %v3110 = vunpack.c.h.b16 %v457
        %v3111 = vunpack.c.l.b16 %v458
        %v3112 = vunpack.c.h.b16 %v458
        %v3113 = vunpack.c.l.b16 %v459
        %v3114 = vunpack.c.h.b16 %v459
        %v3115 = vunpack.c.l.b16 %v460
        %v3116 = vunpack.c.h.b16 %v460
        %v3117 = vunpack.c.l.b16 %v461
        %v3118 = vunpack.c.h.b16 %v461
        %v3119 = vunpack.c.l.b16 %v462
        %v3120 = vunpack.c.h.b16 %v462
        %v3121 = vunpack.c.l.b16 %v463
        %v3122 = vunpack.c.h.b16 %v463
        %v3123 = vunpack.c.l.b16 %v464
        %v3124 = vunpack.c.h.b16 %v464
        %v3125 = vunpack.c.l.b16 %v465
        %v3126 = vunpack.c.h.b16 %v465
        %v3127 = vunpack.c.l.b16 %v466
        %v3128 = vunpack.c.h.b16 %v466
        %v3129 = vunpack.c.l.b16 %v467
        %v3130 = vunpack.c.h.b16 %v467
        %v3131 = vunpack.c.l.b16 %v468
        %v3132 = vunpack.c.h.b16 %v468
        %v3133 = vunpack.c.l.b16 %v469
        %v3134 = vunpack.c.h.b16 %v469
        %v3135 = vunpack.c.l.b16 %v470
        %v3136 = vunpack.c.h.b16 %v470
        %v3137 = vunpack.c.l.b16 %v471
        %v3138 = vunpack.c.h.b16 %v471
        %v3139 = vunpack.c.l.b16 %v472
        %v3140 = vunpack.c.h.b16 %v472
        %v3141 = vunpack.c.l.b16 %v473
        %v3142 = vunpack.c.h.b16 %v473
        %v3143 = vunpack.c.l.b16 %v474
        %v3144 = vunpack.c.h.b16 %v474
        %v3145 = vunpack.c.l.b16 %v475
        %v3146 = vunpack.c.h.b16 %v475
        %v3147 = vunpack.c.l.b16 %v476
        %v3148 = vunpack.c.h.b16 %v476
        %v3149 = vunpack.c.l.b16 %v477
        %v3150 = vunpack.c.h.b16 %v477
        %v3151 = vunpack.c.l.b16 %v478
        %v3152 = vunpack.c.h.b16 %v478
        %v3153 = vunpack.c.l.b16 %v479
        %v3154 = vunpack.c.h.b16 %v479
        %v3155 = vunpack.c.l.b16 %v480
        %v3156 = vunpack.c.h.b16 %v480
        %v3157 = vunpack.c.l.b16 %v481
        %v3158 = vunpack.c.h.b16 %v481
        %v3159 = vunpack.c.l.b16 %v482
        %v3160 = vunpack.c.h.b16 %v482
        %v3161 = vunpack.c.l.b16 %v483
        %v3162 = vunpack.c.h.b16 %v483
        %v3163 = vunpack.c.l.b16 %v484
        %v3164 = vunpack.c.h.b16 %v484
        %v3165 = vunpack.c.l.b16 %v485
        %v3166 = vunpack.c.h.b16 %v485
        %v3167 = vunpack.c.l.b16 %v486
        %v3168 = vunpack.c.h.b16 %v486
        %v3169 = vunpack.c.l.b16 %v487
        %v3170 = vunpack.c.h.b16 %v487
        %v3171 = vunpack.c.l.b16 %v488
        %v3172 = vunpack.c.h.b16 %v488
        %v3173 = vunpack.c.l.b16 %v489
        %v3174 = vunpack.c.h.b16 %v489
        %v3175 = vunpack.c.l.b16 %v490
        %v3176 = vunpack.c.h.b16 %v490
        %v3177 = vunpack.c.l.b16 %v491
        %v3178 = vunpack.c.h.b16 %v491
        %v3179 = vunpack.c.l.b16 %v492
        %v3180 = vunpack.c.h.b16 %v492
        %v3181 = vunpack.c.l.b16 %v493
        %v3182 = vunpack.c.h.b16 %v493
        %v3183 = vunpack.c.l.b16 %v494
        %v3184 = vunpack.c.h.b16 %v494
        %v3185 = vunpack.c.l.b16 %v495
        %v3186 = vunpack.c.h.b16 %v495
        %v3187 = vunpack.c.l.b16 %v496
        %v3188 = vunpack.c.h.b16 %v496
        %v3189 = vunpack.c.l.b16 %v497
        %v3190 = vunpack.c.h.b16 %v497
        %v3191 = vunpack.c.l.b16 %v498
        %v3192 = vunpack.c.h.b16 %v498
        %v3193 = vunpack.c.l.b16 %v499
        %v3194 = vunpack.c.h.b16 %v499
        %v3195 = vunpack.c.l.b16 %v500
        %v3196 = vunpack.c.h.b16 %v500
        %v3197 = vunpack.c.l.b16 %v501
        %v3198 = vunpack.c.h.b16 %v501
        %v3199 = vunpack.c.l.b16 %v502
        %v3200 = vunpack.c.h.b16 %v502
        %v3201 = vunpack.c.l.b16 %v503
        %v3202 = vunpack.c.h.b16 %v503
        %v3203 = vunpack.c.l.b16 %v504
        %v3204 = vunpack.c.h.b16 %v504
        %v3205 = vunpack.c.l.b16 %v505
        %v3206 = vunpack.c.h.b16 %v505
        %v3207 = vunpack.c.l.b16 %v506
        %v3208 = vunpack.c.h.b16 %v506
        %v3209 = vunpack.c.l.b16 %v507
        %v3210 = vunpack.c.h.b16 %v507
        %v3211 = vunpack.c.l.b16 %v508
        %v3212 = vunpack.c.h.b16 %v508
        %v3213 = vunpack.c.l.b16 %v509
        %v3214 = vunpack.c.h.b16 %v509
        %v3215 = vunpack.c.l.b16 %v510
        %v3216 = vunpack.c.h.b16 %v510
        %v3217 = vunpack.c.l.b16 %v511
        %v3218 = vunpack.c.h.b16 %v511
        %v3219 = vunpack.c.l.b16 %v512
        %v3220 = vunpack.c.h.b16 %v512
        %v3221 = vunpack.c.l.b16 %v513
        %v3222 = vunpack.c.h.b16 %v513
        %v3223 = vunpack.c.l.b16 %v514
        %v3224 = vunpack.c.h.b16 %v514
        %v3225 = vunpack.c.l.b16 %v515
        %v3226 = vunpack.c.h.b16 %v515
        %v3227 = vunpack.c.l.b16 %v516
        %v3228 = vunpack.c.h.b16 %v516
        %v3229 = vunpack.c.l.b16 %v517
        %v3230 = vunpack.c.h.b16 %v517
        %v3231 = vunpack.c.l.b16 %v518
        %v3232 = vunpack.c.h.b16 %v518
        %v3233 = vunpack.c.l.b16 %v519
        %v3234 = vunpack.c.h.b16 %v519
        %v3235 = vunpack.c.l.b16 %v520
        %v3236 = vunpack.c.h.b16 %v520
        %v3237 = vunpack.c.l.b16 %v521
        %v3238 = vunpack.c.h.b16 %v521
        %v3239 = vunpack.c.l.b16 %v522
        %v3240 = vunpack.c.h.b16 %v522
        %v3241 = vunpack.c.l.b16 %v523
        %v3242 = vunpack.c.h.b16 %v523
        %v3243 = vunpack.c.l.b16 %v524
        %v3244 = vunpack.c.h.b16 %v524
        %v3245 = vunpack.c.l.b16 %v525
        %v3246 = vunpack.c.h.b16 %v525
        %v3247 = vunpack.c.l.b16 %v526
        %v3248 = vunpack.c.h.b16 %v526
        %v3249 = vunpack.c.l.b16 %v527
        %v3250 = vunpack.c.h.b16 %v527
        %v3251 = vunpack.c.l.b16 %v528
        %v3252 = vunpack.c.h.b16 %v528
        %v3253 = vunpack.c.l.b16 %v529
        %v3254 = vunpack.c.h.b16 %v529
        %v3255 = vunpack.c.l.b16 %v530
        %v3256 = vunpack.c.h.b16 %v530
        %v3257 = vunpack.c.l.b16 %v531
        %v3258 = vunpack.c.h.b16 %v531
        %v3259 = vunpack.c.l.b16 %v532
        %v3260 = vunpack.c.h.b16 %v532
        %v3261 = vunpack.c.l.b16 %v533
        %v3262 = vunpack.c.h.b16 %v533
        %v3263 = vunpack.c.l.b16 %v534
        %v3264 = vunpack.c.h.b16 %v534
        %v3265 = vunpack.c.l.b16 %v535
        %v3266 = vunpack.c.h.b16 %v535
        %v3267 = vunpack.c.l.b16 %v536
        %v3268 = vunpack.c.h.b16 %v536
        %v3269 = vunpack.c.l.b16 %v537
        %v3270 = vunpack.c.h.b16 %v537
        %v3271 = vunpack.c.l.b16 %v538
        %v3272 = vunpack.c.h.b16 %v538
        %v3273 = vunpack.c.l.b16 %v539
        %v3274 = vunpack.c.h.b16 %v539
        %v3275 = vunpack.c.l.b16 %v540
        %v3276 = vunpack.c.h.b16 %v540
        %v3277 = vunpack.c.l.b16 %v541
        %v3278 = vunpack.c.h.b16 %v541
        %v3279 = vunpack.c.l.b16 %v542
        %v3280 = vunpack.c.h.b16 %v542
        %v3281 = vunpack.c.l.b16 %v543
        %v3282 = vunpack.c.h.b16 %v543
        %v3283 = vunpack.c.l.b16 %v544
        %v3284 = vunpack.c.h.b16 %v544
        %v3285 = vunpack.c.l.b16 %v545
        %v3286 = vunpack.c.h.b16 %v545
        %v3287 = vunpack.c.l.b16 %v546
        %v3288 = vunpack.c.h.b16 %v546
        %v3289 = vunpack.c.l.b16 %v547
        %v3290 = vunpack.c.h.b16 %v547
        %v3291 = vunpack.c.l.b16 %v548
        %v3292 = vunpack.c.h.b16 %v548
        %v3293 = vunpack.c.l.b16 %v549
        %v3294 = vunpack.c.h.b16 %v549
        %v3295 = vunpack.c.l.b16 %v550
        %v3296 = vunpack.c.h.b16 %v550
        %v3297 = vunpack.c.l.b16 %v551
        %v3298 = vunpack.c.h.b16 %v551
        %v3299 = vunpack.c.l.b16 %v552
        %v3300 = vunpack.c.h.b16 %v552
        %v3301 = vunpack.c.l.b16 %v553
        %v3302 = vunpack.c.h.b16 %v553
        %v3303 = vpack.c.b16 %v2795, %v2791
        %v3304 = vpack.c.b16 %v2796, %v2792
        %v3305 = vpack.c.b16 %v2797, %v2793
        %v3306 = vpack.c.b16 %v2798, %v2794
        %v3307 = vpack.c.b16 %v2803, %v2799
        %v3308 = vpack.c.b16 %v2804, %v2800
        %v3309 = vpack.c.b16 %v2805, %v2801
        %v3310 = vpack.c.b16 %v2806, %v2802
        %v3311 = vpack.c.b16 %v2811, %v2807
        %v3312 = vpack.c.b16 %v2812, %v2808
        %v3313 = vpack.c.b16 %v2813, %v2809
        %v3314 = vpack.c.b16 %v2814, %v2810
        %v3315 = vpack.c.b16 %v2819, %v2815
        %v3316 = vpack.c.b16 %v2820, %v2816
        %v3317 = vpack.c.b16 %v2821, %v2817
        %v3318 = vpack.c.b16 %v2822, %v2818
        %v3319 = vpack.c.b16 %v2827, %v2823
        %v3320 = vpack.c.b16 %v2828, %v2824
        %v3321 = vpack.c.b16 %v2829, %v2825
        %v3322 = vpack.c.b16 %v2830, %v2826
        %v3323 = vpack.c.b16 %v2835, %v2831
        %v3324 = vpack.c.b16 %v2836, %v2832
        %v3325 = vpack.c.b16 %v2837, %v2833
        %v3326 = vpack.c.b16 %v2838, %v2834
        %v3327 = vpack.c.b16 %v2843, %v2839
        %v3328 = vpack.c.b16 %v2844, %v2840
        %v3329 = vpack.c.b16 %v2845, %v2841
        %v3330 = vpack.c.b16 %v2846, %v2842
        %v3331 = vpack.c.b16 %v2851, %v2847
        %v3332 = vpack.c.b16 %v2852, %v2848
        %v3333 = vpack.c.b16 %v2853, %v2849
        %v3334 = vpack.c.b16 %v2854, %v2850
        %v3335 = vpack.c.b16 %v2859, %v2855
        %v3336 = vpack.c.b16 %v2860, %v2856
        %v3337 = vpack.c.b16 %v2861, %v2857
        %v3338 = vpack.c.b16 %v2862, %v2858
        %v3339 = vpack.c.b16 %v2867, %v2863
        %v3340 = vpack.c.b16 %v2868, %v2864
        %v3341 = vpack.c.b16 %v2869, %v2865
        %v3342 = vpack.c.b16 %v2870, %v2866
        %v3343 = vpack.c.b16 %v2875, %v2871
        %v3344 = vpack.c.b16 %v2876, %v2872
        %v3345 = vpack.c.b16 %v2877, %v2873
        %v3346 = vpack.c.b16 %v2878, %v2874
        %v3347 = vpack.c.b16 %v2883, %v2879
        %v3348 = vpack.c.b16 %v2884, %v2880
        %v3349 = vpack.c.b16 %v2885, %v2881
        %v3350 = vpack.c.b16 %v2886, %v2882
        %v3351 = vpack.c.b16 %v2891, %v2887
        %v3352 = vpack.c.b16 %v2892, %v2888
        %v3353 = vpack.c.b16 %v2893, %v2889
        %v3354 = vpack.c.b16 %v2894, %v2890
        %v3355 = vpack.c.b16 %v2899, %v2895
        %v3356 = vpack.c.b16 %v2900, %v2896
        %v3357 = vpack.c.b16 %v2901, %v2897
        %v3358 = vpack.c.b16 %v2902, %v2898
        %v3359 = vpack.c.b16 %v2907, %v2903
        %v3360 = vpack.c.b16 %v2908, %v2904
        %v3361 = vpack.c.b16 %v2909, %v2905
        %v3362 = vpack.c.b16 %v2910, %v2906
        %v3363 = vpack.c.b16 %v2915, %v2911
        %v3364 = vpack.c.b16 %v2916, %v2912
        %v3365 = vpack.c.b16 %v2917, %v2913
        %v3366 = vpack.c.b16 %v2918, %v2914
        %v3367 = vpack.c.b16 %v2923, %v2919
        %v3368 = vpack.c.b16 %v2924, %v2920
        %v3369 = vpack.c.b16 %v2925, %v2921
        %v3370 = vpack.c.b16 %v2926, %v2922
        %v3371 = vpack.c.b16 %v2931, %v2927
        %v3372 = vpack.c.b16 %v2932, %v2928
        %v3373 = vpack.c.b16 %v2933, %v2929
        %v3374 = vpack.c.b16 %v2934, %v2930
        %v3375 = vpack.c.b16 %v2939, %v2935
        %v3376 = vpack.c.b16 %v2940, %v2936
        %v3377 = vpack.c.b16 %v2941, %v2937
        %v3378 = vpack.c.b16 %v2942, %v2938
        %v3379 = vpack.c.b16 %v2947, %v2943
        %v3380 = vpack.c.b16 %v2948, %v2944
        %v3381 = vpack.c.b16 %v2949, %v2945
        %v3382 = vpack.c.b16 %v2950, %v2946
        %v3383 = vpack.c.b16 %v2955, %v2951
        %v3384 = vpack.c.b16 %v2956, %v2952
        %v3385 = vpack.c.b16 %v2957, %v2953
        %v3386 = vpack.c.b16 %v2958, %v2954
        %v3387 = vpack.c.b16 %v2963, %v2959
        %v3388 = vpack.c.b16 %v2964, %v2960
        %v3389 = vpack.c.b16 %v2965, %v2961
        %v3390 = vpack.c.b16 %v2966, %v2962
        %v3391 = vpack.c.b16 %v2971, %v2967
        %v3392 = vpack.c.b16 %v2972, %v2968
        %v3393 = vpack.c.b16 %v2973, %v2969
        %v3394 = vpack.c.b16 %v2974, %v2970
        %v3395 = vpack.c.b16 %v2979, %v2975
        %v3396 = vpack.c.b16 %v2980, %v2976
        %v3397 = vpack.c.b16 %v2981, %v2977
        %v3398 = vpack.c.b16 %v2982, %v2978
        %v3399 = vpack.c.b16 %v2987, %v2983
        %v3400 = vpack.c.b16 %v2988, %v2984
        %v3401 = vpack.c.b16 %v2989, %v2985
        %v3402 = vpack.c.b16 %v2990, %v2986
        %v3403 = vpack.c.b16 %v2995, %v2991
        %v3404 = vpack.c.b16 %v2996, %v2992
        %v3405 = vpack.c.b16 %v2997, %v2993
        %v3406 = vpack.c.b16 %v2998, %v2994
        %v3407 = vpack.c.b16 %v3003, %v2999
        %v3408 = vpack.c.b16 %v3004, %v3000
        %v3409 = vpack.c.b16 %v3005, %v3001
        %v3410 = vpack.c.b16 %v3006, %v3002
        %v3411 = vpack.c.b16 %v3011, %v3007
        %v3412 = vpack.c.b16 %v3012, %v3008
        %v3413 = vpack.c.b16 %v3013, %v3009
        %v3414 = vpack.c.b16 %v3014, %v3010
        %v3415 = vpack.c.b16 %v3019, %v3015
        %v3416 = vpack.c.b16 %v3020, %v3016
        %v3417 = vpack.c.b16 %v3021, %v3017
        %v3418 = vpack.c.b16 %v3022, %v3018
        %v3419 = vpack.c.b16 %v3027, %v3023
        %v3420 = vpack.c.b16 %v3028, %v3024
        %v3421 = vpack.c.b16 %v3029, %v3025
        %v3422 = vpack.c.b16 %v3030, %v3026
        %v3423 = vpack.c.b16 %v3035, %v3031
        %v3424 = vpack.c.b16 %v3036, %v3032
        %v3425 = vpack.c.b16 %v3037, %v3033
        %v3426 = vpack.c.b16 %v3038, %v3034
        %v3427 = vpack.c.b16 %v3043, %v3039
        %v3428 = vpack.c.b16 %v3044, %v3040
        %v3429 = vpack.c.b16 %v3045, %v3041
        %v3430 = vpack.c.b16 %v3046, %v3042
        %v3431 = vpack.c.b16 %v3051, %v3047
        %v3432 = vpack.c.b16 %v3052, %v3048
        %v3433 = vpack.c.b16 %v3053, %v3049
        %v3434 = vpack.c.b16 %v3054, %v3050
        %v3435 = vpack.c.b16 %v3059, %v3055
        %v3436 = vpack.c.b16 %v3060, %v3056
        %v3437 = vpack.c.b16 %v3061, %v3057
        %v3438 = vpack.c.b16 %v3062, %v3058
        %v3439 = vpack.c.b16 %v3067, %v3063
        %v3440 = vpack.c.b16 %v3068, %v3064
        %v3441 = vpack.c.b16 %v3069, %v3065
        %v3442 = vpack.c.b16 %v3070, %v3066
        %v3443 = vpack.c.b16 %v3075, %v3071
        %v3444 = vpack.c.b16 %v3076, %v3072
        %v3445 = vpack.c.b16 %v3077, %v3073
        %v3446 = vpack.c.b16 %v3078, %v3074
        %v3447 = vpack.c.b16 %v3083, %v3079
        %v3448 = vpack.c.b16 %v3084, %v3080
        %v3449 = vpack.c.b16 %v3085, %v3081
        %v3450 = vpack.c.b16 %v3086, %v3082
        %v3451 = vpack.c.b16 %v3091, %v3087
        %v3452 = vpack.c.b16 %v3092, %v3088
        %v3453 = vpack.c.b16 %v3093, %v3089
        %v3454 = vpack.c.b16 %v3094, %v3090
        %v3455 = vpack.c.b16 %v3099, %v3095
        %v3456 = vpack.c.b16 %v3100, %v3096
        %v3457 = vpack.c.b16 %v3101, %v3097
        %v3458 = vpack.c.b16 %v3102, %v3098
        %v3459 = vpack.c.b16 %v3107, %v3103
        %v3460 = vpack.c.b16 %v3108, %v3104
        %v3461 = vpack.c.b16 %v3109, %v3105
        %v3462 = vpack.c.b16 %v3110, %v3106
        %v3463 = vpack.c.b16 %v3115, %v3111
        %v3464 = vpack.c.b16 %v3116, %v3112
        %v3465 = vpack.c.b16 %v3117, %v3113
        %v3466 = vpack.c.b16 %v3118, %v3114
        %v3467 = vpack.c.b16 %v3123, %v3119
        %v3468 = vpack.c.b16 %v3124, %v3120
        %v3469 = vpack.c.b16 %v3125, %v3121
        %v3470 = vpack.c.b16 %v3126, %v3122
        %v3471 = vpack.c.b16 %v3131, %v3127
        %v3472 = vpack.c.b16 %v3132, %v3128
        %v3473 = vpack.c.b16 %v3133, %v3129
        %v3474 = vpack.c.b16 %v3134, %v3130
        %v3475 = vpack.c.b16 %v3139, %v3135
        %v3476 = vpack.c.b16 %v3140, %v3136
        %v3477 = vpack.c.b16 %v3141, %v3137
        %v3478 = vpack.c.b16 %v3142, %v3138
        %v3479 = vpack.c.b16 %v3147, %v3143
        %v3480 = vpack.c.b16 %v3148, %v3144
        %v3481 = vpack.c.b16 %v3149, %v3145
        %v3482 = vpack.c.b16 %v3150, %v3146
        %v3483 = vpack.c.b16 %v3155, %v3151
        %v3484 = vpack.c.b16 %v3156, %v3152
        %v3485 = vpack.c.b16 %v3157, %v3153
        %v3486 = vpack.c.b16 %v3158, %v3154
        %v3487 = vpack.c.b16 %v3163, %v3159
        %v3488 = vpack.c.b16 %v3164, %v3160
        %v3489 = vpack.c.b16 %v3165, %v3161
        %v3490 = vpack.c.b16 %v3166, %v3162
        %v3491 = vpack.c.b16 %v3171, %v3167
        %v3492 = vpack.c.b16 %v3172, %v3168
        %v3493 = vpack.c.b16 %v3173, %v3169
        %v3494 = vpack.c.b16 %v3174, %v3170
        %v3495 = vpack.c.b16 %v3179, %v3175
        %v3496 = vpack.c.b16 %v3180, %v3176
        %v3497 = vpack.c.b16 %v3181, %v3177
        %v3498 = vpack.c.b16 %v3182, %v3178
        %v3499 = vpack.c.b16 %v3187, %v3183
        %v3500 = vpack.c.b16 %v3188, %v3184
        %v3501 = vpack.c.b16 %v3189, %v3185
        %v3502 = vpack.c.b16 %v3190, %v3186
        %v3503 = vpack.c.b16 %v3195, %v3191
        %v3504 = vpack.c.b16 %v3196, %v3192
        %v3505 = vpack.c.b16 %v3197, %v3193
        %v3506 = vpack.c.b16 %v3198, %v3194
        %v3507 = vpack.c.b16 %v3203, %v3199
        %v3508 = vpack.c.b16 %v3204, %v3200
        %v3509 = vpack.c.b16 %v3205, %v3201
        %v3510 = vpack.c.b16 %v3206, %v3202
        %v3511 = vpack.c.b16 %v3211, %v3207
        %v3512 = vpack.c.b16 %v3212, %v3208
        %v3513 = vpack.c.b16 %v3213, %v3209
        %v3514 = vpack.c.b16 %v3214, %v3210
        %v3515 = vpack.c.b16 %v3219, %v3215
        %v3516 = vpack.c.b16 %v3220, %v3216
        %v3517 = vpack.c.b16 %v3221, %v3217
        %v3518 = vpack.c.b16 %v3222, %v3218
        %v3519 = vpack.c.b16 %v3227, %v3223
        %v3520 = vpack.c.b16 %v3228, %v3224
        %v3521 = vpack.c.b16 %v3229, %v3225
        %v3522 = vpack.c.b16 %v3230, %v3226
        %v3523 = vpack.c.b16 %v3235, %v3231
        %v3524 = vpack.c.b16 %v3236, %v3232
        %v3525 = vpack.c.b16 %v3237, %v3233
        %v3526 = vpack.c.b16 %v3238, %v3234
        %v3527 = vpack.c.b16 %v3243, %v3239
        %v3528 = vpack.c.b16 %v3244, %v3240
        %v3529 = vpack.c.b16 %v3245, %v3241
        %v3530 = vpack.c.b16 %v3246, %v3242
        %v3531 = vpack.c.b16 %v3251, %v3247
        %v3532 = vpack.c.b16 %v3252, %v3248
        %v3533 = vpack.c.b16 %v3253, %v3249
        %v3534 = vpack.c.b16 %v3254, %v3250
        %v3535 = vpack.c.b16 %v3259, %v3255
        %v3536 = vpack.c.b16 %v3260, %v3256
        %v3537 = vpack.c.b16 %v3261, %v3257
        %v3538 = vpack.c.b16 %v3262, %v3258
        %v3539 = vpack.c.b16 %v3267, %v3263
        %v3540 = vpack.c.b16 %v3268, %v3264
        %v3541 = vpack.c.b16 %v3269, %v3265
        %v3542 = vpack.c.b16 %v3270, %v3266
        %v3543 = vpack.c.b16 %v3275, %v3271
        %v3544 = vpack.c.b16 %v3276, %v3272
        %v3545 = vpack.c.b16 %v3277, %v3273
        %v3546 = vpack.c.b16 %v3278, %v3274
        %v3547 = vpack.c.b16 %v3283, %v3279
        %v3548 = vpack.c.b16 %v3284, %v3280
        %v3549 = vpack.c.b16 %v3285, %v3281
        %v3550 = vpack.c.b16 %v3286, %v3282
        %v3551 = vpack.c.b16 %v3291, %v3287
        %v3552 = vpack.c.b16 %v3292, %v3288
        %v3553 = vpack.c.b16 %v3293, %v3289
        %v3554 = vpack.c.b16 %v3294, %v3290
        %v3555 = vpack.c.b16 %v3299, %v3295
        %v3556 = vpack.c.b16 %v3300, %v3296
        %v3557 = vpack.c.b16 %v3301, %v3297
        %v3558 = vpack.c.b16 %v3302, %v3298
        %3815 = vmatprep.subr.bf16.mxu0 %v3304
        %3816 = vmatpush1.bf16.msra.mxu0 %v3303
        %3817 = vmatprep.subr.bf16.mxu0 %v3308
        %3818 = vmatpush1.bf16.msra.mxu0 %v3307
        %3819 = vmatprep.subr.bf16.mxu0 %v3312
        %3820 = vmatpush1.bf16.msra.mxu0 %v3311
        %3821 = vmatprep.subr.bf16.mxu0 %v3316
        %3822 = vmatpush1.bf16.msra.mxu0 %v3315
        %3823 = vmatprep.subr.bf16.mxu0 %v3320
        %3824 = vmatpush1.bf16.msra.mxu0 %v3319
        %3825 = vmatprep.subr.bf16.mxu0 %v3324
        %3826 = vmatpush1.bf16.msra.mxu0 %v3323
        %3827 = vmatprep.subr.bf16.mxu0 %v3328
        %3828 = vmatpush1.bf16.msra.mxu0 %v3327
        %3829 = vmatprep.subr.bf16.mxu0 %v3332
        %3830 = vmatpush1.bf16.msra.mxu0 %v3331
        %3831 = vmatprep.subr.bf16.mxu0 %v3336
        %3832 = vmatpush1.bf16.msra.mxu0 %v3335
        %3833 = vmatprep.subr.bf16.mxu0 %v3340
        %3834 = vmatpush1.bf16.msra.mxu0 %v3339
        %3835 = vmatprep.subr.bf16.mxu0 %v3344
        %3836 = vmatpush1.bf16.msra.mxu0 %v3343
        %3837 = vmatprep.subr.bf16.mxu0 %v3348
        %3838 = vmatpush1.bf16.msra.mxu0 %v3347
        %3839 = vmatprep.subr.bf16.mxu0 %v3352
        %3840 = vmatpush1.bf16.msra.mxu0 %v3351
        %3841 = vmatprep.subr.bf16.mxu0 %v3356
        %3842 = vmatpush1.bf16.msra.mxu0 %v3355
        %3843 = vmatprep.subr.bf16.mxu0 %v3360
        %3844 = vmatpush1.bf16.msra.mxu0 %v3359
        %3845 = vmatprep.subr.bf16.mxu0 %v3364
        %3846 = vmatpush1.bf16.msra.mxu0 %v3363
        %3847 = vmatprep.mubr.bf16.mxu0 %v2520
        %3848 = vmatmul.mubr.bf16.gmra.mrb[0].mxu0 %v2519
        %v3849 = vpop.f32.mrb[0].mxu0
        %v3850 = vadd.f32 %v2337, %v3849
        %v3851 = vpop.f32.mrb[0].mxu0
        %v3852 = vadd.f32 %v2339, %v3851
        %v3853 = vpop.f32.mrb[0].mxu0
        %v3854 = vpop.f32.mrb[0].mxu0
        %3855 = vdwg.mxu0
        %3856 = vmatprep.subr.bf16.mxu0 %v3368
        %3857 = vmatpush1.bf16.msra.mxu0 %v3367
        %3858 = vmatprep.subr.bf16.mxu0 %v3372
        %3859 = vmatpush1.bf16.msra.mxu0 %v3371
        %3860 = vmatprep.subr.bf16.mxu0 %v3376
        %3861 = vmatpush1.bf16.msra.mxu0 %v3375
        %3862 = vmatprep.subr.bf16.mxu0 %v3380
        %3863 = vmatpush1.bf16.msra.mxu0 %v3379
        %3864 = vmatprep.subr.bf16.mxu0 %v3384
        %3865 = vmatpush1.bf16.msra.mxu0 %v3383
        %3866 = vmatprep.subr.bf16.mxu0 %v3388
        %3867 = vmatpush1.bf16.msra.mxu0 %v3387
        %3868 = vmatprep.subr.bf16.mxu0 %v3392
        %3869 = vmatpush1.bf16.msra.mxu0 %v3391
        %3870 = vmatprep.subr.bf16.mxu0 %v3396
        %3871 = vmatpush1.bf16.msra.mxu0 %v3395
        %3872 = vmatprep.subr.bf16.mxu0 %v3400
        %3873 = vmatpush1.bf16.msra.mxu0 %v3399
        %3874 = vmatprep.subr.bf16.mxu0 %v3404
        %3875 = vmatpush1.bf16.msra.mxu0 %v3403
        %3876 = vmatprep.subr.bf16.mxu0 %v3408
        %3877 = vmatpush1.bf16.msra.mxu0 %v3407
        %3878 = vmatprep.subr.bf16.mxu0 %v3412
        %3879 = vmatpush1.bf16.msra.mxu0 %v3411
        %3880 = vmatprep.subr.bf16.mxu0 %v3416
        %3881 = vmatpush1.bf16.msra.mxu0 %v3415
        %3882 = vmatprep.subr.bf16.mxu0 %v3420
        %3883 = vmatpush1.bf16.msra.mxu0 %v3419
        %3884 = vmatprep.subr.bf16.mxu0 %v3424
        %3885 = vmatpush1.bf16.msra.mxu0 %v3423
        %3886 = vmatprep.subr.bf16.mxu0 %v3428
        %3887 = vmatpush1.bf16.msra.mxu0 %v3427
        %3888 = vmatprep.mubr.bf16.mxu0 %v2522
        %3889 = vmatmul.mubr.bf16.gmra.mrb[0].mxu0 %v2521
        %v3890 = vpop.f32.mrb[0].mxu0
        %v3891 = vadd.f32 %v3850, %v3890
        %v3892 = vpop.f32.mrb[0].mxu0
        %v3893 = vadd.f32 %v3852, %v3892
        %v3894 = vpop.f32.mrb[0].mxu0
        %v3895 = vpop.f32.mrb[0].mxu0
        %3896 = vdwg.mxu0
        %3897 = vmatprep.subr.bf16.mxu0 %v3432
        %3898 = vmatpush1.bf16.msra.mxu0 %v3431
        %3899 = vmatprep.subr.bf16.mxu0 %v3436
        %3900 = vmatpush1.bf16.msra.mxu0 %v3435
        %3901 = vmatprep.subr.bf16.mxu0 %v3440
        %3902 = vmatpush1.bf16.msra.mxu0 %v3439
        %3903 = vmatprep.subr.bf16.mxu0 %v3444
        %3904 = vmatpush1.bf16.msra.mxu0 %v3443
        %3905 = vmatprep.subr.bf16.mxu0 %v3448
        %3906 = vmatpush1.bf16.msra.mxu0 %v3447
        %3907 = vmatprep.subr.bf16.mxu0 %v3452
        %3908 = vmatpush1.bf16.msra.mxu0 %v3451
        %3909 = vmatprep.subr.bf16.mxu0 %v3456
        %3910 = vmatpush1.bf16.msra.mxu0 %v3455
        %3911 = vmatprep.subr.bf16.mxu0 %v3460
        %3912 = vmatpush1.bf16.msra.mxu0 %v3459
        %3913 = vmatprep.subr.bf16.mxu0 %v3464
        %3914 = vmatpush1.bf16.msra.mxu0 %v3463
        %3915 = vmatprep.subr.bf16.mxu0 %v3468
        %3916 = vmatpush1.bf16.msra.mxu0 %v3467
        %3917 = vmatprep.subr.bf16.mxu0 %v3472
        %3918 = vmatpush1.bf16.msra.mxu0 %v3471
        %3919 = vmatprep.subr.bf16.mxu0 %v3476
        %3920 = vmatpush1.bf16.msra.mxu0 %v3475
        %3921 = vmatprep.subr.bf16.mxu0 %v3480
        %3922 = vmatpush1.bf16.msra.mxu0 %v3479
        %3923 = vmatprep.subr.bf16.mxu0 %v3484
        %3924 = vmatpush1.bf16.msra.mxu0 %v3483
        %3925 = vmatprep.subr.bf16.mxu0 %v3488
        %3926 = vmatpush1.bf16.msra.mxu0 %v3487
        %3927 = vmatprep.subr.bf16.mxu0 %v3492
        %3928 = vmatpush1.bf16.msra.mxu0 %v3491
        %3929 = vmatprep.mubr.bf16.mxu0 %v2524
        %3930 = vmatmul.mubr.bf16.gmra.mrb[0].mxu0 %v2523
        %v3931 = vpop.f32.mrb[0].mxu0
        %v3932 = vadd.f32 %v3891, %v3931
        %v3933 = vpop.f32.mrb[0].mxu0
        %v3934 = vadd.f32 %v3893, %v3933
        %v3935 = vpop.f32.mrb[0].mxu0
        %v3936 = vpop.f32.mrb[0].mxu0
        %3937 = vdwg.mxu0
        %3938 = vmatprep.subr.bf16.mxu0 %v3496
        %3939 = vmatpush1.bf16.msra.mxu0 %v3495
        %3940 = vmatprep.subr.bf16.mxu0 %v3500
        %3941 = vmatpush1.bf16.msra.mxu0 %v3499
        %3942 = vmatprep.subr.bf16.mxu0 %v3504
        %3943 = vmatpush1.bf16.msra.mxu0 %v3503
        %3944 = vmatprep.subr.bf16.mxu0 %v3508
        %3945 = vmatpush1.bf16.msra.mxu0 %v3507
        %3946 = vmatprep.subr.bf16.mxu0 %v3512
        %3947 = vmatpush1.bf16.msra.mxu0 %v3511
        %3948 = vmatprep.subr.bf16.mxu0 %v3516
        %3949 = vmatpush1.bf16.msra.mxu0 %v3515
        %3950 = vmatprep.subr.bf16.mxu0 %v3520
        %3951 = vmatpush1.bf16.msra.mxu0 %v3519
        %3952 = vmatprep.subr.bf16.mxu0 %v3524
        %3953 = vmatpush1.bf16.msra.mxu0 %v3523
        %3954 = vmatprep.subr.bf16.mxu0 %v3528
        %3955 = vmatpush1.bf16.msra.mxu0 %v3527
        %3956 = vmatprep.subr.bf16.mxu0 %v3532
        %3957 = vmatpush1.bf16.msra.mxu0 %v3531
        %3958 = vmatprep.subr.bf16.mxu0 %v3536
        %3959 = vmatpush1.bf16.msra.mxu0 %v3535
        %3960 = vmatprep.subr.bf16.mxu0 %v3540
        %3961 = vmatpush1.bf16.msra.mxu0 %v3539
        %3962 = vmatprep.subr.bf16.mxu0 %v3544
        %3963 = vmatpush1.bf16.msra.mxu0 %v3543
        %3964 = vmatprep.subr.bf16.mxu0 %v3548
        %3965 = vmatpush1.bf16.msra.mxu0 %v3547
        %3966 = vmatprep.subr.bf16.mxu0 %v3552
        %3967 = vmatpush1.bf16.msra.mxu0 %v3551
        %3968 = vmatprep.subr.bf16.mxu0 %v3556
        %3969 = vmatpush1.bf16.msra.mxu0 %v3555
        %3970 = vmatprep.mubr.bf16.mxu0 %v2526
        %3971 = vmatmul.mubr.bf16.gmra.mrb[0].mxu0 %v2525
        %v3972 = vpop.f32.mrb[0].mxu0
        %v3973 = vadd.f32 %v3932, %v3972
        %v3974 = vpop.f32.mrb[0].mxu0
        %v3975 = vadd.f32 %v3934, %v3974
        %v3976 = vpop.f32.mrb[0].mxu0
        %v3977 = vpop.f32.mrb[0].mxu0
        %3978 = vdwg.mxu0
        %3979 = vmatprep.subr.bf16.mxu0 %v3306
        %3980 = vmatpush1.bf16.msra.mxu0 %v3305
        %3981 = vmatprep.subr.bf16.mxu0 %v3310
        %3982 = vmatpush1.bf16.msra.mxu0 %v3309
        %3983 = vmatprep.subr.bf16.mxu0 %v3314
        %3984 = vmatpush1.bf16.msra.mxu0 %v3313
        %3985 = vmatprep.subr.bf16.mxu0 %v3318
        %3986 = vmatpush1.bf16.msra.mxu0 %v3317
        %3987 = vmatprep.subr.bf16.mxu0 %v3322
        %3988 = vmatpush1.bf16.msra.mxu0 %v3321
        %3989 = vmatprep.subr.bf16.mxu0 %v3326
        %3990 = vmatpush1.bf16.msra.mxu0 %v3325
        %3991 = vmatprep.subr.bf16.mxu0 %v3330
        %3992 = vmatpush1.bf16.msra.mxu0 %v3329
        %3993 = vmatprep.subr.bf16.mxu0 %v3334
        %3994 = vmatpush1.bf16.msra.mxu0 %v3333
        %3995 = vmatprep.subr.bf16.mxu0 %v3338
        %3996 = vmatpush1.bf16.msra.mxu0 %v3337
        %3997 = vmatprep.subr.bf16.mxu0 %v3342
        %3998 = vmatpush1.bf16.msra.mxu0 %v3341
        %3999 = vmatprep.subr.bf16.mxu0 %v3346
        %4000 = vmatpush1.bf16.msra.mxu0 %v3345
        %4001 = vmatprep.subr.bf16.mxu0 %v3350
        %4002 = vmatpush1.bf16.msra.mxu0 %v3349
        %4003 = vmatprep.subr.bf16.mxu0 %v3354
        %4004 = vmatpush1.bf16.msra.mxu0 %v3353
        %4005 = vmatprep.subr.bf16.mxu0 %v3358
        %4006 = vmatpush1.bf16.msra.mxu0 %v3357
        %4007 = vmatprep.subr.bf16.mxu0 %v3362
        %4008 = vmatpush1.bf16.msra.mxu0 %v3361
        %4009 = vmatprep.subr.bf16.mxu0 %v3366
        %4010 = vmatpush1.bf16.msra.mxu0 %v3365
        %4011 = vmatprep.mubr.bf16.mxu0 %v2520
        %4012 = vmatmul.mubr.bf16.gmra.mrb[0].mxu0 %v2519
        %v4013 = vpop.f32.mrb[0].mxu0
        %v4014 = vadd.f32 %v2501, %v4013
        %v4015 = vpop.f32.mrb[0].mxu0
        %v4016 = vadd.f32 %v2503, %v4015
        %v4017 = vpop.f32.mrb[0].mxu0
        %v4018 = vpop.f32.mrb[0].mxu0
        %4019 = vdwg.mxu0
        %4020 = vmatprep.subr.bf16.mxu0 %v3370
        %4021 = vmatpush1.bf16.msra.mxu0 %v3369
        %4022 = vmatprep.subr.bf16.mxu0 %v3374
        %4023 = vmatpush1.bf16.msra.mxu0 %v3373
        %4024 = vmatprep.subr.bf16.mxu0 %v3378
        %4025 = vmatpush1.bf16.msra.mxu0 %v3377
        %4026 = vmatprep.subr.bf16.mxu0 %v3382
        %4027 = vmatpush1.bf16.msra.mxu0 %v3381
        %4028 = vmatprep.subr.bf16.mxu0 %v3386
        %4029 = vmatpush1.bf16.msra.mxu0 %v3385
        %4030 = vmatprep.subr.bf16.mxu0 %v3390
        %4031 = vmatpush1.bf16.msra.mxu0 %v3389
        %4032 = vmatprep.subr.bf16.mxu0 %v3394
        %4033 = vmatpush1.bf16.msra.mxu0 %v3393
        %4034 = vmatprep.subr.bf16.mxu0 %v3398
        %4035 = vmatpush1.bf16.msra.mxu0 %v3397
        %4036 = vmatprep.subr.bf16.mxu0 %v3402
        %4037 = vmatpush1.bf16.msra.mxu0 %v3401
        %4038 = vmatprep.subr.bf16.mxu0 %v3406
        %4039 = vmatpush1.bf16.msra.mxu0 %v3405
        %4040 = vmatprep.subr.bf16.mxu0 %v3410
        %4041 = vmatpush1.bf16.msra.mxu0 %v3409
        %4042 = vmatprep.subr.bf16.mxu0 %v3414
        %4043 = vmatpush1.bf16.msra.mxu0 %v3413
        %4044 = vmatprep.subr.bf16.mxu0 %v3418
        %4045 = vmatpush1.bf16.msra.mxu0 %v3417
        %4046 = vmatprep.subr.bf16.mxu0 %v3422
        %4047 = vmatpush1.bf16.msra.mxu0 %v3421
        %4048 = vmatprep.subr.bf16.mxu0 %v3426
        %4049 = vmatpush1.bf16.msra.mxu0 %v3425
        %4050 = vmatprep.subr.bf16.mxu0 %v3430
        %4051 = vmatpush1.bf16.msra.mxu0 %v3429
        %4052 = vmatprep.mubr.bf16.mxu0 %v2522
        %4053 = vmatmul.mubr.bf16.gmra.mrb[0].mxu0 %v2521
        %v4054 = vpop.f32.mrb[0].mxu0
        %v4055 = vadd.f32 %v4014, %v4054
        %v4056 = vpop.f32.mrb[0].mxu0
        %v4057 = vadd.f32 %v4016, %v4056
        %v4058 = vpop.f32.mrb[0].mxu0
        %v4059 = vpop.f32.mrb[0].mxu0
        %4060 = vdwg.mxu0
        %4061 = vmatprep.subr.bf16.mxu0 %v3434
        %4062 = vmatpush1.bf16.msra.mxu0 %v3433
        %4063 = vmatprep.subr.bf16.mxu0 %v3438
        %4064 = vmatpush1.bf16.msra.mxu0 %v3437
        %4065 = vmatprep.subr.bf16.mxu0 %v3442
        %4066 = vmatpush1.bf16.msra.mxu0 %v3441
        %4067 = vmatprep.subr.bf16.mxu0 %v3446
        %4068 = vmatpush1.bf16.msra.mxu0 %v3445
        %4069 = vmatprep.subr.bf16.mxu0 %v3450
        %4070 = vmatpush1.bf16.msra.mxu0 %v3449
        %4071 = vmatprep.subr.bf16.mxu0 %v3454
        %4072 = vmatpush1.bf16.msra.mxu0 %v3453
        %4073 = vmatprep.subr.bf16.mxu0 %v3458
        %4074 = vmatpush1.bf16.msra.mxu0 %v3457
        %4075 = vmatprep.subr.bf16.mxu0 %v3462
        %4076 = vmatpush1.bf16.msra.mxu0 %v3461
        %4077 = vmatprep.subr.bf16.mxu0 %v3466
        %4078 = vmatpush1.bf16.msra.mxu0 %v3465
        %4079 = vmatprep.subr.bf16.mxu0 %v3470
        %4080 = vmatpush1.bf16.msra.mxu0 %v3469
        %4081 = vmatprep.subr.bf16.mxu0 %v3474
        %4082 = vmatpush1.bf16.msra.mxu0 %v3473
        %4083 = vmatprep.subr.bf16.mxu0 %v3478
        %4084 = vmatpush1.bf16.msra.mxu0 %v3477
        %4085 = vmatprep.subr.bf16.mxu0 %v3482
        %4086 = vmatpush1.bf16.msra.mxu0 %v3481
        %4087 = vmatprep.subr.bf16.mxu0 %v3486
        %4088 = vmatpush1.bf16.msra.mxu0 %v3485
        %4089 = vmatprep.subr.bf16.mxu0 %v3490
        %4090 = vmatpush1.bf16.msra.mxu0 %v3489
        %4091 = vmatprep.subr.bf16.mxu0 %v3494
        %4092 = vmatpush1.bf16.msra.mxu0 %v3493
        %4093 = vmatprep.mubr.bf16.mxu0 %v2524
        %4094 = vmatmul.mubr.bf16.gmra.mrb[0].mxu0 %v2523
        %v4095 = vpop.f32.mrb[0].mxu0
        %v4096 = vadd.f32 %v4055, %v4095
        %v4097 = vpop.f32.mrb[0].mxu0
        %v4098 = vadd.f32 %v4057, %v4097
        %v4099 = vpop.f32.mrb[0].mxu0
        %v4100 = vpop.f32.mrb[0].mxu0
        %4101 = vdwg.mxu0
        %4102 = vmatprep.subr.bf16.mxu0 %v3498
        %4103 = vmatpush1.bf16.msra.mxu0 %v3497
        %4104 = vmatprep.subr.bf16.mxu0 %v3502
        %4105 = vmatpush1.bf16.msra.mxu0 %v3501
        %4106 = vmatprep.subr.bf16.mxu0 %v3506
        %4107 = vmatpush1.bf16.msra.mxu0 %v3505
        %4108 = vmatprep.subr.bf16.mxu0 %v3510
        %4109 = vmatpush1.bf16.msra.mxu0 %v3509
        %4110 = vmatprep.subr.bf16.mxu0 %v3514
        %4111 = vmatpush1.bf16.msra.mxu0 %v3513
        %4112 = vmatprep.subr.bf16.mxu0 %v3518
        %4113 = vmatpush1.bf16.msra.mxu0 %v3517
        %4114 = vmatprep.subr.bf16.mxu0 %v3522
        %4115 = vmatpush1.bf16.msra.mxu0 %v3521
        %4116 = vmatprep.subr.bf16.mxu0 %v3526
        %4117 = vmatpush1.bf16.msra.mxu0 %v3525
        %4118 = vmatprep.subr.bf16.mxu0 %v3530
        %4119 = vmatpush1.bf16.msra.mxu0 %v3529
        %4120 = vmatprep.subr.bf16.mxu0 %v3534
        %4121 = vmatpush1.bf16.msra.mxu0 %v3533
        %4122 = vmatprep.subr.bf16.mxu0 %v3538
        %4123 = vmatpush1.bf16.msra.mxu0 %v3537
        %4124 = vmatprep.subr.bf16.mxu0 %v3542
        %4125 = vmatpush1.bf16.msra.mxu0 %v3541
        %4126 = vmatprep.subr.bf16.mxu0 %v3546
        %4127 = vmatpush1.bf16.msra.mxu0 %v3545
        %4128 = vmatprep.subr.bf16.mxu0 %v3550
        %4129 = vmatpush1.bf16.msra.mxu0 %v3549
        %4130 = vmatprep.subr.bf16.mxu0 %v3554
        %4131 = vmatpush1.bf16.msra.mxu0 %v3553
        %4132 = vmatprep.subr.bf16.mxu0 %v3558
        %4133 = vmatpush1.bf16.msra.mxu0 %v3557
        %4134 = vmatprep.mubr.bf16.mxu0 %v2526
        %4135 = vmatmul.mubr.bf16.gmra.mrb[0].mxu0 %v2525
        %v4136 = vpop.f32.mrb[0].mxu0
        %v4137 = vadd.f32 %v4096, %v4136
        %v4138 = vpop.f32.mrb[0].mxu0
        %v4139 = vadd.f32 %v4098, %v4138
        %v4140 = vpop.f32.mrb[0].mxu0
        %v4141 = vpop.f32.mrb[0].mxu0
        %4142 = vdwg.mxu0
        %v4143 = vld [vmem:[%s290] sm:$0x22]
        %v4144 = vld [vmem:[%s290 + $0x8] sm:$0x22]
        %v4145 = vld [vmem:[%s290 + $0x10] sm:$0x22]
        %v4146 = vld [vmem:[%s290 + $0x18] sm:$0x22]
        %s4147 = scalar_lea.vmem [#allocation3], 4096
        %v4148 = vld [vmem:[%s4147] sm:$0xff]
        %v4149 = vld [vmem:[%s4147 + $0x8] sm:$0xff]
        %v4150 = vld [vmem:[%s4147 + $0x10] sm:$0xff]
        %v4151 = vld [vmem:[%s4147 + $0x18] sm:$0xff]
        %v4152 = vld [vmem:[%s4147 + $0x20] sm:$0xff]
        %v4153 = vld [vmem:[%s4147 + $0x28] sm:$0xff]
        %v4154 = vld [vmem:[%s4147 + $0x30] sm:$0xff]
        %v4155 = vld [vmem:[%s4147 + $0x38] sm:$0xff]
        %v4156 = vld [vmem:[%s4147 + $0x40] sm:$0xff]
        %v4157 = vld [vmem:[%s4147 + $0x48] sm:$0xff]
        %v4158 = vld [vmem:[%s4147 + $0x50] sm:$0xff]
        %v4159 = vld [vmem:[%s4147 + $0x58] sm:$0xff]
        %v4160 = vld [vmem:[%s4147 + $0x60] sm:$0xff]
        %v4161 = vld [vmem:[%s4147 + $0x68] sm:$0xff]
        %v4162 = vld [vmem:[%s4147 + $0x70] sm:$0xff]
        %v4163 = vld [vmem:[%s4147 + $0x78] sm:$0xff]
        %v4164 = vld [vmem:[%s4147 + $0x80] sm:$0xff]
        %v4165 = vld [vmem:[%s4147 + $0x88] sm:$0xff]
        %v4166 = vld [vmem:[%s4147 + $0x90] sm:$0xff]
        %v4167 = vld [vmem:[%s4147 + $0x98] sm:$0xff]
        %v4168 = vld [vmem:[%s4147 + $0xa0] sm:$0xff]
        %v4169 = vld [vmem:[%s4147 + $0xa8] sm:$0xff]
        %v4170 = vld [vmem:[%s4147 + $0xb0] sm:$0xff]
        %v4171 = vld [vmem:[%s4147 + $0xb8] sm:$0xff]
        %v4172 = vld [vmem:[%s4147 + $0xc0] sm:$0xff]
        %v4173 = vld [vmem:[%s4147 + $0xc8] sm:$0xff]
        %v4174 = vld [vmem:[%s4147 + $0xd0] sm:$0xff]
        %v4175 = vld [vmem:[%s4147 + $0xd8] sm:$0xff]
        %v4176 = vld [vmem:[%s4147 + $0xe0] sm:$0xff]
        %v4177 = vld [vmem:[%s4147 + $0xe8] sm:$0xff]
        %v4178 = vld [vmem:[%s4147 + $0xf0] sm:$0xff]
        %v4179 = vld [vmem:[%s4147 + $0xf8] sm:$0xff]
        %v4180 = vld [vmem:[%s4147 + $0x100] sm:$0xff]
        %v4181 = vld [vmem:[%s4147 + $0x108] sm:$0xff]
        %v4182 = vld [vmem:[%s4147 + $0x110] sm:$0xff]
        %v4183 = vld [vmem:[%s4147 + $0x118] sm:$0xff]
        %v4184 = vld [vmem:[%s4147 + $0x120] sm:$0xff]
        %v4185 = vld [vmem:[%s4147 + $0x128] sm:$0xff]
        %v4186 = vld [vmem:[%s4147 + $0x130] sm:$0xff]
        %v4187 = vld [vmem:[%s4147 + $0x138] sm:$0xff]
        %v4188 = vld [vmem:[%s4147 + $0x140] sm:$0xff]
        %v4189 = vld [vmem:[%s4147 + $0x148] sm:$0xff]
        %v4190 = vld [vmem:[%s4147 + $0x150] sm:$0xff]
        %v4191 = vld [vmem:[%s4147 + $0x158] sm:$0xff]
        %v4192 = vld [vmem:[%s4147 + $0x160] sm:$0xff]
        %v4193 = vld [vmem:[%s4147 + $0x168] sm:$0xff]
        %v4194 = vld [vmem:[%s4147 + $0x170] sm:$0xff]
        %v4195 = vld [vmem:[%s4147 + $0x178] sm:$0xff]
        %v4196 = vld [vmem:[%s4147 + $0x180] sm:$0xff]
        %v4197 = vld [vmem:[%s4147 + $0x188] sm:$0xff]
        %v4198 = vld [vmem:[%s4147 + $0x190] sm:$0xff]
        %v4199 = vld [vmem:[%s4147 + $0x198] sm:$0xff]
        %v4200 = vld [vmem:[%s4147 + $0x1a0] sm:$0xff]
        %v4201 = vld [vmem:[%s4147 + $0x1a8] sm:$0xff]
        %v4202 = vld [vmem:[%s4147 + $0x1b0] sm:$0xff]
        %v4203 = vld [vmem:[%s4147 + $0x1b8] sm:$0xff]
        %v4204 = vld [vmem:[%s4147 + $0x1c0] sm:$0xff]
        %v4205 = vld [vmem:[%s4147 + $0x1c8] sm:$0xff]
        %v4206 = vld [vmem:[%s4147 + $0x1d0] sm:$0xff]
        %v4207 = vld [vmem:[%s4147 + $0x1d8] sm:$0xff]
        %v4208 = vld [vmem:[%s4147 + $0x1e0] sm:$0xff]
        %v4209 = vld [vmem:[%s4147 + $0x1e8] sm:$0xff]
        %v4210 = vld [vmem:[%s4147 + $0x1f0] sm:$0xff]
        %v4211 = vld [vmem:[%s4147 + $0x1f8] sm:$0xff]
        %v4212 = vld [vmem:[%s4147 + $0x200] sm:$0xff]
        %v4213 = vld [vmem:[%s4147 + $0x208] sm:$0xff]
        %v4214 = vld [vmem:[%s4147 + $0x210] sm:$0xff]
        %v4215 = vld [vmem:[%s4147 + $0x218] sm:$0xff]
        %v4216 = vld [vmem:[%s4147 + $0x220] sm:$0xff]
        %v4217 = vld [vmem:[%s4147 + $0x228] sm:$0xff]
        %v4218 = vld [vmem:[%s4147 + $0x230] sm:$0xff]
        %v4219 = vld [vmem:[%s4147 + $0x238] sm:$0xff]
        %v4220 = vld [vmem:[%s4147 + $0x240] sm:$0xff]
        %v4221 = vld [vmem:[%s4147 + $0x248] sm:$0xff]
        %v4222 = vld [vmem:[%s4147 + $0x250] sm:$0xff]
        %v4223 = vld [vmem:[%s4147 + $0x258] sm:$0xff]
        %v4224 = vld [vmem:[%s4147 + $0x260] sm:$0xff]
        %v4225 = vld [vmem:[%s4147 + $0x268] sm:$0xff]
        %v4226 = vld [vmem:[%s4147 + $0x270] sm:$0xff]
        %v4227 = vld [vmem:[%s4147 + $0x278] sm:$0xff]
        %v4228 = vld [vmem:[%s4147 + $0x280] sm:$0xff]
        %v4229 = vld [vmem:[%s4147 + $0x288] sm:$0xff]
        %v4230 = vld [vmem:[%s4147 + $0x290] sm:$0xff]
        %v4231 = vld [vmem:[%s4147 + $0x298] sm:$0xff]
        %v4232 = vld [vmem:[%s4147 + $0x2a0] sm:$0xff]
        %v4233 = vld [vmem:[%s4147 + $0x2a8] sm:$0xff]
        %v4234 = vld [vmem:[%s4147 + $0x2b0] sm:$0xff]
        %v4235 = vld [vmem:[%s4147 + $0x2b8] sm:$0xff]
        %v4236 = vld [vmem:[%s4147 + $0x2c0] sm:$0xff]
        %v4237 = vld [vmem:[%s4147 + $0x2c8] sm:$0xff]
        %v4238 = vld [vmem:[%s4147 + $0x2d0] sm:$0xff]
        %v4239 = vld [vmem:[%s4147 + $0x2d8] sm:$0xff]
        %v4240 = vld [vmem:[%s4147 + $0x2e0] sm:$0xff]
        %v4241 = vld [vmem:[%s4147 + $0x2e8] sm:$0xff]
        %v4242 = vld [vmem:[%s4147 + $0x2f0] sm:$0xff]
        %v4243 = vld [vmem:[%s4147 + $0x2f8] sm:$0xff]
        %v4244 = vld [vmem:[%s4147 + $0x300] sm:$0xff]
        %v4245 = vld [vmem:[%s4147 + $0x308] sm:$0xff]
        %v4246 = vld [vmem:[%s4147 + $0x310] sm:$0xff]
        %v4247 = vld [vmem:[%s4147 + $0x318] sm:$0xff]
        %v4248 = vld [vmem:[%s4147 + $0x320] sm:$0xff]
        %v4249 = vld [vmem:[%s4147 + $0x328] sm:$0xff]
        %v4250 = vld [vmem:[%s4147 + $0x330] sm:$0xff]
        %v4251 = vld [vmem:[%s4147 + $0x338] sm:$0xff]
        %v4252 = vld [vmem:[%s4147 + $0x340] sm:$0xff]
        %v4253 = vld [vmem:[%s4147 + $0x348] sm:$0xff]
        %v4254 = vld [vmem:[%s4147 + $0x350] sm:$0xff]
        %v4255 = vld [vmem:[%s4147 + $0x358] sm:$0xff]
        %v4256 = vld [vmem:[%s4147 + $0x360] sm:$0xff]
        %v4257 = vld [vmem:[%s4147 + $0x368] sm:$0xff]
        %v4258 = vld [vmem:[%s4147 + $0x370] sm:$0xff]
        %v4259 = vld [vmem:[%s4147 + $0x378] sm:$0xff]
        %v4260 = vld [vmem:[%s4147 + $0x380] sm:$0xff]
        %v4261 = vld [vmem:[%s4147 + $0x388] sm:$0xff]
        %v4262 = vld [vmem:[%s4147 + $0x390] sm:$0xff]
        %v4263 = vld [vmem:[%s4147 + $0x398] sm:$0xff]
        %v4264 = vld [vmem:[%s4147 + $0x3a0] sm:$0xff]
        %v4265 = vld [vmem:[%s4147 + $0x3a8] sm:$0xff]
        %v4266 = vld [vmem:[%s4147 + $0x3b0] sm:$0xff]
        %v4267 = vld [vmem:[%s4147 + $0x3b8] sm:$0xff]
        %v4268 = vld [vmem:[%s4147 + $0x3c0] sm:$0xff]
        %v4269 = vld [vmem:[%s4147 + $0x3c8] sm:$0xff]
        %v4270 = vld [vmem:[%s4147 + $0x3d0] sm:$0xff]
        %v4271 = vld [vmem:[%s4147 + $0x3d8] sm:$0xff]
        %v4272 = vld [vmem:[%s4147 + $0x3e0] sm:$0xff]
        %v4273 = vld [vmem:[%s4147 + $0x3e8] sm:$0xff]
        %v4274 = vld [vmem:[%s4147 + $0x3f0] sm:$0xff]
        %v4275 = vld [vmem:[%s4147 + $0x3f8] sm:$0xff]
        %v4276 = vld [vmem:[%s4147 + $0x400] sm:$0xff]
        %v4277 = vld [vmem:[%s4147 + $0x408] sm:$0xff]
        %v4278 = vld [vmem:[%s4147 + $0x410] sm:$0xff]
        %v4279 = vld [vmem:[%s4147 + $0x418] sm:$0xff]
        %v4280 = vld [vmem:[%s4147 + $0x420] sm:$0xff]
        %v4281 = vld [vmem:[%s4147 + $0x428] sm:$0xff]
        %v4282 = vld [vmem:[%s4147 + $0x430] sm:$0xff]
        %v4283 = vld [vmem:[%s4147 + $0x438] sm:$0xff]
        %v4284 = vld [vmem:[%s4147 + $0x440] sm:$0xff]
        %v4285 = vld [vmem:[%s4147 + $0x448] sm:$0xff]
        %v4286 = vld [vmem:[%s4147 + $0x450] sm:$0xff]
        %v4287 = vld [vmem:[%s4147 + $0x458] sm:$0xff]
        %v4288 = vld [vmem:[%s4147 + $0x460] sm:$0xff]
        %v4289 = vld [vmem:[%s4147 + $0x468] sm:$0xff]
        %v4290 = vld [vmem:[%s4147 + $0x470] sm:$0xff]
        %v4291 = vld [vmem:[%s4147 + $0x478] sm:$0xff]
        %v4292 = vld [vmem:[%s4147 + $0x480] sm:$0xff]
        %v4293 = vld [vmem:[%s4147 + $0x488] sm:$0xff]
        %v4294 = vld [vmem:[%s4147 + $0x490] sm:$0xff]
        %v4295 = vld [vmem:[%s4147 + $0x498] sm:$0xff]
        %v4296 = vld [vmem:[%s4147 + $0x4a0] sm:$0xff]
        %v4297 = vld [vmem:[%s4147 + $0x4a8] sm:$0xff]
        %v4298 = vld [vmem:[%s4147 + $0x4b0] sm:$0xff]
        %v4299 = vld [vmem:[%s4147 + $0x4b8] sm:$0xff]
        %v4300 = vld [vmem:[%s4147 + $0x4c0] sm:$0xff]
        %v4301 = vld [vmem:[%s4147 + $0x4c8] sm:$0xff]
        %v4302 = vld [vmem:[%s4147 + $0x4d0] sm:$0xff]
        %v4303 = vld [vmem:[%s4147 + $0x4d8] sm:$0xff]
        %v4304 = vld [vmem:[%s4147 + $0x4e0] sm:$0xff]
        %v4305 = vld [vmem:[%s4147 + $0x4e8] sm:$0xff]
        %v4306 = vld [vmem:[%s4147 + $0x4f0] sm:$0xff]
        %v4307 = vld [vmem:[%s4147 + $0x4f8] sm:$0xff]
        %v4308 = vld [vmem:[%s4147 + $0x500] sm:$0xff]
        %v4309 = vld [vmem:[%s4147 + $0x508] sm:$0xff]
        %v4310 = vld [vmem:[%s4147 + $0x510] sm:$0xff]
        %v4311 = vld [vmem:[%s4147 + $0x518] sm:$0xff]
        %v4312 = vld [vmem:[%s4147 + $0x520] sm:$0xff]
        %v4313 = vld [vmem:[%s4147 + $0x528] sm:$0xff]
        %v4314 = vld [vmem:[%s4147 + $0x530] sm:$0xff]
        %v4315 = vld [vmem:[%s4147 + $0x538] sm:$0xff]
        %v4316 = vld [vmem:[%s4147 + $0x540] sm:$0xff]
        %v4317 = vld [vmem:[%s4147 + $0x548] sm:$0xff]
        %v4318 = vld [vmem:[%s4147 + $0x550] sm:$0xff]
        %v4319 = vld [vmem:[%s4147 + $0x558] sm:$0xff]
        %v4320 = vld [vmem:[%s4147 + $0x560] sm:$0xff]
        %v4321 = vld [vmem:[%s4147 + $0x568] sm:$0xff]
        %v4322 = vld [vmem:[%s4147 + $0x570] sm:$0xff]
        %v4323 = vld [vmem:[%s4147 + $0x578] sm:$0xff]
        %v4324 = vld [vmem:[%s4147 + $0x580] sm:$0xff]
        %v4325 = vld [vmem:[%s4147 + $0x588] sm:$0xff]
        %v4326 = vld [vmem:[%s4147 + $0x590] sm:$0xff]
        %v4327 = vld [vmem:[%s4147 + $0x598] sm:$0xff]
        %v4328 = vld [vmem:[%s4147 + $0x5a0] sm:$0xff]
        %v4329 = vld [vmem:[%s4147 + $0x5a8] sm:$0xff]
        %v4330 = vld [vmem:[%s4147 + $0x5b0] sm:$0xff]
        %v4331 = vld [vmem:[%s4147 + $0x5b8] sm:$0xff]
        %v4332 = vld [vmem:[%s4147 + $0x5c0] sm:$0xff]
        %v4333 = vld [vmem:[%s4147 + $0x5c8] sm:$0xff]
        %v4334 = vld [vmem:[%s4147 + $0x5d0] sm:$0xff]
        %v4335 = vld [vmem:[%s4147 + $0x5d8] sm:$0xff]
        %v4336 = vld [vmem:[%s4147 + $0x5e0] sm:$0xff]
        %v4337 = vld [vmem:[%s4147 + $0x5e8] sm:$0xff]
        %v4338 = vld [vmem:[%s4147 + $0x5f0] sm:$0xff]
        %v4339 = vld [vmem:[%s4147 + $0x5f8] sm:$0xff]
        %v4340 = vld [vmem:[%s4147 + $0x600] sm:$0xff]
        %v4341 = vld [vmem:[%s4147 + $0x608] sm:$0xff]
        %v4342 = vld [vmem:[%s4147 + $0x610] sm:$0xff]
        %v4343 = vld [vmem:[%s4147 + $0x618] sm:$0xff]
        %v4344 = vld [vmem:[%s4147 + $0x620] sm:$0xff]
        %v4345 = vld [vmem:[%s4147 + $0x628] sm:$0xff]
        %v4346 = vld [vmem:[%s4147 + $0x630] sm:$0xff]
        %v4347 = vld [vmem:[%s4147 + $0x638] sm:$0xff]
        %v4348 = vld [vmem:[%s4147 + $0x640] sm:$0xff]
        %v4349 = vld [vmem:[%s4147 + $0x648] sm:$0xff]
        %v4350 = vld [vmem:[%s4147 + $0x650] sm:$0xff]
        %v4351 = vld [vmem:[%s4147 + $0x658] sm:$0xff]
        %v4352 = vld [vmem:[%s4147 + $0x660] sm:$0xff]
        %v4353 = vld [vmem:[%s4147 + $0x668] sm:$0xff]
        %v4354 = vld [vmem:[%s4147 + $0x670] sm:$0xff]
        %v4355 = vld [vmem:[%s4147 + $0x678] sm:$0xff]
        %v4356 = vld [vmem:[%s4147 + $0x680] sm:$0xff]
        %v4357 = vld [vmem:[%s4147 + $0x688] sm:$0xff]
        %v4358 = vld [vmem:[%s4147 + $0x690] sm:$0xff]
        %v4359 = vld [vmem:[%s4147 + $0x698] sm:$0xff]
        %v4360 = vld [vmem:[%s4147 + $0x6a0] sm:$0xff]
        %v4361 = vld [vmem:[%s4147 + $0x6a8] sm:$0xff]
        %v4362 = vld [vmem:[%s4147 + $0x6b0] sm:$0xff]
        %v4363 = vld [vmem:[%s4147 + $0x6b8] sm:$0xff]
        %v4364 = vld [vmem:[%s4147 + $0x6c0] sm:$0xff]
        %v4365 = vld [vmem:[%s4147 + $0x6c8] sm:$0xff]
        %v4366 = vld [vmem:[%s4147 + $0x6d0] sm:$0xff]
        %v4367 = vld [vmem:[%s4147 + $0x6d8] sm:$0xff]
        %v4368 = vld [vmem:[%s4147 + $0x6e0] sm:$0xff]
        %v4369 = vld [vmem:[%s4147 + $0x6e8] sm:$0xff]
        %v4370 = vld [vmem:[%s4147 + $0x6f0] sm:$0xff]
        %v4371 = vld [vmem:[%s4147 + $0x6f8] sm:$0xff]
        %v4372 = vld [vmem:[%s4147 + $0x700] sm:$0xff]
        %v4373 = vld [vmem:[%s4147 + $0x708] sm:$0xff]
        %v4374 = vld [vmem:[%s4147 + $0x710] sm:$0xff]
        %v4375 = vld [vmem:[%s4147 + $0x718] sm:$0xff]
        %v4376 = vld [vmem:[%s4147 + $0x720] sm:$0xff]
        %v4377 = vld [vmem:[%s4147 + $0x728] sm:$0xff]
        %v4378 = vld [vmem:[%s4147 + $0x730] sm:$0xff]
        %v4379 = vld [vmem:[%s4147 + $0x738] sm:$0xff]
        %v4380 = vld [vmem:[%s4147 + $0x740] sm:$0xff]
        %v4381 = vld [vmem:[%s4147 + $0x748] sm:$0xff]
        %v4382 = vld [vmem:[%s4147 + $0x750] sm:$0xff]
        %v4383 = vld [vmem:[%s4147 + $0x758] sm:$0xff]
        %v4384 = vld [vmem:[%s4147 + $0x760] sm:$0xff]
        %v4385 = vld [vmem:[%s4147 + $0x768] sm:$0xff]
        %v4386 = vld [vmem:[%s4147 + $0x770] sm:$0xff]
        %v4387 = vld [vmem:[%s4147 + $0x778] sm:$0xff]
        %v4388 = vld [vmem:[%s4147 + $0x780] sm:$0xff]
        %v4389 = vld [vmem:[%s4147 + $0x788] sm:$0xff]
        %v4390 = vld [vmem:[%s4147 + $0x790] sm:$0xff]
        %v4391 = vld [vmem:[%s4147 + $0x798] sm:$0xff]
        %v4392 = vld [vmem:[%s4147 + $0x7a0] sm:$0xff]
        %v4393 = vld [vmem:[%s4147 + $0x7a8] sm:$0xff]
        %v4394 = vld [vmem:[%s4147 + $0x7b0] sm:$0xff]
        %v4395 = vld [vmem:[%s4147 + $0x7b8] sm:$0xff]
        %v4396 = vld [vmem:[%s4147 + $0x7c0] sm:$0xff]
        %v4397 = vld [vmem:[%s4147 + $0x7c8] sm:$0xff]
        %v4398 = vld [vmem:[%s4147 + $0x7d0] sm:$0xff]
        %v4399 = vld [vmem:[%s4147 + $0x7d8] sm:$0xff]
        %v4400 = vld [vmem:[%s4147 + $0x7e0] sm:$0xff]
        %v4401 = vld [vmem:[%s4147 + $0x7e8] sm:$0xff]
        %v4402 = vld [vmem:[%s4147 + $0x7f0] sm:$0xff]
        %v4403 = vld [vmem:[%s4147 + $0x7f8] sm:$0xff]
        %v4408 = vunpack.c.l.b16 %v4143
        %v4409 = vunpack.c.h.b16 %v4143
        %v4410 = vunpack.c.l.b16 %v4144
        %v4411 = vunpack.c.h.b16 %v4144
        %v4412 = vunpack.c.l.b16 %v4145
        %v4413 = vunpack.c.h.b16 %v4145
        %v4414 = vunpack.c.l.b16 %v4146
        %v4415 = vunpack.c.h.b16 %v4146
        %v4416 = vpack.c.b16 %v4408, %v4408
        %v4417 = vpack.c.b16 %v4409, %v4409
        %v4418 = vpack.c.b16 %v4410, %v4410
        %v4419 = vpack.c.b16 %v4411, %v4411
        %v4420 = vpack.c.b16 %v4412, %v4412
        %v4421 = vpack.c.b16 %v4413, %v4413
        %v4422 = vpack.c.b16 %v4414, %v4414
        %v4423 = vpack.c.b16 %v4415, %v4415
        %v4424 = vrot.slane %v4416, 1
        %v4425 = vrot.slane %v4417, 1
        %v4426 = vrot.slane %v4418, 1
        %v4427 = vrot.slane %v4419, 1
        %v4428 = vrot.slane %v4420, 1
        %v4429 = vrot.slane %v4421, 1
        %v4430 = vrot.slane %v4422, 1
        %v4431 = vrot.slane %v4423, 1
        %v4696 = vunpack.c.l.b16 %v4148
        %v4697 = vunpack.c.h.b16 %v4148
        %v4698 = vunpack.c.l.b16 %v4149
        %v4699 = vunpack.c.h.b16 %v4149
        %v4700 = vunpack.c.l.b16 %v4150
        %v4701 = vunpack.c.h.b16 %v4150
        %v4702 = vunpack.c.l.b16 %v4151
        %v4703 = vunpack.c.h.b16 %v4151
        %v4704 = vunpack.c.l.b16 %v4152
        %v4705 = vunpack.c.h.b16 %v4152
        %v4706 = vunpack.c.l.b16 %v4153
        %v4707 = vunpack.c.h.b16 %v4153
        %v4708 = vunpack.c.l.b16 %v4154
        %v4709 = vunpack.c.h.b16 %v4154
        %v4710 = vunpack.c.l.b16 %v4155
        %v4711 = vunpack.c.h.b16 %v4155
        %v4712 = vunpack.c.l.b16 %v4156
        %v4713 = vunpack.c.h.b16 %v4156
        %v4714 = vunpack.c.l.b16 %v4157
        %v4715 = vunpack.c.h.b16 %v4157
        %v4716 = vunpack.c.l.b16 %v4158
        %v4717 = vunpack.c.h.b16 %v4158
        %v4718 = vunpack.c.l.b16 %v4159
        %v4719 = vunpack.c.h.b16 %v4159
        %v4720 = vunpack.c.l.b16 %v4160
        %v4721 = vunpack.c.h.b16 %v4160
        %v4722 = vunpack.c.l.b16 %v4161
        %v4723 = vunpack.c.h.b16 %v4161
        %v4724 = vunpack.c.l.b16 %v4162
        %v4725 = vunpack.c.h.b16 %v4162
        %v4726 = vunpack.c.l.b16 %v4163
        %v4727 = vunpack.c.h.b16 %v4163
        %v4728 = vunpack.c.l.b16 %v4164
        %v4729 = vunpack.c.h.b16 %v4164
        %v4730 = vunpack.c.l.b16 %v4165
        %v4731 = vunpack.c.h.b16 %v4165
        %v4732 = vunpack.c.l.b16 %v4166
        %v4733 = vunpack.c.h.b16 %v4166
        %v4734 = vunpack.c.l.b16 %v4167
        %v4735 = vunpack.c.h.b16 %v4167
        %v4736 = vunpack.c.l.b16 %v4168
        %v4737 = vunpack.c.h.b16 %v4168
        %v4738 = vunpack.c.l.b16 %v4169
        %v4739 = vunpack.c.h.b16 %v4169
        %v4740 = vunpack.c.l.b16 %v4170
        %v4741 = vunpack.c.h.b16 %v4170
        %v4742 = vunpack.c.l.b16 %v4171
        %v4743 = vunpack.c.h.b16 %v4171
        %v4744 = vunpack.c.l.b16 %v4172
        %v4745 = vunpack.c.h.b16 %v4172
        %v4746 = vunpack.c.l.b16 %v4173
        %v4747 = vunpack.c.h.b16 %v4173
        %v4748 = vunpack.c.l.b16 %v4174
        %v4749 = vunpack.c.h.b16 %v4174
        %v4750 = vunpack.c.l.b16 %v4175
        %v4751 = vunpack.c.h.b16 %v4175
        %v4752 = vunpack.c.l.b16 %v4176
        %v4753 = vunpack.c.h.b16 %v4176
        %v4754 = vunpack.c.l.b16 %v4177
        %v4755 = vunpack.c.h.b16 %v4177
        %v4756 = vunpack.c.l.b16 %v4178
        %v4757 = vunpack.c.h.b16 %v4178
        %v4758 = vunpack.c.l.b16 %v4179
        %v4759 = vunpack.c.h.b16 %v4179
        %v4760 = vunpack.c.l.b16 %v4180
        %v4761 = vunpack.c.h.b16 %v4180
        %v4762 = vunpack.c.l.b16 %v4181
        %v4763 = vunpack.c.h.b16 %v4181
        %v4764 = vunpack.c.l.b16 %v4182
        %v4765 = vunpack.c.h.b16 %v4182
        %v4766 = vunpack.c.l.b16 %v4183
        %v4767 = vunpack.c.h.b16 %v4183
        %v4768 = vunpack.c.l.b16 %v4184
        %v4769 = vunpack.c.h.b16 %v4184
        %v4770 = vunpack.c.l.b16 %v4185
        %v4771 = vunpack.c.h.b16 %v4185
        %v4772 = vunpack.c.l.b16 %v4186
        %v4773 = vunpack.c.h.b16 %v4186
        %v4774 = vunpack.c.l.b16 %v4187
        %v4775 = vunpack.c.h.b16 %v4187
        %v4776 = vunpack.c.l.b16 %v4188
        %v4777 = vunpack.c.h.b16 %v4188
        %v4778 = vunpack.c.l.b16 %v4189
        %v4779 = vunpack.c.h.b16 %v4189
        %v4780 = vunpack.c.l.b16 %v4190
        %v4781 = vunpack.c.h.b16 %v4190
        %v4782 = vunpack.c.l.b16 %v4191
        %v4783 = vunpack.c.h.b16 %v4191
        %v4784 = vunpack.c.l.b16 %v4192
        %v4785 = vunpack.c.h.b16 %v4192
        %v4786 = vunpack.c.l.b16 %v4193
        %v4787 = vunpack.c.h.b16 %v4193
        %v4788 = vunpack.c.l.b16 %v4194
        %v4789 = vunpack.c.h.b16 %v4194
        %v4790 = vunpack.c.l.b16 %v4195
        %v4791 = vunpack.c.h.b16 %v4195
        %v4792 = vunpack.c.l.b16 %v4196
        %v4793 = vunpack.c.h.b16 %v4196
        %v4794 = vunpack.c.l.b16 %v4197
        %v4795 = vunpack.c.h.b16 %v4197
        %v4796 = vunpack.c.l.b16 %v4198
        %v4797 = vunpack.c.h.b16 %v4198
        %v4798 = vunpack.c.l.b16 %v4199
        %v4799 = vunpack.c.h.b16 %v4199
        %v4800 = vunpack.c.l.b16 %v4200
        %v4801 = vunpack.c.h.b16 %v4200
        %v4802 = vunpack.c.l.b16 %v4201
        %v4803 = vunpack.c.h.b16 %v4201
        %v4804 = vunpack.c.l.b16 %v4202
        %v4805 = vunpack.c.h.b16 %v4202
        %v4806 = vunpack.c.l.b16 %v4203
        %v4807 = vunpack.c.h.b16 %v4203
        %v4808 = vunpack.c.l.b16 %v4204
        %v4809 = vunpack.c.h.b16 %v4204
        %v4810 = vunpack.c.l.b16 %v4205
        %v4811 = vunpack.c.h.b16 %v4205
        %v4812 = vunpack.c.l.b16 %v4206
        %v4813 = vunpack.c.h.b16 %v4206
        %v4814 = vunpack.c.l.b16 %v4207
        %v4815 = vunpack.c.h.b16 %v4207
        %v4816 = vunpack.c.l.b16 %v4208
        %v4817 = vunpack.c.h.b16 %v4208
        %v4818 = vunpack.c.l.b16 %v4209
        %v4819 = vunpack.c.h.b16 %v4209
        %v4820 = vunpack.c.l.b16 %v4210
        %v4821 = vunpack.c.h.b16 %v4210
        %v4822 = vunpack.c.l.b16 %v4211
        %v4823 = vunpack.c.h.b16 %v4211
        %v4824 = vunpack.c.l.b16 %v4212
        %v4825 = vunpack.c.h.b16 %v4212
        %v4826 = vunpack.c.l.b16 %v4213
        %v4827 = vunpack.c.h.b16 %v4213
        %v4828 = vunpack.c.l.b16 %v4214
        %v4829 = vunpack.c.h.b16 %v4214
        %v4830 = vunpack.c.l.b16 %v4215
        %v4831 = vunpack.c.h.b16 %v4215
        %v4832 = vunpack.c.l.b16 %v4216
        %v4833 = vunpack.c.h.b16 %v4216
        %v4834 = vunpack.c.l.b16 %v4217
        %v4835 = vunpack.c.h.b16 %v4217
        %v4836 = vunpack.c.l.b16 %v4218
        %v4837 = vunpack.c.h.b16 %v4218
        %v4838 = vunpack.c.l.b16 %v4219
        %v4839 = vunpack.c.h.b16 %v4219
        %v4840 = vunpack.c.l.b16 %v4220
        %v4841 = vunpack.c.h.b16 %v4220
        %v4842 = vunpack.c.l.b16 %v4221
        %v4843 = vunpack.c.h.b16 %v4221
        %v4844 = vunpack.c.l.b16 %v4222
        %v4845 = vunpack.c.h.b16 %v4222
        %v4846 = vunpack.c.l.b16 %v4223
        %v4847 = vunpack.c.h.b16 %v4223
        %v4848 = vunpack.c.l.b16 %v4224
        %v4849 = vunpack.c.h.b16 %v4224
        %v4850 = vunpack.c.l.b16 %v4225
        %v4851 = vunpack.c.h.b16 %v4225
        %v4852 = vunpack.c.l.b16 %v4226
        %v4853 = vunpack.c.h.b16 %v4226
        %v4854 = vunpack.c.l.b16 %v4227
        %v4855 = vunpack.c.h.b16 %v4227
        %v4856 = vunpack.c.l.b16 %v4228
        %v4857 = vunpack.c.h.b16 %v4228
        %v4858 = vunpack.c.l.b16 %v4229
        %v4859 = vunpack.c.h.b16 %v4229
        %v4860 = vunpack.c.l.b16 %v4230
        %v4861 = vunpack.c.h.b16 %v4230
        %v4862 = vunpack.c.l.b16 %v4231
        %v4863 = vunpack.c.h.b16 %v4231
        %v4864 = vunpack.c.l.b16 %v4232
        %v4865 = vunpack.c.h.b16 %v4232
        %v4866 = vunpack.c.l.b16 %v4233
        %v4867 = vunpack.c.h.b16 %v4233
        %v4868 = vunpack.c.l.b16 %v4234
        %v4869 = vunpack.c.h.b16 %v4234
        %v4870 = vunpack.c.l.b16 %v4235
        %v4871 = vunpack.c.h.b16 %v4235
        %v4872 = vunpack.c.l.b16 %v4236
        %v4873 = vunpack.c.h.b16 %v4236
        %v4874 = vunpack.c.l.b16 %v4237
        %v4875 = vunpack.c.h.b16 %v4237
        %v4876 = vunpack.c.l.b16 %v4238
        %v4877 = vunpack.c.h.b16 %v4238
        %v4878 = vunpack.c.l.b16 %v4239
        %v4879 = vunpack.c.h.b16 %v4239
        %v4880 = vunpack.c.l.b16 %v4240
        %v4881 = vunpack.c.h.b16 %v4240
        %v4882 = vunpack.c.l.b16 %v4241
        %v4883 = vunpack.c.h.b16 %v4241
        %v4884 = vunpack.c.l.b16 %v4242
        %v4885 = vunpack.c.h.b16 %v4242
        %v4886 = vunpack.c.l.b16 %v4243
        %v4887 = vunpack.c.h.b16 %v4243
        %v4888 = vunpack.c.l.b16 %v4244
        %v4889 = vunpack.c.h.b16 %v4244
        %v4890 = vunpack.c.l.b16 %v4245
        %v4891 = vunpack.c.h.b16 %v4245
        %v4892 = vunpack.c.l.b16 %v4246
        %v4893 = vunpack.c.h.b16 %v4246
        %v4894 = vunpack.c.l.b16 %v4247
        %v4895 = vunpack.c.h.b16 %v4247
        %v4896 = vunpack.c.l.b16 %v4248
        %v4897 = vunpack.c.h.b16 %v4248
        %v4898 = vunpack.c.l.b16 %v4249
        %v4899 = vunpack.c.h.b16 %v4249
        %v4900 = vunpack.c.l.b16 %v4250
        %v4901 = vunpack.c.h.b16 %v4250
        %v4902 = vunpack.c.l.b16 %v4251
        %v4903 = vunpack.c.h.b16 %v4251
        %v4904 = vunpack.c.l.b16 %v4252
        %v4905 = vunpack.c.h.b16 %v4252
        %v4906 = vunpack.c.l.b16 %v4253
        %v4907 = vunpack.c.h.b16 %v4253
        %v4908 = vunpack.c.l.b16 %v4254
        %v4909 = vunpack.c.h.b16 %v4254
        %v4910 = vunpack.c.l.b16 %v4255
        %v4911 = vunpack.c.h.b16 %v4255
        %v4912 = vunpack.c.l.b16 %v4256
        %v4913 = vunpack.c.h.b16 %v4256
        %v4914 = vunpack.c.l.b16 %v4257
        %v4915 = vunpack.c.h.b16 %v4257
        %v4916 = vunpack.c.l.b16 %v4258
        %v4917 = vunpack.c.h.b16 %v4258
        %v4918 = vunpack.c.l.b16 %v4259
        %v4919 = vunpack.c.h.b16 %v4259
        %v4920 = vunpack.c.l.b16 %v4260
        %v4921 = vunpack.c.h.b16 %v4260
        %v4922 = vunpack.c.l.b16 %v4261
        %v4923 = vunpack.c.h.b16 %v4261
        %v4924 = vunpack.c.l.b16 %v4262
        %v4925 = vunpack.c.h.b16 %v4262
        %v4926 = vunpack.c.l.b16 %v4263
        %v4927 = vunpack.c.h.b16 %v4263
        %v4928 = vunpack.c.l.b16 %v4264
        %v4929 = vunpack.c.h.b16 %v4264
        %v4930 = vunpack.c.l.b16 %v4265
        %v4931 = vunpack.c.h.b16 %v4265
        %v4932 = vunpack.c.l.b16 %v4266
        %v4933 = vunpack.c.h.b16 %v4266
        %v4934 = vunpack.c.l.b16 %v4267
        %v4935 = vunpack.c.h.b16 %v4267
        %v4936 = vunpack.c.l.b16 %v4268
        %v4937 = vunpack.c.h.b16 %v4268
        %v4938 = vunpack.c.l.b16 %v4269
        %v4939 = vunpack.c.h.b16 %v4269
        %v4940 = vunpack.c.l.b16 %v4270
        %v4941 = vunpack.c.h.b16 %v4270
        %v4942 = vunpack.c.l.b16 %v4271
        %v4943 = vunpack.c.h.b16 %v4271
        %v4944 = vunpack.c.l.b16 %v4272
        %v4945 = vunpack.c.h.b16 %v4272
        %v4946 = vunpack.c.l.b16 %v4273
        %v4947 = vunpack.c.h.b16 %v4273
        %v4948 = vunpack.c.l.b16 %v4274
        %v4949 = vunpack.c.h.b16 %v4274
        %v4950 = vunpack.c.l.b16 %v4275
        %v4951 = vunpack.c.h.b16 %v4275
        %v4952 = vunpack.c.l.b16 %v4276
        %v4953 = vunpack.c.h.b16 %v4276
        %v4954 = vunpack.c.l.b16 %v4277
        %v4955 = vunpack.c.h.b16 %v4277
        %v4956 = vunpack.c.l.b16 %v4278
        %v4957 = vunpack.c.h.b16 %v4278
        %v4958 = vunpack.c.l.b16 %v4279
        %v4959 = vunpack.c.h.b16 %v4279
        %v4960 = vunpack.c.l.b16 %v4280
        %v4961 = vunpack.c.h.b16 %v4280
        %v4962 = vunpack.c.l.b16 %v4281
        %v4963 = vunpack.c.h.b16 %v4281
        %v4964 = vunpack.c.l.b16 %v4282
        %v4965 = vunpack.c.h.b16 %v4282
        %v4966 = vunpack.c.l.b16 %v4283
        %v4967 = vunpack.c.h.b16 %v4283
        %v4968 = vunpack.c.l.b16 %v4284
        %v4969 = vunpack.c.h.b16 %v4284
        %v4970 = vunpack.c.l.b16 %v4285
        %v4971 = vunpack.c.h.b16 %v4285
        %v4972 = vunpack.c.l.b16 %v4286
        %v4973 = vunpack.c.h.b16 %v4286
        %v4974 = vunpack.c.l.b16 %v4287
        %v4975 = vunpack.c.h.b16 %v4287
        %v4976 = vunpack.c.l.b16 %v4288
        %v4977 = vunpack.c.h.b16 %v4288
        %v4978 = vunpack.c.l.b16 %v4289
        %v4979 = vunpack.c.h.b16 %v4289
        %v4980 = vunpack.c.l.b16 %v4290
        %v4981 = vunpack.c.h.b16 %v4290
        %v4982 = vunpack.c.l.b16 %v4291
        %v4983 = vunpack.c.h.b16 %v4291
        %v4984 = vunpack.c.l.b16 %v4292
        %v4985 = vunpack.c.h.b16 %v4292
        %v4986 = vunpack.c.l.b16 %v4293
        %v4987 = vunpack.c.h.b16 %v4293
        %v4988 = vunpack.c.l.b16 %v4294
        %v4989 = vunpack.c.h.b16 %v4294
        %v4990 = vunpack.c.l.b16 %v4295
        %v4991 = vunpack.c.h.b16 %v4295
        %v4992 = vunpack.c.l.b16 %v4296
        %v4993 = vunpack.c.h.b16 %v4296
        %v4994 = vunpack.c.l.b16 %v4297
        %v4995 = vunpack.c.h.b16 %v4297
        %v4996 = vunpack.c.l.b16 %v4298
        %v4997 = vunpack.c.h.b16 %v4298
        %v4998 = vunpack.c.l.b16 %v4299
        %v4999 = vunpack.c.h.b16 %v4299
        %v5000 = vunpack.c.l.b16 %v4300
        %v5001 = vunpack.c.h.b16 %v4300
        %v5002 = vunpack.c.l.b16 %v4301
        %v5003 = vunpack.c.h.b16 %v4301
        %v5004 = vunpack.c.l.b16 %v4302
        %v5005 = vunpack.c.h.b16 %v4302
        %v5006 = vunpack.c.l.b16 %v4303
        %v5007 = vunpack.c.h.b16 %v4303
        %v5008 = vunpack.c.l.b16 %v4304
        %v5009 = vunpack.c.h.b16 %v4304
        %v5010 = vunpack.c.l.b16 %v4305
        %v5011 = vunpack.c.h.b16 %v4305
        %v5012 = vunpack.c.l.b16 %v4306
        %v5013 = vunpack.c.h.b16 %v4306
        %v5014 = vunpack.c.l.b16 %v4307
        %v5015 = vunpack.c.h.b16 %v4307
        %v5016 = vunpack.c.l.b16 %v4308
        %v5017 = vunpack.c.h.b16 %v4308
        %v5018 = vunpack.c.l.b16 %v4309
        %v5019 = vunpack.c.h.b16 %v4309
        %v5020 = vunpack.c.l.b16 %v4310
        %v5021 = vunpack.c.h.b16 %v4310
        %v5022 = vunpack.c.l.b16 %v4311
        %v5023 = vunpack.c.h.b16 %v4311
        %v5024 = vunpack.c.l.b16 %v4312
        %v5025 = vunpack.c.h.b16 %v4312
        %v5026 = vunpack.c.l.b16 %v4313
        %v5027 = vunpack.c.h.b16 %v4313
        %v5028 = vunpack.c.l.b16 %v4314
        %v5029 = vunpack.c.h.b16 %v4314
        %v5030 = vunpack.c.l.b16 %v4315
        %v5031 = vunpack.c.h.b16 %v4315
        %v5032 = vunpack.c.l.b16 %v4316
        %v5033 = vunpack.c.h.b16 %v4316
        %v5034 = vunpack.c.l.b16 %v4317
        %v5035 = vunpack.c.h.b16 %v4317
        %v5036 = vunpack.c.l.b16 %v4318
        %v5037 = vunpack.c.h.b16 %v4318
        %v5038 = vunpack.c.l.b16 %v4319
        %v5039 = vunpack.c.h.b16 %v4319
        %v5040 = vunpack.c.l.b16 %v4320
        %v5041 = vunpack.c.h.b16 %v4320
        %v5042 = vunpack.c.l.b16 %v4321
        %v5043 = vunpack.c.h.b16 %v4321
        %v5044 = vunpack.c.l.b16 %v4322
        %v5045 = vunpack.c.h.b16 %v4322
        %v5046 = vunpack.c.l.b16 %v4323
        %v5047 = vunpack.c.h.b16 %v4323
        %v5048 = vunpack.c.l.b16 %v4324
        %v5049 = vunpack.c.h.b16 %v4324
        %v5050 = vunpack.c.l.b16 %v4325
        %v5051 = vunpack.c.h.b16 %v4325
        %v5052 = vunpack.c.l.b16 %v4326
        %v5053 = vunpack.c.h.b16 %v4326
        %v5054 = vunpack.c.l.b16 %v4327
        %v5055 = vunpack.c.h.b16 %v4327
        %v5056 = vunpack.c.l.b16 %v4328
        %v5057 = vunpack.c.h.b16 %v4328
        %v5058 = vunpack.c.l.b16 %v4329
        %v5059 = vunpack.c.h.b16 %v4329
        %v5060 = vunpack.c.l.b16 %v4330
        %v5061 = vunpack.c.h.b16 %v4330
        %v5062 = vunpack.c.l.b16 %v4331
        %v5063 = vunpack.c.h.b16 %v4331
        %v5064 = vunpack.c.l.b16 %v4332
        %v5065 = vunpack.c.h.b16 %v4332
        %v5066 = vunpack.c.l.b16 %v4333
        %v5067 = vunpack.c.h.b16 %v4333
        %v5068 = vunpack.c.l.b16 %v4334
        %v5069 = vunpack.c.h.b16 %v4334
        %v5070 = vunpack.c.l.b16 %v4335
        %v5071 = vunpack.c.h.b16 %v4335
        %v5072 = vunpack.c.l.b16 %v4336
        %v5073 = vunpack.c.h.b16 %v4336
        %v5074 = vunpack.c.l.b16 %v4337
        %v5075 = vunpack.c.h.b16 %v4337
        %v5076 = vunpack.c.l.b16 %v4338
        %v5077 = vunpack.c.h.b16 %v4338
        %v5078 = vunpack.c.l.b16 %v4339
        %v5079 = vunpack.c.h.b16 %v4339
        %v5080 = vunpack.c.l.b16 %v4340
        %v5081 = vunpack.c.h.b16 %v4340
        %v5082 = vunpack.c.l.b16 %v4341
        %v5083 = vunpack.c.h.b16 %v4341
        %v5084 = vunpack.c.l.b16 %v4342
        %v5085 = vunpack.c.h.b16 %v4342
        %v5086 = vunpack.c.l.b16 %v4343
        %v5087 = vunpack.c.h.b16 %v4343
        %v5088 = vunpack.c.l.b16 %v4344
        %v5089 = vunpack.c.h.b16 %v4344
        %v5090 = vunpack.c.l.b16 %v4345
        %v5091 = vunpack.c.h.b16 %v4345
        %v5092 = vunpack.c.l.b16 %v4346
        %v5093 = vunpack.c.h.b16 %v4346
        %v5094 = vunpack.c.l.b16 %v4347
        %v5095 = vunpack.c.h.b16 %v4347
        %v5096 = vunpack.c.l.b16 %v4348
        %v5097 = vunpack.c.h.b16 %v4348
        %v5098 = vunpack.c.l.b16 %v4349
        %v5099 = vunpack.c.h.b16 %v4349
        %v5100 = vunpack.c.l.b16 %v4350
        %v5101 = vunpack.c.h.b16 %v4350
        %v5102 = vunpack.c.l.b16 %v4351
        %v5103 = vunpack.c.h.b16 %v4351
        %v5104 = vunpack.c.l.b16 %v4352
        %v5105 = vunpack.c.h.b16 %v4352
        %v5106 = vunpack.c.l.b16 %v4353
        %v5107 = vunpack.c.h.b16 %v4353
        %v5108 = vunpack.c.l.b16 %v4354
        %v5109 = vunpack.c.h.b16 %v4354
        %v5110 = vunpack.c.l.b16 %v4355
        %v5111 = vunpack.c.h.b16 %v4355
        %v5112 = vunpack.c.l.b16 %v4356
        %v5113 = vunpack.c.h.b16 %v4356
        %v5114 = vunpack.c.l.b16 %v4357
        %v5115 = vunpack.c.h.b16 %v4357
        %v5116 = vunpack.c.l.b16 %v4358
        %v5117 = vunpack.c.h.b16 %v4358
        %v5118 = vunpack.c.l.b16 %v4359
        %v5119 = vunpack.c.h.b16 %v4359
        %v5120 = vunpack.c.l.b16 %v4360
        %v5121 = vunpack.c.h.b16 %v4360
        %v5122 = vunpack.c.l.b16 %v4361
        %v5123 = vunpack.c.h.b16 %v4361
        %v5124 = vunpack.c.l.b16 %v4362
        %v5125 = vunpack.c.h.b16 %v4362
        %v5126 = vunpack.c.l.b16 %v4363
        %v5127 = vunpack.c.h.b16 %v4363
        %v5128 = vunpack.c.l.b16 %v4364
        %v5129 = vunpack.c.h.b16 %v4364
        %v5130 = vunpack.c.l.b16 %v4365
        %v5131 = vunpack.c.h.b16 %v4365
        %v5132 = vunpack.c.l.b16 %v4366
        %v5133 = vunpack.c.h.b16 %v4366
        %v5134 = vunpack.c.l.b16 %v4367
        %v5135 = vunpack.c.h.b16 %v4367
        %v5136 = vunpack.c.l.b16 %v4368
        %v5137 = vunpack.c.h.b16 %v4368
        %v5138 = vunpack.c.l.b16 %v4369
        %v5139 = vunpack.c.h.b16 %v4369
        %v5140 = vunpack.c.l.b16 %v4370
        %v5141 = vunpack.c.h.b16 %v4370
        %v5142 = vunpack.c.l.b16 %v4371
        %v5143 = vunpack.c.h.b16 %v4371
        %v5144 = vunpack.c.l.b16 %v4372
        %v5145 = vunpack.c.h.b16 %v4372
        %v5146 = vunpack.c.l.b16 %v4373
        %v5147 = vunpack.c.h.b16 %v4373
        %v5148 = vunpack.c.l.b16 %v4374
        %v5149 = vunpack.c.h.b16 %v4374
        %v5150 = vunpack.c.l.b16 %v4375
        %v5151 = vunpack.c.h.b16 %v4375
        %v5152 = vunpack.c.l.b16 %v4376
        %v5153 = vunpack.c.h.b16 %v4376
        %v5154 = vunpack.c.l.b16 %v4377
        %v5155 = vunpack.c.h.b16 %v4377
        %v5156 = vunpack.c.l.b16 %v4378
        %v5157 = vunpack.c.h.b16 %v4378
        %v5158 = vunpack.c.l.b16 %v4379
        %v5159 = vunpack.c.h.b16 %v4379
        %v5160 = vunpack.c.l.b16 %v4380
        %v5161 = vunpack.c.h.b16 %v4380
        %v5162 = vunpack.c.l.b16 %v4381
        %v5163 = vunpack.c.h.b16 %v4381
        %v5164 = vunpack.c.l.b16 %v4382
        %v5165 = vunpack.c.h.b16 %v4382
        %v5166 = vunpack.c.l.b16 %v4383
        %v5167 = vunpack.c.h.b16 %v4383
        %v5168 = vunpack.c.l.b16 %v4384
        %v5169 = vunpack.c.h.b16 %v4384
        %v5170 = vunpack.c.l.b16 %v4385
        %v5171 = vunpack.c.h.b16 %v4385
        %v5172 = vunpack.c.l.b16 %v4386
        %v5173 = vunpack.c.h.b16 %v4386
        %v5174 = vunpack.c.l.b16 %v4387
        %v5175 = vunpack.c.h.b16 %v4387
        %v5176 = vunpack.c.l.b16 %v4388
        %v5177 = vunpack.c.h.b16 %v4388
        %v5178 = vunpack.c.l.b16 %v4389
        %v5179 = vunpack.c.h.b16 %v4389
        %v5180 = vunpack.c.l.b16 %v4390
        %v5181 = vunpack.c.h.b16 %v4390
        %v5182 = vunpack.c.l.b16 %v4391
        %v5183 = vunpack.c.h.b16 %v4391
        %v5184 = vunpack.c.l.b16 %v4392
        %v5185 = vunpack.c.h.b16 %v4392
        %v5186 = vunpack.c.l.b16 %v4393
        %v5187 = vunpack.c.h.b16 %v4393
        %v5188 = vunpack.c.l.b16 %v4394
        %v5189 = vunpack.c.h.b16 %v4394
        %v5190 = vunpack.c.l.b16 %v4395
        %v5191 = vunpack.c.h.b16 %v4395
        %v5192 = vunpack.c.l.b16 %v4396
        %v5193 = vunpack.c.h.b16 %v4396
        %v5194 = vunpack.c.l.b16 %v4397
        %v5195 = vunpack.c.h.b16 %v4397
        %v5196 = vunpack.c.l.b16 %v4398
        %v5197 = vunpack.c.h.b16 %v4398
        %v5198 = vunpack.c.l.b16 %v4399
        %v5199 = vunpack.c.h.b16 %v4399
        %v5200 = vunpack.c.l.b16 %v4400
        %v5201 = vunpack.c.h.b16 %v4400
        %v5202 = vunpack.c.l.b16 %v4401
        %v5203 = vunpack.c.h.b16 %v4401
        %v5204 = vunpack.c.l.b16 %v4402
        %v5205 = vunpack.c.h.b16 %v4402
        %v5206 = vunpack.c.l.b16 %v4403
        %v5207 = vunpack.c.h.b16 %v4403
        %v5208 = vpack.c.b16 %v4700, %v4696
        %v5209 = vpack.c.b16 %v4701, %v4697
        %v5210 = vpack.c.b16 %v4702, %v4698
        %v5211 = vpack.c.b16 %v4703, %v4699
        %v5212 = vpack.c.b16 %v4708, %v4704
        %v5213 = vpack.c.b16 %v4709, %v4705
        %v5214 = vpack.c.b16 %v4710, %v4706
        %v5215 = vpack.c.b16 %v4711, %v4707
        %v5216 = vpack.c.b16 %v4716, %v4712
        %v5217 = vpack.c.b16 %v4717, %v4713
        %v5218 = vpack.c.b16 %v4718, %v4714
        %v5219 = vpack.c.b16 %v4719, %v4715
        %v5220 = vpack.c.b16 %v4724, %v4720
        %v5221 = vpack.c.b16 %v4725, %v4721
        %v5222 = vpack.c.b16 %v4726, %v4722
        %v5223 = vpack.c.b16 %v4727, %v4723
        %v5224 = vpack.c.b16 %v4732, %v4728
        %v5225 = vpack.c.b16 %v4733, %v4729
        %v5226 = vpack.c.b16 %v4734, %v4730
        %v5227 = vpack.c.b16 %v4735, %v4731
        %v5228 = vpack.c.b16 %v4740, %v4736
        %v5229 = vpack.c.b16 %v4741, %v4737
        %v5230 = vpack.c.b16 %v4742, %v4738
        %v5231 = vpack.c.b16 %v4743, %v4739
        %v5232 = vpack.c.b16 %v4748, %v4744
        %v5233 = vpack.c.b16 %v4749, %v4745
        %v5234 = vpack.c.b16 %v4750, %v4746
        %v5235 = vpack.c.b16 %v4751, %v4747
        %v5236 = vpack.c.b16 %v4756, %v4752
        %v5237 = vpack.c.b16 %v4757, %v4753
        %v5238 = vpack.c.b16 %v4758, %v4754
        %v5239 = vpack.c.b16 %v4759, %v4755
        %v5240 = vpack.c.b16 %v4764, %v4760
        %v5241 = vpack.c.b16 %v4765, %v4761
        %v5242 = vpack.c.b16 %v4766, %v4762
        %v5243 = vpack.c.b16 %v4767, %v4763
        %v5244 = vpack.c.b16 %v4772, %v4768
        %v5245 = vpack.c.b16 %v4773, %v4769
        %v5246 = vpack.c.b16 %v4774, %v4770
        %v5247 = vpack.c.b16 %v4775, %v4771
        %v5248 = vpack.c.b16 %v4780, %v4776
        %v5249 = vpack.c.b16 %v4781, %v4777
        %v5250 = vpack.c.b16 %v4782, %v4778
        %v5251 = vpack.c.b16 %v4783, %v4779
        %v5252 = vpack.c.b16 %v4788, %v4784
        %v5253 = vpack.c.b16 %v4789, %v4785
        %v5254 = vpack.c.b16 %v4790, %v4786
        %v5255 = vpack.c.b16 %v4791, %v4787
        %v5256 = vpack.c.b16 %v4796, %v4792
        %v5257 = vpack.c.b16 %v4797, %v4793
        %v5258 = vpack.c.b16 %v4798, %v4794
        %v5259 = vpack.c.b16 %v4799, %v4795
        %v5260 = vpack.c.b16 %v4804, %v4800
        %v5261 = vpack.c.b16 %v4805, %v4801
        %v5262 = vpack.c.b16 %v4806, %v4802
        %v5263 = vpack.c.b16 %v4807, %v4803
        %v5264 = vpack.c.b16 %v4812, %v4808
        %v5265 = vpack.c.b16 %v4813, %v4809
        %v5266 = vpack.c.b16 %v4814, %v4810
        %v5267 = vpack.c.b16 %v4815, %v4811
        %v5268 = vpack.c.b16 %v4820, %v4816
        %v5269 = vpack.c.b16 %v4821, %v4817
        %v5270 = vpack.c.b16 %v4822, %v4818
        %v5271 = vpack.c.b16 %v4823, %v4819
        %v5272 = vpack.c.b16 %v4828, %v4824
        %v5273 = vpack.c.b16 %v4829, %v4825
        %v5274 = vpack.c.b16 %v4830, %v4826
        %v5275 = vpack.c.b16 %v4831, %v4827
        %v5276 = vpack.c.b16 %v4836, %v4832
        %v5277 = vpack.c.b16 %v4837, %v4833
        %v5278 = vpack.c.b16 %v4838, %v4834
        %v5279 = vpack.c.b16 %v4839, %v4835
        %v5280 = vpack.c.b16 %v4844, %v4840
        %v5281 = vpack.c.b16 %v4845, %v4841
        %v5282 = vpack.c.b16 %v4846, %v4842
        %v5283 = vpack.c.b16 %v4847, %v4843
        %v5284 = vpack.c.b16 %v4852, %v4848
        %v5285 = vpack.c.b16 %v4853, %v4849
        %v5286 = vpack.c.b16 %v4854, %v4850
        %v5287 = vpack.c.b16 %v4855, %v4851
        %v5288 = vpack.c.b16 %v4860, %v4856
        %v5289 = vpack.c.b16 %v4861, %v4857
        %v5290 = vpack.c.b16 %v4862, %v4858
        %v5291 = vpack.c.b16 %v4863, %v4859
        %v5292 = vpack.c.b16 %v4868, %v4864
        %v5293 = vpack.c.b16 %v4869, %v4865
        %v5294 = vpack.c.b16 %v4870, %v4866
        %v5295 = vpack.c.b16 %v4871, %v4867
        %v5296 = vpack.c.b16 %v4876, %v4872
        %v5297 = vpack.c.b16 %v4877, %v4873
        %v5298 = vpack.c.b16 %v4878, %v4874
        %v5299 = vpack.c.b16 %v4879, %v4875
        %v5300 = vpack.c.b16 %v4884, %v4880
        %v5301 = vpack.c.b16 %v4885, %v4881
        %v5302 = vpack.c.b16 %v4886, %v4882
        %v5303 = vpack.c.b16 %v4887, %v4883
        %v5304 = vpack.c.b16 %v4892, %v4888
        %v5305 = vpack.c.b16 %v4893, %v4889
        %v5306 = vpack.c.b16 %v4894, %v4890
        %v5307 = vpack.c.b16 %v4895, %v4891
        %v5308 = vpack.c.b16 %v4900, %v4896
        %v5309 = vpack.c.b16 %v4901, %v4897
        %v5310 = vpack.c.b16 %v4902, %v4898
        %v5311 = vpack.c.b16 %v4903, %v4899
        %v5312 = vpack.c.b16 %v4908, %v4904
        %v5313 = vpack.c.b16 %v4909, %v4905
        %v5314 = vpack.c.b16 %v4910, %v4906
        %v5315 = vpack.c.b16 %v4911, %v4907
        %v5316 = vpack.c.b16 %v4916, %v4912
        %v5317 = vpack.c.b16 %v4917, %v4913
        %v5318 = vpack.c.b16 %v4918, %v4914
        %v5319 = vpack.c.b16 %v4919, %v4915
        %v5320 = vpack.c.b16 %v4924, %v4920
        %v5321 = vpack.c.b16 %v4925, %v4921
        %v5322 = vpack.c.b16 %v4926, %v4922
        %v5323 = vpack.c.b16 %v4927, %v4923
        %v5324 = vpack.c.b16 %v4932, %v4928
        %v5325 = vpack.c.b16 %v4933, %v4929
        %v5326 = vpack.c.b16 %v4934, %v4930
        %v5327 = vpack.c.b16 %v4935, %v4931
        %v5328 = vpack.c.b16 %v4940, %v4936
        %v5329 = vpack.c.b16 %v4941, %v4937
        %v5330 = vpack.c.b16 %v4942, %v4938
        %v5331 = vpack.c.b16 %v4943, %v4939
        %v5332 = vpack.c.b16 %v4948, %v4944
        %v5333 = vpack.c.b16 %v4949, %v4945
        %v5334 = vpack.c.b16 %v4950, %v4946
        %v5335 = vpack.c.b16 %v4951, %v4947
        %v5336 = vpack.c.b16 %v4956, %v4952
        %v5337 = vpack.c.b16 %v4957, %v4953
        %v5338 = vpack.c.b16 %v4958, %v4954
        %v5339 = vpack.c.b16 %v4959, %v4955
        %v5340 = vpack.c.b16 %v4964, %v4960
        %v5341 = vpack.c.b16 %v4965, %v4961
        %v5342 = vpack.c.b16 %v4966, %v4962
        %v5343 = vpack.c.b16 %v4967, %v4963
        %v5344 = vpack.c.b16 %v4972, %v4968
        %v5345 = vpack.c.b16 %v4973, %v4969
        %v5346 = vpack.c.b16 %v4974, %v4970
        %v5347 = vpack.c.b16 %v4975, %v4971
        %v5348 = vpack.c.b16 %v4980, %v4976
        %v5349 = vpack.c.b16 %v4981, %v4977
        %v5350 = vpack.c.b16 %v4982, %v4978
        %v5351 = vpack.c.b16 %v4983, %v4979
        %v5352 = vpack.c.b16 %v4988, %v4984
        %v5353 = vpack.c.b16 %v4989, %v4985
        %v5354 = vpack.c.b16 %v4990, %v4986
        %v5355 = vpack.c.b16 %v4991, %v4987
        %v5356 = vpack.c.b16 %v4996, %v4992
        %v5357 = vpack.c.b16 %v4997, %v4993
        %v5358 = vpack.c.b16 %v4998, %v4994
        %v5359 = vpack.c.b16 %v4999, %v4995
        %v5360 = vpack.c.b16 %v5004, %v5000
        %v5361 = vpack.c.b16 %v5005, %v5001
        %v5362 = vpack.c.b16 %v5006, %v5002
        %v5363 = vpack.c.b16 %v5007, %v5003
        %v5364 = vpack.c.b16 %v5012, %v5008
        %v5365 = vpack.c.b16 %v5013, %v5009
        %v5366 = vpack.c.b16 %v5014, %v5010
        %v5367 = vpack.c.b16 %v5015, %v5011
        %v5368 = vpack.c.b16 %v5020, %v5016
        %v5369 = vpack.c.b16 %v5021, %v5017
        %v5370 = vpack.c.b16 %v5022, %v5018
        %v5371 = vpack.c.b16 %v5023, %v5019
        %v5372 = vpack.c.b16 %v5028, %v5024
        %v5373 = vpack.c.b16 %v5029, %v5025
        %v5374 = vpack.c.b16 %v5030, %v5026
        %v5375 = vpack.c.b16 %v5031, %v5027
        %v5376 = vpack.c.b16 %v5036, %v5032
        %v5377 = vpack.c.b16 %v5037, %v5033
        %v5378 = vpack.c.b16 %v5038, %v5034
        %v5379 = vpack.c.b16 %v5039, %v5035
        %v5380 = vpack.c.b16 %v5044, %v5040
        %v5381 = vpack.c.b16 %v5045, %v5041
        %v5382 = vpack.c.b16 %v5046, %v5042
        %v5383 = vpack.c.b16 %v5047, %v5043
        %v5384 = vpack.c.b16 %v5052, %v5048
        %v5385 = vpack.c.b16 %v5053, %v5049
        %v5386 = vpack.c.b16 %v5054, %v5050
        %v5387 = vpack.c.b16 %v5055, %v5051
        %v5388 = vpack.c.b16 %v5060, %v5056
        %v5389 = vpack.c.b16 %v5061, %v5057
        %v5390 = vpack.c.b16 %v5062, %v5058
        %v5391 = vpack.c.b16 %v5063, %v5059
        %v5392 = vpack.c.b16 %v5068, %v5064
        %v5393 = vpack.c.b16 %v5069, %v5065
        %v5394 = vpack.c.b16 %v5070, %v5066
        %v5395 = vpack.c.b16 %v5071, %v5067
        %v5396 = vpack.c.b16 %v5076, %v5072
        %v5397 = vpack.c.b16 %v5077, %v5073
        %v5398 = vpack.c.b16 %v5078, %v5074
        %v5399 = vpack.c.b16 %v5079, %v5075
        %v5400 = vpack.c.b16 %v5084, %v5080
        %v5401 = vpack.c.b16 %v5085, %v5081
        %v5402 = vpack.c.b16 %v5086, %v5082
        %v5403 = vpack.c.b16 %v5087, %v5083
        %v5404 = vpack.c.b16 %v5092, %v5088
        %v5405 = vpack.c.b16 %v5093, %v5089
        %v5406 = vpack.c.b16 %v5094, %v5090
        %v5407 = vpack.c.b16 %v5095, %v5091
        %v5408 = vpack.c.b16 %v5100, %v5096
        %v5409 = vpack.c.b16 %v5101, %v5097
        %v5410 = vpack.c.b16 %v5102, %v5098
        %v5411 = vpack.c.b16 %v5103, %v5099
        %v5412 = vpack.c.b16 %v5108, %v5104
        %v5413 = vpack.c.b16 %v5109, %v5105
        %v5414 = vpack.c.b16 %v5110, %v5106
        %v5415 = vpack.c.b16 %v5111, %v5107
        %v5416 = vpack.c.b16 %v5116, %v5112
        %v5417 = vpack.c.b16 %v5117, %v5113
        %v5418 = vpack.c.b16 %v5118, %v5114
        %v5419 = vpack.c.b16 %v5119, %v5115
        %v5420 = vpack.c.b16 %v5124, %v5120
        %v5421 = vpack.c.b16 %v5125, %v5121
        %v5422 = vpack.c.b16 %v5126, %v5122
        %v5423 = vpack.c.b16 %v5127, %v5123
        %v5424 = vpack.c.b16 %v5132, %v5128
        %v5425 = vpack.c.b16 %v5133, %v5129
        %v5426 = vpack.c.b16 %v5134, %v5130
        %v5427 = vpack.c.b16 %v5135, %v5131
        %v5428 = vpack.c.b16 %v5140, %v5136
        %v5429 = vpack.c.b16 %v5141, %v5137
        %v5430 = vpack.c.b16 %v5142, %v5138
        %v5431 = vpack.c.b16 %v5143, %v5139
        %v5432 = vpack.c.b16 %v5148, %v5144
        %v5433 = vpack.c.b16 %v5149, %v5145
        %v5434 = vpack.c.b16 %v5150, %v5146
        %v5435 = vpack.c.b16 %v5151, %v5147
        %v5436 = vpack.c.b16 %v5156, %v5152
        %v5437 = vpack.c.b16 %v5157, %v5153
        %v5438 = vpack.c.b16 %v5158, %v5154
        %v5439 = vpack.c.b16 %v5159, %v5155
        %v5440 = vpack.c.b16 %v5164, %v5160
        %v5441 = vpack.c.b16 %v5165, %v5161
        %v5442 = vpack.c.b16 %v5166, %v5162
        %v5443 = vpack.c.b16 %v5167, %v5163
        %v5444 = vpack.c.b16 %v5172, %v5168
        %v5445 = vpack.c.b16 %v5173, %v5169
        %v5446 = vpack.c.b16 %v5174, %v5170
        %v5447 = vpack.c.b16 %v5175, %v5171
        %v5448 = vpack.c.b16 %v5180, %v5176
        %v5449 = vpack.c.b16 %v5181, %v5177
        %v5450 = vpack.c.b16 %v5182, %v5178
        %v5451 = vpack.c.b16 %v5183, %v5179
        %v5452 = vpack.c.b16 %v5188, %v5184
        %v5453 = vpack.c.b16 %v5189, %v5185
        %v5454 = vpack.c.b16 %v5190, %v5186
        %v5455 = vpack.c.b16 %v5191, %v5187
        %v5456 = vpack.c.b16 %v5196, %v5192
        %v5457 = vpack.c.b16 %v5197, %v5193
        %v5458 = vpack.c.b16 %v5198, %v5194
        %v5459 = vpack.c.b16 %v5199, %v5195
        %v5460 = vpack.c.b16 %v5204, %v5200
        %v5461 = vpack.c.b16 %v5205, %v5201
        %v5462 = vpack.c.b16 %v5206, %v5202
        %v5463 = vpack.c.b16 %v5207, %v5203
        %5720 = vmatprep.subr.bf16.mxu0 %v5209
        %5721 = vmatpush1.bf16.msra.mxu0 %v5208
        %5722 = vmatprep.subr.bf16.mxu0 %v5213
        %5723 = vmatpush1.bf16.msra.mxu0 %v5212
        %5724 = vmatprep.subr.bf16.mxu0 %v5217
        %5725 = vmatpush1.bf16.msra.mxu0 %v5216
        %5726 = vmatprep.subr.bf16.mxu0 %v5221
        %5727 = vmatpush1.bf16.msra.mxu0 %v5220
        %5728 = vmatprep.subr.bf16.mxu0 %v5225
        %5729 = vmatpush1.bf16.msra.mxu0 %v5224
        %5730 = vmatprep.subr.bf16.mxu0 %v5229
        %5731 = vmatpush1.bf16.msra.mxu0 %v5228
        %5732 = vmatprep.subr.bf16.mxu0 %v5233
        %5733 = vmatpush1.bf16.msra.mxu0 %v5232
        %5734 = vmatprep.subr.bf16.mxu0 %v5237
        %5735 = vmatpush1.bf16.msra.mxu0 %v5236
        %5736 = vmatprep.subr.bf16.mxu0 %v5241
        %5737 = vmatpush1.bf16.msra.mxu0 %v5240
        %5738 = vmatprep.subr.bf16.mxu0 %v5245
        %5739 = vmatpush1.bf16.msra.mxu0 %v5244
        %5740 = vmatprep.subr.bf16.mxu0 %v5249
        %5741 = vmatpush1.bf16.msra.mxu0 %v5248
        %5742 = vmatprep.subr.bf16.mxu0 %v5253
        %5743 = vmatpush1.bf16.msra.mxu0 %v5252
        %5744 = vmatprep.subr.bf16.mxu0 %v5257
        %5745 = vmatpush1.bf16.msra.mxu0 %v5256
        %5746 = vmatprep.subr.bf16.mxu0 %v5261
        %5747 = vmatpush1.bf16.msra.mxu0 %v5260
        %5748 = vmatprep.subr.bf16.mxu0 %v5265
        %5749 = vmatpush1.bf16.msra.mxu0 %v5264
        %5750 = vmatprep.subr.bf16.mxu0 %v5269
        %5751 = vmatpush1.bf16.msra.mxu0 %v5268
        %5752 = vmatprep.mubr.bf16.mxu0 %v4425
        %5753 = vmatmul.mubr.bf16.gmra.mrb[0].mxu0 %v4424
        %v5754 = vpop.f32.mrb[0].mxu0
        %v5755 = vadd.f32 0.0, %v5754
        %v5756 = vpop.f32.mrb[0].mxu0
        %v5757 = vadd.f32 0.0, %v5756
        %v5758 = vpop.f32.mrb[0].mxu0
        %v5759 = vpop.f32.mrb[0].mxu0
        %5760 = vdwg.mxu0
        %5761 = vmatprep.subr.bf16.mxu0 %v5273
        %5762 = vmatpush1.bf16.msra.mxu0 %v5272
        %5763 = vmatprep.subr.bf16.mxu0 %v5277
        %5764 = vmatpush1.bf16.msra.mxu0 %v5276
        %5765 = vmatprep.subr.bf16.mxu0 %v5281
        %5766 = vmatpush1.bf16.msra.mxu0 %v5280
        %5767 = vmatprep.subr.bf16.mxu0 %v5285
        %5768 = vmatpush1.bf16.msra.mxu0 %v5284
        %5769 = vmatprep.subr.bf16.mxu0 %v5289
        %5770 = vmatpush1.bf16.msra.mxu0 %v5288
        %5771 = vmatprep.subr.bf16.mxu0 %v5293
        %5772 = vmatpush1.bf16.msra.mxu0 %v5292
        %5773 = vmatprep.subr.bf16.mxu0 %v5297
        %5774 = vmatpush1.bf16.msra.mxu0 %v5296
        %5775 = vmatprep.subr.bf16.mxu0 %v5301
        %5776 = vmatpush1.bf16.msra.mxu0 %v5300
        %5777 = vmatprep.subr.bf16.mxu0 %v5305
        %5778 = vmatpush1.bf16.msra.mxu0 %v5304
        %5779 = vmatprep.subr.bf16.mxu0 %v5309
        %5780 = vmatpush1.bf16.msra.mxu0 %v5308
        %5781 = vmatprep.subr.bf16.mxu0 %v5313
        %5782 = vmatpush1.bf16.msra.mxu0 %v5312
        %5783 = vmatprep.subr.bf16.mxu0 %v5317
        %5784 = vmatpush1.bf16.msra.mxu0 %v5316
        %5785 = vmatprep.subr.bf16.mxu0 %v5321
        %5786 = vmatpush1.bf16.msra.mxu0 %v5320
        %5787 = vmatprep.subr.bf16.mxu0 %v5325
        %5788 = vmatpush1.bf16.msra.mxu0 %v5324
        %5789 = vmatprep.subr.bf16.mxu0 %v5329
        %5790 = vmatpush1.bf16.msra.mxu0 %v5328
        %5791 = vmatprep.subr.bf16.mxu0 %v5333
        %5792 = vmatpush1.bf16.msra.mxu0 %v5332
        %5793 = vmatprep.mubr.bf16.mxu0 %v4427
        %5794 = vmatmul.mubr.bf16.gmra.mrb[0].mxu0 %v4426
        %v5795 = vpop.f32.mrb[0].mxu0
        %v5796 = vadd.f32 %v5755, %v5795
        %v5797 = vpop.f32.mrb[0].mxu0
        %v5798 = vadd.f32 %v5757, %v5797
        %v5799 = vpop.f32.mrb[0].mxu0
        %v5800 = vpop.f32.mrb[0].mxu0
        %5801 = vdwg.mxu0
        %5802 = vmatprep.subr.bf16.mxu0 %v5337
        %5803 = vmatpush1.bf16.msra.mxu0 %v5336
        %5804 = vmatprep.subr.bf16.mxu0 %v5341
        %5805 = vmatpush1.bf16.msra.mxu0 %v5340
        %5806 = vmatprep.subr.bf16.mxu0 %v5345
        %5807 = vmatpush1.bf16.msra.mxu0 %v5344
        %5808 = vmatprep.subr.bf16.mxu0 %v5349
        %5809 = vmatpush1.bf16.msra.mxu0 %v5348
        %5810 = vmatprep.subr.bf16.mxu0 %v5353
        %5811 = vmatpush1.bf16.msra.mxu0 %v5352
        %5812 = vmatprep.subr.bf16.mxu0 %v5357
        %5813 = vmatpush1.bf16.msra.mxu0 %v5356
        %5814 = vmatprep.subr.bf16.mxu0 %v5361
        %5815 = vmatpush1.bf16.msra.mxu0 %v5360
        %5816 = vmatprep.subr.bf16.mxu0 %v5365
        %5817 = vmatpush1.bf16.msra.mxu0 %v5364
        %5818 = vmatprep.subr.bf16.mxu0 %v5369
        %5819 = vmatpush1.bf16.msra.mxu0 %v5368
        %5820 = vmatprep.subr.bf16.mxu0 %v5373
        %5821 = vmatpush1.bf16.msra.mxu0 %v5372
        %5822 = vmatprep.subr.bf16.mxu0 %v5377
        %5823 = vmatpush1.bf16.msra.mxu0 %v5376
        %5824 = vmatprep.subr.bf16.mxu0 %v5381
        %5825 = vmatpush1.bf16.msra.mxu0 %v5380
        %5826 = vmatprep.subr.bf16.mxu0 %v5385
        %5827 = vmatpush1.bf16.msra.mxu0 %v5384
        %5828 = vmatprep.subr.bf16.mxu0 %v5389
        %5829 = vmatpush1.bf16.msra.mxu0 %v5388
        %5830 = vmatprep.subr.bf16.mxu0 %v5393
        %5831 = vmatpush1.bf16.msra.mxu0 %v5392
        %5832 = vmatprep.subr.bf16.mxu0 %v5397
        %5833 = vmatpush1.bf16.msra.mxu0 %v5396
        %5834 = vmatprep.mubr.bf16.mxu0 %v4429
        %5835 = vmatmul.mubr.bf16.gmra.mrb[0].mxu0 %v4428
        %v5836 = vpop.f32.mrb[0].mxu0
        %v5837 = vadd.f32 %v5796, %v5836
        %v5838 = vpop.f32.mrb[0].mxu0
        %v5839 = vadd.f32 %v5798, %v5838
        %v5840 = vpop.f32.mrb[0].mxu0
        %v5841 = vpop.f32.mrb[0].mxu0
        %5842 = vdwg.mxu0
        %5843 = vmatprep.subr.bf16.mxu0 %v5401
        %5844 = vmatpush1.bf16.msra.mxu0 %v5400
        %5845 = vmatprep.subr.bf16.mxu0 %v5405
        %5846 = vmatpush1.bf16.msra.mxu0 %v5404
        %5847 = vmatprep.subr.bf16.mxu0 %v5409
        %5848 = vmatpush1.bf16.msra.mxu0 %v5408
        %5849 = vmatprep.subr.bf16.mxu0 %v5413
        %5850 = vmatpush1.bf16.msra.mxu0 %v5412
        %5851 = vmatprep.subr.bf16.mxu0 %v5417
        %5852 = vmatpush1.bf16.msra.mxu0 %v5416
        %5853 = vmatprep.subr.bf16.mxu0 %v5421
        %5854 = vmatpush1.bf16.msra.mxu0 %v5420
        %5855 = vmatprep.subr.bf16.mxu0 %v5425
        %5856 = vmatpush1.bf16.msra.mxu0 %v5424
        %5857 = vmatprep.subr.bf16.mxu0 %v5429
        %5858 = vmatpush1.bf16.msra.mxu0 %v5428
        %5859 = vmatprep.subr.bf16.mxu0 %v5433
        %5860 = vmatpush1.bf16.msra.mxu0 %v5432
        %5861 = vmatprep.subr.bf16.mxu0 %v5437
        %5862 = vmatpush1.bf16.msra.mxu0 %v5436
        %5863 = vmatprep.subr.bf16.mxu0 %v5441
        %5864 = vmatpush1.bf16.msra.mxu0 %v5440
        %5865 = vmatprep.subr.bf16.mxu0 %v5445
        %5866 = vmatpush1.bf16.msra.mxu0 %v5444
        %5867 = vmatprep.subr.bf16.mxu0 %v5449
        %5868 = vmatpush1.bf16.msra.mxu0 %v5448
        %5869 = vmatprep.subr.bf16.mxu0 %v5453
        %5870 = vmatpush1.bf16.msra.mxu0 %v5452
        %5871 = vmatprep.subr.bf16.mxu0 %v5457
        %5872 = vmatpush1.bf16.msra.mxu0 %v5456
        %5873 = vmatprep.subr.bf16.mxu0 %v5461
        %5874 = vmatpush1.bf16.msra.mxu0 %v5460
        %5875 = vmatprep.mubr.bf16.mxu0 %v4431
        %5876 = vmatmul.mubr.bf16.gmra.mrb[0].mxu0 %v4430
        %v5877 = vpop.f32.mrb[0].mxu0
        %v5878 = vadd.f32 %v5837, %v5877
        %v5879 = vpop.f32.mrb[0].mxu0
        %v5880 = vadd.f32 %v5839, %v5879
        %v5881 = vpop.f32.mrb[0].mxu0
        %v5882 = vpop.f32.mrb[0].mxu0
        %5883 = vdwg.mxu0
        %5884 = vmatprep.subr.bf16.mxu0 %v5211
        %5885 = vmatpush1.bf16.msra.mxu0 %v5210
        %5886 = vmatprep.subr.bf16.mxu0 %v5215
        %5887 = vmatpush1.bf16.msra.mxu0 %v5214
        %5888 = vmatprep.subr.bf16.mxu0 %v5219
        %5889 = vmatpush1.bf16.msra.mxu0 %v5218
        %5890 = vmatprep.subr.bf16.mxu0 %v5223
        %5891 = vmatpush1.bf16.msra.mxu0 %v5222
        %5892 = vmatprep.subr.bf16.mxu0 %v5227
        %5893 = vmatpush1.bf16.msra.mxu0 %v5226
        %5894 = vmatprep.subr.bf16.mxu0 %v5231
        %5895 = vmatpush1.bf16.msra.mxu0 %v5230
        %5896 = vmatprep.subr.bf16.mxu0 %v5235
        %5897 = vmatpush1.bf16.msra.mxu0 %v5234
        %5898 = vmatprep.subr.bf16.mxu0 %v5239
        %5899 = vmatpush1.bf16.msra.mxu0 %v5238
        %5900 = vmatprep.subr.bf16.mxu0 %v5243
        %5901 = vmatpush1.bf16.msra.mxu0 %v5242
        %5902 = vmatprep.subr.bf16.mxu0 %v5247
        %5903 = vmatpush1.bf16.msra.mxu0 %v5246
        %5904 = vmatprep.subr.bf16.mxu0 %v5251
        %5905 = vmatpush1.bf16.msra.mxu0 %v5250
        %5906 = vmatprep.subr.bf16.mxu0 %v5255
        %5907 = vmatpush1.bf16.msra.mxu0 %v5254
        %5908 = vmatprep.subr.bf16.mxu0 %v5259
        %5909 = vmatpush1.bf16.msra.mxu0 %v5258
        %5910 = vmatprep.subr.bf16.mxu0 %v5263
        %5911 = vmatpush1.bf16.msra.mxu0 %v5262
        %5912 = vmatprep.subr.bf16.mxu0 %v5267
        %5913 = vmatpush1.bf16.msra.mxu0 %v5266
        %5914 = vmatprep.subr.bf16.mxu0 %v5271
        %5915 = vmatpush1.bf16.msra.mxu0 %v5270
        %5916 = vmatprep.mubr.bf16.mxu0 %v4425
        %5917 = vmatmul.mubr.bf16.gmra.mrb[0].mxu0 %v4424
        %v5918 = vpop.f32.mrb[0].mxu0
        %v5919 = vadd.f32 0.0, %v5918
        %v5920 = vpop.f32.mrb[0].mxu0
        %v5921 = vadd.f32 0.0, %v5920
        %v5922 = vpop.f32.mrb[0].mxu0
        %v5923 = vpop.f32.mrb[0].mxu0
        %5924 = vdwg.mxu0
        %5925 = vmatprep.subr.bf16.mxu0 %v5275
        %5926 = vmatpush1.bf16.msra.mxu0 %v5274
        %5927 = vmatprep.subr.bf16.mxu0 %v5279
        %5928 = vmatpush1.bf16.msra.mxu0 %v5278
        %5929 = vmatprep.subr.bf16.mxu0 %v5283
        %5930 = vmatpush1.bf16.msra.mxu0 %v5282
        %5931 = vmatprep.subr.bf16.mxu0 %v5287
        %5932 = vmatpush1.bf16.msra.mxu0 %v5286
        %5933 = vmatprep.subr.bf16.mxu0 %v5291
        %5934 = vmatpush1.bf16.msra.mxu0 %v5290
        %5935 = vmatprep.subr.bf16.mxu0 %v5295
        %5936 = vmatpush1.bf16.msra.mxu0 %v5294
        %5937 = vmatprep.subr.bf16.mxu0 %v5299
        %5938 = vmatpush1.bf16.msra.mxu0 %v5298
        %5939 = vmatprep.subr.bf16.mxu0 %v5303
        %5940 = vmatpush1.bf16.msra.mxu0 %v5302
        %5941 = vmatprep.subr.bf16.mxu0 %v5307
        %5942 = vmatpush1.bf16.msra.mxu0 %v5306
        %5943 = vmatprep.subr.bf16.mxu0 %v5311
        %5944 = vmatpush1.bf16.msra.mxu0 %v5310
        %5945 = vmatprep.subr.bf16.mxu0 %v5315
        %5946 = vmatpush1.bf16.msra.mxu0 %v5314
        %5947 = vmatprep.subr.bf16.mxu0 %v5319
        %5948 = vmatpush1.bf16.msra.mxu0 %v5318
        %5949 = vmatprep.subr.bf16.mxu0 %v5323
        %5950 = vmatpush1.bf16.msra.mxu0 %v5322
        %5951 = vmatprep.subr.bf16.mxu0 %v5327
        %5952 = vmatpush1.bf16.msra.mxu0 %v5326
        %5953 = vmatprep.subr.bf16.mxu0 %v5331
        %5954 = vmatpush1.bf16.msra.mxu0 %v5330
        %5955 = vmatprep.subr.bf16.mxu0 %v5335
        %5956 = vmatpush1.bf16.msra.mxu0 %v5334
        %5957 = vmatprep.mubr.bf16.mxu0 %v4427
        %5958 = vmatmul.mubr.bf16.gmra.mrb[0].mxu0 %v4426
        %v5959 = vpop.f32.mrb[0].mxu0
        %v5960 = vadd.f32 %v5919, %v5959
        %v5961 = vpop.f32.mrb[0].mxu0
        %v5962 = vadd.f32 %v5921, %v5961
        %v5963 = vpop.f32.mrb[0].mxu0
        %v5964 = vpop.f32.mrb[0].mxu0
        %5965 = vdwg.mxu0
        %5966 = vmatprep.subr.bf16.mxu0 %v5339
        %5967 = vmatpush1.bf16.msra.mxu0 %v5338
        %5968 = vmatprep.subr.bf16.mxu0 %v5343
        %5969 = vmatpush1.bf16.msra.mxu0 %v5342
        %5970 = vmatprep.subr.bf16.mxu0 %v5347
        %5971 = vmatpush1.bf16.msra.mxu0 %v5346
        %5972 = vmatprep.subr.bf16.mxu0 %v5351
        %5973 = vmatpush1.bf16.msra.mxu0 %v5350
        %5974 = vmatprep.subr.bf16.mxu0 %v5355
        %5975 = vmatpush1.bf16.msra.mxu0 %v5354
        %5976 = vmatprep.subr.bf16.mxu0 %v5359
        %5977 = vmatpush1.bf16.msra.mxu0 %v5358
        %5978 = vmatprep.subr.bf16.mxu0 %v5363
        %5979 = vmatpush1.bf16.msra.mxu0 %v5362
        %5980 = vmatprep.subr.bf16.mxu0 %v5367
        %5981 = vmatpush1.bf16.msra.mxu0 %v5366
        %5982 = vmatprep.subr.bf16.mxu0 %v5371
        %5983 = vmatpush1.bf16.msra.mxu0 %v5370
        %5984 = vmatprep.subr.bf16.mxu0 %v5375
        %5985 = vmatpush1.bf16.msra.mxu0 %v5374
        %5986 = vmatprep.subr.bf16.mxu0 %v5379
        %5987 = vmatpush1.bf16.msra.mxu0 %v5378
        %5988 = vmatprep.subr.bf16.mxu0 %v5383
        %5989 = vmatpush1.bf16.msra.mxu0 %v5382
        %5990 = vmatprep.subr.bf16.mxu0 %v5387
        %5991 = vmatpush1.bf16.msra.mxu0 %v5386
        %5992 = vmatprep.subr.bf16.mxu0 %v5391
        %5993 = vmatpush1.bf16.msra.mxu0 %v5390
        %5994 = vmatprep.subr.bf16.mxu0 %v5395
        %5995 = vmatpush1.bf16.msra.mxu0 %v5394
        %5996 = vmatprep.subr.bf16.mxu0 %v5399
        %5997 = vmatpush1.bf16.msra.mxu0 %v5398
        %5998 = vmatprep.mubr.bf16.mxu0 %v4429
        %5999 = vmatmul.mubr.bf16.gmra.mrb[0].mxu0 %v4428
        %v6000 = vpop.f32.mrb[0].mxu0
        %v6001 = vadd.f32 %v5960, %v6000
        %v6002 = vpop.f32.mrb[0].mxu0
        %v6003 = vadd.f32 %v5962, %v6002
        %v6004 = vpop.f32.mrb[0].mxu0
        %v6005 = vpop.f32.mrb[0].mxu0
        %6006 = vdwg.mxu0
        %6007 = vmatprep.subr.bf16.mxu0 %v5403
        %6008 = vmatpush1.bf16.msra.mxu0 %v5402
        %6009 = vmatprep.subr.bf16.mxu0 %v5407
        %6010 = vmatpush1.bf16.msra.mxu0 %v5406
        %6011 = vmatprep.subr.bf16.mxu0 %v5411
        %6012 = vmatpush1.bf16.msra.mxu0 %v5410
        %6013 = vmatprep.subr.bf16.mxu0 %v5415
        %6014 = vmatpush1.bf16.msra.mxu0 %v5414
        %6015 = vmatprep.subr.bf16.mxu0 %v5419
        %6016 = vmatpush1.bf16.msra.mxu0 %v5418
        %6017 = vmatprep.subr.bf16.mxu0 %v5423
        %6018 = vmatpush1.bf16.msra.mxu0 %v5422
        %6019 = vmatprep.subr.bf16.mxu0 %v5427
        %6020 = vmatpush1.bf16.msra.mxu0 %v5426
        %6021 = vmatprep.subr.bf16.mxu0 %v5431
        %6022 = vmatpush1.bf16.msra.mxu0 %v5430
        %6023 = vmatprep.subr.bf16.mxu0 %v5435
        %6024 = vmatpush1.bf16.msra.mxu0 %v5434
        %6025 = vmatprep.subr.bf16.mxu0 %v5439
        %6026 = vmatpush1.bf16.msra.mxu0 %v5438
        %6027 = vmatprep.subr.bf16.mxu0 %v5443
        %6028 = vmatpush1.bf16.msra.mxu0 %v5442
        %6029 = vmatprep.subr.bf16.mxu0 %v5447
        %6030 = vmatpush1.bf16.msra.mxu0 %v5446
        %6031 = vmatprep.subr.bf16.mxu0 %v5451
        %6032 = vmatpush1.bf16.msra.mxu0 %v5450
        %6033 = vmatprep.subr.bf16.mxu0 %v5455
        %6034 = vmatpush1.bf16.msra.mxu0 %v5454
        %6035 = vmatprep.subr.bf16.mxu0 %v5459
        %6036 = vmatpush1.bf16.msra.mxu0 %v5458
        %6037 = vmatprep.subr.bf16.mxu0 %v5463
        %6038 = vmatpush1.bf16.msra.mxu0 %v5462
        %6039 = vmatprep.mubr.bf16.mxu0 %v4431
        %6040 = vmatmul.mubr.bf16.gmra.mrb[0].mxu0 %v4430
        %v6041 = vpop.f32.mrb[0].mxu0
        %v6042 = vadd.f32 %v6001, %v6041
        %v6043 = vpop.f32.mrb[0].mxu0
        %v6044 = vadd.f32 %v6003, %v6043
        %v6045 = vpop.f32.mrb[0].mxu0
        %v6046 = vpop.f32.mrb[0].mxu0
        %6047 = vdwg.mxu0
        %v6048 = vadd.f32 %v3973, %v5878
        %v6049 = vadd.f32 %v3975, %v5880
        %v6050 = vadd.f32 %v4137, %v6042
        %v6051 = vadd.f32 %v4139, %v6044
        %v6052 = vld [vmem:[%s290] sm:$0x66]
        %v6053 = vld [vmem:[%s290 + $0x8] sm:$0x66]
        %v6054 = vld [vmem:[%s290 + $0x10] sm:$0x66]
        %v6055 = vld [vmem:[%s290 + $0x18] sm:$0x66]
        %s6056 = scalar_lea.vmem [#allocation3], 6144
        %v6057 = vld [vmem:[%s6056] sm:$0xff]
        %v6058 = vld [vmem:[%s6056 + $0x8] sm:$0xff]
        %v6059 = vld [vmem:[%s6056 + $0x10] sm:$0xff]
        %v6060 = vld [vmem:[%s6056 + $0x18] sm:$0xff]
        %v6061 = vld [vmem:[%s6056 + $0x20] sm:$0xff]
        %v6062 = vld [vmem:[%s6056 + $0x28] sm:$0xff]
        %v6063 = vld [vmem:[%s6056 + $0x30] sm:$0xff]
        %v6064 = vld [vmem:[%s6056 + $0x38] sm:$0xff]
        %v6065 = vld [vmem:[%s6056 + $0x40] sm:$0xff]
        %v6066 = vld [vmem:[%s6056 + $0x48] sm:$0xff]
        %v6067 = vld [vmem:[%s6056 + $0x50] sm:$0xff]
        %v6068 = vld [vmem:[%s6056 + $0x58] sm:$0xff]
        %v6069 = vld [vmem:[%s6056 + $0x60] sm:$0xff]
        %v6070 = vld [vmem:[%s6056 + $0x68] sm:$0xff]
        %v6071 = vld [vmem:[%s6056 + $0x70] sm:$0xff]
        %v6072 = vld [vmem:[%s6056 + $0x78] sm:$0xff]
        %v6073 = vld [vmem:[%s6056 + $0x80] sm:$0xff]
        %v6074 = vld [vmem:[%s6056 + $0x88] sm:$0xff]
        %v6075 = vld [vmem:[%s6056 + $0x90] sm:$0xff]
        %v6076 = vld [vmem:[%s6056 + $0x98] sm:$0xff]
        %v6077 = vld [vmem:[%s6056 + $0xa0] sm:$0xff]
        %v6078 = vld [vmem:[%s6056 + $0xa8] sm:$0xff]
        %v6079 = vld [vmem:[%s6056 + $0xb0] sm:$0xff]
        %v6080 = vld [vmem:[%s6056 + $0xb8] sm:$0xff]
        %v6081 = vld [vmem:[%s6056 + $0xc0] sm:$0xff]
        %v6082 = vld [vmem:[%s6056 + $0xc8] sm:$0xff]
        %v6083 = vld [vmem:[%s6056 + $0xd0] sm:$0xff]
        %v6084 = vld [vmem:[%s6056 + $0xd8] sm:$0xff]
        %v6085 = vld [vmem:[%s6056 + $0xe0] sm:$0xff]
        %v6086 = vld [vmem:[%s6056 + $0xe8] sm:$0xff]
        %v6087 = vld [vmem:[%s6056 + $0xf0] sm:$0xff]
        %v6088 = vld [vmem:[%s6056 + $0xf8] sm:$0xff]
        %v6089 = vld [vmem:[%s6056 + $0x100] sm:$0xff]
        %v6090 = vld [vmem:[%s6056 + $0x108] sm:$0xff]
        %v6091 = vld [vmem:[%s6056 + $0x110] sm:$0xff]
        %v6092 = vld [vmem:[%s6056 + $0x118] sm:$0xff]
        %v6093 = vld [vmem:[%s6056 + $0x120] sm:$0xff]
        %v6094 = vld [vmem:[%s6056 + $0x128] sm:$0xff]
        %v6095 = vld [vmem:[%s6056 + $0x130] sm:$0xff]
        %v6096 = vld [vmem:[%s6056 + $0x138] sm:$0xff]
        %v6097 = vld [vmem:[%s6056 + $0x140] sm:$0xff]
        %v6098 = vld [vmem:[%s6056 + $0x148] sm:$0xff]
        %v6099 = vld [vmem:[%s6056 + $0x150] sm:$0xff]
        %v6100 = vld [vmem:[%s6056 + $0x158] sm:$0xff]
        %v6101 = vld [vmem:[%s6056 + $0x160] sm:$0xff]
        %v6102 = vld [vmem:[%s6056 + $0x168] sm:$0xff]
        %v6103 = vld [vmem:[%s6056 + $0x170] sm:$0xff]
        %v6104 = vld [vmem:[%s6056 + $0x178] sm:$0xff]
        %v6105 = vld [vmem:[%s6056 + $0x180] sm:$0xff]
        %v6106 = vld [vmem:[%s6056 + $0x188] sm:$0xff]
        %v6107 = vld [vmem:[%s6056 + $0x190] sm:$0xff]
        %v6108 = vld [vmem:[%s6056 + $0x198] sm:$0xff]
        %v6109 = vld [vmem:[%s6056 + $0x1a0] sm:$0xff]
        %v6110 = vld [vmem:[%s6056 + $0x1a8] sm:$0xff]
        %v6111 = vld [vmem:[%s6056 + $0x1b0] sm:$0xff]
        %v6112 = vld [vmem:[%s6056 + $0x1b8] sm:$0xff]
        %v6113 = vld [vmem:[%s6056 + $0x1c0] sm:$0xff]
        %v6114 = vld [vmem:[%s6056 + $0x1c8] sm:$0xff]
        %v6115 = vld [vmem:[%s6056 + $0x1d0] sm:$0xff]
        %v6116 = vld [vmem:[%s6056 + $0x1d8] sm:$0xff]
        %v6117 = vld [vmem:[%s6056 + $0x1e0] sm:$0xff]
        %v6118 = vld [vmem:[%s6056 + $0x1e8] sm:$0xff]
        %v6119 = vld [vmem:[%s6056 + $0x1f0] sm:$0xff]
        %v6120 = vld [vmem:[%s6056 + $0x1f8] sm:$0xff]
        %v6121 = vld [vmem:[%s6056 + $0x200] sm:$0xff]
        %v6122 = vld [vmem:[%s6056 + $0x208] sm:$0xff]
        %v6123 = vld [vmem:[%s6056 + $0x210] sm:$0xff]
        %v6124 = vld [vmem:[%s6056 + $0x218] sm:$0xff]
        %v6125 = vld [vmem:[%s6056 + $0x220] sm:$0xff]
        %v6126 = vld [vmem:[%s6056 + $0x228] sm:$0xff]
        %v6127 = vld [vmem:[%s6056 + $0x230] sm:$0xff]
        %v6128 = vld [vmem:[%s6056 + $0x238] sm:$0xff]
        %v6129 = vld [vmem:[%s6056 + $0x240] sm:$0xff]
        %v6130 = vld [vmem:[%s6056 + $0x248] sm:$0xff]
        %v6131 = vld [vmem:[%s6056 + $0x250] sm:$0xff]
        %v6132 = vld [vmem:[%s6056 + $0x258] sm:$0xff]
        %v6133 = vld [vmem:[%s6056 + $0x260] sm:$0xff]
        %v6134 = vld [vmem:[%s6056 + $0x268] sm:$0xff]
        %v6135 = vld [vmem:[%s6056 + $0x270] sm:$0xff]
        %v6136 = vld [vmem:[%s6056 + $0x278] sm:$0xff]
        %v6137 = vld [vmem:[%s6056 + $0x280] sm:$0xff]
        %v6138 = vld [vmem:[%s6056 + $0x288] sm:$0xff]
        %v6139 = vld [vmem:[%s6056 + $0x290] sm:$0xff]
        %v6140 = vld [vmem:[%s6056 + $0x298] sm:$0xff]
        %v6141 = vld [vmem:[%s6056 + $0x2a0] sm:$0xff]
        %v6142 = vld [vmem:[%s6056 + $0x2a8] sm:$0xff]
        %v6143 = vld [vmem:[%s6056 + $0x2b0] sm:$0xff]
        %v6144 = vld [vmem:[%s6056 + $0x2b8] sm:$0xff]
        %v6145 = vld [vmem:[%s6056 + $0x2c0] sm:$0xff]
        %v6146 = vld [vmem:[%s6056 + $0x2c8] sm:$0xff]
        %v6147 = vld [vmem:[%s6056 + $0x2d0] sm:$0xff]
        %v6148 = vld [vmem:[%s6056 + $0x2d8] sm:$0xff]
        %v6149 = vld [vmem:[%s6056 + $0x2e0] sm:$0xff]
        %v6150 = vld [vmem:[%s6056 + $0x2e8] sm:$0xff]
        %v6151 = vld [vmem:[%s6056 + $0x2f0] sm:$0xff]
        %v6152 = vld [vmem:[%s6056 + $0x2f8] sm:$0xff]
        %v6153 = vld [vmem:[%s6056 + $0x300] sm:$0xff]
        %v6154 = vld [vmem:[%s6056 + $0x308] sm:$0xff]
        %v6155 = vld [vmem:[%s6056 + $0x310] sm:$0xff]
        %v6156 = vld [vmem:[%s6056 + $0x318] sm:$0xff]
        %v6157 = vld [vmem:[%s6056 + $0x320] sm:$0xff]
        %v6158 = vld [vmem:[%s6056 + $0x328] sm:$0xff]
        %v6159 = vld [vmem:[%s6056 + $0x330] sm:$0xff]
        %v6160 = vld [vmem:[%s6056 + $0x338] sm:$0xff]
        %v6161 = vld [vmem:[%s6056 + $0x340] sm:$0xff]
        %v6162 = vld [vmem:[%s6056 + $0x348] sm:$0xff]
        %v6163 = vld [vmem:[%s6056 + $0x350] sm:$0xff]
        %v6164 = vld [vmem:[%s6056 + $0x358] sm:$0xff]
        %v6165 = vld [vmem:[%s6056 + $0x360] sm:$0xff]
        %v6166 = vld [vmem:[%s6056 + $0x368] sm:$0xff]
        %v6167 = vld [vmem:[%s6056 + $0x370] sm:$0xff]
        %v6168 = vld [vmem:[%s6056 + $0x378] sm:$0xff]
        %v6169 = vld [vmem:[%s6056 + $0x380] sm:$0xff]
        %v6170 = vld [vmem:[%s6056 + $0x388] sm:$0xff]
        %v6171 = vld [vmem:[%s6056 + $0x390] sm:$0xff]
        %v6172 = vld [vmem:[%s6056 + $0x398] sm:$0xff]
        %v6173 = vld [vmem:[%s6056 + $0x3a0] sm:$0xff]
        %v6174 = vld [vmem:[%s6056 + $0x3a8] sm:$0xff]
        %v6175 = vld [vmem:[%s6056 + $0x3b0] sm:$0xff]
        %v6176 = vld [vmem:[%s6056 + $0x3b8] sm:$0xff]
        %v6177 = vld [vmem:[%s6056 + $0x3c0] sm:$0xff]
        %v6178 = vld [vmem:[%s6056 + $0x3c8] sm:$0xff]
        %v6179 = vld [vmem:[%s6056 + $0x3d0] sm:$0xff]
        %v6180 = vld [vmem:[%s6056 + $0x3d8] sm:$0xff]
        %v6181 = vld [vmem:[%s6056 + $0x3e0] sm:$0xff]
        %v6182 = vld [vmem:[%s6056 + $0x3e8] sm:$0xff]
        %v6183 = vld [vmem:[%s6056 + $0x3f0] sm:$0xff]
        %v6184 = vld [vmem:[%s6056 + $0x3f8] sm:$0xff]
        %v6185 = vld [vmem:[%s6056 + $0x400] sm:$0xff]
        %v6186 = vld [vmem:[%s6056 + $0x408] sm:$0xff]
        %v6187 = vld [vmem:[%s6056 + $0x410] sm:$0xff]
        %v6188 = vld [vmem:[%s6056 + $0x418] sm:$0xff]
        %v6189 = vld [vmem:[%s6056 + $0x420] sm:$0xff]
        %v6190 = vld [vmem:[%s6056 + $0x428] sm:$0xff]
        %v6191 = vld [vmem:[%s6056 + $0x430] sm:$0xff]
        %v6192 = vld [vmem:[%s6056 + $0x438] sm:$0xff]
        %v6193 = vld [vmem:[%s6056 + $0x440] sm:$0xff]
        %v6194 = vld [vmem:[%s6056 + $0x448] sm:$0xff]
        %v6195 = vld [vmem:[%s6056 + $0x450] sm:$0xff]
        %v6196 = vld [vmem:[%s6056 + $0x458] sm:$0xff]
        %v6197 = vld [vmem:[%s6056 + $0x460] sm:$0xff]
        %v6198 = vld [vmem:[%s6056 + $0x468] sm:$0xff]
        %v6199 = vld [vmem:[%s6056 + $0x470] sm:$0xff]
        %v6200 = vld [vmem:[%s6056 + $0x478] sm:$0xff]
        %v6201 = vld [vmem:[%s6056 + $0x480] sm:$0xff]
        %v6202 = vld [vmem:[%s6056 + $0x488] sm:$0xff]
        %v6203 = vld [vmem:[%s6056 + $0x490] sm:$0xff]
        %v6204 = vld [vmem:[%s6056 + $0x498] sm:$0xff]
        %v6205 = vld [vmem:[%s6056 + $0x4a0] sm:$0xff]
        %v6206 = vld [vmem:[%s6056 + $0x4a8] sm:$0xff]
        %v6207 = vld [vmem:[%s6056 + $0x4b0] sm:$0xff]
        %v6208 = vld [vmem:[%s6056 + $0x4b8] sm:$0xff]
        %v6209 = vld [vmem:[%s6056 + $0x4c0] sm:$0xff]
        %v6210 = vld [vmem:[%s6056 + $0x4c8] sm:$0xff]
        %v6211 = vld [vmem:[%s6056 + $0x4d0] sm:$0xff]
        %v6212 = vld [vmem:[%s6056 + $0x4d8] sm:$0xff]
        %v6213 = vld [vmem:[%s6056 + $0x4e0] sm:$0xff]
        %v6214 = vld [vmem:[%s6056 + $0x4e8] sm:$0xff]
        %v6215 = vld [vmem:[%s6056 + $0x4f0] sm:$0xff]
        %v6216 = vld [vmem:[%s6056 + $0x4f8] sm:$0xff]
        %v6217 = vld [vmem:[%s6056 + $0x500] sm:$0xff]
        %v6218 = vld [vmem:[%s6056 + $0x508] sm:$0xff]
        %v6219 = vld [vmem:[%s6056 + $0x510] sm:$0xff]
        %v6220 = vld [vmem:[%s6056 + $0x518] sm:$0xff]
        %v6221 = vld [vmem:[%s6056 + $0x520] sm:$0xff]
        %v6222 = vld [vmem:[%s6056 + $0x528] sm:$0xff]
        %v6223 = vld [vmem:[%s6056 + $0x530] sm:$0xff]
        %v6224 = vld [vmem:[%s6056 + $0x538] sm:$0xff]
        %v6225 = vld [vmem:[%s6056 + $0x540] sm:$0xff]
        %v6226 = vld [vmem:[%s6056 + $0x548] sm:$0xff]
        %v6227 = vld [vmem:[%s6056 + $0x550] sm:$0xff]
        %v6228 = vld [vmem:[%s6056 + $0x558] sm:$0xff]
        %v6229 = vld [vmem:[%s6056 + $0x560] sm:$0xff]
        %v6230 = vld [vmem:[%s6056 + $0x568] sm:$0xff]
        %v6231 = vld [vmem:[%s6056 + $0x570] sm:$0xff]
        %v6232 = vld [vmem:[%s6056 + $0x578] sm:$0xff]
        %v6233 = vld [vmem:[%s6056 + $0x580] sm:$0xff]
        %v6234 = vld [vmem:[%s6056 + $0x588] sm:$0xff]
        %v6235 = vld [vmem:[%s6056 + $0x590] sm:$0xff]
        %v6236 = vld [vmem:[%s6056 + $0x598] sm:$0xff]
        %v6237 = vld [vmem:[%s6056 + $0x5a0] sm:$0xff]
        %v6238 = vld [vmem:[%s6056 + $0x5a8] sm:$0xff]
        %v6239 = vld [vmem:[%s6056 + $0x5b0] sm:$0xff]
        %v6240 = vld [vmem:[%s6056 + $0x5b8] sm:$0xff]
        %v6241 = vld [vmem:[%s6056 + $0x5c0] sm:$0xff]
        %v6242 = vld [vmem:[%s6056 + $0x5c8] sm:$0xff]
        %v6243 = vld [vmem:[%s6056 + $0x5d0] sm:$0xff]
        %v6244 = vld [vmem:[%s6056 + $0x5d8] sm:$0xff]
        %v6245 = vld [vmem:[%s6056 + $0x5e0] sm:$0xff]
        %v6246 = vld [vmem:[%s6056 + $0x5e8] sm:$0xff]
        %v6247 = vld [vmem:[%s6056 + $0x5f0] sm:$0xff]
        %v6248 = vld [vmem:[%s6056 + $0x5f8] sm:$0xff]
        %v6249 = vld [vmem:[%s6056 + $0x600] sm:$0xff]
        %v6250 = vld [vmem:[%s6056 + $0x608] sm:$0xff]
        %v6251 = vld [vmem:[%s6056 + $0x610] sm:$0xff]
        %v6252 = vld [vmem:[%s6056 + $0x618] sm:$0xff]
        %v6253 = vld [vmem:[%s6056 + $0x620] sm:$0xff]
        %v6254 = vld [vmem:[%s6056 + $0x628] sm:$0xff]
        %v6255 = vld [vmem:[%s6056 + $0x630] sm:$0xff]
        %v6256 = vld [vmem:[%s6056 + $0x638] sm:$0xff]
        %v6257 = vld [vmem:[%s6056 + $0x640] sm:$0xff]
        %v6258 = vld [vmem:[%s6056 + $0x648] sm:$0xff]
        %v6259 = vld [vmem:[%s6056 + $0x650] sm:$0xff]
        %v6260 = vld [vmem:[%s6056 + $0x658] sm:$0xff]
        %v6261 = vld [vmem:[%s6056 + $0x660] sm:$0xff]
        %v6262 = vld [vmem:[%s6056 + $0x668] sm:$0xff]
        %v6263 = vld [vmem:[%s6056 + $0x670] sm:$0xff]
        %v6264 = vld [vmem:[%s6056 + $0x678] sm:$0xff]
        %v6265 = vld [vmem:[%s6056 + $0x680] sm:$0xff]
        %v6266 = vld [vmem:[%s6056 + $0x688] sm:$0xff]
        %v6267 = vld [vmem:[%s6056 + $0x690] sm:$0xff]
        %v6268 = vld [vmem:[%s6056 + $0x698] sm:$0xff]
        %v6269 = vld [vmem:[%s6056 + $0x6a0] sm:$0xff]
        %v6270 = vld [vmem:[%s6056 + $0x6a8] sm:$0xff]
        %v6271 = vld [vmem:[%s6056 + $0x6b0] sm:$0xff]
        %v6272 = vld [vmem:[%s6056 + $0x6b8] sm:$0xff]
        %v6273 = vld [vmem:[%s6056 + $0x6c0] sm:$0xff]
        %v6274 = vld [vmem:[%s6056 + $0x6c8] sm:$0xff]
        %v6275 = vld [vmem:[%s6056 + $0x6d0] sm:$0xff]
        %v6276 = vld [vmem:[%s6056 + $0x6d8] sm:$0xff]
        %v6277 = vld [vmem:[%s6056 + $0x6e0] sm:$0xff]
        %v6278 = vld [vmem:[%s6056 + $0x6e8] sm:$0xff]
        %v6279 = vld [vmem:[%s6056 + $0x6f0] sm:$0xff]
        %v6280 = vld [vmem:[%s6056 + $0x6f8] sm:$0xff]
        %v6281 = vld [vmem:[%s6056 + $0x700] sm:$0xff]
        %v6282 = vld [vmem:[%s6056 + $0x708] sm:$0xff]
        %v6283 = vld [vmem:[%s6056 + $0x710] sm:$0xff]
        %v6284 = vld [vmem:[%s6056 + $0x718] sm:$0xff]
        %v6285 = vld [vmem:[%s6056 + $0x720] sm:$0xff]
        %v6286 = vld [vmem:[%s6056 + $0x728] sm:$0xff]
        %v6287 = vld [vmem:[%s6056 + $0x730] sm:$0xff]
        %v6288 = vld [vmem:[%s6056 + $0x738] sm:$0xff]
        %v6289 = vld [vmem:[%s6056 + $0x740] sm:$0xff]
        %v6290 = vld [vmem:[%s6056 + $0x748] sm:$0xff]
        %v6291 = vld [vmem:[%s6056 + $0x750] sm:$0xff]
        %v6292 = vld [vmem:[%s6056 + $0x758] sm:$0xff]
        %v6293 = vld [vmem:[%s6056 + $0x760] sm:$0xff]
        %v6294 = vld [vmem:[%s6056 + $0x768] sm:$0xff]
        %v6295 = vld [vmem:[%s6056 + $0x770] sm:$0xff]
        %v6296 = vld [vmem:[%s6056 + $0x778] sm:$0xff]
        %v6297 = vld [vmem:[%s6056 + $0x780] sm:$0xff]
        %v6298 = vld [vmem:[%s6056 + $0x788] sm:$0xff]
        %v6299 = vld [vmem:[%s6056 + $0x790] sm:$0xff]
        %v6300 = vld [vmem:[%s6056 + $0x798] sm:$0xff]
        %v6301 = vld [vmem:[%s6056 + $0x7a0] sm:$0xff]
        %v6302 = vld [vmem:[%s6056 + $0x7a8] sm:$0xff]
        %v6303 = vld [vmem:[%s6056 + $0x7b0] sm:$0xff]
        %v6304 = vld [vmem:[%s6056 + $0x7b8] sm:$0xff]
        %v6305 = vld [vmem:[%s6056 + $0x7c0] sm:$0xff]
        %v6306 = vld [vmem:[%s6056 + $0x7c8] sm:$0xff]
        %v6307 = vld [vmem:[%s6056 + $0x7d0] sm:$0xff]
        %v6308 = vld [vmem:[%s6056 + $0x7d8] sm:$0xff]
        %v6309 = vld [vmem:[%s6056 + $0x7e0] sm:$0xff]
        %v6310 = vld [vmem:[%s6056 + $0x7e8] sm:$0xff]
        %v6311 = vld [vmem:[%s6056 + $0x7f0] sm:$0xff]
        %v6312 = vld [vmem:[%s6056 + $0x7f8] sm:$0xff]
        %v6317 = vunpack.c.l.b16 %v6052
        %v6318 = vunpack.c.h.b16 %v6052
        %v6319 = vunpack.c.l.b16 %v6053
        %v6320 = vunpack.c.h.b16 %v6053
        %v6321 = vunpack.c.l.b16 %v6054
        %v6322 = vunpack.c.h.b16 %v6054
        %v6323 = vunpack.c.l.b16 %v6055
        %v6324 = vunpack.c.h.b16 %v6055
        %v6325 = vpack.c.b16 %v6317, %v6317
        %v6326 = vpack.c.b16 %v6318, %v6318
        %v6327 = vpack.c.b16 %v6319, %v6319
        %v6328 = vpack.c.b16 %v6320, %v6320
        %v6329 = vpack.c.b16 %v6321, %v6321
        %v6330 = vpack.c.b16 %v6322, %v6322
        %v6331 = vpack.c.b16 %v6323, %v6323
        %v6332 = vpack.c.b16 %v6324, %v6324
        %v6334 = vshrl.u32 %v6325, 16
        %v6336 = vrot.slane %v6334, 1
        %v6337 = vshll.u32 %v6325, 16
        %v6339 = vrot.slane %v6337, 2
        %v6340 = vor.u32 %v6336, %v6339
        %v6342 = vshrl.u32 %v6326, 16
        %v6344 = vrot.slane %v6342, 1
        %v6345 = vshll.u32 %v6326, 16
        %v6347 = vrot.slane %v6345, 2
        %v6348 = vor.u32 %v6344, %v6347
        %v6350 = vshrl.u32 %v6327, 16
        %v6352 = vrot.slane %v6350, 1
        %v6353 = vshll.u32 %v6327, 16
        %v6355 = vrot.slane %v6353, 2
        %v6356 = vor.u32 %v6352, %v6355
        %v6358 = vshrl.u32 %v6328, 16
        %v6360 = vrot.slane %v6358, 1
        %v6361 = vshll.u32 %v6328, 16
        %v6363 = vrot.slane %v6361, 2
        %v6364 = vor.u32 %v6360, %v6363
        %v6366 = vshrl.u32 %v6329, 16
        %v6368 = vrot.slane %v6366, 1
        %v6369 = vshll.u32 %v6329, 16
        %v6371 = vrot.slane %v6369, 2
        %v6372 = vor.u32 %v6368, %v6371
        %v6374 = vshrl.u32 %v6330, 16
        %v6376 = vrot.slane %v6374, 1
        %v6377 = vshll.u32 %v6330, 16
        %v6379 = vrot.slane %v6377, 2
        %v6380 = vor.u32 %v6376, %v6379
        %v6382 = vshrl.u32 %v6331, 16
        %v6384 = vrot.slane %v6382, 1
        %v6385 = vshll.u32 %v6331, 16
        %v6387 = vrot.slane %v6385, 2
        %v6388 = vor.u32 %v6384, %v6387
        %v6390 = vshrl.u32 %v6332, 16
        %v6392 = vrot.slane %v6390, 1
        %v6393 = vshll.u32 %v6332, 16
        %v6395 = vrot.slane %v6393, 2
        %v6396 = vor.u32 %v6392, %v6395
        %v6661 = vunpack.c.l.b16 %v6057
        %v6662 = vunpack.c.h.b16 %v6057
        %v6663 = vunpack.c.l.b16 %v6058
        %v6664 = vunpack.c.h.b16 %v6058
        %v6665 = vunpack.c.l.b16 %v6059
        %v6666 = vunpack.c.h.b16 %v6059
        %v6667 = vunpack.c.l.b16 %v6060
        %v6668 = vunpack.c.h.b16 %v6060
        %v6669 = vunpack.c.l.b16 %v6061
        %v6670 = vunpack.c.h.b16 %v6061
        %v6671 = vunpack.c.l.b16 %v6062
        %v6672 = vunpack.c.h.b16 %v6062
        %v6673 = vunpack.c.l.b16 %v6063
        %v6674 = vunpack.c.h.b16 %v6063
        %v6675 = vunpack.c.l.b16 %v6064
        %v6676 = vunpack.c.h.b16 %v6064
        %v6677 = vunpack.c.l.b16 %v6065
        %v6678 = vunpack.c.h.b16 %v6065
        %v6679 = vunpack.c.l.b16 %v6066
        %v6680 = vunpack.c.h.b16 %v6066
        %v6681 = vunpack.c.l.b16 %v6067
        %v6682 = vunpack.c.h.b16 %v6067
        %v6683 = vunpack.c.l.b16 %v6068
        %v6684 = vunpack.c.h.b16 %v6068
        %v6685 = vunpack.c.l.b16 %v6069
        %v6686 = vunpack.c.h.b16 %v6069
        %v6687 = vunpack.c.l.b16 %v6070
        %v6688 = vunpack.c.h.b16 %v6070
        %v6689 = vunpack.c.l.b16 %v6071
        %v6690 = vunpack.c.h.b16 %v6071
        %v6691 = vunpack.c.l.b16 %v6072
        %v6692 = vunpack.c.h.b16 %v6072
        %v6693 = vunpack.c.l.b16 %v6073
        %v6694 = vunpack.c.h.b16 %v6073
        %v6695 = vunpack.c.l.b16 %v6074
        %v6696 = vunpack.c.h.b16 %v6074
        %v6697 = vunpack.c.l.b16 %v6075
        %v6698 = vunpack.c.h.b16 %v6075
        %v6699 = vunpack.c.l.b16 %v6076
        %v6700 = vunpack.c.h.b16 %v6076
        %v6701 = vunpack.c.l.b16 %v6077
        %v6702 = vunpack.c.h.b16 %v6077
        %v6703 = vunpack.c.l.b16 %v6078
        %v6704 = vunpack.c.h.b16 %v6078
        %v6705 = vunpack.c.l.b16 %v6079
        %v6706 = vunpack.c.h.b16 %v6079
        %v6707 = vunpack.c.l.b16 %v6080
        %v6708 = vunpack.c.h.b16 %v6080
        %v6709 = vunpack.c.l.b16 %v6081
        %v6710 = vunpack.c.h.b16 %v6081
        %v6711 = vunpack.c.l.b16 %v6082
        %v6712 = vunpack.c.h.b16 %v6082
        %v6713 = vunpack.c.l.b16 %v6083
        %v6714 = vunpack.c.h.b16 %v6083
        %v6715 = vunpack.c.l.b16 %v6084
        %v6716 = vunpack.c.h.b16 %v6084
        %v6717 = vunpack.c.l.b16 %v6085
        %v6718 = vunpack.c.h.b16 %v6085
        %v6719 = vunpack.c.l.b16 %v6086
        %v6720 = vunpack.c.h.b16 %v6086
        %v6721 = vunpack.c.l.b16 %v6087
        %v6722 = vunpack.c.h.b16 %v6087
        %v6723 = vunpack.c.l.b16 %v6088
        %v6724 = vunpack.c.h.b16 %v6088
        %v6725 = vunpack.c.l.b16 %v6089
        %v6726 = vunpack.c.h.b16 %v6089
        %v6727 = vunpack.c.l.b16 %v6090
        %v6728 = vunpack.c.h.b16 %v6090
        %v6729 = vunpack.c.l.b16 %v6091
        %v6730 = vunpack.c.h.b16 %v6091
        %v6731 = vunpack.c.l.b16 %v6092
        %v6732 = vunpack.c.h.b16 %v6092
        %v6733 = vunpack.c.l.b16 %v6093
        %v6734 = vunpack.c.h.b16 %v6093
        %v6735 = vunpack.c.l.b16 %v6094
        %v6736 = vunpack.c.h.b16 %v6094
        %v6737 = vunpack.c.l.b16 %v6095
        %v6738 = vunpack.c.h.b16 %v6095
        %v6739 = vunpack.c.l.b16 %v6096
        %v6740 = vunpack.c.h.b16 %v6096
        %v6741 = vunpack.c.l.b16 %v6097
        %v6742 = vunpack.c.h.b16 %v6097
        %v6743 = vunpack.c.l.b16 %v6098
        %v6744 = vunpack.c.h.b16 %v6098
        %v6745 = vunpack.c.l.b16 %v6099
        %v6746 = vunpack.c.h.b16 %v6099
        %v6747 = vunpack.c.l.b16 %v6100
        %v6748 = vunpack.c.h.b16 %v6100
        %v6749 = vunpack.c.l.b16 %v6101
        %v6750 = vunpack.c.h.b16 %v6101
        %v6751 = vunpack.c.l.b16 %v6102
        %v6752 = vunpack.c.h.b16 %v6102
        %v6753 = vunpack.c.l.b16 %v6103
        %v6754 = vunpack.c.h.b16 %v6103
        %v6755 = vunpack.c.l.b16 %v6104
        %v6756 = vunpack.c.h.b16 %v6104
        %v6757 = vunpack.c.l.b16 %v6105
        %v6758 = vunpack.c.h.b16 %v6105
        %v6759 = vunpack.c.l.b16 %v6106
        %v6760 = vunpack.c.h.b16 %v6106
        %v6761 = vunpack.c.l.b16 %v6107
        %v6762 = vunpack.c.h.b16 %v6107
        %v6763 = vunpack.c.l.b16 %v6108
        %v6764 = vunpack.c.h.b16 %v6108
        %v6765 = vunpack.c.l.b16 %v6109
        %v6766 = vunpack.c.h.b16 %v6109
        %v6767 = vunpack.c.l.b16 %v6110
        %v6768 = vunpack.c.h.b16 %v6110
        %v6769 = vunpack.c.l.b16 %v6111
        %v6770 = vunpack.c.h.b16 %v6111
        %v6771 = vunpack.c.l.b16 %v6112
        %v6772 = vunpack.c.h.b16 %v6112
        %v6773 = vunpack.c.l.b16 %v6113
        %v6774 = vunpack.c.h.b16 %v6113
        %v6775 = vunpack.c.l.b16 %v6114
        %v6776 = vunpack.c.h.b16 %v6114
        %v6777 = vunpack.c.l.b16 %v6115
        %v6778 = vunpack.c.h.b16 %v6115
        %v6779 = vunpack.c.l.b16 %v6116
        %v6780 = vunpack.c.h.b16 %v6116
        %v6781 = vunpack.c.l.b16 %v6117
        %v6782 = vunpack.c.h.b16 %v6117
        %v6783 = vunpack.c.l.b16 %v6118
        %v6784 = vunpack.c.h.b16 %v6118
        %v6785 = vunpack.c.l.b16 %v6119
        %v6786 = vunpack.c.h.b16 %v6119
        %v6787 = vunpack.c.l.b16 %v6120
        %v6788 = vunpack.c.h.b16 %v6120
        %v6789 = vunpack.c.l.b16 %v6121
        %v6790 = vunpack.c.h.b16 %v6121
        %v6791 = vunpack.c.l.b16 %v6122
        %v6792 = vunpack.c.h.b16 %v6122
        %v6793 = vunpack.c.l.b16 %v6123
        %v6794 = vunpack.c.h.b16 %v6123
        %v6795 = vunpack.c.l.b16 %v6124
        %v6796 = vunpack.c.h.b16 %v6124
        %v6797 = vunpack.c.l.b16 %v6125
        %v6798 = vunpack.c.h.b16 %v6125
        %v6799 = vunpack.c.l.b16 %v6126
        %v6800 = vunpack.c.h.b16 %v6126
        %v6801 = vunpack.c.l.b16 %v6127
        %v6802 = vunpack.c.h.b16 %v6127
        %v6803 = vunpack.c.l.b16 %v6128
        %v6804 = vunpack.c.h.b16 %v6128
        %v6805 = vunpack.c.l.b16 %v6129
        %v6806 = vunpack.c.h.b16 %v6129
        %v6807 = vunpack.c.l.b16 %v6130
        %v6808 = vunpack.c.h.b16 %v6130
        %v6809 = vunpack.c.l.b16 %v6131
        %v6810 = vunpack.c.h.b16 %v6131
        %v6811 = vunpack.c.l.b16 %v6132
        %v6812 = vunpack.c.h.b16 %v6132
        %v6813 = vunpack.c.l.b16 %v6133
        %v6814 = vunpack.c.h.b16 %v6133
        %v6815 = vunpack.c.l.b16 %v6134
        %v6816 = vunpack.c.h.b16 %v6134
        %v6817 = vunpack.c.l.b16 %v6135
        %v6818 = vunpack.c.h.b16 %v6135
        %v6819 = vunpack.c.l.b16 %v6136
        %v6820 = vunpack.c.h.b16 %v6136
        %v6821 = vunpack.c.l.b16 %v6137
        %v6822 = vunpack.c.h.b16 %v6137
        %v6823 = vunpack.c.l.b16 %v6138
        %v6824 = vunpack.c.h.b16 %v6138
        %v6825 = vunpack.c.l.b16 %v6139
        %v6826 = vunpack.c.h.b16 %v6139
        %v6827 = vunpack.c.l.b16 %v6140
        %v6828 = vunpack.c.h.b16 %v6140
        %v6829 = vunpack.c.l.b16 %v6141
        %v6830 = vunpack.c.h.b16 %v6141
        %v6831 = vunpack.c.l.b16 %v6142
        %v6832 = vunpack.c.h.b16 %v6142
        %v6833 = vunpack.c.l.b16 %v6143
        %v6834 = vunpack.c.h.b16 %v6143
        %v6835 = vunpack.c.l.b16 %v6144
        %v6836 = vunpack.c.h.b16 %v6144
        %v6837 = vunpack.c.l.b16 %v6145
        %v6838 = vunpack.c.h.b16 %v6145
        %v6839 = vunpack.c.l.b16 %v6146
        %v6840 = vunpack.c.h.b16 %v6146
        %v6841 = vunpack.c.l.b16 %v6147
        %v6842 = vunpack.c.h.b16 %v6147
        %v6843 = vunpack.c.l.b16 %v6148
        %v6844 = vunpack.c.h.b16 %v6148
        %v6845 = vunpack.c.l.b16 %v6149
        %v6846 = vunpack.c.h.b16 %v6149
        %v6847 = vunpack.c.l.b16 %v6150
        %v6848 = vunpack.c.h.b16 %v6150
        %v6849 = vunpack.c.l.b16 %v6151
        %v6850 = vunpack.c.h.b16 %v6151
        %v6851 = vunpack.c.l.b16 %v6152
        %v6852 = vunpack.c.h.b16 %v6152
        %v6853 = vunpack.c.l.b16 %v6153
        %v6854 = vunpack.c.h.b16 %v6153
        %v6855 = vunpack.c.l.b16 %v6154
        %v6856 = vunpack.c.h.b16 %v6154
        %v6857 = vunpack.c.l.b16 %v6155
        %v6858 = vunpack.c.h.b16 %v6155
        %v6859 = vunpack.c.l.b16 %v6156
        %v6860 = vunpack.c.h.b16 %v6156
        %v6861 = vunpack.c.l.b16 %v6157
        %v6862 = vunpack.c.h.b16 %v6157
        %v6863 = vunpack.c.l.b16 %v6158
        %v6864 = vunpack.c.h.b16 %v6158
        %v6865 = vunpack.c.l.b16 %v6159
        %v6866 = vunpack.c.h.b16 %v6159
        %v6867 = vunpack.c.l.b16 %v6160
        %v6868 = vunpack.c.h.b16 %v6160
        %v6869 = vunpack.c.l.b16 %v6161
        %v6870 = vunpack.c.h.b16 %v6161
        %v6871 = vunpack.c.l.b16 %v6162
        %v6872 = vunpack.c.h.b16 %v6162
        %v6873 = vunpack.c.l.b16 %v6163
        %v6874 = vunpack.c.h.b16 %v6163
        %v6875 = vunpack.c.l.b16 %v6164
        %v6876 = vunpack.c.h.b16 %v6164
        %v6877 = vunpack.c.l.b16 %v6165
        %v6878 = vunpack.c.h.b16 %v6165
        %v6879 = vunpack.c.l.b16 %v6166
        %v6880 = vunpack.c.h.b16 %v6166
        %v6881 = vunpack.c.l.b16 %v6167
        %v6882 = vunpack.c.h.b16 %v6167
        %v6883 = vunpack.c.l.b16 %v6168
        %v6884 = vunpack.c.h.b16 %v6168
        %v6885 = vunpack.c.l.b16 %v6169
        %v6886 = vunpack.c.h.b16 %v6169
        %v6887 = vunpack.c.l.b16 %v6170
        %v6888 = vunpack.c.h.b16 %v6170
        %v6889 = vunpack.c.l.b16 %v6171
        %v6890 = vunpack.c.h.b16 %v6171
        %v6891 = vunpack.c.l.b16 %v6172
        %v6892 = vunpack.c.h.b16 %v6172
        %v6893 = vunpack.c.l.b16 %v6173
        %v6894 = vunpack.c.h.b16 %v6173
        %v6895 = vunpack.c.l.b16 %v6174
        %v6896 = vunpack.c.h.b16 %v6174
        %v6897 = vunpack.c.l.b16 %v6175
        %v6898 = vunpack.c.h.b16 %v6175
        %v6899 = vunpack.c.l.b16 %v6176
        %v6900 = vunpack.c.h.b16 %v6176
        %v6901 = vunpack.c.l.b16 %v6177
        %v6902 = vunpack.c.h.b16 %v6177
        %v6903 = vunpack.c.l.b16 %v6178
        %v6904 = vunpack.c.h.b16 %v6178
        %v6905 = vunpack.c.l.b16 %v6179
        %v6906 = vunpack.c.h.b16 %v6179
        %v6907 = vunpack.c.l.b16 %v6180
        %v6908 = vunpack.c.h.b16 %v6180
        %v6909 = vunpack.c.l.b16 %v6181
        %v6910 = vunpack.c.h.b16 %v6181
        %v6911 = vunpack.c.l.b16 %v6182
        %v6912 = vunpack.c.h.b16 %v6182
        %v6913 = vunpack.c.l.b16 %v6183
        %v6914 = vunpack.c.h.b16 %v6183
        %v6915 = vunpack.c.l.b16 %v6184
        %v6916 = vunpack.c.h.b16 %v6184
        %v6917 = vunpack.c.l.b16 %v6185
        %v6918 = vunpack.c.h.b16 %v6185
        %v6919 = vunpack.c.l.b16 %v6186
        %v6920 = vunpack.c.h.b16 %v6186
        %v6921 = vunpack.c.l.b16 %v6187
        %v6922 = vunpack.c.h.b16 %v6187
        %v6923 = vunpack.c.l.b16 %v6188
        %v6924 = vunpack.c.h.b16 %v6188
        %v6925 = vunpack.c.l.b16 %v6189
        %v6926 = vunpack.c.h.b16 %v6189
        %v6927 = vunpack.c.l.b16 %v6190
        %v6928 = vunpack.c.h.b16 %v6190
        %v6929 = vunpack.c.l.b16 %v6191
        %v6930 = vunpack.c.h.b16 %v6191
        %v6931 = vunpack.c.l.b16 %v6192
        %v6932 = vunpack.c.h.b16 %v6192
        %v6933 = vunpack.c.l.b16 %v6193
        %v6934 = vunpack.c.h.b16 %v6193
        %v6935 = vunpack.c.l.b16 %v6194
        %v6936 = vunpack.c.h.b16 %v6194
        %v6937 = vunpack.c.l.b16 %v6195
        %v6938 = vunpack.c.h.b16 %v6195
        %v6939 = vunpack.c.l.b16 %v6196
        %v6940 = vunpack.c.h.b16 %v6196
        %v6941 = vunpack.c.l.b16 %v6197
        %v6942 = vunpack.c.h.b16 %v6197
        %v6943 = vunpack.c.l.b16 %v6198
        %v6944 = vunpack.c.h.b16 %v6198
        %v6945 = vunpack.c.l.b16 %v6199
        %v6946 = vunpack.c.h.b16 %v6199
        %v6947 = vunpack.c.l.b16 %v6200
        %v6948 = vunpack.c.h.b16 %v6200
        %v6949 = vunpack.c.l.b16 %v6201
        %v6950 = vunpack.c.h.b16 %v6201
        %v6951 = vunpack.c.l.b16 %v6202
        %v6952 = vunpack.c.h.b16 %v6202
        %v6953 = vunpack.c.l.b16 %v6203
        %v6954 = vunpack.c.h.b16 %v6203
        %v6955 = vunpack.c.l.b16 %v6204
        %v6956 = vunpack.c.h.b16 %v6204
        %v6957 = vunpack.c.l.b16 %v6205
        %v6958 = vunpack.c.h.b16 %v6205
        %v6959 = vunpack.c.l.b16 %v6206
        %v6960 = vunpack.c.h.b16 %v6206
        %v6961 = vunpack.c.l.b16 %v6207
        %v6962 = vunpack.c.h.b16 %v6207
        %v6963 = vunpack.c.l.b16 %v6208
        %v6964 = vunpack.c.h.b16 %v6208
        %v6965 = vunpack.c.l.b16 %v6209
        %v6966 = vunpack.c.h.b16 %v6209
        %v6967 = vunpack.c.l.b16 %v6210
        %v6968 = vunpack.c.h.b16 %v6210
        %v6969 = vunpack.c.l.b16 %v6211
        %v6970 = vunpack.c.h.b16 %v6211
        %v6971 = vunpack.c.l.b16 %v6212
        %v6972 = vunpack.c.h.b16 %v6212
        %v6973 = vunpack.c.l.b16 %v6213
        %v6974 = vunpack.c.h.b16 %v6213
        %v6975 = vunpack.c.l.b16 %v6214
        %v6976 = vunpack.c.h.b16 %v6214
        %v6977 = vunpack.c.l.b16 %v6215
        %v6978 = vunpack.c.h.b16 %v6215
        %v6979 = vunpack.c.l.b16 %v6216
        %v6980 = vunpack.c.h.b16 %v6216
        %v6981 = vunpack.c.l.b16 %v6217
        %v6982 = vunpack.c.h.b16 %v6217
        %v6983 = vunpack.c.l.b16 %v6218
        %v6984 = vunpack.c.h.b16 %v6218
        %v6985 = vunpack.c.l.b16 %v6219
        %v6986 = vunpack.c.h.b16 %v6219
        %v6987 = vunpack.c.l.b16 %v6220
        %v6988 = vunpack.c.h.b16 %v6220
        %v6989 = vunpack.c.l.b16 %v6221
        %v6990 = vunpack.c.h.b16 %v6221
        %v6991 = vunpack.c.l.b16 %v6222
        %v6992 = vunpack.c.h.b16 %v6222
        %v6993 = vunpack.c.l.b16 %v6223
        %v6994 = vunpack.c.h.b16 %v6223
        %v6995 = vunpack.c.l.b16 %v6224
        %v6996 = vunpack.c.h.b16 %v6224
        %v6997 = vunpack.c.l.b16 %v6225
        %v6998 = vunpack.c.h.b16 %v6225
        %v6999 = vunpack.c.l.b16 %v6226
        %v7000 = vunpack.c.h.b16 %v6226
        %v7001 = vunpack.c.l.b16 %v6227
        %v7002 = vunpack.c.h.b16 %v6227
        %v7003 = vunpack.c.l.b16 %v6228
        %v7004 = vunpack.c.h.b16 %v6228
        %v7005 = vunpack.c.l.b16 %v6229
        %v7006 = vunpack.c.h.b16 %v6229
        %v7007 = vunpack.c.l.b16 %v6230
        %v7008 = vunpack.c.h.b16 %v6230
        %v7009 = vunpack.c.l.b16 %v6231
        %v7010 = vunpack.c.h.b16 %v6231
        %v7011 = vunpack.c.l.b16 %v6232
        %v7012 = vunpack.c.h.b16 %v6232
        %v7013 = vunpack.c.l.b16 %v6233
        %v7014 = vunpack.c.h.b16 %v6233
        %v7015 = vunpack.c.l.b16 %v6234
        %v7016 = vunpack.c.h.b16 %v6234
        %v7017 = vunpack.c.l.b16 %v6235
        %v7018 = vunpack.c.h.b16 %v6235
        %v7019 = vunpack.c.l.b16 %v6236
        %v7020 = vunpack.c.h.b16 %v6236
        %v7021 = vunpack.c.l.b16 %v6237
        %v7022 = vunpack.c.h.b16 %v6237
        %v7023 = vunpack.c.l.b16 %v6238
        %v7024 = vunpack.c.h.b16 %v6238
        %v7025 = vunpack.c.l.b16 %v6239
        %v7026 = vunpack.c.h.b16 %v6239
        %v7027 = vunpack.c.l.b16 %v6240
        %v7028 = vunpack.c.h.b16 %v6240
        %v7029 = vunpack.c.l.b16 %v6241
        %v7030 = vunpack.c.h.b16 %v6241
        %v7031 = vunpack.c.l.b16 %v6242
        %v7032 = vunpack.c.h.b16 %v6242
        %v7033 = vunpack.c.l.b16 %v6243
        %v7034 = vunpack.c.h.b16 %v6243
        %v7035 = vunpack.c.l.b16 %v6244
        %v7036 = vunpack.c.h.b16 %v6244
        %v7037 = vunpack.c.l.b16 %v6245
        %v7038 = vunpack.c.h.b16 %v6245
        %v7039 = vunpack.c.l.b16 %v6246
        %v7040 = vunpack.c.h.b16 %v6246
        %v7041 = vunpack.c.l.b16 %v6247
        %v7042 = vunpack.c.h.b16 %v6247
        %v7043 = vunpack.c.l.b16 %v6248
        %v7044 = vunpack.c.h.b16 %v6248
        %v7045 = vunpack.c.l.b16 %v6249
        %v7046 = vunpack.c.h.b16 %v6249
        %v7047 = vunpack.c.l.b16 %v6250
        %v7048 = vunpack.c.h.b16 %v6250
        %v7049 = vunpack.c.l.b16 %v6251
        %v7050 = vunpack.c.h.b16 %v6251
        %v7051 = vunpack.c.l.b16 %v6252
        %v7052 = vunpack.c.h.b16 %v6252
        %v7053 = vunpack.c.l.b16 %v6253
        %v7054 = vunpack.c.h.b16 %v6253
        %v7055 = vunpack.c.l.b16 %v6254
        %v7056 = vunpack.c.h.b16 %v6254
        %v7057 = vunpack.c.l.b16 %v6255
        %v7058 = vunpack.c.h.b16 %v6255
        %v7059 = vunpack.c.l.b16 %v6256
        %v7060 = vunpack.c.h.b16 %v6256
        %v7061 = vunpack.c.l.b16 %v6257
        %v7062 = vunpack.c.h.b16 %v6257
        %v7063 = vunpack.c.l.b16 %v6258
        %v7064 = vunpack.c.h.b16 %v6258
        %v7065 = vunpack.c.l.b16 %v6259
        %v7066 = vunpack.c.h.b16 %v6259
        %v7067 = vunpack.c.l.b16 %v6260
        %v7068 = vunpack.c.h.b16 %v6260
        %v7069 = vunpack.c.l.b16 %v6261
        %v7070 = vunpack.c.h.b16 %v6261
        %v7071 = vunpack.c.l.b16 %v6262
        %v7072 = vunpack.c.h.b16 %v6262
        %v7073 = vunpack.c.l.b16 %v6263
        %v7074 = vunpack.c.h.b16 %v6263
        %v7075 = vunpack.c.l.b16 %v6264
        %v7076 = vunpack.c.h.b16 %v6264
        %v7077 = vunpack.c.l.b16 %v6265
        %v7078 = vunpack.c.h.b16 %v6265
        %v7079 = vunpack.c.l.b16 %v6266
        %v7080 = vunpack.c.h.b16 %v6266
        %v7081 = vunpack.c.l.b16 %v6267
        %v7082 = vunpack.c.h.b16 %v6267
        %v7083 = vunpack.c.l.b16 %v6268
        %v7084 = vunpack.c.h.b16 %v6268
        %v7085 = vunpack.c.l.b16 %v6269
        %v7086 = vunpack.c.h.b16 %v6269
        %v7087 = vunpack.c.l.b16 %v6270
        %v7088 = vunpack.c.h.b16 %v6270
        %v7089 = vunpack.c.l.b16 %v6271
        %v7090 = vunpack.c.h.b16 %v6271
        %v7091 = vunpack.c.l.b16 %v6272
        %v7092 = vunpack.c.h.b16 %v6272
        %v7093 = vunpack.c.l.b16 %v6273
        %v7094 = vunpack.c.h.b16 %v6273
        %v7095 = vunpack.c.l.b16 %v6274
        %v7096 = vunpack.c.h.b16 %v6274
        %v7097 = vunpack.c.l.b16 %v6275
        %v7098 = vunpack.c.h.b16 %v6275
        %v7099 = vunpack.c.l.b16 %v6276
        %v7100 = vunpack.c.h.b16 %v6276
        %v7101 = vunpack.c.l.b16 %v6277
        %v7102 = vunpack.c.h.b16 %v6277
        %v7103 = vunpack.c.l.b16 %v6278
        %v7104 = vunpack.c.h.b16 %v6278
        %v7105 = vunpack.c.l.b16 %v6279
        %v7106 = vunpack.c.h.b16 %v6279
        %v7107 = vunpack.c.l.b16 %v6280
        %v7108 = vunpack.c.h.b16 %v6280
        %v7109 = vunpack.c.l.b16 %v6281
        %v7110 = vunpack.c.h.b16 %v6281
        %v7111 = vunpack.c.l.b16 %v6282
        %v7112 = vunpack.c.h.b16 %v6282
        %v7113 = vunpack.c.l.b16 %v6283
        %v7114 = vunpack.c.h.b16 %v6283
        %v7115 = vunpack.c.l.b16 %v6284
        %v7116 = vunpack.c.h.b16 %v6284
        %v7117 = vunpack.c.l.b16 %v6285
        %v7118 = vunpack.c.h.b16 %v6285
        %v7119 = vunpack.c.l.b16 %v6286
        %v7120 = vunpack.c.h.b16 %v6286
        %v7121 = vunpack.c.l.b16 %v6287
        %v7122 = vunpack.c.h.b16 %v6287
        %v7123 = vunpack.c.l.b16 %v6288
        %v7124 = vunpack.c.h.b16 %v6288
        %v7125 = vunpack.c.l.b16 %v6289
        %v7126 = vunpack.c.h.b16 %v6289
        %v7127 = vunpack.c.l.b16 %v6290
        %v7128 = vunpack.c.h.b16 %v6290
        %v7129 = vunpack.c.l.b16 %v6291
        %v7130 = vunpack.c.h.b16 %v6291
        %v7131 = vunpack.c.l.b16 %v6292
        %v7132 = vunpack.c.h.b16 %v6292
        %v7133 = vunpack.c.l.b16 %v6293
        %v7134 = vunpack.c.h.b16 %v6293
        %v7135 = vunpack.c.l.b16 %v6294
        %v7136 = vunpack.c.h.b16 %v6294
        %v7137 = vunpack.c.l.b16 %v6295
        %v7138 = vunpack.c.h.b16 %v6295
        %v7139 = vunpack.c.l.b16 %v6296
        %v7140 = vunpack.c.h.b16 %v6296
        %v7141 = vunpack.c.l.b16 %v6297
        %v7142 = vunpack.c.h.b16 %v6297
        %v7143 = vunpack.c.l.b16 %v6298
        %v7144 = vunpack.c.h.b16 %v6298
        %v7145 = vunpack.c.l.b16 %v6299
        %v7146 = vunpack.c.h.b16 %v6299
        %v7147 = vunpack.c.l.b16 %v6300
        %v7148 = vunpack.c.h.b16 %v6300
        %v7149 = vunpack.c.l.b16 %v6301
        %v7150 = vunpack.c.h.b16 %v6301
        %v7151 = vunpack.c.l.b16 %v6302
        %v7152 = vunpack.c.h.b16 %v6302
        %v7153 = vunpack.c.l.b16 %v6303
        %v7154 = vunpack.c.h.b16 %v6303
        %v7155 = vunpack.c.l.b16 %v6304
        %v7156 = vunpack.c.h.b16 %v6304
        %v7157 = vunpack.c.l.b16 %v6305
        %v7158 = vunpack.c.h.b16 %v6305
        %v7159 = vunpack.c.l.b16 %v6306
        %v7160 = vunpack.c.h.b16 %v6306
        %v7161 = vunpack.c.l.b16 %v6307
        %v7162 = vunpack.c.h.b16 %v6307
        %v7163 = vunpack.c.l.b16 %v6308
        %v7164 = vunpack.c.h.b16 %v6308
        %v7165 = vunpack.c.l.b16 %v6309
        %v7166 = vunpack.c.h.b16 %v6309
        %v7167 = vunpack.c.l.b16 %v6310
        %v7168 = vunpack.c.h.b16 %v6310
        %v7169 = vunpack.c.l.b16 %v6311
        %v7170 = vunpack.c.h.b16 %v6311
        %v7171 = vunpack.c.l.b16 %v6312
        %v7172 = vunpack.c.h.b16 %v6312
        %v7173 = vpack.c.b16 %v6665, %v6661
        %v7174 = vpack.c.b16 %v6666, %v6662
        %v7175 = vpack.c.b16 %v6667, %v6663
        %v7176 = vpack.c.b16 %v6668, %v6664
        %v7177 = vpack.c.b16 %v6673, %v6669
        %v7178 = vpack.c.b16 %v6674, %v6670
        %v7179 = vpack.c.b16 %v6675, %v6671
        %v7180 = vpack.c.b16 %v6676, %v6672
        %v7181 = vpack.c.b16 %v6681, %v6677
        %v7182 = vpack.c.b16 %v6682, %v6678
        %v7183 = vpack.c.b16 %v6683, %v6679
        %v7184 = vpack.c.b16 %v6684, %v6680
        %v7185 = vpack.c.b16 %v6689, %v6685
        %v7186 = vpack.c.b16 %v6690, %v6686
        %v7187 = vpack.c.b16 %v6691, %v6687
        %v7188 = vpack.c.b16 %v6692, %v6688
        %v7189 = vpack.c.b16 %v6697, %v6693
        %v7190 = vpack.c.b16 %v6698, %v6694
        %v7191 = vpack.c.b16 %v6699, %v6695
        %v7192 = vpack.c.b16 %v6700, %v6696
        %v7193 = vpack.c.b16 %v6705, %v6701
        %v7194 = vpack.c.b16 %v6706, %v6702
        %v7195 = vpack.c.b16 %v6707, %v6703
        %v7196 = vpack.c.b16 %v6708, %v6704
        %v7197 = vpack.c.b16 %v6713, %v6709
        %v7198 = vpack.c.b16 %v6714, %v6710
        %v7199 = vpack.c.b16 %v6715, %v6711
        %v7200 = vpack.c.b16 %v6716, %v6712
        %v7201 = vpack.c.b16 %v6721, %v6717
        %v7202 = vpack.c.b16 %v6722, %v6718
        %v7203 = vpack.c.b16 %v6723, %v6719
        %v7204 = vpack.c.b16 %v6724, %v6720
        %v7205 = vpack.c.b16 %v6729, %v6725
        %v7206 = vpack.c.b16 %v6730, %v6726
        %v7207 = vpack.c.b16 %v6731, %v6727
        %v7208 = vpack.c.b16 %v6732, %v6728
        %v7209 = vpack.c.b16 %v6737, %v6733
        %v7210 = vpack.c.b16 %v6738, %v6734
        %v7211 = vpack.c.b16 %v6739, %v6735
        %v7212 = vpack.c.b16 %v6740, %v6736
        %v7213 = vpack.c.b16 %v6745, %v6741
        %v7214 = vpack.c.b16 %v6746, %v6742
        %v7215 = vpack.c.b16 %v6747, %v6743
        %v7216 = vpack.c.b16 %v6748, %v6744
        %v7217 = vpack.c.b16 %v6753, %v6749
        %v7218 = vpack.c.b16 %v6754, %v6750
        %v7219 = vpack.c.b16 %v6755, %v6751
        %v7220 = vpack.c.b16 %v6756, %v6752
        %v7221 = vpack.c.b16 %v6761, %v6757
        %v7222 = vpack.c.b16 %v6762, %v6758
        %v7223 = vpack.c.b16 %v6763, %v6759
        %v7224 = vpack.c.b16 %v6764, %v6760
        %v7225 = vpack.c.b16 %v6769, %v6765
        %v7226 = vpack.c.b16 %v6770, %v6766
        %v7227 = vpack.c.b16 %v6771, %v6767
        %v7228 = vpack.c.b16 %v6772, %v6768
        %v7229 = vpack.c.b16 %v6777, %v6773
        %v7230 = vpack.c.b16 %v6778, %v6774
        %v7231 = vpack.c.b16 %v6779, %v6775
        %v7232 = vpack.c.b16 %v6780, %v6776
        %v7233 = vpack.c.b16 %v6785, %v6781
        %v7234 = vpack.c.b16 %v6786, %v6782
        %v7235 = vpack.c.b16 %v6787, %v6783
        %v7236 = vpack.c.b16 %v6788, %v6784
        %v7237 = vpack.c.b16 %v6793, %v6789
        %v7238 = vpack.c.b16 %v6794, %v6790
        %v7239 = vpack.c.b16 %v6795, %v6791
        %v7240 = vpack.c.b16 %v6796, %v6792
        %v7241 = vpack.c.b16 %v6801, %v6797
        %v7242 = vpack.c.b16 %v6802, %v6798
        %v7243 = vpack.c.b16 %v6803, %v6799
        %v7244 = vpack.c.b16 %v6804, %v6800
        %v7245 = vpack.c.b16 %v6809, %v6805
        %v7246 = vpack.c.b16 %v6810, %v6806
        %v7247 = vpack.c.b16 %v6811, %v6807
        %v7248 = vpack.c.b16 %v6812, %v6808
        %v7249 = vpack.c.b16 %v6817, %v6813
        %v7250 = vpack.c.b16 %v6818, %v6814
        %v7251 = vpack.c.b16 %v6819, %v6815
        %v7252 = vpack.c.b16 %v6820, %v6816
        %v7253 = vpack.c.b16 %v6825, %v6821
        %v7254 = vpack.c.b16 %v6826, %v6822
        %v7255 = vpack.c.b16 %v6827, %v6823
        %v7256 = vpack.c.b16 %v6828, %v6824
        %v7257 = vpack.c.b16 %v6833, %v6829
        %v7258 = vpack.c.b16 %v6834, %v6830
        %v7259 = vpack.c.b16 %v6835, %v6831
        %v7260 = vpack.c.b16 %v6836, %v6832
        %v7261 = vpack.c.b16 %v6841, %v6837
        %v7262 = vpack.c.b16 %v6842, %v6838
        %v7263 = vpack.c.b16 %v6843, %v6839
        %v7264 = vpack.c.b16 %v6844, %v6840
        %v7265 = vpack.c.b16 %v6849, %v6845
        %v7266 = vpack.c.b16 %v6850, %v6846
        %v7267 = vpack.c.b16 %v6851, %v6847
        %v7268 = vpack.c.b16 %v6852, %v6848
        %v7269 = vpack.c.b16 %v6857, %v6853
        %v7270 = vpack.c.b16 %v6858, %v6854
        %v7271 = vpack.c.b16 %v6859, %v6855
        %v7272 = vpack.c.b16 %v6860, %v6856
        %v7273 = vpack.c.b16 %v6865, %v6861
        %v7274 = vpack.c.b16 %v6866, %v6862
        %v7275 = vpack.c.b16 %v6867, %v6863
        %v7276 = vpack.c.b16 %v6868, %v6864
        %v7277 = vpack.c.b16 %v6873, %v6869
        %v7278 = vpack.c.b16 %v6874, %v6870
        %v7279 = vpack.c.b16 %v6875, %v6871
        %v7280 = vpack.c.b16 %v6876, %v6872
        %v7281 = vpack.c.b16 %v6881, %v6877
        %v7282 = vpack.c.b16 %v6882, %v6878
        %v7283 = vpack.c.b16 %v6883, %v6879
        %v7284 = vpack.c.b16 %v6884, %v6880
        %v7285 = vpack.c.b16 %v6889, %v6885
        %v7286 = vpack.c.b16 %v6890, %v6886
        %v7287 = vpack.c.b16 %v6891, %v6887
        %v7288 = vpack.c.b16 %v6892, %v6888
        %v7289 = vpack.c.b16 %v6897, %v6893
        %v7290 = vpack.c.b16 %v6898, %v6894
        %v7291 = vpack.c.b16 %v6899, %v6895
        %v7292 = vpack.c.b16 %v6900, %v6896
        %v7293 = vpack.c.b16 %v6905, %v6901
        %v7294 = vpack.c.b16 %v6906, %v6902
        %v7295 = vpack.c.b16 %v6907, %v6903
        %v7296 = vpack.c.b16 %v6908, %v6904
        %v7297 = vpack.c.b16 %v6913, %v6909
        %v7298 = vpack.c.b16 %v6914, %v6910
        %v7299 = vpack.c.b16 %v6915, %v6911
        %v7300 = vpack.c.b16 %v6916, %v6912
        %v7301 = vpack.c.b16 %v6921, %v6917
        %v7302 = vpack.c.b16 %v6922, %v6918
        %v7303 = vpack.c.b16 %v6923, %v6919
        %v7304 = vpack.c.b16 %v6924, %v6920
        %v7305 = vpack.c.b16 %v6929, %v6925
        %v7306 = vpack.c.b16 %v6930, %v6926
        %v7307 = vpack.c.b16 %v6931, %v6927
        %v7308 = vpack.c.b16 %v6932, %v6928
        %v7309 = vpack.c.b16 %v6937, %v6933
        %v7310 = vpack.c.b16 %v6938, %v6934
        %v7311 = vpack.c.b16 %v6939, %v6935
        %v7312 = vpack.c.b16 %v6940, %v6936
        %v7313 = vpack.c.b16 %v6945, %v6941
        %v7314 = vpack.c.b16 %v6946, %v6942
        %v7315 = vpack.c.b16 %v6947, %v6943
        %v7316 = vpack.c.b16 %v6948, %v6944
        %v7317 = vpack.c.b16 %v6953, %v6949
        %v7318 = vpack.c.b16 %v6954, %v6950
        %v7319 = vpack.c.b16 %v6955, %v6951
        %v7320 = vpack.c.b16 %v6956, %v6952
        %v7321 = vpack.c.b16 %v6961, %v6957
        %v7322 = vpack.c.b16 %v6962, %v6958
        %v7323 = vpack.c.b16 %v6963, %v6959
        %v7324 = vpack.c.b16 %v6964, %v6960
        %v7325 = vpack.c.b16 %v6969, %v6965
        %v7326 = vpack.c.b16 %v6970, %v6966
        %v7327 = vpack.c.b16 %v6971, %v6967
        %v7328 = vpack.c.b16 %v6972, %v6968
        %v7329 = vpack.c.b16 %v6977, %v6973
        %v7330 = vpack.c.b16 %v6978, %v6974
        %v7331 = vpack.c.b16 %v6979, %v6975
        %v7332 = vpack.c.b16 %v6980, %v6976
        %v7333 = vpack.c.b16 %v6985, %v6981
        %v7334 = vpack.c.b16 %v6986, %v6982
        %v7335 = vpack.c.b16 %v6987, %v6983
        %v7336 = vpack.c.b16 %v6988, %v6984
        %v7337 = vpack.c.b16 %v6993, %v6989
        %v7338 = vpack.c.b16 %v6994, %v6990
        %v7339 = vpack.c.b16 %v6995, %v6991
        %v7340 = vpack.c.b16 %v6996, %v6992
        %v7341 = vpack.c.b16 %v7001, %v6997
        %v7342 = vpack.c.b16 %v7002, %v6998
        %v7343 = vpack.c.b16 %v7003, %v6999
        %v7344 = vpack.c.b16 %v7004, %v7000
        %v7345 = vpack.c.b16 %v7009, %v7005
        %v7346 = vpack.c.b16 %v7010, %v7006
        %v7347 = vpack.c.b16 %v7011, %v7007
        %v7348 = vpack.c.b16 %v7012, %v7008
        %v7349 = vpack.c.b16 %v7017, %v7013
        %v7350 = vpack.c.b16 %v7018, %v7014
        %v7351 = vpack.c.b16 %v7019, %v7015
        %v7352 = vpack.c.b16 %v7020, %v7016
        %v7353 = vpack.c.b16 %v7025, %v7021
        %v7354 = vpack.c.b16 %v7026, %v7022
        %v7355 = vpack.c.b16 %v7027, %v7023
        %v7356 = vpack.c.b16 %v7028, %v7024
        %v7357 = vpack.c.b16 %v7033, %v7029
        %v7358 = vpack.c.b16 %v7034, %v7030
        %v7359 = vpack.c.b16 %v7035, %v7031
        %v7360 = vpack.c.b16 %v7036, %v7032
        %v7361 = vpack.c.b16 %v7041, %v7037
        %v7362 = vpack.c.b16 %v7042, %v7038
        %v7363 = vpack.c.b16 %v7043, %v7039
        %v7364 = vpack.c.b16 %v7044, %v7040
        %v7365 = vpack.c.b16 %v7049, %v7045
        %v7366 = vpack.c.b16 %v7050, %v7046
        %v7367 = vpack.c.b16 %v7051, %v7047
        %v7368 = vpack.c.b16 %v7052, %v7048
        %v7369 = vpack.c.b16 %v7057, %v7053
        %v7370 = vpack.c.b16 %v7058, %v7054
        %v7371 = vpack.c.b16 %v7059, %v7055
        %v7372 = vpack.c.b16 %v7060, %v7056
        %v7373 = vpack.c.b16 %v7065, %v7061
        %v7374 = vpack.c.b16 %v7066, %v7062
        %v7375 = vpack.c.b16 %v7067, %v7063
        %v7376 = vpack.c.b16 %v7068, %v7064
        %v7377 = vpack.c.b16 %v7073, %v7069
        %v7378 = vpack.c.b16 %v7074, %v7070
        %v7379 = vpack.c.b16 %v7075, %v7071
        %v7380 = vpack.c.b16 %v7076, %v7072
        %v7381 = vpack.c.b16 %v7081, %v7077
        %v7382 = vpack.c.b16 %v7082, %v7078
        %v7383 = vpack.c.b16 %v7083, %v7079
        %v7384 = vpack.c.b16 %v7084, %v7080
        %v7385 = vpack.c.b16 %v7089, %v7085
        %v7386 = vpack.c.b16 %v7090, %v7086
        %v7387 = vpack.c.b16 %v7091, %v7087
        %v7388 = vpack.c.b16 %v7092, %v7088
        %v7389 = vpack.c.b16 %v7097, %v7093
        %v7390 = vpack.c.b16 %v7098, %v7094
        %v7391 = vpack.c.b16 %v7099, %v7095
        %v7392 = vpack.c.b16 %v7100, %v7096
        %v7393 = vpack.c.b16 %v7105, %v7101
        %v7394 = vpack.c.b16 %v7106, %v7102
        %v7395 = vpack.c.b16 %v7107, %v7103
        %v7396 = vpack.c.b16 %v7108, %v7104
        %v7397 = vpack.c.b16 %v7113, %v7109
        %v7398 = vpack.c.b16 %v7114, %v7110
        %v7399 = vpack.c.b16 %v7115, %v7111
        %v7400 = vpack.c.b16 %v7116, %v7112
        %v7401 = vpack.c.b16 %v7121, %v7117
        %v7402 = vpack.c.b16 %v7122, %v7118
        %v7403 = vpack.c.b16 %v7123, %v7119
        %v7404 = vpack.c.b16 %v7124, %v7120
        %v7405 = vpack.c.b16 %v7129, %v7125
        %v7406 = vpack.c.b16 %v7130, %v7126
        %v7407 = vpack.c.b16 %v7131, %v7127
        %v7408 = vpack.c.b16 %v7132, %v7128
        %v7409 = vpack.c.b16 %v7137, %v7133
        %v7410 = vpack.c.b16 %v7138, %v7134
        %v7411 = vpack.c.b16 %v7139, %v7135
        %v7412 = vpack.c.b16 %v7140, %v7136
        %v7413 = vpack.c.b16 %v7145, %v7141
        %v7414 = vpack.c.b16 %v7146, %v7142
        %v7415 = vpack.c.b16 %v7147, %v7143
        %v7416 = vpack.c.b16 %v7148, %v7144
        %v7417 = vpack.c.b16 %v7153, %v7149
        %v7418 = vpack.c.b16 %v7154, %v7150
        %v7419 = vpack.c.b16 %v7155, %v7151
        %v7420 = vpack.c.b16 %v7156, %v7152
        %v7421 = vpack.c.b16 %v7161, %v7157
        %v7422 = vpack.c.b16 %v7162, %v7158
        %v7423 = vpack.c.b16 %v7163, %v7159
        %v7424 = vpack.c.b16 %v7164, %v7160
        %v7425 = vpack.c.b16 %v7169, %v7165
        %v7426 = vpack.c.b16 %v7170, %v7166
        %v7427 = vpack.c.b16 %v7171, %v7167
        %v7428 = vpack.c.b16 %v7172, %v7168
        %7685 = vmatprep.subr.bf16.mxu0 %v7174
        %7686 = vmatpush1.bf16.msra.mxu0 %v7173
        %7687 = vmatprep.subr.bf16.mxu0 %v7178
        %7688 = vmatpush1.bf16.msra.mxu0 %v7177
        %7689 = vmatprep.subr.bf16.mxu0 %v7182
        %7690 = vmatpush1.bf16.msra.mxu0 %v7181
        %7691 = vmatprep.subr.bf16.mxu0 %v7186
        %7692 = vmatpush1.bf16.msra.mxu0 %v7185
        %7693 = vmatprep.subr.bf16.mxu0 %v7190
        %7694 = vmatpush1.bf16.msra.mxu0 %v7189
        %7695 = vmatprep.subr.bf16.mxu0 %v7194
        %7696 = vmatpush1.bf16.msra.mxu0 %v7193
        %7697 = vmatprep.subr.bf16.mxu0 %v7198
        %7698 = vmatpush1.bf16.msra.mxu0 %v7197
        %7699 = vmatprep.subr.bf16.mxu0 %v7202
        %7700 = vmatpush1.bf16.msra.mxu0 %v7201
        %7701 = vmatprep.subr.bf16.mxu0 %v7206
        %7702 = vmatpush1.bf16.msra.mxu0 %v7205
        %7703 = vmatprep.subr.bf16.mxu0 %v7210
        %7704 = vmatpush1.bf16.msra.mxu0 %v7209
        %7705 = vmatprep.subr.bf16.mxu0 %v7214
        %7706 = vmatpush1.bf16.msra.mxu0 %v7213
        %7707 = vmatprep.subr.bf16.mxu0 %v7218
        %7708 = vmatpush1.bf16.msra.mxu0 %v7217
        %7709 = vmatprep.subr.bf16.mxu0 %v7222
        %7710 = vmatpush1.bf16.msra.mxu0 %v7221
        %7711 = vmatprep.subr.bf16.mxu0 %v7226
        %7712 = vmatpush1.bf16.msra.mxu0 %v7225
        %7713 = vmatprep.subr.bf16.mxu0 %v7230
        %7714 = vmatpush1.bf16.msra.mxu0 %v7229
        %7715 = vmatprep.subr.bf16.mxu0 %v7234
        %7716 = vmatpush1.bf16.msra.mxu0 %v7233
        %7717 = vmatprep.mubr.bf16.mxu0 %v6348
        %7718 = vmatmul.mubr.bf16.gmra.mrb[0].mxu0 %v6340
        %v7719 = vpop.f32.mrb[0].mxu0
        %v7720 = vadd.f32 0.0, %v7719
        %v7721 = vpop.f32.mrb[0].mxu0
        %v7722 = vadd.f32 0.0, %v7721
        %v7723 = vpop.f32.mrb[0].mxu0
        %v7724 = vpop.f32.mrb[0].mxu0
        %7725 = vdwg.mxu0
        %7726 = vmatprep.subr.bf16.mxu0 %v7238
        %7727 = vmatpush1.bf16.msra.mxu0 %v7237
        %7728 = vmatprep.subr.bf16.mxu0 %v7242
        %7729 = vmatpush1.bf16.msra.mxu0 %v7241
        %7730 = vmatprep.subr.bf16.mxu0 %v7246
        %7731 = vmatpush1.bf16.msra.mxu0 %v7245
        %7732 = vmatprep.subr.bf16.mxu0 %v7250
        %7733 = vmatpush1.bf16.msra.mxu0 %v7249
        %7734 = vmatprep.subr.bf16.mxu0 %v7254
        %7735 = vmatpush1.bf16.msra.mxu0 %v7253
        %7736 = vmatprep.subr.bf16.mxu0 %v7258
        %7737 = vmatpush1.bf16.msra.mxu0 %v7257
        %7738 = vmatprep.subr.bf16.mxu0 %v7262
        %7739 = vmatpush1.bf16.msra.mxu0 %v7261
        %7740 = vmatprep.subr.bf16.mxu0 %v7266
        %7741 = vmatpush1.bf16.msra.mxu0 %v7265
        %7742 = vmatprep.subr.bf16.mxu0 %v7270
        %7743 = vmatpush1.bf16.msra.mxu0 %v7269
        %7744 = vmatprep.subr.bf16.mxu0 %v7274
        %7745 = vmatpush1.bf16.msra.mxu0 %v7273
        %7746 = vmatprep.subr.bf16.mxu0 %v7278
        %7747 = vmatpush1.bf16.msra.mxu0 %v7277
        %7748 = vmatprep.subr.bf16.mxu0 %v7282
        %7749 = vmatpush1.bf16.msra.mxu0 %v7281
        %7750 = vmatprep.subr.bf16.mxu0 %v7286
        %7751 = vmatpush1.bf16.msra.mxu0 %v7285
        %7752 = vmatprep.subr.bf16.mxu0 %v7290
        %7753 = vmatpush1.bf16.msra.mxu0 %v7289
        %7754 = vmatprep.subr.bf16.mxu0 %v7294
        %7755 = vmatpush1.bf16.msra.mxu0 %v7293
        %7756 = vmatprep.subr.bf16.mxu0 %v7298
        %7757 = vmatpush1.bf16.msra.mxu0 %v7297
        %7758 = vmatprep.mubr.bf16.mxu0 %v6364
        %7759 = vmatmul.mubr.bf16.gmra.mrb[0].mxu0 %v6356
        %v7760 = vpop.f32.mrb[0].mxu0
        %v7761 = vadd.f32 %v7720, %v7760
        %v7762 = vpop.f32.mrb[0].mxu0
        %v7763 = vadd.f32 %v7722, %v7762
        %v7764 = vpop.f32.mrb[0].mxu0
        %v7765 = vpop.f32.mrb[0].mxu0
        %7766 = vdwg.mxu0
        %7767 = vmatprep.subr.bf16.mxu0 %v7302
        %7768 = vmatpush1.bf16.msra.mxu0 %v7301
        %7769 = vmatprep.subr.bf16.mxu0 %v7306
        %7770 = vmatpush1.bf16.msra.mxu0 %v7305
        %7771 = vmatprep.subr.bf16.mxu0 %v7310
        %7772 = vmatpush1.bf16.msra.mxu0 %v7309
        %7773 = vmatprep.subr.bf16.mxu0 %v7314
        %7774 = vmatpush1.bf16.msra.mxu0 %v7313
        %7775 = vmatprep.subr.bf16.mxu0 %v7318
        %7776 = vmatpush1.bf16.msra.mxu0 %v7317
        %7777 = vmatprep.subr.bf16.mxu0 %v7322
        %7778 = vmatpush1.bf16.msra.mxu0 %v7321
        %7779 = vmatprep.subr.bf16.mxu0 %v7326
        %7780 = vmatpush1.bf16.msra.mxu0 %v7325
        %7781 = vmatprep.subr.bf16.mxu0 %v7330
        %7782 = vmatpush1.bf16.msra.mxu0 %v7329
        %7783 = vmatprep.subr.bf16.mxu0 %v7334
        %7784 = vmatpush1.bf16.msra.mxu0 %v7333
        %7785 = vmatprep.subr.bf16.mxu0 %v7338
        %7786 = vmatpush1.bf16.msra.mxu0 %v7337
        %7787 = vmatprep.subr.bf16.mxu0 %v7342
        %7788 = vmatpush1.bf16.msra.mxu0 %v7341
        %7789 = vmatprep.subr.bf16.mxu0 %v7346
        %7790 = vmatpush1.bf16.msra.mxu0 %v7345
        %7791 = vmatprep.subr.bf16.mxu0 %v7350
        %7792 = vmatpush1.bf16.msra.mxu0 %v7349
        %7793 = vmatprep.subr.bf16.mxu0 %v7354
        %7794 = vmatpush1.bf16.msra.mxu0 %v7353
        %7795 = vmatprep.subr.bf16.mxu0 %v7358
        %7796 = vmatpush1.bf16.msra.mxu0 %v7357
        %7797 = vmatprep.subr.bf16.mxu0 %v7362
        %7798 = vmatpush1.bf16.msra.mxu0 %v7361
        %7799 = vmatprep.mubr.bf16.mxu0 %v6380
        %7800 = vmatmul.mubr.bf16.gmra.mrb[0].mxu0 %v6372
        %v7801 = vpop.f32.mrb[0].mxu0
        %v7802 = vadd.f32 %v7761, %v7801
        %v7803 = vpop.f32.mrb[0].mxu0
        %v7804 = vadd.f32 %v7763, %v7803
        %v7805 = vpop.f32.mrb[0].mxu0
        %v7806 = vpop.f32.mrb[0].mxu0
        %7807 = vdwg.mxu0
        %7808 = vmatprep.subr.bf16.mxu0 %v7366
        %7809 = vmatpush1.bf16.msra.mxu0 %v7365
        %7810 = vmatprep.subr.bf16.mxu0 %v7370
        %7811 = vmatpush1.bf16.msra.mxu0 %v7369
        %7812 = vmatprep.subr.bf16.mxu0 %v7374
        %7813 = vmatpush1.bf16.msra.mxu0 %v7373
        %7814 = vmatprep.subr.bf16.mxu0 %v7378
        %7815 = vmatpush1.bf16.msra.mxu0 %v7377
        %7816 = vmatprep.subr.bf16.mxu0 %v7382
        %7817 = vmatpush1.bf16.msra.mxu0 %v7381
        %7818 = vmatprep.subr.bf16.mxu0 %v7386
        %7819 = vmatpush1.bf16.msra.mxu0 %v7385
        %7820 = vmatprep.subr.bf16.mxu0 %v7390
        %7821 = vmatpush1.bf16.msra.mxu0 %v7389
        %7822 = vmatprep.subr.bf16.mxu0 %v7394
        %7823 = vmatpush1.bf16.msra.mxu0 %v7393
        %7824 = vmatprep.subr.bf16.mxu0 %v7398
        %7825 = vmatpush1.bf16.msra.mxu0 %v7397
        %7826 = vmatprep.subr.bf16.mxu0 %v7402
        %7827 = vmatpush1.bf16.msra.mxu0 %v7401
        %7828 = vmatprep.subr.bf16.mxu0 %v7406
        %7829 = vmatpush1.bf16.msra.mxu0 %v7405
        %7830 = vmatprep.subr.bf16.mxu0 %v7410
        %7831 = vmatpush1.bf16.msra.mxu0 %v7409
        %7832 = vmatprep.subr.bf16.mxu0 %v7414
        %7833 = vmatpush1.bf16.msra.mxu0 %v7413
        %7834 = vmatprep.subr.bf16.mxu0 %v7418
        %7835 = vmatpush1.bf16.msra.mxu0 %v7417
        %7836 = vmatprep.subr.bf16.mxu0 %v7422
        %7837 = vmatpush1.bf16.msra.mxu0 %v7421
        %7838 = vmatprep.subr.bf16.mxu0 %v7426
        %7839 = vmatpush1.bf16.msra.mxu0 %v7425
        %7840 = vmatprep.mubr.bf16.mxu0 %v6396
        %7841 = vmatmul.mubr.bf16.gmra.mrb[0].mxu0 %v6388
        %v7842 = vpop.f32.mrb[0].mxu0
        %v7843 = vadd.f32 %v7802, %v7842
        %v7844 = vpop.f32.mrb[0].mxu0
        %v7845 = vadd.f32 %v7804, %v7844
        %v7846 = vpop.f32.mrb[0].mxu0
        %v7847 = vpop.f32.mrb[0].mxu0
        %7848 = vdwg.mxu0
        %7849 = vmatprep.subr.bf16.mxu0 %v7176
        %7850 = vmatpush1.bf16.msra.mxu0 %v7175
        %7851 = vmatprep.subr.bf16.mxu0 %v7180
        %7852 = vmatpush1.bf16.msra.mxu0 %v7179
        %7853 = vmatprep.subr.bf16.mxu0 %v7184
        %7854 = vmatpush1.bf16.msra.mxu0 %v7183
        %7855 = vmatprep.subr.bf16.mxu0 %v7188
        %7856 = vmatpush1.bf16.msra.mxu0 %v7187
        %7857 = vmatprep.subr.bf16.mxu0 %v7192
        %7858 = vmatpush1.bf16.msra.mxu0 %v7191
        %7859 = vmatprep.subr.bf16.mxu0 %v7196
        %7860 = vmatpush1.bf16.msra.mxu0 %v7195
        %7861 = vmatprep.subr.bf16.mxu0 %v7200
        %7862 = vmatpush1.bf16.msra.mxu0 %v7199
        %7863 = vmatprep.subr.bf16.mxu0 %v7204
        %7864 = vmatpush1.bf16.msra.mxu0 %v7203
        %7865 = vmatprep.subr.bf16.mxu0 %v7208
        %7866 = vmatpush1.bf16.msra.mxu0 %v7207
        %7867 = vmatprep.subr.bf16.mxu0 %v7212
        %7868 = vmatpush1.bf16.msra.mxu0 %v7211
        %7869 = vmatprep.subr.bf16.mxu0 %v7216
        %7870 = vmatpush1.bf16.msra.mxu0 %v7215
        %7871 = vmatprep.subr.bf16.mxu0 %v7220
        %7872 = vmatpush1.bf16.msra.mxu0 %v7219
        %7873 = vmatprep.subr.bf16.mxu0 %v7224
        %7874 = vmatpush1.bf16.msra.mxu0 %v7223
        %7875 = vmatprep.subr.bf16.mxu0 %v7228
        %7876 = vmatpush1.bf16.msra.mxu0 %v7227
        %7877 = vmatprep.subr.bf16.mxu0 %v7232
        %7878 = vmatpush1.bf16.msra.mxu0 %v7231
        %7879 = vmatprep.subr.bf16.mxu0 %v7236
        %7880 = vmatpush1.bf16.msra.mxu0 %v7235
        %7881 = vmatprep.mubr.bf16.mxu0 %v6348
        %7882 = vmatmul.mubr.bf16.gmra.mrb[0].mxu0 %v6340
        %v7883 = vpop.f32.mrb[0].mxu0
        %v7884 = vadd.f32 0.0, %v7883
        %v7885 = vpop.f32.mrb[0].mxu0
        %v7886 = vadd.f32 0.0, %v7885
        %v7887 = vpop.f32.mrb[0].mxu0
        %v7888 = vpop.f32.mrb[0].mxu0
        %7889 = vdwg.mxu0
        %7890 = vmatprep.subr.bf16.mxu0 %v7240
        %7891 = vmatpush1.bf16.msra.mxu0 %v7239
        %7892 = vmatprep.subr.bf16.mxu0 %v7244
        %7893 = vmatpush1.bf16.msra.mxu0 %v7243
        %7894 = vmatprep.subr.bf16.mxu0 %v7248
        %7895 = vmatpush1.bf16.msra.mxu0 %v7247
        %7896 = vmatprep.subr.bf16.mxu0 %v7252
        %7897 = vmatpush1.bf16.msra.mxu0 %v7251
        %7898 = vmatprep.subr.bf16.mxu0 %v7256
        %7899 = vmatpush1.bf16.msra.mxu0 %v7255
        %7900 = vmatprep.subr.bf16.mxu0 %v7260
        %7901 = vmatpush1.bf16.msra.mxu0 %v7259
        %7902 = vmatprep.subr.bf16.mxu0 %v7264
        %7903 = vmatpush1.bf16.msra.mxu0 %v7263
        %7904 = vmatprep.subr.bf16.mxu0 %v7268
        %7905 = vmatpush1.bf16.msra.mxu0 %v7267
        %7906 = vmatprep.subr.bf16.mxu0 %v7272
        %7907 = vmatpush1.bf16.msra.mxu0 %v7271
        %7908 = vmatprep.subr.bf16.mxu0 %v7276
        %7909 = vmatpush1.bf16.msra.mxu0 %v7275
        %7910 = vmatprep.subr.bf16.mxu0 %v7280
        %7911 = vmatpush1.bf16.msra.mxu0 %v7279
        %7912 = vmatprep.subr.bf16.mxu0 %v7284
        %7913 = vmatpush1.bf16.msra.mxu0 %v7283
        %7914 = vmatprep.subr.bf16.mxu0 %v7288
        %7915 = vmatpush1.bf16.msra.mxu0 %v7287
        %7916 = vmatprep.subr.bf16.mxu0 %v7292
        %7917 = vmatpush1.bf16.msra.mxu0 %v7291
        %7918 = vmatprep.subr.bf16.mxu0 %v7296
        %7919 = vmatpush1.bf16.msra.mxu0 %v7295
        %7920 = vmatprep.subr.bf16.mxu0 %v7300
        %7921 = vmatpush1.bf16.msra.mxu0 %v7299
        %7922 = vmatprep.mubr.bf16.mxu0 %v6364
        %7923 = vmatmul.mubr.bf16.gmra.mrb[0].mxu0 %v6356
        %v7924 = vpop.f32.mrb[0].mxu0
        %v7925 = vadd.f32 %v7884, %v7924
        %v7926 = vpop.f32.mrb[0].mxu0
        %v7927 = vadd.f32 %v7886, %v7926
        %v7928 = vpop.f32.mrb[0].mxu0
        %v7929 = vpop.f32.mrb[0].mxu0
        %7930 = vdwg.mxu0
        %7931 = vmatprep.subr.bf16.mxu0 %v7304
        %7932 = vmatpush1.bf16.msra.mxu0 %v7303
        %7933 = vmatprep.subr.bf16.mxu0 %v7308
        %7934 = vmatpush1.bf16.msra.mxu0 %v7307
        %7935 = vmatprep.subr.bf16.mxu0 %v7312
        %7936 = vmatpush1.bf16.msra.mxu0 %v7311
        %7937 = vmatprep.subr.bf16.mxu0 %v7316
        %7938 = vmatpush1.bf16.msra.mxu0 %v7315
        %7939 = vmatprep.subr.bf16.mxu0 %v7320
        %7940 = vmatpush1.bf16.msra.mxu0 %v7319
        %7941 = vmatprep.subr.bf16.mxu0 %v7324
        %7942 = vmatpush1.bf16.msra.mxu0 %v7323
        %7943 = vmatprep.subr.bf16.mxu0 %v7328
        %7944 = vmatpush1.bf16.msra.mxu0 %v7327
        %7945 = vmatprep.subr.bf16.mxu0 %v7332
        %7946 = vmatpush1.bf16.msra.mxu0 %v7331
        %7947 = vmatprep.subr.bf16.mxu0 %v7336
        %7948 = vmatpush1.bf16.msra.mxu0 %v7335
        %7949 = vmatprep.subr.bf16.mxu0 %v7340
        %7950 = vmatpush1.bf16.msra.mxu0 %v7339
        %7951 = vmatprep.subr.bf16.mxu0 %v7344
        %7952 = vmatpush1.bf16.msra.mxu0 %v7343
        %7953 = vmatprep.subr.bf16.mxu0 %v7348
        %7954 = vmatpush1.bf16.msra.mxu0 %v7347
        %7955 = vmatprep.subr.bf16.mxu0 %v7352
        %7956 = vmatpush1.bf16.msra.mxu0 %v7351
        %7957 = vmatprep.subr.bf16.mxu0 %v7356
        %7958 = vmatpush1.bf16.msra.mxu0 %v7355
        %7959 = vmatprep.subr.bf16.mxu0 %v7360
        %7960 = vmatpush1.bf16.msra.mxu0 %v7359
        %7961 = vmatprep.subr.bf16.mxu0 %v7364
        %7962 = vmatpush1.bf16.msra.mxu0 %v7363
        %7963 = vmatprep.mubr.bf16.mxu0 %v6380
        %7964 = vmatmul.mubr.bf16.gmra.mrb[0].mxu0 %v6372
        %v7965 = vpop.f32.mrb[0].mxu0
        %v7966 = vadd.f32 %v7925, %v7965
        %v7967 = vpop.f32.mrb[0].mxu0
        %v7968 = vadd.f32 %v7927, %v7967
        %v7969 = vpop.f32.mrb[0].mxu0
        %v7970 = vpop.f32.mrb[0].mxu0
        %7971 = vdwg.mxu0
        %7972 = vmatprep.subr.bf16.mxu0 %v7368
        %7973 = vmatpush1.bf16.msra.mxu0 %v7367
        %7974 = vmatprep.subr.bf16.mxu0 %v7372
        %7975 = vmatpush1.bf16.msra.mxu0 %v7371
        %7976 = vmatprep.subr.bf16.mxu0 %v7376
        %7977 = vmatpush1.bf16.msra.mxu0 %v7375
        %7978 = vmatprep.subr.bf16.mxu0 %v7380
        %7979 = vmatpush1.bf16.msra.mxu0 %v7379
        %7980 = vmatprep.subr.bf16.mxu0 %v7384
        %7981 = vmatpush1.bf16.msra.mxu0 %v7383
        %7982 = vmatprep.subr.bf16.mxu0 %v7388
        %7983 = vmatpush1.bf16.msra.mxu0 %v7387
        %7984 = vmatprep.subr.bf16.mxu0 %v7392
        %7985 = vmatpush1.bf16.msra.mxu0 %v7391
        %7986 = vmatprep.subr.bf16.mxu0 %v7396
        %7987 = vmatpush1.bf16.msra.mxu0 %v7395
        %7988 = vmatprep.subr.bf16.mxu0 %v7400
        %7989 = vmatpush1.bf16.msra.mxu0 %v7399
        %7990 = vmatprep.subr.bf16.mxu0 %v7404
        %7991 = vmatpush1.bf16.msra.mxu0 %v7403
        %7992 = vmatprep.subr.bf16.mxu0 %v7408
        %7993 = vmatpush1.bf16.msra.mxu0 %v7407
        %7994 = vmatprep.subr.bf16.mxu0 %v7412
        %7995 = vmatpush1.bf16.msra.mxu0 %v7411
        %7996 = vmatprep.subr.bf16.mxu0 %v7416
        %7997 = vmatpush1.bf16.msra.mxu0 %v7415
        %7998 = vmatprep.subr.bf16.mxu0 %v7420
        %7999 = vmatpush1.bf16.msra.mxu0 %v7419
        %8000 = vmatprep.subr.bf16.mxu0 %v7424
        %8001 = vmatpush1.bf16.msra.mxu0 %v7423
        %8002 = vmatprep.subr.bf16.mxu0 %v7428
        %8003 = vmatpush1.bf16.msra.mxu0 %v7427
        %8004 = vmatprep.mubr.bf16.mxu0 %v6396
        %8005 = vmatmul.mubr.bf16.gmra.mrb[0].mxu0 %v6388
        %v8006 = vpop.f32.mrb[0].mxu0
        %v8007 = vadd.f32 %v7966, %v8006
        %v8008 = vpop.f32.mrb[0].mxu0
        %v8009 = vadd.f32 %v7968, %v8008
        %v8010 = vpop.f32.mrb[0].mxu0
        %v8011 = vpop.f32.mrb[0].mxu0
        %8012 = vdwg.mxu0
        %v8013 = vadd.f32 %v6048, %v7843
        %v8014 = vadd.f32 %v6049, %v7845
        %v8015 = vadd.f32 %v6050, %v8007
        %v8016 = vadd.f32 %v6051, %v8009
        %v8017 = vld [vmem:[#allocation5] sm:$0xf]
        %v8019 = vlaneseq
        %v8020 = vshrl.u32 %v8019, 7
        %v8021 = vsub.s32 0, %v8020
        %v8022 = vrot.slane %v8017, %v8021
        %v8023 = vlaneseq
        %v8024 = vshrl.u32 %v8023, 7
        %v8025 = vsub.s32 1, %v8024
        %v8026 = vrot.slane %v8017, %v8025
        %v8027 = vlaneseq
        %v8028 = vshrl.u32 %v8027, 7
        %v8029 = vsub.s32 2, %v8028
        %v8030 = vrot.slane %v8017, %v8029
        %v8031 = vlaneseq
        %v8032 = vshrl.u32 %v8031, 7
        %v8033 = vsub.s32 3, %v8032
        %v8034 = vrot.slane %v8017, %v8033
        %v8039 = vadd.f32 %v8013, %v8022
        %v8040 = vadd.f32 %v8014, %v8026
        %v8041 = vadd.f32 %v8015, %v8030
        %v8042 = vadd.f32 %v8016, %v8034
        %v8043 = vtanh.pop %v8039
        %v8044 = vtanh.pop %v8040
        %v8045 = vtanh.pop %v8041
        %v8046 = vtanh.pop %v8042
        %p8047 = scmp.eq.s32.totalorder %s24, 0
        // Predicated region
        $region57: #{disc_forward.7} parent=39 // pred_check
          %p8048 = pneg %p8047
        $region58: #{disc_forward.7} parent=39 // pred_check_branch
          %8050 = sbr.rel (%p8048) target = $region60
        $region59: #{disc_forward.7} parent=39 // pred_region
          %v8051 = vlaneseq
          %vm8052 = vcmp.ge.s32.totalorder %v8051, 0
          %vm8053 = vcmp.lt.s32.totalorder %v8051, 512
          %vm8054 = vmand %vm8052, %vm8053
          %8055 = vst.msk [vmem:[#allocation2] sm:$0xf] %vm8054, 0.0
        $region60: #{disc_forward.7} parent=39 // pred_fallthru
          _
        %v8056 = vld [vmem:[#allocation2] sm:$0xf]
        %v8057 = vld [vmem:[#allocation7] sm:$0xff]
        %v8059 = vcombine.high %v8057, %v8057
        %v8061 = vunpack.c.l.s4 1983009808
        %v8062 = vunpack.c.0.s8 %v8061
        %v8063 = vlaneseq
        %v8064 = vshrl.u32 %v8063, 7
        %v8065 = vsub.s32 %v8062, %v8064
        %v8066 = vrot.slane %v8057, %v8065
        %v8068 = vunpack.c.l.s4 1983009808
        %v8069 = vunpack.c.0.s8 %v8068
        %v8070 = vlaneseq
        %v8071 = vshrl.u32 %v8070, 7
        %v8072 = vsub.s32 %v8069, %v8071
        %v8073 = vrot.slane %v8059, %v8072
        %v8074 = vcombine.high %v8066, %v8066
        %v8075 = vcombine.high %v8073, %v8073
        %v8080 = vmul.f32 %v8043, %v8066
        %v8081 = vmul.f32 %v8044, %v8074
        %v8082 = vmul.f32 %v8045, %v8073
        %v8083 = vmul.f32 %v8046, %v8075
        %vm8084 = vcmask 1041408
        %v8085 = vsel %vm8084, %v8080, 0.0
        %v8086 = vrot.slane %v8085, 4
        %v8087 = vadd.f32 %v8085, %v8086
        %v8088 = vrot.slane %v8087, 2
        %v8089 = vadd.f32 %v8087, %v8088
        %v8090 = vrot.slane %v8089, 1
        %v8091 = vadd.f32 %v8089, %v8090
        %v8092 = vsel %vm8084, %v8081, 0.0
        %v8093 = vrot.slane %v8092, 4
        %v8094 = vadd.f32 %v8092, %v8093
        %v8095 = vrot.slane %v8094, 2
        %v8096 = vadd.f32 %v8094, %v8095
        %v8097 = vrot.slane %v8096, 1
        %v8098 = vadd.f32 %v8096, %v8097
        %v8099 = vsel %vm8084, %v8082, 0.0
        %v8100 = vrot.slane %v8099, 4
        %v8101 = vadd.f32 %v8099, %v8100
        %v8102 = vrot.slane %v8101, 2
        %v8103 = vadd.f32 %v8101, %v8102
        %v8104 = vrot.slane %v8103, 1
        %v8105 = vadd.f32 %v8103, %v8104
        %v8106 = vsel %vm8084, %v8083, 0.0
        %v8107 = vrot.slane %v8106, 4
        %v8108 = vadd.f32 %v8106, %v8107
        %v8109 = vrot.slane %v8108, 2
        %v8110 = vadd.f32 %v8108, %v8109
        %v8111 = vrot.slane %v8110, 1
        %v8112 = vadd.f32 %v8110, %v8111
        %v8117 = vcombine.low %v8091, %v8098
        %v8118 = vcombine.low %v8105, %v8112
        %v8120 = vunpack.c.l.s4 1966171168
        %v8121 = vunpack.c.0.s8 %v8120
        %v8122 = vlaneseq
        %v8123 = vshrl.u32 %v8122, 7
        %v8124 = vsub.s32 %v8121, %v8123
        %v8125 = vrot.slane %v8117, %v8124
        %v8127 = vunpack.c.l.s4 1966171168
        %v8128 = vunpack.c.0.s8 %v8127
        %v8129 = vlaneseq
        %v8130 = vshrl.u32 %v8129, 7
        %v8131 = vsub.s32 %v8128, %v8130
        %v8132 = vrot.slane %v8118, %v8131
        %v8133 = vcombine.low %v8125, %v8132
        %v8135 = vunpack.c.l.s4 1966171168
        %v8136 = vunpack.c.0.s8 %v8135
        %v8137 = vlaneseq
        %v8138 = vshrl.u32 %v8137, 7
        %v8139 = vsub.s32 %v8136, %v8138
        %v8140 = vrot.slane %v8133, %v8139
        %v8142 = vadd.f32 %v8056, %v8140
        %v8143 = vlaneseq
        %vm8144 = vcmp.ge.s32.totalorder %v8143, 0
        %vm8145 = vcmp.lt.s32.totalorder %v8143, 512
        %vm8146 = vmand %vm8144, %vm8145
        %8147 = vst.msk [vmem:[#allocation2] sm:$0xf] %vm8146, %v8142
        // Predicated region
        $region61: #{disc_forward.7} parent=39 // pred_check
          %p8148 = pneg %p8047
        $region62: #{disc_forward.7} parent=39 // pred_check_branch
          %8150 = sbr.rel (%p8148) target = $region64
        $region63: #{disc_forward.7} parent=39 // pred_region
          %v8151 = vld [vmem:[#allocation2] sm:$0xf]
          %v8153 = vlaneseq
          %v8154 = vshrl.u32 %v8153, 7
          %v8155 = vsub.s32 0, %v8154
          %v8156 = vrot.slane %v8151, %v8155
          %v8157 = vlaneseq
          %v8158 = vshrl.u32 %v8157, 7
          %v8159 = vsub.s32 1, %v8158
          %v8160 = vrot.slane %v8151, %v8159
          %v8161 = vlaneseq
          %v8162 = vshrl.u32 %v8161, 7
          %v8163 = vsub.s32 2, %v8162
          %v8164 = vrot.slane %v8151, %v8163
          %v8165 = vlaneseq
          %v8166 = vshrl.u32 %v8165, 7
          %v8167 = vsub.s32 3, %v8166
          %v8168 = vrot.slane %v8151, %v8167
          %vm8173 = vcmask 1040384
          %v8174 = vsel %vm8173, %v8156, 0.0
          %v8175 = vsel %vm8173, %v8160, 0.0
          %v8176 = vadd.f32 %v8174, %v8175
          %v8177 = vsel %vm8173, %v8164, 0.0
          %v8178 = vadd.f32 %v8176, %v8177
          %v8179 = vsel %vm8173, %v8168, 0.0
          %v8180 = vadd.f32 %v8178, %v8179
          %8181 = vadd.xlane.f32.xlu0 %v8180
          %v8182 = vpop.xlane.xlu0 %8181
          %v8183 = vrot.slane %v8182, 4
          %v8184 = vadd.f32 %v8182, %v8183
          %v8185 = vrot.slane %v8184, 2
          %v8186 = vadd.f32 %v8184, %v8185
          %v8187 = vrot.slane %v8186, 1
          %v8188 = vadd.f32 %v8186, %v8187
          %s8189 = vtos %v8188
          %v8190 = vld [vmem:[#allocation8] sm:$0x1]
          %v8191 = vstv %s8189
          %v8192 = vadd.f32 %v8191, %v8190
          %v8193 = vmax.f32 %v8192, 0.0
          %8194 = vst [vmem:[%s293] sm:$0x1] %v8193
        $region64: #{disc_forward.7} parent=39 // pred_fallthru
          _
        %p8195 = scmp.lt.s32.totalorder %s23, 1
        %s8196 = scalar_select %p8195, %s23, 1
        %s8197 = scalar_lea.vmem %s5, %s8196
        // Predicated region
        $region65: #{disc_forward.7} parent=39 // pred_check
          %p8198 = pneg %p164
        $region66: #{disc_forward.7} parent=39 // pred_check_branch
          %8200 = sbr.rel (%p8198) target = $region68
        $region67: #{disc_forward.7} parent=39 // pred_region
          _
        $region68: #{disc_forward.7} parent=39 // pred_fallthru
          _
      $region40: #{disc_forward.7} parent=5 // pred_fallthru
        _
      %p8201 = scmp.le.s32.totalorder 2, %s14
      // Predicated region
      $region69: #{disc_forward.7} parent=5 // pred_check
        %p8202 = pneg %p8201
      $region70: #{disc_forward.7} parent=5 // pred_check_branch
        %8204 = sbr.rel (%p8202) target = $region72
      $region71: #{disc_forward.7} parent=5 // pred_region
        %s8205 = ssub.s32 %s14, 2
        // Predicated region
        $region73: #{disc_forward.7} parent=71 // pred_check
          %p8206 = pneg %p170
        $region74: #{disc_forward.7} parent=71 // pred_check_branch
          %8208 = sbr.rel (%p8206) target = $region76
        $region75: #{disc_forward.7} parent=71 // pred_region
          %p8209 = scmp.lt.s32.totalorder %s25, 1
          %s8210 = scalar_select %p8209, %s25, 1
          %s8211 = scalar_lea.vmem %s5, %s8210
        $region76: #{disc_forward.7} parent=71 // pred_fallthru
          _
      $region72: #{disc_forward.7} parent=5 // pred_fallthru
        _
    $region6: #{disc_forward.7} parent=1 // loop_footer
      %s18 = sadd.s32 1, %s14
    $region7: #{disc_forward.7} parent=1 // loop_footer_branch
      %13 = sbr.rel target = $region3
    $region8: #{disc_forward.7} parent=1 // loop_exit
      _
    %8212 = vsyncpa [#allocation4], 1
    %s8213 = scalar_lea.sflag [#allocation4], 1
    %8214 = vsyncpa %s8213, 1
    %8215 = vsyncpa [#allocation6], 1
    %8216 = vsyncpa [#allocation9], 1

</llo_original>
